<compile_context>
chip_gen: v6e
topology: v6e:2x2x1
jax: 0.10.0
libtpu: 0.0.40
codegen_flags: <defaults>
</compile_context>

<pallas_src>
import jax
import jax.numpy as jnp
from jax.experimental import pallas as pl
from jax.experimental.pallas import tpu as pltpu

D_IN = 48 * 48   # 2304 (= 18 * 128, lane-dense)
H = 20 * 20      # 400 (logical hidden size)
H_PAD = 512      # padded hidden size (multiple of 128)
TM_MAX = 256     # max batch tile


def _round_up(n, m):
    return ((n + m - 1) // m) * m


def _autoencoder_kernel(x_ref, w1_ref, b1_ref, w2_ref, b2_ref, o_ref):
    # encoder: (TM, D_IN)bf16 @ (D_IN, H_PAD)bf16 -> f32 accumulate
    h = jnp.dot(x_ref[...], w1_ref[...], preferred_element_type=jnp.float32)
    h = h + b1_ref[...]                      # bias add in f32
    # decoder: (TM, H_PAD)bf16 @ (H_PAD, D_IN)bf16 -> f32 accumulate
    y = jnp.dot(h.astype(jnp.bfloat16), w2_ref[...],
                preferred_element_type=jnp.float32)
    y = y + b2_ref[...]                      # bias add in f32
    o_ref[...] = jnp.tanh(y)                 # F.tanh, f32 epilogue (safe on v5e too)


def prepare_params(w1_t, b1, w2_t, b2):
    """Pad hidden dim 400->512 and cast weights to bf16 for the MXU.

    w1_t: (D_IN, H) f32, b1: (1, H) f32, w2_t: (H, D_IN) f32, b2: (1, D_IN) f32.
    Zero-padded hidden lanes contribute exactly 0 to the decoder output.
    """
    w1_p = jnp.zeros((D_IN, H_PAD), jnp.float32).at[:, :H].set(w1_t)
    b1_p = jnp.zeros((1, H_PAD), jnp.float32).at[:, :H].set(b1)
    w2_p = jnp.zeros((H_PAD, D_IN), jnp.float32).at[:H, :].set(w2_t)
    return (w1_p.astype(jnp.bfloat16), b1_p,
            w2_p.astype(jnp.bfloat16), b2.astype(jnp.float32))


def auto_encoder_forward(x, w1_bf, b1_p, w2_bf, b2):
    """x: (B, C, H, W) float32 with C*H*W == 2304; returns (B, 1, 48, 48) float32."""
    B = x.shape[0]
    x_flat = x.reshape(B, -1)
    assert x_flat.shape[1] == D_IN, f"expected {D_IN} flat features, got {x_flat.shape[1]}"

    # Batch tile: multiple of 8, capped at TM_MAX; pad B up to a multiple of it.
    tm = TM_MAX if B >= TM_MAX else _round_up(B, 8)
    b_pad = _round_up(B, tm)
    x_p = jnp.zeros((b_pad, D_IN), jnp.bfloat16).at[:B, :].set(
        x_flat.astype(jnp.bfloat16))

    grid = (b_pad // tm,)

    out_flat = pl.pallas_call(
        _autoencoder_kernel,
        out_shape=jax.ShapeDtypeStruct((b_pad, D_IN), jnp.float32),
        grid_spec=pltpu.PrefetchScalarGridSpec(
            num_scalar_prefetch=0,
            grid=grid,
            in_specs=[
                pl.BlockSpec((tm, D_IN), lambda i: (i, 0)),      # x tile (pipelined)
                pl.BlockSpec((D_IN, H_PAD), lambda i: (0, 0)),   # encoder weight^T (resident)
                pl.BlockSpec((1, H_PAD), lambda i: (0, 0)),      # encoder bias (resident)
                pl.BlockSpec((H_PAD, D_IN), lambda i: (0, 0)),   # decoder weight^T (resident)
                pl.BlockSpec((1, D_IN), lambda i: (0, 0)),       # decoder bias (resident)
            ],
            out_specs=pl.BlockSpec((tm, D_IN), lambda i: (i, 0)),
        ),
        compiler_params=pltpu.CompilerParams(
            dimension_semantics=("parallel",),     # shard batch across TCs on v7x
            vmem_limit_bytes=48 << 20,             # headroom under v7x 64 MiB
        ),
    )(x_p, w1_bf, b1_p, w2_bf, b2)

    return out_flat[:B].reshape(B, 1, 48, 48)


def init_params(key):
    """Deterministic init matching nn.Linear shapes (stored pre-transposed, f32)."""
    k1, k2, k3, k4 = jax.random.split(key, 4)
    # nn.Linear(D_in, H): weight (H, D_in), bias (H,)  -> store weight.T: (D_in, H)
    lim1 = 1.0 / (D_IN ** 0.5)
    w1_t = jax.random.uniform(k1, (D_IN, H), jnp.float32, -lim1, lim1)
    b1 = jax.random.uniform(k2, (1, H), jnp.float32, -lim1, lim1)
    # nn.Linear(H, D_in): weight (D_in, H), bias (D_in,) -> store weight.T: (H, D_in)
    lim2 = 1.0 / (H ** 0.5)
    w2_t = jax.random.uniform(k3, (H, D_IN), jnp.float32, -lim2, lim2)
    b2 = jax.random.uniform(k4, (1, D_IN), jnp.float32, -lim2, lim2)
    return w1_t, b1, w2_t, b2


if __name__ == "__main__":
    key = jax.random.PRNGKey(0)
    k_x, k_p = jax.random.split(key)

    # Small batch; spatial size is fixed by the module (48x48 flattened = 2304).
    B = 2
    x = jax.random.normal(k_x, (B, 1, 48, 48), jnp.float32)
    w1_t, b1, w2_t, b2 = init_params(k_p)
    params_dev = prepare_params(w1_t, b1, w2_t, b2)

    out = auto_encoder_forward(x, *params_dev)
    out = jax.block_until_ready(out)

    # Sanity check against plain-JAX f32 reference of the same math.
    # Matmul operands are bf16 in the kernel (f32 accumulation), so use a
    # tolerance appropriate to bf16 input quantization.
    ref = jnp.tanh((x.reshape(B, -1) @ w1_t + b1) @ w2_t + b2).reshape(B, 1, 48, 48)
    assert out.shape == (B, 1, 48, 48)
    assert jnp.allclose(out, ref, atol=2e-2, rtol=2e-2), float(jnp.max(jnp.abs(out - ref)))

    print("KERNEL_OK")
</pallas_src>

<mosaic_0001>
module attributes {stable_mosaic.version = 11 : i64} {
  func.func @_autoencoder_kernel(%arg0: i32, %arg1: memref<8x2304xbf16, #tpu.memory_space<vmem>>, %arg2: memref<2304x512xbf16, #tpu.memory_space<vmem>>, %arg3: memref<1x512xf32, #tpu.memory_space<vmem>>, %arg4: memref<512x2304xbf16, #tpu.memory_space<vmem>>, %arg5: memref<1x2304xf32, #tpu.memory_space<vmem>>, %arg6: memref<8x2304xf32, #tpu.memory_space<vmem>>) attributes {dimension_semantics = [#tpu.dimension_semantics<parallel>], iteration_bounds = array<i64: 1>, scalar_prefetch = 0 : i64, scratch_operands = 0 : i64, tpu.core_type = #tpu.core_type<tc>, window_params = [{transform_indices = @transform_0, window_bounds = array<i64: 8, 2304>}, {pipeline_mode = #tpu.pipeline_mode<synchronous>, transform_indices = @transform_1, window_bounds = array<i64: 2304, 512>}, {pipeline_mode = #tpu.pipeline_mode<synchronous>, transform_indices = @transform_2, window_bounds = array<i64: 1, 512>}, {pipeline_mode = #tpu.pipeline_mode<synchronous>, transform_indices = @transform_3, window_bounds = array<i64: 512, 2304>}, {pipeline_mode = #tpu.pipeline_mode<synchronous>, transform_indices = @transform_4, window_bounds = array<i64: 1, 2304>}, {transform_indices = @transform_5, window_bounds = array<i64: 8, 2304>}]} {
    %c0 = arith.constant 0 : index
    %c0_0 = arith.constant 0 : index
    %0 = vector.load %arg1[%c0, %c0_0] : memref<8x2304xbf16, #tpu.memory_space<vmem>>, vector<8x2304xbf16>
    %c0_1 = arith.constant 0 : index
    %c0_2 = arith.constant 0 : index
    %1 = vector.load %arg2[%c0_1, %c0_2] : memref<2304x512xbf16, #tpu.memory_space<vmem>>, vector<2304x512xbf16>
    %cst = arith.constant dense<0.000000e+00> : vector<8x512xf32>
    %2 = tpu.matmul %0, %1, %cst {dimension_numbers = #tpu.dot_dimension_numbers<[1], [0], [0], [1], [0, 0, 1, 1], [], []>} : vector<8x2304xbf16>, vector<2304x512xbf16>, vector<8x512xf32> -> vector<8x512xf32>
    %c0_3 = arith.constant 0 : index
    %c0_4 = arith.constant 0 : index
    %3 = vector.load %arg3[%c0_3, %c0_4] : memref<1x512xf32, #tpu.memory_space<vmem>>, vector<1x512xf32>
    %4 = vector.broadcast %3 : vector<1x512xf32> to vector<8x512xf32>
    %5 = arith.addf %2, %4 : vector<8x512xf32>
    %6 = arith.truncf %5 : vector<8x512xf32> to vector<8x512xbf16>
    %c0_5 = arith.constant 0 : index
    %c0_6 = arith.constant 0 : index
    %7 = vector.load %arg4[%c0_5, %c0_6] : memref<512x2304xbf16, #tpu.memory_space<vmem>>, vector<512x2304xbf16>
    %cst_7 = arith.constant dense<0.000000e+00> : vector<8x2304xf32>
    %8 = tpu.matmul %6, %7, %cst_7 {dimension_numbers = #tpu.dot_dimension_numbers<[1], [0], [0], [1], [0, 0, 1, 1], [], []>} : vector<8x512xbf16>, vector<512x2304xbf16>, vector<8x2304xf32> -> vector<8x2304xf32>
    %c0_8 = arith.constant 0 : index
    %c0_9 = arith.constant 0 : index
    %9 = vector.load %arg5[%c0_8, %c0_9] : memref<1x2304xf32, #tpu.memory_space<vmem>>, vector<1x2304xf32>
    %10 = vector.broadcast %9 : vector<1x2304xf32> to vector<8x2304xf32>
    %11 = arith.addf %8, %10 : vector<8x2304xf32>
    %12 = math.tanh %11 : vector<8x2304xf32>
    %c0_10 = arith.constant 0 : index
    %c0_11 = arith.constant 0 : index
    %13 = vector.load %arg6[%c0_10, %c0_11] : memref<8x2304xf32, #tpu.memory_space<vmem>>, vector<8x2304xf32>
    tpu.vector_store %arg6[%c0_10, %c0_11], %12 {strides = array<i32>} : memref<8x2304xf32, #tpu.memory_space<vmem>>, vector<8x2304xf32>,
    return
  }
  func.func @transform_0(%arg0: i32) -> (i32, i32) {
    %c0_i32 = arith.constant 0 : i32
    %c0_i32_0 = arith.constant 0 : i32
    return %arg0, %c0_i32 : i32, i32
  }
  func.func @transform_1(%arg0: i32) -> (i32, i32) {
    %c0_i32 = arith.constant 0 : i32
    %c0_i32_0 = arith.constant 0 : i32
    %c0_i32_1 = arith.constant 0 : i32
    return %c0_i32, %c0_i32_0 : i32, i32
  }
  func.func @transform_2(%arg0: i32) -> (i32, i32) {
    %c0_i32 = arith.constant 0 : i32
    %c0_i32_0 = arith.constant 0 : i32
    %c0_i32_1 = arith.constant 0 : i32
    return %c0_i32, %c0_i32_0 : i32, i32
  }
  func.func @transform_3(%arg0: i32) -> (i32, i32) {
    %c0_i32 = arith.constant 0 : i32
    %c0_i32_0 = arith.constant 0 : i32
    %c0_i32_1 = arith.constant 0 : i32
    return %c0_i32, %c0_i32_0 : i32, i32
  }
  func.func @transform_4(%arg0: i32) -> (i32, i32) {
    %c0_i32 = arith.constant 0 : i32
    %c0_i32_0 = arith.constant 0 : i32
    %c0_i32_1 = arith.constant 0 : i32
    return %c0_i32, %c0_i32_0 : i32, i32
  }
  func.func @transform_5(%arg0: i32) -> (i32, i32) {
    %c0_i32 = arith.constant 0 : i32
    %c0_i32_0 = arith.constant 0 : i32
    return %arg0, %c0_i32 : i32, i32
  }
}

</mosaic_0001>

<llo_original>
// kernel: tpu_custom_call.1
$region0: #{tpu_custom_call.1}
  #allocation0 [shape = 'u32[]', space=smem, size = 0x4, offset = 0x4, fixed_abs, tag = 'smem constant byte address 0x4 - core index']
  #allocation1 [shape = 'u32[144,128]{1,0:T(1,128)}', space=vmem, size = 0x12000, scoped, tag = 'internal scratch']
  %s0 = inlined_call_operand.hbm [shape: bf16[8,2304], index: 0, kind: input, shape index: {}]
  %s1 = inlined_call_operand.hbm [shape: bf16[2304,512], index: 1, kind: input, shape index: {}]
  %s2 = inlined_call_operand.hbm [shape: f32[1,512], index: 2, kind: input, shape index: {}]
  %s3 = inlined_call_operand.hbm [shape: bf16[512,2304], index: 3, kind: input, shape index: {}]
  %s4 = inlined_call_operand.hbm [shape: f32[1,2304], index: 4, kind: input, shape index: {}]
  %s5 = inlined_call_operand.hbm [shape: f32[8,2304], index: 5, kind: output, shape index: {}]
  %s6 = sld [smem:[#allocation0]]
  $region50: #{tpu_custom_call.1} parent=0
    _
  %s8 = ssub.s32 1, %s6
  %s9 = scalar_select 0, %s8, %s6
  $region1: #{tpu_custom_call.1} parent=0
    #allocation2 [shape = 'u8[36864]{0}', space=vmem, size = 0x9000, scoped, tag = 'input window, operand 0, single buffered']
    #allocation3 [shape = 's32[1]{0}', space=sflag, size = 0x4, scoped, tag = 'scoped memory for tpu_custom_call.1']
    #allocation4 [shape = 's32[1]{0}', space=sflag, size = 0x4, scoped, tag = 'scoped memory for tpu_custom_call.1']
    #allocation5 [shape = 'u8[2359296]{0}', space=vmem, size = 0x240000, scoped, tag = 'input window, operand 1, single buffered']
    #allocation6 [shape = 's32[1]{0}', space=sflag, size = 0x4, scoped, tag = 'scoped memory for tpu_custom_call.1']
    #allocation7 [shape = 'u8[2048]{0}', space=vmem, size = 0x800, scoped, tag = 'input window, operand 2, single buffered']
    #allocation8 [shape = 'u8[2359296]{0}', space=vmem, size = 0x240000, scoped, tag = 'input window, operand 3, single buffered']
    #allocation9 [shape = 's32[1]{0}', space=sflag, size = 0x4, scoped, tag = 'scoped memory for tpu_custom_call.1']
    #allocation10 [shape = 'u8[9216]{0}', space=vmem, size = 0x2400, scoped, tag = 'input window, operand 4, single buffered']
    #allocation11 [shape = 'u8[73728]{0}', space=vmem, size = 0x12000, scoped, tag = 'output window, operand 0, single buffered']
    %10 = vsyncpa [#allocation3], 0
    %11 = vsyncpa [#allocation6], 0
    %12 = vsyncpa [#allocation9], 0
    %13 = vsyncpa [#allocation4], 0
    // Predicated region
    $region2: #{tpu_custom_call.1} parent=1 // pred_check
      _
    $region3: #{tpu_custom_call.1} parent=1 // pred_check_branch
      %15 = sbr.rel (0) target = $region5
    $region4: #{tpu_custom_call.1} parent=1 // pred_region
      %s17 = ssub.s32 1152, 1152
      %18 = vsyncadd [#allocation3], %s17
      %s20 = sshll.u32 [#allocation2], 4
      %s21 = int_to_ptr.vmem [resolvable:$true] %s20
      %23 = dma.hbm_to_vmem [thread:$0]  %s0, 1152, %s21, [#allocation3]
    $region5: #{tpu_custom_call.1} parent=1 // pred_fallthru
      _
    // Predicated region
    $region6: #{tpu_custom_call.1} parent=1 // pred_check
      _
    $region7: #{tpu_custom_call.1} parent=1 // pred_check_branch
      %25 = sbr.rel (0) target = $region9
    $region8: #{tpu_custom_call.1} parent=1 // pred_region
      %s27 = ssub.s32 73728, 73728
      %28 = vsyncadd [#allocation6], %s27
      %s29 = sshll.u32 [#allocation5], 4
      %s30 = int_to_ptr.vmem [resolvable:$true] %s29
      %35 = dma.hbm_to_vmem [thread:$0]  %s1, 73728, %s30, [#allocation6], 256, 256, 16
    $region9: #{tpu_custom_call.1} parent=1 // pred_fallthru
      _
    // Predicated region
    $region10: #{tpu_custom_call.1} parent=1 // pred_check
      _
    $region11: #{tpu_custom_call.1} parent=1 // pred_check_branch
      %37 = sbr.rel (0) target = $region13
    $region12: #{tpu_custom_call.1} parent=1 // pred_region
      %s39 = ssub.s32 64, 64
      %40 = vsyncadd [#allocation6], %s39
      %s42 = sshll.u32 [#allocation7], 4
      %s43 = int_to_ptr.vmem [resolvable:$true] %s42
      %45 = dma.hbm_to_vmem [thread:$0]  %s2, 64, %s43, [#allocation6]
    $region13: #{tpu_custom_call.1} parent=1 // pred_fallthru
      _
    // Predicated region
    $region14: #{tpu_custom_call.1} parent=1 // pred_check
      _
    $region15: #{tpu_custom_call.1} parent=1 // pred_check_branch
      %47 = sbr.rel (0) target = $region17
    $region16: #{tpu_custom_call.1} parent=1 // pred_region
      %s49 = ssub.s32 73728, 73728
      %50 = vsyncadd [#allocation9], %s49
      %s51 = sshll.u32 [#allocation8], 4
      %s52 = int_to_ptr.vmem [resolvable:$true] %s51
      %57 = dma.hbm_to_vmem [thread:$0]  %s3, 73728, %s52, [#allocation9], 1152, 1152, 72
    $region17: #{tpu_custom_call.1} parent=1 // pred_fallthru
      _
    // Predicated region
    $region18: #{tpu_custom_call.1} parent=1 // pred_check
      _
    $region19: #{tpu_custom_call.1} parent=1 // pred_check_branch
      %59 = sbr.rel (0) target = $region21
    $region20: #{tpu_custom_call.1} parent=1 // pred_region
      %s61 = ssub.s32 288, 288
      %62 = vsyncadd [#allocation9], %s61
      %s64 = sshll.u32 [#allocation10], 4
      %s65 = int_to_ptr.vmem [resolvable:$true] %s64
      %67 = dma.hbm_to_vmem [thread:$0]  %s4, 288, %s65, [#allocation9]
    $region21: #{tpu_custom_call.1} parent=1 // pred_fallthru
      _
    // Predicated region
    $region22: #{tpu_custom_call.1} parent=1 // pred_check
      _
    $region23: #{tpu_custom_call.1} parent=1 // pred_check_branch
      %69 = sbr.rel (0) target = $region25
    $region24: #{tpu_custom_call.1} parent=1 // pred_region
      %70 = dma.done [#allocation3], 1152
    $region25: #{tpu_custom_call.1} parent=1 // pred_fallthru
      _
    // Predicated region
    $region26: #{tpu_custom_call.1} parent=1 // pred_check
      _
    $region27: #{tpu_custom_call.1} parent=1 // pred_check_branch
      %72 = sbr.rel (0) target = $region29
    $region28: #{tpu_custom_call.1} parent=1 // pred_region
      %73 = dma.done [#allocation6], 73728
    $region29: #{tpu_custom_call.1} parent=1 // pred_fallthru
      _
    // Predicated region
    $region30: #{tpu_custom_call.1} parent=1 // pred_check
      _
    $region31: #{tpu_custom_call.1} parent=1 // pred_check_branch
      %75 = sbr.rel (0) target = $region33
    $region32: #{tpu_custom_call.1} parent=1 // pred_region
      %76 = dma.done [#allocation6], 64
    $region33: #{tpu_custom_call.1} parent=1 // pred_fallthru
      _
    // Predicated region
    $region34: #{tpu_custom_call.1} parent=1 // pred_check
      _
    $region35: #{tpu_custom_call.1} parent=1 // pred_check_branch
      %78 = sbr.rel (0) target = $region37
    $region36: #{tpu_custom_call.1} parent=1 // pred_region
      %79 = dma.done [#allocation9], 73728
    $region37: #{tpu_custom_call.1} parent=1 // pred_fallthru
      _
    // Predicated region
    $region38: #{tpu_custom_call.1} parent=1 // pred_check
      _
    $region39: #{tpu_custom_call.1} parent=1 // pred_check_branch
      %81 = sbr.rel (0) target = $region41
    $region40: #{tpu_custom_call.1} parent=1 // pred_region
      %82 = dma.done [#allocation9], 288
    $region41: #{tpu_custom_call.1} parent=1 // pred_fallthru
      _
    %v83 = vld [vmem:[#allocation2] sm:$0xff]
    %v84 = vld [vmem:[#allocation2 + $0x8] sm:$0xff]
    %v85 = vld [vmem:[#allocation2 + $0x10] sm:$0xff]
    %v86 = vld [vmem:[#allocation2 + $0x18] sm:$0xff]
    %v87 = vld [vmem:[#allocation2 + $0x20] sm:$0xff]
    %v88 = vld [vmem:[#allocation2 + $0x28] sm:$0xff]
    %v89 = vld [vmem:[#allocation2 + $0x30] sm:$0xff]
    %v90 = vld [vmem:[#allocation2 + $0x38] sm:$0xff]
    %v91 = vld [vmem:[#allocation2 + $0x40] sm:$0xff]
    %v92 = vld [vmem:[#allocation5] sm:$0xff]
    %v93 = vld [vmem:[#allocation5 + $0x8] sm:$0xff]
    %v94 = vld [vmem:[#allocation5 + $0x10] sm:$0xff]
    %v95 = vld [vmem:[#allocation5 + $0x18] sm:$0xff]
    %v96 = vld [vmem:[#allocation5 + $0x20] sm:$0xff]
    %v97 = vld [vmem:[#allocation5 + $0x28] sm:$0xff]
    %v98 = vld [vmem:[#allocation5 + $0x30] sm:$0xff]
    %v99 = vld [vmem:[#allocation5 + $0x38] sm:$0xff]
    %v100 = vld [vmem:[#allocation5 + $0x40] sm:$0xff]
    %v101 = vld [vmem:[#allocation5 + $0x48] sm:$0xff]
    %v102 = vld [vmem:[#allocation5 + $0x50] sm:$0xff]
    %v103 = vld [vmem:[#allocation5 + $0x58] sm:$0xff]
    %v104 = vld [vmem:[#allocation5 + $0x60] sm:$0xff]
    %v105 = vld [vmem:[#allocation5 + $0x68] sm:$0xff]
    %v106 = vld [vmem:[#allocation5 + $0x70] sm:$0xff]
    %v107 = vld [vmem:[#allocation5 + $0x78] sm:$0xff]
    %v108 = vld [vmem:[#allocation5 + $0x80] sm:$0xff]
    %v109 = vld [vmem:[#allocation5 + $0x88] sm:$0xff]
    %v110 = vld [vmem:[#allocation5 + $0x90] sm:$0xff]
    %v111 = vld [vmem:[#allocation5 + $0x98] sm:$0xff]
    %v112 = vld [vmem:[#allocation5 + $0xa0] sm:$0xff]
    %v113 = vld [vmem:[#allocation5 + $0xa8] sm:$0xff]
    %v114 = vld [vmem:[#allocation5 + $0xb0] sm:$0xff]
    %v115 = vld [vmem:[#allocation5 + $0xb8] sm:$0xff]
    %v116 = vld [vmem:[#allocation5 + $0xc0] sm:$0xff]
    %v117 = vld [vmem:[#allocation5 + $0xc8] sm:$0xff]
    %v118 = vld [vmem:[#allocation5 + $0xd0] sm:$0xff]
    %v119 = vld [vmem:[#allocation5 + $0xd8] sm:$0xff]
    %v120 = vld [vmem:[#allocation5 + $0xe0] sm:$0xff]
    %v121 = vld [vmem:[#allocation5 + $0xe8] sm:$0xff]
    %v122 = vld [vmem:[#allocation5 + $0xf0] sm:$0xff]
    %v123 = vld [vmem:[#allocation5 + $0xf8] sm:$0xff]
    %v124 = vld [vmem:[#allocation5 + $0x100] sm:$0xff]
    %v125 = vld [vmem:[#allocation5 + $0x108] sm:$0xff]
    %v126 = vld [vmem:[#allocation5 + $0x110] sm:$0xff]
    %v127 = vld [vmem:[#allocation5 + $0x118] sm:$0xff]
    %v128 = vld [vmem:[#allocation5 + $0x120] sm:$0xff]
    %v129 = vld [vmem:[#allocation5 + $0x128] sm:$0xff]
    %v130 = vld [vmem:[#allocation5 + $0x130] sm:$0xff]
    %v131 = vld [vmem:[#allocation5 + $0x138] sm:$0xff]
    %v132 = vld [vmem:[#allocation5 + $0x140] sm:$0xff]
    %v133 = vld [vmem:[#allocation5 + $0x148] sm:$0xff]
    %v134 = vld [vmem:[#allocation5 + $0x150] sm:$0xff]
    %v135 = vld [vmem:[#allocation5 + $0x158] sm:$0xff]
    %v136 = vld [vmem:[#allocation5 + $0x160] sm:$0xff]
    %v137 = vld [vmem:[#allocation5 + $0x168] sm:$0xff]
    %v138 = vld [vmem:[#allocation5 + $0x170] sm:$0xff]
    %v139 = vld [vmem:[#allocation5 + $0x178] sm:$0xff]
    %v140 = vld [vmem:[#allocation5 + $0x180] sm:$0xff]
    %v141 = vld [vmem:[#allocation5 + $0x188] sm:$0xff]
    %v142 = vld [vmem:[#allocation5 + $0x190] sm:$0xff]
    %v143 = vld [vmem:[#allocation5 + $0x198] sm:$0xff]
    %v144 = vld [vmem:[#allocation5 + $0x1a0] sm:$0xff]
    %v145 = vld [vmem:[#allocation5 + $0x1a8] sm:$0xff]
    %v146 = vld [vmem:[#allocation5 + $0x1b0] sm:$0xff]
    %v147 = vld [vmem:[#allocation5 + $0x1b8] sm:$0xff]
    %v148 = vld [vmem:[#allocation5 + $0x1c0] sm:$0xff]
    %v149 = vld [vmem:[#allocation5 + $0x1c8] sm:$0xff]
    %v150 = vld [vmem:[#allocation5 + $0x1d0] sm:$0xff]
    %v151 = vld [vmem:[#allocation5 + $0x1d8] sm:$0xff]
    %v152 = vld [vmem:[#allocation5 + $0x1e0] sm:$0xff]
    %v153 = vld [vmem:[#allocation5 + $0x1e8] sm:$0xff]
    %v154 = vld [vmem:[#allocation5 + $0x1f0] sm:$0xff]
    %v155 = vld [vmem:[#allocation5 + $0x1f8] sm:$0xff]
    %v156 = vld [vmem:[#allocation5 + $0x200] sm:$0xff]
    %v157 = vld [vmem:[#allocation5 + $0x208] sm:$0xff]
    %v158 = vld [vmem:[#allocation5 + $0x210] sm:$0xff]
    %v159 = vld [vmem:[#allocation5 + $0x218] sm:$0xff]
    %v160 = vld [vmem:[#allocation5 + $0x220] sm:$0xff]
    %v161 = vld [vmem:[#allocation5 + $0x228] sm:$0xff]
    %v162 = vld [vmem:[#allocation5 + $0x230] sm:$0xff]
    %v163 = vld [vmem:[#allocation5 + $0x238] sm:$0xff]
    %v164 = vld [vmem:[#allocation5 + $0x240] sm:$0xff]
    %v165 = vld [vmem:[#allocation5 + $0x248] sm:$0xff]
    %v166 = vld [vmem:[#allocation5 + $0x250] sm:$0xff]
    %v167 = vld [vmem:[#allocation5 + $0x258] sm:$0xff]
    %v168 = vld [vmem:[#allocation5 + $0x260] sm:$0xff]
    %v169 = vld [vmem:[#allocation5 + $0x268] sm:$0xff]
    %v170 = vld [vmem:[#allocation5 + $0x270] sm:$0xff]
    %v171 = vld [vmem:[#allocation5 + $0x278] sm:$0xff]
    %v172 = vld [vmem:[#allocation5 + $0x280] sm:$0xff]
    %v173 = vld [vmem:[#allocation5 + $0x288] sm:$0xff]
    %v174 = vld [vmem:[#allocation5 + $0x290] sm:$0xff]
    %v175 = vld [vmem:[#allocation5 + $0x298] sm:$0xff]
    %v176 = vld [vmem:[#allocation5 + $0x2a0] sm:$0xff]
    %v177 = vld [vmem:[#allocation5 + $0x2a8] sm:$0xff]
    %v178 = vld [vmem:[#allocation5 + $0x2b0] sm:$0xff]
    %v179 = vld [vmem:[#allocation5 + $0x2b8] sm:$0xff]
    %v180 = vld [vmem:[#allocation5 + $0x2c0] sm:$0xff]
    %v181 = vld [vmem:[#allocation5 + $0x2c8] sm:$0xff]
    %v182 = vld [vmem:[#allocation5 + $0x2d0] sm:$0xff]
    %v183 = vld [vmem:[#allocation5 + $0x2d8] sm:$0xff]
    %v184 = vld [vmem:[#allocation5 + $0x2e0] sm:$0xff]
    %v185 = vld [vmem:[#allocation5 + $0x2e8] sm:$0xff]
    %v186 = vld [vmem:[#allocation5 + $0x2f0] sm:$0xff]
    %v187 = vld [vmem:[#allocation5 + $0x2f8] sm:$0xff]
    %v188 = vld [vmem:[#allocation5 + $0x300] sm:$0xff]
    %v189 = vld [vmem:[#allocation5 + $0x308] sm:$0xff]
    %v190 = vld [vmem:[#allocation5 + $0x310] sm:$0xff]
    %v191 = vld [vmem:[#allocation5 + $0x318] sm:$0xff]
    %v192 = vld [vmem:[#allocation5 + $0x320] sm:$0xff]
    %v193 = vld [vmem:[#allocation5 + $0x328] sm:$0xff]
    %v194 = vld [vmem:[#allocation5 + $0x330] sm:$0xff]
    %v195 = vld [vmem:[#allocation5 + $0x338] sm:$0xff]
    %v196 = vld [vmem:[#allocation5 + $0x340] sm:$0xff]
    %v197 = vld [vmem:[#allocation5 + $0x348] sm:$0xff]
    %v198 = vld [vmem:[#allocation5 + $0x350] sm:$0xff]
    %v199 = vld [vmem:[#allocation5 + $0x358] sm:$0xff]
    %v200 = vld [vmem:[#allocation5 + $0x360] sm:$0xff]
    %v201 = vld [vmem:[#allocation5 + $0x368] sm:$0xff]
    %v202 = vld [vmem:[#allocation5 + $0x370] sm:$0xff]
    %v203 = vld [vmem:[#allocation5 + $0x378] sm:$0xff]
    %v204 = vld [vmem:[#allocation5 + $0x380] sm:$0xff]
    %v205 = vld [vmem:[#allocation5 + $0x388] sm:$0xff]
    %v206 = vld [vmem:[#allocation5 + $0x390] sm:$0xff]
    %v207 = vld [vmem:[#allocation5 + $0x398] sm:$0xff]
    %v208 = vld [vmem:[#allocation5 + $0x3a0] sm:$0xff]
    %v209 = vld [vmem:[#allocation5 + $0x3a8] sm:$0xff]
    %v210 = vld [vmem:[#allocation5 + $0x3b0] sm:$0xff]
    %v211 = vld [vmem:[#allocation5 + $0x3b8] sm:$0xff]
    %v212 = vld [vmem:[#allocation5 + $0x3c0] sm:$0xff]
    %v213 = vld [vmem:[#allocation5 + $0x3c8] sm:$0xff]
    %v214 = vld [vmem:[#allocation5 + $0x3d0] sm:$0xff]
    %v215 = vld [vmem:[#allocation5 + $0x3d8] sm:$0xff]
    %v216 = vld [vmem:[#allocation5 + $0x3e0] sm:$0xff]
    %v217 = vld [vmem:[#allocation5 + $0x3e8] sm:$0xff]
    %v218 = vld [vmem:[#allocation5 + $0x3f0] sm:$0xff]
    %v219 = vld [vmem:[#allocation5 + $0x3f8] sm:$0xff]
    %v220 = vld [vmem:[#allocation5 + $0x400] sm:$0xff]
    %v221 = vld [vmem:[#allocation5 + $0x408] sm:$0xff]
    %v222 = vld [vmem:[#allocation5 + $0x410] sm:$0xff]
    %v223 = vld [vmem:[#allocation5 + $0x418] sm:$0xff]
    %v224 = vld [vmem:[#allocation5 + $0x420] sm:$0xff]
    %v225 = vld [vmem:[#allocation5 + $0x428] sm:$0xff]
    %v226 = vld [vmem:[#allocation5 + $0x430] sm:$0xff]
    %v227 = vld [vmem:[#allocation5 + $0x438] sm:$0xff]
    %v228 = vld [vmem:[#allocation5 + $0x440] sm:$0xff]
    %v229 = vld [vmem:[#allocation5 + $0x448] sm:$0xff]
    %v230 = vld [vmem:[#allocation5 + $0x450] sm:$0xff]
    %v231 = vld [vmem:[#allocation5 + $0x458] sm:$0xff]
    %v232 = vld [vmem:[#allocation5 + $0x460] sm:$0xff]
    %v233 = vld [vmem:[#allocation5 + $0x468] sm:$0xff]
    %v234 = vld [vmem:[#allocation5 + $0x470] sm:$0xff]
    %v235 = vld [vmem:[#allocation5 + $0x478] sm:$0xff]
    %v236 = vld [vmem:[#allocation5 + $0x480] sm:$0xff]
    %v237 = vld [vmem:[#allocation5 + $0x488] sm:$0xff]
    %v238 = vld [vmem:[#allocation5 + $0x490] sm:$0xff]
    %v239 = vld [vmem:[#allocation5 + $0x498] sm:$0xff]
    %v240 = vld [vmem:[#allocation5 + $0x4a0] sm:$0xff]
    %v241 = vld [vmem:[#allocation5 + $0x4a8] sm:$0xff]
    %v242 = vld [vmem:[#allocation5 + $0x4b0] sm:$0xff]
    %v243 = vld [vmem:[#allocation5 + $0x4b8] sm:$0xff]
    %v244 = vld [vmem:[#allocation5 + $0x4c0] sm:$0xff]
    %v245 = vld [vmem:[#allocation5 + $0x4c8] sm:$0xff]
    %v246 = vld [vmem:[#allocation5 + $0x4d0] sm:$0xff]
    %v247 = vld [vmem:[#allocation5 + $0x4d8] sm:$0xff]
    %v248 = vld [vmem:[#allocation5 + $0x4e0] sm:$0xff]
    %v249 = vld [vmem:[#allocation5 + $0x4e8] sm:$0xff]
    %v250 = vld [vmem:[#allocation5 + $0x4f0] sm:$0xff]
    %v251 = vld [vmem:[#allocation5 + $0x4f8] sm:$0xff]
    %v252 = vld [vmem:[#allocation5 + $0x500] sm:$0xff]
    %v253 = vld [vmem:[#allocation5 + $0x508] sm:$0xff]
    %v254 = vld [vmem:[#allocation5 + $0x510] sm:$0xff]
    %v255 = vld [vmem:[#allocation5 + $0x518] sm:$0xff]
    %v256 = vld [vmem:[#allocation5 + $0x520] sm:$0xff]
    %v257 = vld [vmem:[#allocation5 + $0x528] sm:$0xff]
    %v258 = vld [vmem:[#allocation5 + $0x530] sm:$0xff]
    %v259 = vld [vmem:[#allocation5 + $0x538] sm:$0xff]
    %v260 = vld [vmem:[#allocation5 + $0x540] sm:$0xff]
    %v261 = vld [vmem:[#allocation5 + $0x548] sm:$0xff]
    %v262 = vld [vmem:[#allocation5 + $0x550] sm:$0xff]
    %v263 = vld [vmem:[#allocation5 + $0x558] sm:$0xff]
    %v264 = vld [vmem:[#allocation5 + $0x560] sm:$0xff]
    %v265 = vld [vmem:[#allocation5 + $0x568] sm:$0xff]
    %v266 = vld [vmem:[#allocation5 + $0x570] sm:$0xff]
    %v267 = vld [vmem:[#allocation5 + $0x578] sm:$0xff]
    %v268 = vld [vmem:[#allocation5 + $0x580] sm:$0xff]
    %v269 = vld [vmem:[#allocation5 + $0x588] sm:$0xff]
    %v270 = vld [vmem:[#allocation5 + $0x590] sm:$0xff]
    %v271 = vld [vmem:[#allocation5 + $0x598] sm:$0xff]
    %v272 = vld [vmem:[#allocation5 + $0x5a0] sm:$0xff]
    %v273 = vld [vmem:[#allocation5 + $0x5a8] sm:$0xff]
    %v274 = vld [vmem:[#allocation5 + $0x5b0] sm:$0xff]
    %v275 = vld [vmem:[#allocation5 + $0x5b8] sm:$0xff]
    %v276 = vld [vmem:[#allocation5 + $0x5c0] sm:$0xff]
    %v277 = vld [vmem:[#allocation5 + $0x5c8] sm:$0xff]
    %v278 = vld [vmem:[#allocation5 + $0x5d0] sm:$0xff]
    %v279 = vld [vmem:[#allocation5 + $0x5d8] sm:$0xff]
    %v280 = vld [vmem:[#allocation5 + $0x5e0] sm:$0xff]
    %v281 = vld [vmem:[#allocation5 + $0x5e8] sm:$0xff]
    %v282 = vld [vmem:[#allocation5 + $0x5f0] sm:$0xff]
    %v283 = vld [vmem:[#allocation5 + $0x5f8] sm:$0xff]
    %v284 = vld [vmem:[#allocation5 + $0x600] sm:$0xff]
    %v285 = vld [vmem:[#allocation5 + $0x608] sm:$0xff]
    %v286 = vld [vmem:[#allocation5 + $0x610] sm:$0xff]
    %v287 = vld [vmem:[#allocation5 + $0x618] sm:$0xff]
    %v288 = vld [vmem:[#allocation5 + $0x620] sm:$0xff]
    %v289 = vld [vmem:[#allocation5 + $0x628] sm:$0xff]
    %v290 = vld [vmem:[#allocation5 + $0x630] sm:$0xff]
    %v291 = vld [vmem:[#allocation5 + $0x638] sm:$0xff]
    %v292 = vld [vmem:[#allocation5 + $0x640] sm:$0xff]
    %v293 = vld [vmem:[#allocation5 + $0x648] sm:$0xff]
    %v294 = vld [vmem:[#allocation5 + $0x650] sm:$0xff]
    %v295 = vld [vmem:[#allocation5 + $0x658] sm:$0xff]
    %v296 = vld [vmem:[#allocation5 + $0x660] sm:$0xff]
    %v297 = vld [vmem:[#allocation5 + $0x668] sm:$0xff]
    %v298 = vld [vmem:[#allocation5 + $0x670] sm:$0xff]
    %v299 = vld [vmem:[#allocation5 + $0x678] sm:$0xff]
    %v300 = vld [vmem:[#allocation5 + $0x680] sm:$0xff]
    %v301 = vld [vmem:[#allocation5 + $0x688] sm:$0xff]
    %v302 = vld [vmem:[#allocation5 + $0x690] sm:$0xff]
    %v303 = vld [vmem:[#allocation5 + $0x698] sm:$0xff]
    %v304 = vld [vmem:[#allocation5 + $0x6a0] sm:$0xff]
    %v305 = vld [vmem:[#allocation5 + $0x6a8] sm:$0xff]
    %v306 = vld [vmem:[#allocation5 + $0x6b0] sm:$0xff]
    %v307 = vld [vmem:[#allocation5 + $0x6b8] sm:$0xff]
    %v308 = vld [vmem:[#allocation5 + $0x6c0] sm:$0xff]
    %v309 = vld [vmem:[#allocation5 + $0x6c8] sm:$0xff]
    %v310 = vld [vmem:[#allocation5 + $0x6d0] sm:$0xff]
    %v311 = vld [vmem:[#allocation5 + $0x6d8] sm:$0xff]
    %v312 = vld [vmem:[#allocation5 + $0x6e0] sm:$0xff]
    %v313 = vld [vmem:[#allocation5 + $0x6e8] sm:$0xff]
    %v314 = vld [vmem:[#allocation5 + $0x6f0] sm:$0xff]
    %v315 = vld [vmem:[#allocation5 + $0x6f8] sm:$0xff]
    %v316 = vld [vmem:[#allocation5 + $0x700] sm:$0xff]
    %v317 = vld [vmem:[#allocation5 + $0x708] sm:$0xff]
    %v318 = vld [vmem:[#allocation5 + $0x710] sm:$0xff]
    %v319 = vld [vmem:[#allocation5 + $0x718] sm:$0xff]
    %v320 = vld [vmem:[#allocation5 + $0x720] sm:$0xff]
    %v321 = vld [vmem:[#allocation5 + $0x728] sm:$0xff]
    %v322 = vld [vmem:[#allocation5 + $0x730] sm:$0xff]
    %v323 = vld [vmem:[#allocation5 + $0x738] sm:$0xff]
    %v324 = vld [vmem:[#allocation5 + $0x740] sm:$0xff]
    %v325 = vld [vmem:[#allocation5 + $0x748] sm:$0xff]
    %v326 = vld [vmem:[#allocation5 + $0x750] sm:$0xff]
    %v327 = vld [vmem:[#allocation5 + $0x758] sm:$0xff]
    %v328 = vld [vmem:[#allocation5 + $0x760] sm:$0xff]
    %v329 = vld [vmem:[#allocation5 + $0x768] sm:$0xff]
    %v330 = vld [vmem:[#allocation5 + $0x770] sm:$0xff]
    %v331 = vld [vmem:[#allocation5 + $0x778] sm:$0xff]
    %v332 = vld [vmem:[#allocation5 + $0x780] sm:$0xff]
    %v333 = vld [vmem:[#allocation5 + $0x788] sm:$0xff]
    %v334 = vld [vmem:[#allocation5 + $0x790] sm:$0xff]
    %v335 = vld [vmem:[#allocation5 + $0x798] sm:$0xff]
    %v336 = vld [vmem:[#allocation5 + $0x7a0] sm:$0xff]
    %v337 = vld [vmem:[#allocation5 + $0x7a8] sm:$0xff]
    %v338 = vld [vmem:[#allocation5 + $0x7b0] sm:$0xff]
    %v339 = vld [vmem:[#allocation5 + $0x7b8] sm:$0xff]
    %v340 = vld [vmem:[#allocation5 + $0x7c0] sm:$0xff]
    %v341 = vld [vmem:[#allocation5 + $0x7c8] sm:$0xff]
    %v342 = vld [vmem:[#allocation5 + $0x7d0] sm:$0xff]
    %v343 = vld [vmem:[#allocation5 + $0x7d8] sm:$0xff]
    %v344 = vld [vmem:[#allocation5 + $0x7e0] sm:$0xff]
    %v345 = vld [vmem:[#allocation5 + $0x7e8] sm:$0xff]
    %v346 = vld [vmem:[#allocation5 + $0x7f0] sm:$0xff]
    %v347 = vld [vmem:[#allocation5 + $0x7f8] sm:$0xff]
    %v348 = vld [vmem:[#allocation5 + $0x800] sm:$0xff]
    %v349 = vld [vmem:[#allocation5 + $0x808] sm:$0xff]
    %v350 = vld [vmem:[#allocation5 + $0x810] sm:$0xff]
    %v351 = vld [vmem:[#allocation5 + $0x818] sm:$0xff]
    %v352 = vld [vmem:[#allocation5 + $0x820] sm:$0xff]
    %v353 = vld [vmem:[#allocation5 + $0x828] sm:$0xff]
    %v354 = vld [vmem:[#allocation5 + $0x830] sm:$0xff]
    %v355 = vld [vmem:[#allocation5 + $0x838] sm:$0xff]
    %v356 = vld [vmem:[#allocation5 + $0x840] sm:$0xff]
    %v357 = vld [vmem:[#allocation5 + $0x848] sm:$0xff]
    %v358 = vld [vmem:[#allocation5 + $0x850] sm:$0xff]
    %v359 = vld [vmem:[#allocation5 + $0x858] sm:$0xff]
    %v360 = vld [vmem:[#allocation5 + $0x860] sm:$0xff]
    %v361 = vld [vmem:[#allocation5 + $0x868] sm:$0xff]
    %v362 = vld [vmem:[#allocation5 + $0x870] sm:$0xff]
    %v363 = vld [vmem:[#allocation5 + $0x878] sm:$0xff]
    %v364 = vld [vmem:[#allocation5 + $0x880] sm:$0xff]
    %v365 = vld [vmem:[#allocation5 + $0x888] sm:$0xff]
    %v366 = vld [vmem:[#allocation5 + $0x890] sm:$0xff]
    %v367 = vld [vmem:[#allocation5 + $0x898] sm:$0xff]
    %v368 = vld [vmem:[#allocation5 + $0x8a0] sm:$0xff]
    %v369 = vld [vmem:[#allocation5 + $0x8a8] sm:$0xff]
    %v370 = vld [vmem:[#allocation5 + $0x8b0] sm:$0xff]
    %v371 = vld [vmem:[#allocation5 + $0x8b8] sm:$0xff]
    %v372 = vld [vmem:[#allocation5 + $0x8c0] sm:$0xff]
    %v373 = vld [vmem:[#allocation5 + $0x8c8] sm:$0xff]
    %v374 = vld [vmem:[#allocation5 + $0x8d0] sm:$0xff]
    %v375 = vld [vmem:[#allocation5 + $0x8d8] sm:$0xff]
    %v376 = vld [vmem:[#allocation5 + $0x8e0] sm:$0xff]
    %v377 = vld [vmem:[#allocation5 + $0x8e8] sm:$0xff]
    %v378 = vld [vmem:[#allocation5 + $0x8f0] sm:$0xff]
    %v379 = vld [vmem:[#allocation5 + $0x8f8] sm:$0xff]
    %v380 = vld [vmem:[#allocation5 + $0x900] sm:$0xff]
    %v381 = vld [vmem:[#allocation5 + $0x908] sm:$0xff]
    %v382 = vld [vmem:[#allocation5 + $0x910] sm:$0xff]
    %v383 = vld [vmem:[#allocation5 + $0x918] sm:$0xff]
    %v384 = vld [vmem:[#allocation5 + $0x920] sm:$0xff]
    %v385 = vld [vmem:[#allocation5 + $0x928] sm:$0xff]
    %v386 = vld [vmem:[#allocation5 + $0x930] sm:$0xff]
    %v387 = vld [vmem:[#allocation5 + $0x938] sm:$0xff]
    %v388 = vld [vmem:[#allocation5 + $0x940] sm:$0xff]
    %v389 = vld [vmem:[#allocation5 + $0x948] sm:$0xff]
    %v390 = vld [vmem:[#allocation5 + $0x950] sm:$0xff]
    %v391 = vld [vmem:[#allocation5 + $0x958] sm:$0xff]
    %v392 = vld [vmem:[#allocation5 + $0x960] sm:$0xff]
    %v393 = vld [vmem:[#allocation5 + $0x968] sm:$0xff]
    %v394 = vld [vmem:[#allocation5 + $0x970] sm:$0xff]
    %v395 = vld [vmem:[#allocation5 + $0x978] sm:$0xff]
    %v396 = vld [vmem:[#allocation5 + $0x980] sm:$0xff]
    %v397 = vld [vmem:[#allocation5 + $0x988] sm:$0xff]
    %v398 = vld [vmem:[#allocation5 + $0x990] sm:$0xff]
    %v399 = vld [vmem:[#allocation5 + $0x998] sm:$0xff]
    %v400 = vld [vmem:[#allocation5 + $0x9a0] sm:$0xff]
    %v401 = vld [vmem:[#allocation5 + $0x9a8] sm:$0xff]
    %v402 = vld [vmem:[#allocation5 + $0x9b0] sm:$0xff]
    %v403 = vld [vmem:[#allocation5 + $0x9b8] sm:$0xff]
    %v404 = vld [vmem:[#allocation5 + $0x9c0] sm:$0xff]
    %v405 = vld [vmem:[#allocation5 + $0x9c8] sm:$0xff]
    %v406 = vld [vmem:[#allocation5 + $0x9d0] sm:$0xff]
    %v407 = vld [vmem:[#allocation5 + $0x9d8] sm:$0xff]
    %v408 = vld [vmem:[#allocation5 + $0x9e0] sm:$0xff]
    %v409 = vld [vmem:[#allocation5 + $0x9e8] sm:$0xff]
    %v410 = vld [vmem:[#allocation5 + $0x9f0] sm:$0xff]
    %v411 = vld [vmem:[#allocation5 + $0x9f8] sm:$0xff]
    %v412 = vld [vmem:[#allocation5 + $0xa00] sm:$0xff]
    %v413 = vld [vmem:[#allocation5 + $0xa08] sm:$0xff]
    %v414 = vld [vmem:[#allocation5 + $0xa10] sm:$0xff]
    %v415 = vld [vmem:[#allocation5 + $0xa18] sm:$0xff]
    %v416 = vld [vmem:[#allocation5 + $0xa20] sm:$0xff]
    %v417 = vld [vmem:[#allocation5 + $0xa28] sm:$0xff]
    %v418 = vld [vmem:[#allocation5 + $0xa30] sm:$0xff]
    %v419 = vld [vmem:[#allocation5 + $0xa38] sm:$0xff]
    %v420 = vld [vmem:[#allocation5 + $0xa40] sm:$0xff]
    %v421 = vld [vmem:[#allocation5 + $0xa48] sm:$0xff]
    %v422 = vld [vmem:[#allocation5 + $0xa50] sm:$0xff]
    %v423 = vld [vmem:[#allocation5 + $0xa58] sm:$0xff]
    %v424 = vld [vmem:[#allocation5 + $0xa60] sm:$0xff]
    %v425 = vld [vmem:[#allocation5 + $0xa68] sm:$0xff]
    %v426 = vld [vmem:[#allocation5 + $0xa70] sm:$0xff]
    %v427 = vld [vmem:[#allocation5 + $0xa78] sm:$0xff]
    %v428 = vld [vmem:[#allocation5 + $0xa80] sm:$0xff]
    %v429 = vld [vmem:[#allocation5 + $0xa88] sm:$0xff]
    %v430 = vld [vmem:[#allocation5 + $0xa90] sm:$0xff]
    %v431 = vld [vmem:[#allocation5 + $0xa98] sm:$0xff]
    %v432 = vld [vmem:[#allocation5 + $0xaa0] sm:$0xff]
    %v433 = vld [vmem:[#allocation5 + $0xaa8] sm:$0xff]
    %v434 = vld [vmem:[#allocation5 + $0xab0] sm:$0xff]
    %v435 = vld [vmem:[#allocation5 + $0xab8] sm:$0xff]
    %v436 = vld [vmem:[#allocation5 + $0xac0] sm:$0xff]
    %v437 = vld [vmem:[#allocation5 + $0xac8] sm:$0xff]
    %v438 = vld [vmem:[#allocation5 + $0xad0] sm:$0xff]
    %v439 = vld [vmem:[#allocation5 + $0xad8] sm:$0xff]
    %v440 = vld [vmem:[#allocation5 + $0xae0] sm:$0xff]
    %v441 = vld [vmem:[#allocation5 + $0xae8] sm:$0xff]
    %v442 = vld [vmem:[#allocation5 + $0xaf0] sm:$0xff]
    %v443 = vld [vmem:[#allocation5 + $0xaf8] sm:$0xff]
    %v444 = vld [vmem:[#allocation5 + $0xb00] sm:$0xff]
    %v445 = vld [vmem:[#allocation5 + $0xb08] sm:$0xff]
    %v446 = vld [vmem:[#allocation5 + $0xb10] sm:$0xff]
    %v447 = vld [vmem:[#allocation5 + $0xb18] sm:$0xff]
    %v448 = vld [vmem:[#allocation5 + $0xb20] sm:$0xff]
    %v449 = vld [vmem:[#allocation5 + $0xb28] sm:$0xff]
    %v450 = vld [vmem:[#allocation5 + $0xb30] sm:$0xff]
    %v451 = vld [vmem:[#allocation5 + $0xb38] sm:$0xff]
    %v452 = vld [vmem:[#allocation5 + $0xb40] sm:$0xff]
    %v453 = vld [vmem:[#allocation5 + $0xb48] sm:$0xff]
    %v454 = vld [vmem:[#allocation5 + $0xb50] sm:$0xff]
    %v455 = vld [vmem:[#allocation5 + $0xb58] sm:$0xff]
    %v456 = vld [vmem:[#allocation5 + $0xb60] sm:$0xff]
    %v457 = vld [vmem:[#allocation5 + $0xb68] sm:$0xff]
    %v458 = vld [vmem:[#allocation5 + $0xb70] sm:$0xff]
    %v459 = vld [vmem:[#allocation5 + $0xb78] sm:$0xff]
    %v460 = vld [vmem:[#allocation5 + $0xb80] sm:$0xff]
    %v461 = vld [vmem:[#allocation5 + $0xb88] sm:$0xff]
    %v462 = vld [vmem:[#allocation5 + $0xb90] sm:$0xff]
    %v463 = vld [vmem:[#allocation5 + $0xb98] sm:$0xff]
    %v464 = vld [vmem:[#allocation5 + $0xba0] sm:$0xff]
    %v465 = vld [vmem:[#allocation5 + $0xba8] sm:$0xff]
    %v466 = vld [vmem:[#allocation5 + $0xbb0] sm:$0xff]
    %v467 = vld [vmem:[#allocation5 + $0xbb8] sm:$0xff]
    %v468 = vld [vmem:[#allocation5 + $0xbc0] sm:$0xff]
    %v469 = vld [vmem:[#allocation5 + $0xbc8] sm:$0xff]
    %v470 = vld [vmem:[#allocation5 + $0xbd0] sm:$0xff]
    %v471 = vld [vmem:[#allocation5 + $0xbd8] sm:$0xff]
    %v472 = vld [vmem:[#allocation5 + $0xbe0] sm:$0xff]
    %v473 = vld [vmem:[#allocation5 + $0xbe8] sm:$0xff]
    %v474 = vld [vmem:[#allocation5 + $0xbf0] sm:$0xff]
    %v475 = vld [vmem:[#allocation5 + $0xbf8] sm:$0xff]
    %v476 = vld [vmem:[#allocation5 + $0xc00] sm:$0xff]
    %v477 = vld [vmem:[#allocation5 + $0xc08] sm:$0xff]
    %v478 = vld [vmem:[#allocation5 + $0xc10] sm:$0xff]
    %v479 = vld [vmem:[#allocation5 + $0xc18] sm:$0xff]
    %v480 = vld [vmem:[#allocation5 + $0xc20] sm:$0xff]
    %v481 = vld [vmem:[#allocation5 + $0xc28] sm:$0xff]
    %v482 = vld [vmem:[#allocation5 + $0xc30] sm:$0xff]
    %v483 = vld [vmem:[#allocation5 + $0xc38] sm:$0xff]
    %v484 = vld [vmem:[#allocation5 + $0xc40] sm:$0xff]
    %v485 = vld [vmem:[#allocation5 + $0xc48] sm:$0xff]
    %v486 = vld [vmem:[#allocation5 + $0xc50] sm:$0xff]
    %v487 = vld [vmem:[#allocation5 + $0xc58] sm:$0xff]
    %v488 = vld [vmem:[#allocation5 + $0xc60] sm:$0xff]
    %v489 = vld [vmem:[#allocation5 + $0xc68] sm:$0xff]
    %v490 = vld [vmem:[#allocation5 + $0xc70] sm:$0xff]
    %v491 = vld [vmem:[#allocation5 + $0xc78] sm:$0xff]
    %v492 = vld [vmem:[#allocation5 + $0xc80] sm:$0xff]
    %v493 = vld [vmem:[#allocation5 + $0xc88] sm:$0xff]
    %v494 = vld [vmem:[#allocation5 + $0xc90] sm:$0xff]
    %v495 = vld [vmem:[#allocation5 + $0xc98] sm:$0xff]
    %v496 = vld [vmem:[#allocation5 + $0xca0] sm:$0xff]
    %v497 = vld [vmem:[#allocation5 + $0xca8] sm:$0xff]
    %v498 = vld [vmem:[#allocation5 + $0xcb0] sm:$0xff]
    %v499 = vld [vmem:[#allocation5 + $0xcb8] sm:$0xff]
    %v500 = vld [vmem:[#allocation5 + $0xcc0] sm:$0xff]
    %v501 = vld [vmem:[#allocation5 + $0xcc8] sm:$0xff]
    %v502 = vld [vmem:[#allocation5 + $0xcd0] sm:$0xff]
    %v503 = vld [vmem:[#allocation5 + $0xcd8] sm:$0xff]
    %v504 = vld [vmem:[#allocation5 + $0xce0] sm:$0xff]
    %v505 = vld [vmem:[#allocation5 + $0xce8] sm:$0xff]
    %v506 = vld [vmem:[#allocation5 + $0xcf0] sm:$0xff]
    %v507 = vld [vmem:[#allocation5 + $0xcf8] sm:$0xff]
    %v508 = vld [vmem:[#allocation5 + $0xd00] sm:$0xff]
    %v509 = vld [vmem:[#allocation5 + $0xd08] sm:$0xff]
    %v510 = vld [vmem:[#allocation5 + $0xd10] sm:$0xff]
    %v511 = vld [vmem:[#allocation5 + $0xd18] sm:$0xff]
    %v512 = vld [vmem:[#allocation5 + $0xd20] sm:$0xff]
    %v513 = vld [vmem:[#allocation5 + $0xd28] sm:$0xff]
    %v514 = vld [vmem:[#allocation5 + $0xd30] sm:$0xff]
    %v515 = vld [vmem:[#allocation5 + $0xd38] sm:$0xff]
    %v516 = vld [vmem:[#allocation5 + $0xd40] sm:$0xff]
    %v517 = vld [vmem:[#allocation5 + $0xd48] sm:$0xff]
    %v518 = vld [vmem:[#allocation5 + $0xd50] sm:$0xff]
    %v519 = vld [vmem:[#allocation5 + $0xd58] sm:$0xff]
    %v520 = vld [vmem:[#allocation5 + $0xd60] sm:$0xff]
    %v521 = vld [vmem:[#allocation5 + $0xd68] sm:$0xff]
    %v522 = vld [vmem:[#allocation5 + $0xd70] sm:$0xff]
    %v523 = vld [vmem:[#allocation5 + $0xd78] sm:$0xff]
    %v524 = vld [vmem:[#allocation5 + $0xd80] sm:$0xff]
    %v525 = vld [vmem:[#allocation5 + $0xd88] sm:$0xff]
    %v526 = vld [vmem:[#allocation5 + $0xd90] sm:$0xff]
    %v527 = vld [vmem:[#allocation5 + $0xd98] sm:$0xff]
    %v528 = vld [vmem:[#allocation5 + $0xda0] sm:$0xff]
    %v529 = vld [vmem:[#allocation5 + $0xda8] sm:$0xff]
    %v530 = vld [vmem:[#allocation5 + $0xdb0] sm:$0xff]
    %v531 = vld [vmem:[#allocation5 + $0xdb8] sm:$0xff]
    %v532 = vld [vmem:[#allocation5 + $0xdc0] sm:$0xff]
    %v533 = vld [vmem:[#allocation5 + $0xdc8] sm:$0xff]
    %v534 = vld [vmem:[#allocation5 + $0xdd0] sm:$0xff]
    %v535 = vld [vmem:[#allocation5 + $0xdd8] sm:$0xff]
    %v536 = vld [vmem:[#allocation5 + $0xde0] sm:$0xff]
    %v537 = vld [vmem:[#allocation5 + $0xde8] sm:$0xff]
    %v538 = vld [vmem:[#allocation5 + $0xdf0] sm:$0xff]
    %v539 = vld [vmem:[#allocation5 + $0xdf8] sm:$0xff]
    %v540 = vld [vmem:[#allocation5 + $0xe00] sm:$0xff]
    %v541 = vld [vmem:[#allocation5 + $0xe08] sm:$0xff]
    %v542 = vld [vmem:[#allocation5 + $0xe10] sm:$0xff]
    %v543 = vld [vmem:[#allocation5 + $0xe18] sm:$0xff]
    %v544 = vld [vmem:[#allocation5 + $0xe20] sm:$0xff]
    %v545 = vld [vmem:[#allocation5 + $0xe28] sm:$0xff]
    %v546 = vld [vmem:[#allocation5 + $0xe30] sm:$0xff]
    %v547 = vld [vmem:[#allocation5 + $0xe38] sm:$0xff]
    %v548 = vld [vmem:[#allocation5 + $0xe40] sm:$0xff]
    %v549 = vld [vmem:[#allocation5 + $0xe48] sm:$0xff]
    %v550 = vld [vmem:[#allocation5 + $0xe50] sm:$0xff]
    %v551 = vld [vmem:[#allocation5 + $0xe58] sm:$0xff]
    %v552 = vld [vmem:[#allocation5 + $0xe60] sm:$0xff]
    %v553 = vld [vmem:[#allocation5 + $0xe68] sm:$0xff]
    %v554 = vld [vmem:[#allocation5 + $0xe70] sm:$0xff]
    %v555 = vld [vmem:[#allocation5 + $0xe78] sm:$0xff]
    %v556 = vld [vmem:[#allocation5 + $0xe80] sm:$0xff]
    %v557 = vld [vmem:[#allocation5 + $0xe88] sm:$0xff]
    %v558 = vld [vmem:[#allocation5 + $0xe90] sm:$0xff]
    %v559 = vld [vmem:[#allocation5 + $0xe98] sm:$0xff]
    %v560 = vld [vmem:[#allocation5 + $0xea0] sm:$0xff]
    %v561 = vld [vmem:[#allocation5 + $0xea8] sm:$0xff]
    %v562 = vld [vmem:[#allocation5 + $0xeb0] sm:$0xff]
    %v563 = vld [vmem:[#allocation5 + $0xeb8] sm:$0xff]
    %v564 = vld [vmem:[#allocation5 + $0xec0] sm:$0xff]
    %v565 = vld [vmem:[#allocation5 + $0xec8] sm:$0xff]
    %v566 = vld [vmem:[#allocation5 + $0xed0] sm:$0xff]
    %v567 = vld [vmem:[#allocation5 + $0xed8] sm:$0xff]
    %v568 = vld [vmem:[#allocation5 + $0xee0] sm:$0xff]
    %v569 = vld [vmem:[#allocation5 + $0xee8] sm:$0xff]
    %v570 = vld [vmem:[#allocation5 + $0xef0] sm:$0xff]
    %v571 = vld [vmem:[#allocation5 + $0xef8] sm:$0xff]
    %v572 = vld [vmem:[#allocation5 + $0xf00] sm:$0xff]
    %v573 = vld [vmem:[#allocation5 + $0xf08] sm:$0xff]
    %v574 = vld [vmem:[#allocation5 + $0xf10] sm:$0xff]
    %v575 = vld [vmem:[#allocation5 + $0xf18] sm:$0xff]
    %v576 = vld [vmem:[#allocation5 + $0xf20] sm:$0xff]
    %v577 = vld [vmem:[#allocation5 + $0xf28] sm:$0xff]
    %v578 = vld [vmem:[#allocation5 + $0xf30] sm:$0xff]
    %v579 = vld [vmem:[#allocation5 + $0xf38] sm:$0xff]
    %v580 = vld [vmem:[#allocation5 + $0xf40] sm:$0xff]
    %v581 = vld [vmem:[#allocation5 + $0xf48] sm:$0xff]
    %v582 = vld [vmem:[#allocation5 + $0xf50] sm:$0xff]
    %v583 = vld [vmem:[#allocation5 + $0xf58] sm:$0xff]
    %v584 = vld [vmem:[#allocation5 + $0xf60] sm:$0xff]
    %v585 = vld [vmem:[#allocation5 + $0xf68] sm:$0xff]
    %v586 = vld [vmem:[#allocation5 + $0xf70] sm:$0xff]
    %v587 = vld [vmem:[#allocation5 + $0xf78] sm:$0xff]
    %v588 = vld [vmem:[#allocation5 + $0xf80] sm:$0xff]
    %v589 = vld [vmem:[#allocation5 + $0xf88] sm:$0xff]
    %v590 = vld [vmem:[#allocation5 + $0xf90] sm:$0xff]
    %v591 = vld [vmem:[#allocation5 + $0xf98] sm:$0xff]
    %v592 = vld [vmem:[#allocation5 + $0xfa0] sm:$0xff]
    %v593 = vld [vmem:[#allocation5 + $0xfa8] sm:$0xff]
    %v594 = vld [vmem:[#allocation5 + $0xfb0] sm:$0xff]
    %v595 = vld [vmem:[#allocation5 + $0xfb8] sm:$0xff]
    %v596 = vld [vmem:[#allocation5 + $0xfc0] sm:$0xff]
    %v597 = vld [vmem:[#allocation5 + $0xfc8] sm:$0xff]
    %v598 = vld [vmem:[#allocation5 + $0xfd0] sm:$0xff]
    %v599 = vld [vmem:[#allocation5 + $0xfd8] sm:$0xff]
    %v600 = vld [vmem:[#allocation5 + $0xfe0] sm:$0xff]
    %v601 = vld [vmem:[#allocation5 + $0xfe8] sm:$0xff]
    %v602 = vld [vmem:[#allocation5 + $0xff0] sm:$0xff]
    %v603 = vld [vmem:[#allocation5 + $0xff8] sm:$0xff]
    %v604 = vld [vmem:[#allocation5 + $0x1000] sm:$0xff]
    %v605 = vld [vmem:[#allocation5 + $0x1008] sm:$0xff]
    %v606 = vld [vmem:[#allocation5 + $0x1010] sm:$0xff]
    %v607 = vld [vmem:[#allocation5 + $0x1018] sm:$0xff]
    %v608 = vld [vmem:[#allocation5 + $0x1020] sm:$0xff]
    %v609 = vld [vmem:[#allocation5 + $0x1028] sm:$0xff]
    %v610 = vld [vmem:[#allocation5 + $0x1030] sm:$0xff]
    %v611 = vld [vmem:[#allocation5 + $0x1038] sm:$0xff]
    %v612 = vld [vmem:[#allocation5 + $0x1040] sm:$0xff]
    %v613 = vld [vmem:[#allocation5 + $0x1048] sm:$0xff]
    %v614 = vld [vmem:[#allocation5 + $0x1050] sm:$0xff]
    %v615 = vld [vmem:[#allocation5 + $0x1058] sm:$0xff]
    %v616 = vld [vmem:[#allocation5 + $0x1060] sm:$0xff]
    %v617 = vld [vmem:[#allocation5 + $0x1068] sm:$0xff]
    %v618 = vld [vmem:[#allocation5 + $0x1070] sm:$0xff]
    %v619 = vld [vmem:[#allocation5 + $0x1078] sm:$0xff]
    %v620 = vld [vmem:[#allocation5 + $0x1080] sm:$0xff]
    %v621 = vld [vmem:[#allocation5 + $0x1088] sm:$0xff]
    %v622 = vld [vmem:[#allocation5 + $0x1090] sm:$0xff]
    %v623 = vld [vmem:[#allocation5 + $0x1098] sm:$0xff]
    %v624 = vld [vmem:[#allocation5 + $0x10a0] sm:$0xff]
    %v625 = vld [vmem:[#allocation5 + $0x10a8] sm:$0xff]
    %v626 = vld [vmem:[#allocation5 + $0x10b0] sm:$0xff]
    %v627 = vld [vmem:[#allocation5 + $0x10b8] sm:$0xff]
    %v628 = vld [vmem:[#allocation5 + $0x10c0] sm:$0xff]
    %v629 = vld [vmem:[#allocation5 + $0x10c8] sm:$0xff]
    %v630 = vld [vmem:[#allocation5 + $0x10d0] sm:$0xff]
    %v631 = vld [vmem:[#allocation5 + $0x10d8] sm:$0xff]
    %v632 = vld [vmem:[#allocation5 + $0x10e0] sm:$0xff]
    %v633 = vld [vmem:[#allocation5 + $0x10e8] sm:$0xff]
    %v634 = vld [vmem:[#allocation5 + $0x10f0] sm:$0xff]
    %v635 = vld [vmem:[#allocation5 + $0x10f8] sm:$0xff]
    %v636 = vld [vmem:[#allocation5 + $0x1100] sm:$0xff]
    %v637 = vld [vmem:[#allocation5 + $0x1108] sm:$0xff]
    %v638 = vld [vmem:[#allocation5 + $0x1110] sm:$0xff]
    %v639 = vld [vmem:[#allocation5 + $0x1118] sm:$0xff]
    %v640 = vld [vmem:[#allocation5 + $0x1120] sm:$0xff]
    %v641 = vld [vmem:[#allocation5 + $0x1128] sm:$0xff]
    %v642 = vld [vmem:[#allocation5 + $0x1130] sm:$0xff]
    %v643 = vld [vmem:[#allocation5 + $0x1138] sm:$0xff]
    %v644 = vld [vmem:[#allocation5 + $0x1140] sm:$0xff]
    %v645 = vld [vmem:[#allocation5 + $0x1148] sm:$0xff]
    %v646 = vld [vmem:[#allocation5 + $0x1150] sm:$0xff]
    %v647 = vld [vmem:[#allocation5 + $0x1158] sm:$0xff]
    %v648 = vld [vmem:[#allocation5 + $0x1160] sm:$0xff]
    %v649 = vld [vmem:[#allocation5 + $0x1168] sm:$0xff]
    %v650 = vld [vmem:[#allocation5 + $0x1170] sm:$0xff]
    %v651 = vld [vmem:[#allocation5 + $0x1178] sm:$0xff]
    %v652 = vld [vmem:[#allocation5 + $0x1180] sm:$0xff]
    %v653 = vld [vmem:[#allocation5 + $0x1188] sm:$0xff]
    %v654 = vld [vmem:[#allocation5 + $0x1190] sm:$0xff]
    %v655 = vld [vmem:[#allocation5 + $0x1198] sm:$0xff]
    %v656 = vld [vmem:[#allocation5 + $0x11a0] sm:$0xff]
    %v657 = vld [vmem:[#allocation5 + $0x11a8] sm:$0xff]
    %v658 = vld [vmem:[#allocation5 + $0x11b0] sm:$0xff]
    %v659 = vld [vmem:[#allocation5 + $0x11b8] sm:$0xff]
    %v660 = vld [vmem:[#allocation5 + $0x11c0] sm:$0xff]
    %v661 = vld [vmem:[#allocation5 + $0x11c8] sm:$0xff]
    %v662 = vld [vmem:[#allocation5 + $0x11d0] sm:$0xff]
    %v663 = vld [vmem:[#allocation5 + $0x11d8] sm:$0xff]
    %v664 = vld [vmem:[#allocation5 + $0x11e0] sm:$0xff]
    %v665 = vld [vmem:[#allocation5 + $0x11e8] sm:$0xff]
    %v666 = vld [vmem:[#allocation5 + $0x11f0] sm:$0xff]
    %v667 = vld [vmem:[#allocation5 + $0x11f8] sm:$0xff]
    %v668 = vld [vmem:[#allocation7] sm:$0xf]
    %v670 = vlaneseq
    %v671 = vshrl.u32 %v670, 7
    %v672 = vsub.s32 0, %v671
    %v673 = vrot.slane %v668, %v672
    %v674 = vlaneseq
    %v675 = vshrl.u32 %v674, 7
    %v676 = vsub.s32 1, %v675
    %v677 = vrot.slane %v668, %v676
    %v678 = vlaneseq
    %v679 = vshrl.u32 %v678, 7
    %v680 = vsub.s32 2, %v679
    %v681 = vrot.slane %v668, %v680
    %v682 = vlaneseq
    %v683 = vshrl.u32 %v682, 7
    %v684 = vsub.s32 3, %v683
    %v685 = vrot.slane %v668, %v684
    %v699 = vunpack.c.l.b16 %v83
    %v700 = vunpack.c.h.b16 %v83
    %v701 = vunpack.c.l.b16 %v84
    %v702 = vunpack.c.h.b16 %v84
    %v703 = vunpack.c.l.b16 %v85
    %v704 = vunpack.c.h.b16 %v85
    %v705 = vunpack.c.l.b16 %v86
    %v706 = vunpack.c.h.b16 %v86
    %v707 = vunpack.c.l.b16 %v87
    %v708 = vunpack.c.h.b16 %v87
    %v709 = vunpack.c.l.b16 %v88
    %v710 = vunpack.c.h.b16 %v88
    %v711 = vunpack.c.l.b16 %v89
    %v712 = vunpack.c.h.b16 %v89
    %v713 = vunpack.c.l.b16 %v90
    %v714 = vunpack.c.h.b16 %v90
    %v715 = vunpack.c.l.b16 %v91
    %v716 = vunpack.c.h.b16 %v91
    %v717 = vpack.c.b16 %v699, %v699
    %v718 = vpack.c.b16 %v700, %v700
    %v719 = vpack.c.b16 %v701, %v701
    %v720 = vpack.c.b16 %v702, %v702
    %v721 = vpack.c.b16 %v703, %v703
    %v722 = vpack.c.b16 %v704, %v704
    %v723 = vpack.c.b16 %v705, %v705
    %v724 = vpack.c.b16 %v706, %v706
    %v725 = vpack.c.b16 %v707, %v707
    %v726 = vpack.c.b16 %v708, %v708
    %v727 = vpack.c.b16 %v709, %v709
    %v728 = vpack.c.b16 %v710, %v710
    %v729 = vpack.c.b16 %v711, %v711
    %v730 = vpack.c.b16 %v712, %v712
    %v731 = vpack.c.b16 %v713, %v713
    %v732 = vpack.c.b16 %v714, %v714
    %v733 = vpack.c.b16 %v715, %v715
    %v734 = vpack.c.b16 %v716, %v716
    %v1329 = vunpack.c.l.b16 %v92
    %v1330 = vunpack.c.h.b16 %v92
    %v1331 = vunpack.c.l.b16 %v93
    %v1332 = vunpack.c.h.b16 %v93
    %v1333 = vunpack.c.l.b16 %v94
    %v1334 = vunpack.c.h.b16 %v94
    %v1335 = vunpack.c.l.b16 %v95
    %v1336 = vunpack.c.h.b16 %v95
    %v1337 = vunpack.c.l.b16 %v96
    %v1338 = vunpack.c.h.b16 %v96
    %v1339 = vunpack.c.l.b16 %v97
    %v1340 = vunpack.c.h.b16 %v97
    %v1341 = vunpack.c.l.b16 %v98
    %v1342 = vunpack.c.h.b16 %v98
    %v1343 = vunpack.c.l.b16 %v99
    %v1344 = vunpack.c.h.b16 %v99
    %v1345 = vunpack.c.l.b16 %v100
    %v1346 = vunpack.c.h.b16 %v100
    %v1347 = vunpack.c.l.b16 %v101
    %v1348 = vunpack.c.h.b16 %v101
    %v1349 = vunpack.c.l.b16 %v102
    %v1350 = vunpack.c.h.b16 %v102
    %v1351 = vunpack.c.l.b16 %v103
    %v1352 = vunpack.c.h.b16 %v103
    %v1353 = vunpack.c.l.b16 %v104
    %v1354 = vunpack.c.h.b16 %v104
    %v1355 = vunpack.c.l.b16 %v105
    %v1356 = vunpack.c.h.b16 %v105
    %v1357 = vunpack.c.l.b16 %v106
    %v1358 = vunpack.c.h.b16 %v106
    %v1359 = vunpack.c.l.b16 %v107
    %v1360 = vunpack.c.h.b16 %v107
    %v1361 = vunpack.c.l.b16 %v108
    %v1362 = vunpack.c.h.b16 %v108
    %v1363 = vunpack.c.l.b16 %v109
    %v1364 = vunpack.c.h.b16 %v109
    %v1365 = vunpack.c.l.b16 %v110
    %v1366 = vunpack.c.h.b16 %v110
    %v1367 = vunpack.c.l.b16 %v111
    %v1368 = vunpack.c.h.b16 %v111
    %v1369 = vunpack.c.l.b16 %v112
    %v1370 = vunpack.c.h.b16 %v112
    %v1371 = vunpack.c.l.b16 %v113
    %v1372 = vunpack.c.h.b16 %v113
    %v1373 = vunpack.c.l.b16 %v114
    %v1374 = vunpack.c.h.b16 %v114
    %v1375 = vunpack.c.l.b16 %v115
    %v1376 = vunpack.c.h.b16 %v115
    %v1377 = vunpack.c.l.b16 %v116
    %v1378 = vunpack.c.h.b16 %v116
    %v1379 = vunpack.c.l.b16 %v117
    %v1380 = vunpack.c.h.b16 %v117
    %v1381 = vunpack.c.l.b16 %v118
    %v1382 = vunpack.c.h.b16 %v118
    %v1383 = vunpack.c.l.b16 %v119
    %v1384 = vunpack.c.h.b16 %v119
    %v1385 = vunpack.c.l.b16 %v120
    %v1386 = vunpack.c.h.b16 %v120
    %v1387 = vunpack.c.l.b16 %v121
    %v1388 = vunpack.c.h.b16 %v121
    %v1389 = vunpack.c.l.b16 %v122
    %v1390 = vunpack.c.h.b16 %v122
    %v1391 = vunpack.c.l.b16 %v123
    %v1392 = vunpack.c.h.b16 %v123
    %v1393 = vunpack.c.l.b16 %v124
    %v1394 = vunpack.c.h.b16 %v124
    %v1395 = vunpack.c.l.b16 %v125
    %v1396 = vunpack.c.h.b16 %v125
    %v1397 = vunpack.c.l.b16 %v126
    %v1398 = vunpack.c.h.b16 %v126
    %v1399 = vunpack.c.l.b16 %v127
    %v1400 = vunpack.c.h.b16 %v127
    %v1401 = vunpack.c.l.b16 %v128
    %v1402 = vunpack.c.h.b16 %v128
    %v1403 = vunpack.c.l.b16 %v129
    %v1404 = vunpack.c.h.b16 %v129
    %v1405 = vunpack.c.l.b16 %v130
    %v1406 = vunpack.c.h.b16 %v130
    %v1407 = vunpack.c.l.b16 %v131
    %v1408 = vunpack.c.h.b16 %v131
    %v1409 = vunpack.c.l.b16 %v132
    %v1410 = vunpack.c.h.b16 %v132
    %v1411 = vunpack.c.l.b16 %v133
    %v1412 = vunpack.c.h.b16 %v133
    %v1413 = vunpack.c.l.b16 %v134
    %v1414 = vunpack.c.h.b16 %v134
    %v1415 = vunpack.c.l.b16 %v135
    %v1416 = vunpack.c.h.b16 %v135
    %v1417 = vunpack.c.l.b16 %v136
    %v1418 = vunpack.c.h.b16 %v136
    %v1419 = vunpack.c.l.b16 %v137
    %v1420 = vunpack.c.h.b16 %v137
    %v1421 = vunpack.c.l.b16 %v138
    %v1422 = vunpack.c.h.b16 %v138
    %v1423 = vunpack.c.l.b16 %v139
    %v1424 = vunpack.c.h.b16 %v139
    %v1425 = vunpack.c.l.b16 %v140
    %v1426 = vunpack.c.h.b16 %v140
    %v1427 = vunpack.c.l.b16 %v141
    %v1428 = vunpack.c.h.b16 %v141
    %v1429 = vunpack.c.l.b16 %v142
    %v1430 = vunpack.c.h.b16 %v142
    %v1431 = vunpack.c.l.b16 %v143
    %v1432 = vunpack.c.h.b16 %v143
    %v1433 = vunpack.c.l.b16 %v144
    %v1434 = vunpack.c.h.b16 %v144
    %v1435 = vunpack.c.l.b16 %v145
    %v1436 = vunpack.c.h.b16 %v145
    %v1437 = vunpack.c.l.b16 %v146
    %v1438 = vunpack.c.h.b16 %v146
    %v1439 = vunpack.c.l.b16 %v147
    %v1440 = vunpack.c.h.b16 %v147
    %v1441 = vunpack.c.l.b16 %v148
    %v1442 = vunpack.c.h.b16 %v148
    %v1443 = vunpack.c.l.b16 %v149
    %v1444 = vunpack.c.h.b16 %v149
    %v1445 = vunpack.c.l.b16 %v150
    %v1446 = vunpack.c.h.b16 %v150
    %v1447 = vunpack.c.l.b16 %v151
    %v1448 = vunpack.c.h.b16 %v151
    %v1449 = vunpack.c.l.b16 %v152
    %v1450 = vunpack.c.h.b16 %v152
    %v1451 = vunpack.c.l.b16 %v153
    %v1452 = vunpack.c.h.b16 %v153
    %v1453 = vunpack.c.l.b16 %v154
    %v1454 = vunpack.c.h.b16 %v154
    %v1455 = vunpack.c.l.b16 %v155
    %v1456 = vunpack.c.h.b16 %v155
    %v1457 = vunpack.c.l.b16 %v156
    %v1458 = vunpack.c.h.b16 %v156
    %v1459 = vunpack.c.l.b16 %v157
    %v1460 = vunpack.c.h.b16 %v157
    %v1461 = vunpack.c.l.b16 %v158
    %v1462 = vunpack.c.h.b16 %v158
    %v1463 = vunpack.c.l.b16 %v159
    %v1464 = vunpack.c.h.b16 %v159
    %v1465 = vunpack.c.l.b16 %v160
    %v1466 = vunpack.c.h.b16 %v160
    %v1467 = vunpack.c.l.b16 %v161
    %v1468 = vunpack.c.h.b16 %v161
    %v1469 = vunpack.c.l.b16 %v162
    %v1470 = vunpack.c.h.b16 %v162
    %v1471 = vunpack.c.l.b16 %v163
    %v1472 = vunpack.c.h.b16 %v163
    %v1473 = vunpack.c.l.b16 %v164
    %v1474 = vunpack.c.h.b16 %v164
    %v1475 = vunpack.c.l.b16 %v165
    %v1476 = vunpack.c.h.b16 %v165
    %v1477 = vunpack.c.l.b16 %v166
    %v1478 = vunpack.c.h.b16 %v166
    %v1479 = vunpack.c.l.b16 %v167
    %v1480 = vunpack.c.h.b16 %v167
    %v1481 = vunpack.c.l.b16 %v168
    %v1482 = vunpack.c.h.b16 %v168
    %v1483 = vunpack.c.l.b16 %v169
    %v1484 = vunpack.c.h.b16 %v169
    %v1485 = vunpack.c.l.b16 %v170
    %v1486 = vunpack.c.h.b16 %v170
    %v1487 = vunpack.c.l.b16 %v171
    %v1488 = vunpack.c.h.b16 %v171
    %v1489 = vunpack.c.l.b16 %v172
    %v1490 = vunpack.c.h.b16 %v172
    %v1491 = vunpack.c.l.b16 %v173
    %v1492 = vunpack.c.h.b16 %v173
    %v1493 = vunpack.c.l.b16 %v174
    %v1494 = vunpack.c.h.b16 %v174
    %v1495 = vunpack.c.l.b16 %v175
    %v1496 = vunpack.c.h.b16 %v175
    %v1497 = vunpack.c.l.b16 %v176
    %v1498 = vunpack.c.h.b16 %v176
    %v1499 = vunpack.c.l.b16 %v177
    %v1500 = vunpack.c.h.b16 %v177
    %v1501 = vunpack.c.l.b16 %v178
    %v1502 = vunpack.c.h.b16 %v178
    %v1503 = vunpack.c.l.b16 %v179
    %v1504 = vunpack.c.h.b16 %v179
    %v1505 = vunpack.c.l.b16 %v180
    %v1506 = vunpack.c.h.b16 %v180
    %v1507 = vunpack.c.l.b16 %v181
    %v1508 = vunpack.c.h.b16 %v181
    %v1509 = vunpack.c.l.b16 %v182
    %v1510 = vunpack.c.h.b16 %v182
    %v1511 = vunpack.c.l.b16 %v183
    %v1512 = vunpack.c.h.b16 %v183
    %v1513 = vunpack.c.l.b16 %v184
    %v1514 = vunpack.c.h.b16 %v184
    %v1515 = vunpack.c.l.b16 %v185
    %v1516 = vunpack.c.h.b16 %v185
    %v1517 = vunpack.c.l.b16 %v186
    %v1518 = vunpack.c.h.b16 %v186
    %v1519 = vunpack.c.l.b16 %v187
    %v1520 = vunpack.c.h.b16 %v187
    %v1521 = vunpack.c.l.b16 %v188
    %v1522 = vunpack.c.h.b16 %v188
    %v1523 = vunpack.c.l.b16 %v189
    %v1524 = vunpack.c.h.b16 %v189
    %v1525 = vunpack.c.l.b16 %v190
    %v1526 = vunpack.c.h.b16 %v190
    %v1527 = vunpack.c.l.b16 %v191
    %v1528 = vunpack.c.h.b16 %v191
    %v1529 = vunpack.c.l.b16 %v192
    %v1530 = vunpack.c.h.b16 %v192
    %v1531 = vunpack.c.l.b16 %v193
    %v1532 = vunpack.c.h.b16 %v193
    %v1533 = vunpack.c.l.b16 %v194
    %v1534 = vunpack.c.h.b16 %v194
    %v1535 = vunpack.c.l.b16 %v195
    %v1536 = vunpack.c.h.b16 %v195
    %v1537 = vunpack.c.l.b16 %v196
    %v1538 = vunpack.c.h.b16 %v196
    %v1539 = vunpack.c.l.b16 %v197
    %v1540 = vunpack.c.h.b16 %v197
    %v1541 = vunpack.c.l.b16 %v198
    %v1542 = vunpack.c.h.b16 %v198
    %v1543 = vunpack.c.l.b16 %v199
    %v1544 = vunpack.c.h.b16 %v199
    %v1545 = vunpack.c.l.b16 %v200
    %v1546 = vunpack.c.h.b16 %v200
    %v1547 = vunpack.c.l.b16 %v201
    %v1548 = vunpack.c.h.b16 %v201
    %v1549 = vunpack.c.l.b16 %v202
    %v1550 = vunpack.c.h.b16 %v202
    %v1551 = vunpack.c.l.b16 %v203
    %v1552 = vunpack.c.h.b16 %v203
    %v1553 = vunpack.c.l.b16 %v204
    %v1554 = vunpack.c.h.b16 %v204
    %v1555 = vunpack.c.l.b16 %v205
    %v1556 = vunpack.c.h.b16 %v205
    %v1557 = vunpack.c.l.b16 %v206
    %v1558 = vunpack.c.h.b16 %v206
    %v1559 = vunpack.c.l.b16 %v207
    %v1560 = vunpack.c.h.b16 %v207
    %v1561 = vunpack.c.l.b16 %v208
    %v1562 = vunpack.c.h.b16 %v208
    %v1563 = vunpack.c.l.b16 %v209
    %v1564 = vunpack.c.h.b16 %v209
    %v1565 = vunpack.c.l.b16 %v210
    %v1566 = vunpack.c.h.b16 %v210
    %v1567 = vunpack.c.l.b16 %v211
    %v1568 = vunpack.c.h.b16 %v211
    %v1569 = vunpack.c.l.b16 %v212
    %v1570 = vunpack.c.h.b16 %v212
    %v1571 = vunpack.c.l.b16 %v213
    %v1572 = vunpack.c.h.b16 %v213
    %v1573 = vunpack.c.l.b16 %v214
    %v1574 = vunpack.c.h.b16 %v214
    %v1575 = vunpack.c.l.b16 %v215
    %v1576 = vunpack.c.h.b16 %v215
    %v1577 = vunpack.c.l.b16 %v216
    %v1578 = vunpack.c.h.b16 %v216
    %v1579 = vunpack.c.l.b16 %v217
    %v1580 = vunpack.c.h.b16 %v217
    %v1581 = vunpack.c.l.b16 %v218
    %v1582 = vunpack.c.h.b16 %v218
    %v1583 = vunpack.c.l.b16 %v219
    %v1584 = vunpack.c.h.b16 %v219
    %v1585 = vunpack.c.l.b16 %v220
    %v1586 = vunpack.c.h.b16 %v220
    %v1587 = vunpack.c.l.b16 %v221
    %v1588 = vunpack.c.h.b16 %v221
    %v1589 = vunpack.c.l.b16 %v222
    %v1590 = vunpack.c.h.b16 %v222
    %v1591 = vunpack.c.l.b16 %v223
    %v1592 = vunpack.c.h.b16 %v223
    %v1593 = vunpack.c.l.b16 %v224
    %v1594 = vunpack.c.h.b16 %v224
    %v1595 = vunpack.c.l.b16 %v225
    %v1596 = vunpack.c.h.b16 %v225
    %v1597 = vunpack.c.l.b16 %v226
    %v1598 = vunpack.c.h.b16 %v226
    %v1599 = vunpack.c.l.b16 %v227
    %v1600 = vunpack.c.h.b16 %v227
    %v1601 = vunpack.c.l.b16 %v228
    %v1602 = vunpack.c.h.b16 %v228
    %v1603 = vunpack.c.l.b16 %v229
    %v1604 = vunpack.c.h.b16 %v229
    %v1605 = vunpack.c.l.b16 %v230
    %v1606 = vunpack.c.h.b16 %v230
    %v1607 = vunpack.c.l.b16 %v231
    %v1608 = vunpack.c.h.b16 %v231
    %v1609 = vunpack.c.l.b16 %v232
    %v1610 = vunpack.c.h.b16 %v232
    %v1611 = vunpack.c.l.b16 %v233
    %v1612 = vunpack.c.h.b16 %v233
    %v1613 = vunpack.c.l.b16 %v234
    %v1614 = vunpack.c.h.b16 %v234
    %v1615 = vunpack.c.l.b16 %v235
    %v1616 = vunpack.c.h.b16 %v235
    %v1617 = vunpack.c.l.b16 %v236
    %v1618 = vunpack.c.h.b16 %v236
    %v1619 = vunpack.c.l.b16 %v237
    %v1620 = vunpack.c.h.b16 %v237
    %v1621 = vunpack.c.l.b16 %v238
    %v1622 = vunpack.c.h.b16 %v238
    %v1623 = vunpack.c.l.b16 %v239
    %v1624 = vunpack.c.h.b16 %v239
    %v1625 = vunpack.c.l.b16 %v240
    %v1626 = vunpack.c.h.b16 %v240
    %v1627 = vunpack.c.l.b16 %v241
    %v1628 = vunpack.c.h.b16 %v241
    %v1629 = vunpack.c.l.b16 %v242
    %v1630 = vunpack.c.h.b16 %v242
    %v1631 = vunpack.c.l.b16 %v243
    %v1632 = vunpack.c.h.b16 %v243
    %v1633 = vunpack.c.l.b16 %v244
    %v1634 = vunpack.c.h.b16 %v244
    %v1635 = vunpack.c.l.b16 %v245
    %v1636 = vunpack.c.h.b16 %v245
    %v1637 = vunpack.c.l.b16 %v246
    %v1638 = vunpack.c.h.b16 %v246
    %v1639 = vunpack.c.l.b16 %v247
    %v1640 = vunpack.c.h.b16 %v247
    %v1641 = vunpack.c.l.b16 %v248
    %v1642 = vunpack.c.h.b16 %v248
    %v1643 = vunpack.c.l.b16 %v249
    %v1644 = vunpack.c.h.b16 %v249
    %v1645 = vunpack.c.l.b16 %v250
    %v1646 = vunpack.c.h.b16 %v250
    %v1647 = vunpack.c.l.b16 %v251
    %v1648 = vunpack.c.h.b16 %v251
    %v1649 = vunpack.c.l.b16 %v252
    %v1650 = vunpack.c.h.b16 %v252
    %v1651 = vunpack.c.l.b16 %v253
    %v1652 = vunpack.c.h.b16 %v253
    %v1653 = vunpack.c.l.b16 %v254
    %v1654 = vunpack.c.h.b16 %v254
    %v1655 = vunpack.c.l.b16 %v255
    %v1656 = vunpack.c.h.b16 %v255
    %v1657 = vunpack.c.l.b16 %v256
    %v1658 = vunpack.c.h.b16 %v256
    %v1659 = vunpack.c.l.b16 %v257
    %v1660 = vunpack.c.h.b16 %v257
    %v1661 = vunpack.c.l.b16 %v258
    %v1662 = vunpack.c.h.b16 %v258
    %v1663 = vunpack.c.l.b16 %v259
    %v1664 = vunpack.c.h.b16 %v259
    %v1665 = vunpack.c.l.b16 %v260
    %v1666 = vunpack.c.h.b16 %v260
    %v1667 = vunpack.c.l.b16 %v261
    %v1668 = vunpack.c.h.b16 %v261
    %v1669 = vunpack.c.l.b16 %v262
    %v1670 = vunpack.c.h.b16 %v262
    %v1671 = vunpack.c.l.b16 %v263
    %v1672 = vunpack.c.h.b16 %v263
    %v1673 = vunpack.c.l.b16 %v264
    %v1674 = vunpack.c.h.b16 %v264
    %v1675 = vunpack.c.l.b16 %v265
    %v1676 = vunpack.c.h.b16 %v265
    %v1677 = vunpack.c.l.b16 %v266
    %v1678 = vunpack.c.h.b16 %v266
    %v1679 = vunpack.c.l.b16 %v267
    %v1680 = vunpack.c.h.b16 %v267
    %v1681 = vunpack.c.l.b16 %v268
    %v1682 = vunpack.c.h.b16 %v268
    %v1683 = vunpack.c.l.b16 %v269
    %v1684 = vunpack.c.h.b16 %v269
    %v1685 = vunpack.c.l.b16 %v270
    %v1686 = vunpack.c.h.b16 %v270
    %v1687 = vunpack.c.l.b16 %v271
    %v1688 = vunpack.c.h.b16 %v271
    %v1689 = vunpack.c.l.b16 %v272
    %v1690 = vunpack.c.h.b16 %v272
    %v1691 = vunpack.c.l.b16 %v273
    %v1692 = vunpack.c.h.b16 %v273
    %v1693 = vunpack.c.l.b16 %v274
    %v1694 = vunpack.c.h.b16 %v274
    %v1695 = vunpack.c.l.b16 %v275
    %v1696 = vunpack.c.h.b16 %v275
    %v1697 = vunpack.c.l.b16 %v276
    %v1698 = vunpack.c.h.b16 %v276
    %v1699 = vunpack.c.l.b16 %v277
    %v1700 = vunpack.c.h.b16 %v277
    %v1701 = vunpack.c.l.b16 %v278
    %v1702 = vunpack.c.h.b16 %v278
    %v1703 = vunpack.c.l.b16 %v279
    %v1704 = vunpack.c.h.b16 %v279
    %v1705 = vunpack.c.l.b16 %v280
    %v1706 = vunpack.c.h.b16 %v280
    %v1707 = vunpack.c.l.b16 %v281
    %v1708 = vunpack.c.h.b16 %v281
    %v1709 = vunpack.c.l.b16 %v282
    %v1710 = vunpack.c.h.b16 %v282
    %v1711 = vunpack.c.l.b16 %v283
    %v1712 = vunpack.c.h.b16 %v283
    %v1713 = vunpack.c.l.b16 %v284
    %v1714 = vunpack.c.h.b16 %v284
    %v1715 = vunpack.c.l.b16 %v285
    %v1716 = vunpack.c.h.b16 %v285
    %v1717 = vunpack.c.l.b16 %v286
    %v1718 = vunpack.c.h.b16 %v286
    %v1719 = vunpack.c.l.b16 %v287
    %v1720 = vunpack.c.h.b16 %v287
    %v1721 = vunpack.c.l.b16 %v288
    %v1722 = vunpack.c.h.b16 %v288
    %v1723 = vunpack.c.l.b16 %v289
    %v1724 = vunpack.c.h.b16 %v289
    %v1725 = vunpack.c.l.b16 %v290
    %v1726 = vunpack.c.h.b16 %v290
    %v1727 = vunpack.c.l.b16 %v291
    %v1728 = vunpack.c.h.b16 %v291
    %v1729 = vunpack.c.l.b16 %v292
    %v1730 = vunpack.c.h.b16 %v292
    %v1731 = vunpack.c.l.b16 %v293
    %v1732 = vunpack.c.h.b16 %v293
    %v1733 = vunpack.c.l.b16 %v294
    %v1734 = vunpack.c.h.b16 %v294
    %v1735 = vunpack.c.l.b16 %v295
    %v1736 = vunpack.c.h.b16 %v295
    %v1737 = vunpack.c.l.b16 %v296
    %v1738 = vunpack.c.h.b16 %v296
    %v1739 = vunpack.c.l.b16 %v297
    %v1740 = vunpack.c.h.b16 %v297
    %v1741 = vunpack.c.l.b16 %v298
    %v1742 = vunpack.c.h.b16 %v298
    %v1743 = vunpack.c.l.b16 %v299
    %v1744 = vunpack.c.h.b16 %v299
    %v1745 = vunpack.c.l.b16 %v300
    %v1746 = vunpack.c.h.b16 %v300
    %v1747 = vunpack.c.l.b16 %v301
    %v1748 = vunpack.c.h.b16 %v301
    %v1749 = vunpack.c.l.b16 %v302
    %v1750 = vunpack.c.h.b16 %v302
    %v1751 = vunpack.c.l.b16 %v303
    %v1752 = vunpack.c.h.b16 %v303
    %v1753 = vunpack.c.l.b16 %v304
    %v1754 = vunpack.c.h.b16 %v304
    %v1755 = vunpack.c.l.b16 %v305
    %v1756 = vunpack.c.h.b16 %v305
    %v1757 = vunpack.c.l.b16 %v306
    %v1758 = vunpack.c.h.b16 %v306
    %v1759 = vunpack.c.l.b16 %v307
    %v1760 = vunpack.c.h.b16 %v307
    %v1761 = vunpack.c.l.b16 %v308
    %v1762 = vunpack.c.h.b16 %v308
    %v1763 = vunpack.c.l.b16 %v309
    %v1764 = vunpack.c.h.b16 %v309
    %v1765 = vunpack.c.l.b16 %v310
    %v1766 = vunpack.c.h.b16 %v310
    %v1767 = vunpack.c.l.b16 %v311
    %v1768 = vunpack.c.h.b16 %v311
    %v1769 = vunpack.c.l.b16 %v312
    %v1770 = vunpack.c.h.b16 %v312
    %v1771 = vunpack.c.l.b16 %v313
    %v1772 = vunpack.c.h.b16 %v313
    %v1773 = vunpack.c.l.b16 %v314
    %v1774 = vunpack.c.h.b16 %v314
    %v1775 = vunpack.c.l.b16 %v315
    %v1776 = vunpack.c.h.b16 %v315
    %v1777 = vunpack.c.l.b16 %v316
    %v1778 = vunpack.c.h.b16 %v316
    %v1779 = vunpack.c.l.b16 %v317
    %v1780 = vunpack.c.h.b16 %v317
    %v1781 = vunpack.c.l.b16 %v318
    %v1782 = vunpack.c.h.b16 %v318
    %v1783 = vunpack.c.l.b16 %v319
    %v1784 = vunpack.c.h.b16 %v319
    %v1785 = vunpack.c.l.b16 %v320
    %v1786 = vunpack.c.h.b16 %v320
    %v1787 = vunpack.c.l.b16 %v321
    %v1788 = vunpack.c.h.b16 %v321
    %v1789 = vunpack.c.l.b16 %v322
    %v1790 = vunpack.c.h.b16 %v322
    %v1791 = vunpack.c.l.b16 %v323
    %v1792 = vunpack.c.h.b16 %v323
    %v1793 = vunpack.c.l.b16 %v324
    %v1794 = vunpack.c.h.b16 %v324
    %v1795 = vunpack.c.l.b16 %v325
    %v1796 = vunpack.c.h.b16 %v325
    %v1797 = vunpack.c.l.b16 %v326
    %v1798 = vunpack.c.h.b16 %v326
    %v1799 = vunpack.c.l.b16 %v327
    %v1800 = vunpack.c.h.b16 %v327
    %v1801 = vunpack.c.l.b16 %v328
    %v1802 = vunpack.c.h.b16 %v328
    %v1803 = vunpack.c.l.b16 %v329
    %v1804 = vunpack.c.h.b16 %v329
    %v1805 = vunpack.c.l.b16 %v330
    %v1806 = vunpack.c.h.b16 %v330
    %v1807 = vunpack.c.l.b16 %v331
    %v1808 = vunpack.c.h.b16 %v331
    %v1809 = vunpack.c.l.b16 %v332
    %v1810 = vunpack.c.h.b16 %v332
    %v1811 = vunpack.c.l.b16 %v333
    %v1812 = vunpack.c.h.b16 %v333
    %v1813 = vunpack.c.l.b16 %v334
    %v1814 = vunpack.c.h.b16 %v334
    %v1815 = vunpack.c.l.b16 %v335
    %v1816 = vunpack.c.h.b16 %v335
    %v1817 = vunpack.c.l.b16 %v336
    %v1818 = vunpack.c.h.b16 %v336
    %v1819 = vunpack.c.l.b16 %v337
    %v1820 = vunpack.c.h.b16 %v337
    %v1821 = vunpack.c.l.b16 %v338
    %v1822 = vunpack.c.h.b16 %v338
    %v1823 = vunpack.c.l.b16 %v339
    %v1824 = vunpack.c.h.b16 %v339
    %v1825 = vunpack.c.l.b16 %v340
    %v1826 = vunpack.c.h.b16 %v340
    %v1827 = vunpack.c.l.b16 %v341
    %v1828 = vunpack.c.h.b16 %v341
    %v1829 = vunpack.c.l.b16 %v342
    %v1830 = vunpack.c.h.b16 %v342
    %v1831 = vunpack.c.l.b16 %v343
    %v1832 = vunpack.c.h.b16 %v343
    %v1833 = vunpack.c.l.b16 %v344
    %v1834 = vunpack.c.h.b16 %v344
    %v1835 = vunpack.c.l.b16 %v345
    %v1836 = vunpack.c.h.b16 %v345
    %v1837 = vunpack.c.l.b16 %v346
    %v1838 = vunpack.c.h.b16 %v346
    %v1839 = vunpack.c.l.b16 %v347
    %v1840 = vunpack.c.h.b16 %v347
    %v1841 = vunpack.c.l.b16 %v348
    %v1842 = vunpack.c.h.b16 %v348
    %v1843 = vunpack.c.l.b16 %v349
    %v1844 = vunpack.c.h.b16 %v349
    %v1845 = vunpack.c.l.b16 %v350
    %v1846 = vunpack.c.h.b16 %v350
    %v1847 = vunpack.c.l.b16 %v351
    %v1848 = vunpack.c.h.b16 %v351
    %v1849 = vunpack.c.l.b16 %v352
    %v1850 = vunpack.c.h.b16 %v352
    %v1851 = vunpack.c.l.b16 %v353
    %v1852 = vunpack.c.h.b16 %v353
    %v1853 = vunpack.c.l.b16 %v354
    %v1854 = vunpack.c.h.b16 %v354
    %v1855 = vunpack.c.l.b16 %v355
    %v1856 = vunpack.c.h.b16 %v355
    %v1857 = vunpack.c.l.b16 %v356
    %v1858 = vunpack.c.h.b16 %v356
    %v1859 = vunpack.c.l.b16 %v357
    %v1860 = vunpack.c.h.b16 %v357
    %v1861 = vunpack.c.l.b16 %v358
    %v1862 = vunpack.c.h.b16 %v358
    %v1863 = vunpack.c.l.b16 %v359
    %v1864 = vunpack.c.h.b16 %v359
    %v1865 = vunpack.c.l.b16 %v360
    %v1866 = vunpack.c.h.b16 %v360
    %v1867 = vunpack.c.l.b16 %v361
    %v1868 = vunpack.c.h.b16 %v361
    %v1869 = vunpack.c.l.b16 %v362
    %v1870 = vunpack.c.h.b16 %v362
    %v1871 = vunpack.c.l.b16 %v363
    %v1872 = vunpack.c.h.b16 %v363
    %v1873 = vunpack.c.l.b16 %v364
    %v1874 = vunpack.c.h.b16 %v364
    %v1875 = vunpack.c.l.b16 %v365
    %v1876 = vunpack.c.h.b16 %v365
    %v1877 = vunpack.c.l.b16 %v366
    %v1878 = vunpack.c.h.b16 %v366
    %v1879 = vunpack.c.l.b16 %v367
    %v1880 = vunpack.c.h.b16 %v367
    %v1881 = vunpack.c.l.b16 %v368
    %v1882 = vunpack.c.h.b16 %v368
    %v1883 = vunpack.c.l.b16 %v369
    %v1884 = vunpack.c.h.b16 %v369
    %v1885 = vunpack.c.l.b16 %v370
    %v1886 = vunpack.c.h.b16 %v370
    %v1887 = vunpack.c.l.b16 %v371
    %v1888 = vunpack.c.h.b16 %v371
    %v1889 = vunpack.c.l.b16 %v372
    %v1890 = vunpack.c.h.b16 %v372
    %v1891 = vunpack.c.l.b16 %v373
    %v1892 = vunpack.c.h.b16 %v373
    %v1893 = vunpack.c.l.b16 %v374
    %v1894 = vunpack.c.h.b16 %v374
    %v1895 = vunpack.c.l.b16 %v375
    %v1896 = vunpack.c.h.b16 %v375
    %v1897 = vunpack.c.l.b16 %v376
    %v1898 = vunpack.c.h.b16 %v376
    %v1899 = vunpack.c.l.b16 %v377
    %v1900 = vunpack.c.h.b16 %v377
    %v1901 = vunpack.c.l.b16 %v378
    %v1902 = vunpack.c.h.b16 %v378
    %v1903 = vunpack.c.l.b16 %v379
    %v1904 = vunpack.c.h.b16 %v379
    %v1905 = vunpack.c.l.b16 %v380
    %v1906 = vunpack.c.h.b16 %v380
    %v1907 = vunpack.c.l.b16 %v381
    %v1908 = vunpack.c.h.b16 %v381
    %v1909 = vunpack.c.l.b16 %v382
    %v1910 = vunpack.c.h.b16 %v382
    %v1911 = vunpack.c.l.b16 %v383
    %v1912 = vunpack.c.h.b16 %v383
    %v1913 = vunpack.c.l.b16 %v384
    %v1914 = vunpack.c.h.b16 %v384
    %v1915 = vunpack.c.l.b16 %v385
    %v1916 = vunpack.c.h.b16 %v385
    %v1917 = vunpack.c.l.b16 %v386
    %v1918 = vunpack.c.h.b16 %v386
    %v1919 = vunpack.c.l.b16 %v387
    %v1920 = vunpack.c.h.b16 %v387
    %v1921 = vunpack.c.l.b16 %v388
    %v1922 = vunpack.c.h.b16 %v388
    %v1923 = vunpack.c.l.b16 %v389
    %v1924 = vunpack.c.h.b16 %v389
    %v1925 = vunpack.c.l.b16 %v390
    %v1926 = vunpack.c.h.b16 %v390
    %v1927 = vunpack.c.l.b16 %v391
    %v1928 = vunpack.c.h.b16 %v391
    %v1929 = vunpack.c.l.b16 %v392
    %v1930 = vunpack.c.h.b16 %v392
    %v1931 = vunpack.c.l.b16 %v393
    %v1932 = vunpack.c.h.b16 %v393
    %v1933 = vunpack.c.l.b16 %v394
    %v1934 = vunpack.c.h.b16 %v394
    %v1935 = vunpack.c.l.b16 %v395
    %v1936 = vunpack.c.h.b16 %v395
    %v1937 = vunpack.c.l.b16 %v396
    %v1938 = vunpack.c.h.b16 %v396
    %v1939 = vunpack.c.l.b16 %v397
    %v1940 = vunpack.c.h.b16 %v397
    %v1941 = vunpack.c.l.b16 %v398
    %v1942 = vunpack.c.h.b16 %v398
    %v1943 = vunpack.c.l.b16 %v399
    %v1944 = vunpack.c.h.b16 %v399
    %v1945 = vunpack.c.l.b16 %v400
    %v1946 = vunpack.c.h.b16 %v400
    %v1947 = vunpack.c.l.b16 %v401
    %v1948 = vunpack.c.h.b16 %v401
    %v1949 = vunpack.c.l.b16 %v402
    %v1950 = vunpack.c.h.b16 %v402
    %v1951 = vunpack.c.l.b16 %v403
    %v1952 = vunpack.c.h.b16 %v403
    %v1953 = vunpack.c.l.b16 %v404
    %v1954 = vunpack.c.h.b16 %v404
    %v1955 = vunpack.c.l.b16 %v405
    %v1956 = vunpack.c.h.b16 %v405
    %v1957 = vunpack.c.l.b16 %v406
    %v1958 = vunpack.c.h.b16 %v406
    %v1959 = vunpack.c.l.b16 %v407
    %v1960 = vunpack.c.h.b16 %v407
    %v1961 = vunpack.c.l.b16 %v408
    %v1962 = vunpack.c.h.b16 %v408
    %v1963 = vunpack.c.l.b16 %v409
    %v1964 = vunpack.c.h.b16 %v409
    %v1965 = vunpack.c.l.b16 %v410
    %v1966 = vunpack.c.h.b16 %v410
    %v1967 = vunpack.c.l.b16 %v411
    %v1968 = vunpack.c.h.b16 %v411
    %v1969 = vunpack.c.l.b16 %v412
    %v1970 = vunpack.c.h.b16 %v412
    %v1971 = vunpack.c.l.b16 %v413
    %v1972 = vunpack.c.h.b16 %v413
    %v1973 = vunpack.c.l.b16 %v414
    %v1974 = vunpack.c.h.b16 %v414
    %v1975 = vunpack.c.l.b16 %v415
    %v1976 = vunpack.c.h.b16 %v415
    %v1977 = vunpack.c.l.b16 %v416
    %v1978 = vunpack.c.h.b16 %v416
    %v1979 = vunpack.c.l.b16 %v417
    %v1980 = vunpack.c.h.b16 %v417
    %v1981 = vunpack.c.l.b16 %v418
    %v1982 = vunpack.c.h.b16 %v418
    %v1983 = vunpack.c.l.b16 %v419
    %v1984 = vunpack.c.h.b16 %v419
    %v1985 = vunpack.c.l.b16 %v420
    %v1986 = vunpack.c.h.b16 %v420
    %v1987 = vunpack.c.l.b16 %v421
    %v1988 = vunpack.c.h.b16 %v421
    %v1989 = vunpack.c.l.b16 %v422
    %v1990 = vunpack.c.h.b16 %v422
    %v1991 = vunpack.c.l.b16 %v423
    %v1992 = vunpack.c.h.b16 %v423
    %v1993 = vunpack.c.l.b16 %v424
    %v1994 = vunpack.c.h.b16 %v424
    %v1995 = vunpack.c.l.b16 %v425
    %v1996 = vunpack.c.h.b16 %v425
    %v1997 = vunpack.c.l.b16 %v426
    %v1998 = vunpack.c.h.b16 %v426
    %v1999 = vunpack.c.l.b16 %v427
    %v2000 = vunpack.c.h.b16 %v427
    %v2001 = vunpack.c.l.b16 %v428
    %v2002 = vunpack.c.h.b16 %v428
    %v2003 = vunpack.c.l.b16 %v429
    %v2004 = vunpack.c.h.b16 %v429
    %v2005 = vunpack.c.l.b16 %v430
    %v2006 = vunpack.c.h.b16 %v430
    %v2007 = vunpack.c.l.b16 %v431
    %v2008 = vunpack.c.h.b16 %v431
    %v2009 = vunpack.c.l.b16 %v432
    %v2010 = vunpack.c.h.b16 %v432
    %v2011 = vunpack.c.l.b16 %v433
    %v2012 = vunpack.c.h.b16 %v433
    %v2013 = vunpack.c.l.b16 %v434
    %v2014 = vunpack.c.h.b16 %v434
    %v2015 = vunpack.c.l.b16 %v435
    %v2016 = vunpack.c.h.b16 %v435
    %v2017 = vunpack.c.l.b16 %v436
    %v2018 = vunpack.c.h.b16 %v436
    %v2019 = vunpack.c.l.b16 %v437
    %v2020 = vunpack.c.h.b16 %v437
    %v2021 = vunpack.c.l.b16 %v438
    %v2022 = vunpack.c.h.b16 %v438
    %v2023 = vunpack.c.l.b16 %v439
    %v2024 = vunpack.c.h.b16 %v439
    %v2025 = vunpack.c.l.b16 %v440
    %v2026 = vunpack.c.h.b16 %v440
    %v2027 = vunpack.c.l.b16 %v441
    %v2028 = vunpack.c.h.b16 %v441
    %v2029 = vunpack.c.l.b16 %v442
    %v2030 = vunpack.c.h.b16 %v442
    %v2031 = vunpack.c.l.b16 %v443
    %v2032 = vunpack.c.h.b16 %v443
    %v2033 = vunpack.c.l.b16 %v444
    %v2034 = vunpack.c.h.b16 %v444
    %v2035 = vunpack.c.l.b16 %v445
    %v2036 = vunpack.c.h.b16 %v445
    %v2037 = vunpack.c.l.b16 %v446
    %v2038 = vunpack.c.h.b16 %v446
    %v2039 = vunpack.c.l.b16 %v447
    %v2040 = vunpack.c.h.b16 %v447
    %v2041 = vunpack.c.l.b16 %v448
    %v2042 = vunpack.c.h.b16 %v448
    %v2043 = vunpack.c.l.b16 %v449
    %v2044 = vunpack.c.h.b16 %v449
    %v2045 = vunpack.c.l.b16 %v450
    %v2046 = vunpack.c.h.b16 %v450
    %v2047 = vunpack.c.l.b16 %v451
    %v2048 = vunpack.c.h.b16 %v451
    %v2049 = vunpack.c.l.b16 %v452
    %v2050 = vunpack.c.h.b16 %v452
    %v2051 = vunpack.c.l.b16 %v453
    %v2052 = vunpack.c.h.b16 %v453
    %v2053 = vunpack.c.l.b16 %v454
    %v2054 = vunpack.c.h.b16 %v454
    %v2055 = vunpack.c.l.b16 %v455
    %v2056 = vunpack.c.h.b16 %v455
    %v2057 = vunpack.c.l.b16 %v456
    %v2058 = vunpack.c.h.b16 %v456
    %v2059 = vunpack.c.l.b16 %v457
    %v2060 = vunpack.c.h.b16 %v457
    %v2061 = vunpack.c.l.b16 %v458
    %v2062 = vunpack.c.h.b16 %v458
    %v2063 = vunpack.c.l.b16 %v459
    %v2064 = vunpack.c.h.b16 %v459
    %v2065 = vunpack.c.l.b16 %v460
    %v2066 = vunpack.c.h.b16 %v460
    %v2067 = vunpack.c.l.b16 %v461
    %v2068 = vunpack.c.h.b16 %v461
    %v2069 = vunpack.c.l.b16 %v462
    %v2070 = vunpack.c.h.b16 %v462
    %v2071 = vunpack.c.l.b16 %v463
    %v2072 = vunpack.c.h.b16 %v463
    %v2073 = vunpack.c.l.b16 %v464
    %v2074 = vunpack.c.h.b16 %v464
    %v2075 = vunpack.c.l.b16 %v465
    %v2076 = vunpack.c.h.b16 %v465
    %v2077 = vunpack.c.l.b16 %v466
    %v2078 = vunpack.c.h.b16 %v466
    %v2079 = vunpack.c.l.b16 %v467
    %v2080 = vunpack.c.h.b16 %v467
    %v2081 = vunpack.c.l.b16 %v468
    %v2082 = vunpack.c.h.b16 %v468
    %v2083 = vunpack.c.l.b16 %v469
    %v2084 = vunpack.c.h.b16 %v469
    %v2085 = vunpack.c.l.b16 %v470
    %v2086 = vunpack.c.h.b16 %v470
    %v2087 = vunpack.c.l.b16 %v471
    %v2088 = vunpack.c.h.b16 %v471
    %v2089 = vunpack.c.l.b16 %v472
    %v2090 = vunpack.c.h.b16 %v472
    %v2091 = vunpack.c.l.b16 %v473
    %v2092 = vunpack.c.h.b16 %v473
    %v2093 = vunpack.c.l.b16 %v474
    %v2094 = vunpack.c.h.b16 %v474
    %v2095 = vunpack.c.l.b16 %v475
    %v2096 = vunpack.c.h.b16 %v475
    %v2097 = vunpack.c.l.b16 %v476
    %v2098 = vunpack.c.h.b16 %v476
    %v2099 = vunpack.c.l.b16 %v477
    %v2100 = vunpack.c.h.b16 %v477
    %v2101 = vunpack.c.l.b16 %v478
    %v2102 = vunpack.c.h.b16 %v478
    %v2103 = vunpack.c.l.b16 %v479
    %v2104 = vunpack.c.h.b16 %v479
    %v2105 = vunpack.c.l.b16 %v480
    %v2106 = vunpack.c.h.b16 %v480
    %v2107 = vunpack.c.l.b16 %v481
    %v2108 = vunpack.c.h.b16 %v481
    %v2109 = vunpack.c.l.b16 %v482
    %v2110 = vunpack.c.h.b16 %v482
    %v2111 = vunpack.c.l.b16 %v483
    %v2112 = vunpack.c.h.b16 %v483
    %v2113 = vunpack.c.l.b16 %v484
    %v2114 = vunpack.c.h.b16 %v484
    %v2115 = vunpack.c.l.b16 %v485
    %v2116 = vunpack.c.h.b16 %v485
    %v2117 = vunpack.c.l.b16 %v486
    %v2118 = vunpack.c.h.b16 %v486
    %v2119 = vunpack.c.l.b16 %v487
    %v2120 = vunpack.c.h.b16 %v487
    %v2121 = vunpack.c.l.b16 %v488
    %v2122 = vunpack.c.h.b16 %v488
    %v2123 = vunpack.c.l.b16 %v489
    %v2124 = vunpack.c.h.b16 %v489
    %v2125 = vunpack.c.l.b16 %v490
    %v2126 = vunpack.c.h.b16 %v490
    %v2127 = vunpack.c.l.b16 %v491
    %v2128 = vunpack.c.h.b16 %v491
    %v2129 = vunpack.c.l.b16 %v492
    %v2130 = vunpack.c.h.b16 %v492
    %v2131 = vunpack.c.l.b16 %v493
    %v2132 = vunpack.c.h.b16 %v493
    %v2133 = vunpack.c.l.b16 %v494
    %v2134 = vunpack.c.h.b16 %v494
    %v2135 = vunpack.c.l.b16 %v495
    %v2136 = vunpack.c.h.b16 %v495
    %v2137 = vunpack.c.l.b16 %v496
    %v2138 = vunpack.c.h.b16 %v496
    %v2139 = vunpack.c.l.b16 %v497
    %v2140 = vunpack.c.h.b16 %v497
    %v2141 = vunpack.c.l.b16 %v498
    %v2142 = vunpack.c.h.b16 %v498
    %v2143 = vunpack.c.l.b16 %v499
    %v2144 = vunpack.c.h.b16 %v499
    %v2145 = vunpack.c.l.b16 %v500
    %v2146 = vunpack.c.h.b16 %v500
    %v2147 = vunpack.c.l.b16 %v501
    %v2148 = vunpack.c.h.b16 %v501
    %v2149 = vunpack.c.l.b16 %v502
    %v2150 = vunpack.c.h.b16 %v502
    %v2151 = vunpack.c.l.b16 %v503
    %v2152 = vunpack.c.h.b16 %v503
    %v2153 = vunpack.c.l.b16 %v504
    %v2154 = vunpack.c.h.b16 %v504
    %v2155 = vunpack.c.l.b16 %v505
    %v2156 = vunpack.c.h.b16 %v505
    %v2157 = vunpack.c.l.b16 %v506
    %v2158 = vunpack.c.h.b16 %v506
    %v2159 = vunpack.c.l.b16 %v507
    %v2160 = vunpack.c.h.b16 %v507
    %v2161 = vunpack.c.l.b16 %v508
    %v2162 = vunpack.c.h.b16 %v508
    %v2163 = vunpack.c.l.b16 %v509
    %v2164 = vunpack.c.h.b16 %v509
    %v2165 = vunpack.c.l.b16 %v510
    %v2166 = vunpack.c.h.b16 %v510
    %v2167 = vunpack.c.l.b16 %v511
    %v2168 = vunpack.c.h.b16 %v511
    %v2169 = vunpack.c.l.b16 %v512
    %v2170 = vunpack.c.h.b16 %v512
    %v2171 = vunpack.c.l.b16 %v513
    %v2172 = vunpack.c.h.b16 %v513
    %v2173 = vunpack.c.l.b16 %v514
    %v2174 = vunpack.c.h.b16 %v514
    %v2175 = vunpack.c.l.b16 %v515
    %v2176 = vunpack.c.h.b16 %v515
    %v2177 = vunpack.c.l.b16 %v516
    %v2178 = vunpack.c.h.b16 %v516
    %v2179 = vunpack.c.l.b16 %v517
    %v2180 = vunpack.c.h.b16 %v517
    %v2181 = vunpack.c.l.b16 %v518
    %v2182 = vunpack.c.h.b16 %v518
    %v2183 = vunpack.c.l.b16 %v519
    %v2184 = vunpack.c.h.b16 %v519
    %v2185 = vunpack.c.l.b16 %v520
    %v2186 = vunpack.c.h.b16 %v520
    %v2187 = vunpack.c.l.b16 %v521
    %v2188 = vunpack.c.h.b16 %v521
    %v2189 = vunpack.c.l.b16 %v522
    %v2190 = vunpack.c.h.b16 %v522
    %v2191 = vunpack.c.l.b16 %v523
    %v2192 = vunpack.c.h.b16 %v523
    %v2193 = vunpack.c.l.b16 %v524
    %v2194 = vunpack.c.h.b16 %v524
    %v2195 = vunpack.c.l.b16 %v525
    %v2196 = vunpack.c.h.b16 %v525
    %v2197 = vunpack.c.l.b16 %v526
    %v2198 = vunpack.c.h.b16 %v526
    %v2199 = vunpack.c.l.b16 %v527
    %v2200 = vunpack.c.h.b16 %v527
    %v2201 = vunpack.c.l.b16 %v528
    %v2202 = vunpack.c.h.b16 %v528
    %v2203 = vunpack.c.l.b16 %v529
    %v2204 = vunpack.c.h.b16 %v529
    %v2205 = vunpack.c.l.b16 %v530
    %v2206 = vunpack.c.h.b16 %v530
    %v2207 = vunpack.c.l.b16 %v531
    %v2208 = vunpack.c.h.b16 %v531
    %v2209 = vunpack.c.l.b16 %v532
    %v2210 = vunpack.c.h.b16 %v532
    %v2211 = vunpack.c.l.b16 %v533
    %v2212 = vunpack.c.h.b16 %v533
    %v2213 = vunpack.c.l.b16 %v534
    %v2214 = vunpack.c.h.b16 %v534
    %v2215 = vunpack.c.l.b16 %v535
    %v2216 = vunpack.c.h.b16 %v535
    %v2217 = vunpack.c.l.b16 %v536
    %v2218 = vunpack.c.h.b16 %v536
    %v2219 = vunpack.c.l.b16 %v537
    %v2220 = vunpack.c.h.b16 %v537
    %v2221 = vunpack.c.l.b16 %v538
    %v2222 = vunpack.c.h.b16 %v538
    %v2223 = vunpack.c.l.b16 %v539
    %v2224 = vunpack.c.h.b16 %v539
    %v2225 = vunpack.c.l.b16 %v540
    %v2226 = vunpack.c.h.b16 %v540
    %v2227 = vunpack.c.l.b16 %v541
    %v2228 = vunpack.c.h.b16 %v541
    %v2229 = vunpack.c.l.b16 %v542
    %v2230 = vunpack.c.h.b16 %v542
    %v2231 = vunpack.c.l.b16 %v543
    %v2232 = vunpack.c.h.b16 %v543
    %v2233 = vunpack.c.l.b16 %v544
    %v2234 = vunpack.c.h.b16 %v544
    %v2235 = vunpack.c.l.b16 %v545
    %v2236 = vunpack.c.h.b16 %v545
    %v2237 = vunpack.c.l.b16 %v546
    %v2238 = vunpack.c.h.b16 %v546
    %v2239 = vunpack.c.l.b16 %v547
    %v2240 = vunpack.c.h.b16 %v547
    %v2241 = vunpack.c.l.b16 %v548
    %v2242 = vunpack.c.h.b16 %v548
    %v2243 = vunpack.c.l.b16 %v549
    %v2244 = vunpack.c.h.b16 %v549
    %v2245 = vunpack.c.l.b16 %v550
    %v2246 = vunpack.c.h.b16 %v550
    %v2247 = vunpack.c.l.b16 %v551
    %v2248 = vunpack.c.h.b16 %v551
    %v2249 = vunpack.c.l.b16 %v552
    %v2250 = vunpack.c.h.b16 %v552
    %v2251 = vunpack.c.l.b16 %v553
    %v2252 = vunpack.c.h.b16 %v553
    %v2253 = vunpack.c.l.b16 %v554
    %v2254 = vunpack.c.h.b16 %v554
    %v2255 = vunpack.c.l.b16 %v555
    %v2256 = vunpack.c.h.b16 %v555
    %v2257 = vunpack.c.l.b16 %v556
    %v2258 = vunpack.c.h.b16 %v556
    %v2259 = vunpack.c.l.b16 %v557
    %v2260 = vunpack.c.h.b16 %v557
    %v2261 = vunpack.c.l.b16 %v558
    %v2262 = vunpack.c.h.b16 %v558
    %v2263 = vunpack.c.l.b16 %v559
    %v2264 = vunpack.c.h.b16 %v559
    %v2265 = vunpack.c.l.b16 %v560
    %v2266 = vunpack.c.h.b16 %v560
    %v2267 = vunpack.c.l.b16 %v561
    %v2268 = vunpack.c.h.b16 %v561
    %v2269 = vunpack.c.l.b16 %v562
    %v2270 = vunpack.c.h.b16 %v562
    %v2271 = vunpack.c.l.b16 %v563
    %v2272 = vunpack.c.h.b16 %v563
    %v2273 = vunpack.c.l.b16 %v564
    %v2274 = vunpack.c.h.b16 %v564
    %v2275 = vunpack.c.l.b16 %v565
    %v2276 = vunpack.c.h.b16 %v565
    %v2277 = vunpack.c.l.b16 %v566
    %v2278 = vunpack.c.h.b16 %v566
    %v2279 = vunpack.c.l.b16 %v567
    %v2280 = vunpack.c.h.b16 %v567
    %v2281 = vunpack.c.l.b16 %v568
    %v2282 = vunpack.c.h.b16 %v568
    %v2283 = vunpack.c.l.b16 %v569
    %v2284 = vunpack.c.h.b16 %v569
    %v2285 = vunpack.c.l.b16 %v570
    %v2286 = vunpack.c.h.b16 %v570
    %v2287 = vunpack.c.l.b16 %v571
    %v2288 = vunpack.c.h.b16 %v571
    %v2289 = vunpack.c.l.b16 %v572
    %v2290 = vunpack.c.h.b16 %v572
    %v2291 = vunpack.c.l.b16 %v573
    %v2292 = vunpack.c.h.b16 %v573
    %v2293 = vunpack.c.l.b16 %v574
    %v2294 = vunpack.c.h.b16 %v574
    %v2295 = vunpack.c.l.b16 %v575
    %v2296 = vunpack.c.h.b16 %v575
    %v2297 = vunpack.c.l.b16 %v576
    %v2298 = vunpack.c.h.b16 %v576
    %v2299 = vunpack.c.l.b16 %v577
    %v2300 = vunpack.c.h.b16 %v577
    %v2301 = vunpack.c.l.b16 %v578
    %v2302 = vunpack.c.h.b16 %v578
    %v2303 = vunpack.c.l.b16 %v579
    %v2304 = vunpack.c.h.b16 %v579
    %v2305 = vunpack.c.l.b16 %v580
    %v2306 = vunpack.c.h.b16 %v580
    %v2307 = vunpack.c.l.b16 %v581
    %v2308 = vunpack.c.h.b16 %v581
    %v2309 = vunpack.c.l.b16 %v582
    %v2310 = vunpack.c.h.b16 %v582
    %v2311 = vunpack.c.l.b16 %v583
    %v2312 = vunpack.c.h.b16 %v583
    %v2313 = vunpack.c.l.b16 %v584
    %v2314 = vunpack.c.h.b16 %v584
    %v2315 = vunpack.c.l.b16 %v585
    %v2316 = vunpack.c.h.b16 %v585
    %v2317 = vunpack.c.l.b16 %v586
    %v2318 = vunpack.c.h.b16 %v586
    %v2319 = vunpack.c.l.b16 %v587
    %v2320 = vunpack.c.h.b16 %v587
    %v2321 = vunpack.c.l.b16 %v588
    %v2322 = vunpack.c.h.b16 %v588
    %v2323 = vunpack.c.l.b16 %v589
    %v2324 = vunpack.c.h.b16 %v589
    %v2325 = vunpack.c.l.b16 %v590
    %v2326 = vunpack.c.h.b16 %v590
    %v2327 = vunpack.c.l.b16 %v591
    %v2328 = vunpack.c.h.b16 %v591
    %v2329 = vunpack.c.l.b16 %v592
    %v2330 = vunpack.c.h.b16 %v592
    %v2331 = vunpack.c.l.b16 %v593
    %v2332 = vunpack.c.h.b16 %v593
    %v2333 = vunpack.c.l.b16 %v594
    %v2334 = vunpack.c.h.b16 %v594
    %v2335 = vunpack.c.l.b16 %v595
    %v2336 = vunpack.c.h.b16 %v595
    %v2337 = vunpack.c.l.b16 %v596
    %v2338 = vunpack.c.h.b16 %v596
    %v2339 = vunpack.c.l.b16 %v597
    %v2340 = vunpack.c.h.b16 %v597
    %v2341 = vunpack.c.l.b16 %v598
    %v2342 = vunpack.c.h.b16 %v598
    %v2343 = vunpack.c.l.b16 %v599
    %v2344 = vunpack.c.h.b16 %v599
    %v2345 = vunpack.c.l.b16 %v600
    %v2346 = vunpack.c.h.b16 %v600
    %v2347 = vunpack.c.l.b16 %v601
    %v2348 = vunpack.c.h.b16 %v601
    %v2349 = vunpack.c.l.b16 %v602
    %v2350 = vunpack.c.h.b16 %v602
    %v2351 = vunpack.c.l.b16 %v603
    %v2352 = vunpack.c.h.b16 %v603
    %v2353 = vunpack.c.l.b16 %v604
    %v2354 = vunpack.c.h.b16 %v604
    %v2355 = vunpack.c.l.b16 %v605
    %v2356 = vunpack.c.h.b16 %v605
    %v2357 = vunpack.c.l.b16 %v606
    %v2358 = vunpack.c.h.b16 %v606
    %v2359 = vunpack.c.l.b16 %v607
    %v2360 = vunpack.c.h.b16 %v607
    %v2361 = vunpack.c.l.b16 %v608
    %v2362 = vunpack.c.h.b16 %v608
    %v2363 = vunpack.c.l.b16 %v609
    %v2364 = vunpack.c.h.b16 %v609
    %v2365 = vunpack.c.l.b16 %v610
    %v2366 = vunpack.c.h.b16 %v610
    %v2367 = vunpack.c.l.b16 %v611
    %v2368 = vunpack.c.h.b16 %v611
    %v2369 = vunpack.c.l.b16 %v612
    %v2370 = vunpack.c.h.b16 %v612
    %v2371 = vunpack.c.l.b16 %v613
    %v2372 = vunpack.c.h.b16 %v613
    %v2373 = vunpack.c.l.b16 %v614
    %v2374 = vunpack.c.h.b16 %v614
    %v2375 = vunpack.c.l.b16 %v615
    %v2376 = vunpack.c.h.b16 %v615
    %v2377 = vunpack.c.l.b16 %v616
    %v2378 = vunpack.c.h.b16 %v616
    %v2379 = vunpack.c.l.b16 %v617
    %v2380 = vunpack.c.h.b16 %v617
    %v2381 = vunpack.c.l.b16 %v618
    %v2382 = vunpack.c.h.b16 %v618
    %v2383 = vunpack.c.l.b16 %v619
    %v2384 = vunpack.c.h.b16 %v619
    %v2385 = vunpack.c.l.b16 %v620
    %v2386 = vunpack.c.h.b16 %v620
    %v2387 = vunpack.c.l.b16 %v621
    %v2388 = vunpack.c.h.b16 %v621
    %v2389 = vunpack.c.l.b16 %v622
    %v2390 = vunpack.c.h.b16 %v622
    %v2391 = vunpack.c.l.b16 %v623
    %v2392 = vunpack.c.h.b16 %v623
    %v2393 = vunpack.c.l.b16 %v624
    %v2394 = vunpack.c.h.b16 %v624
    %v2395 = vunpack.c.l.b16 %v625
    %v2396 = vunpack.c.h.b16 %v625
    %v2397 = vunpack.c.l.b16 %v626
    %v2398 = vunpack.c.h.b16 %v626
    %v2399 = vunpack.c.l.b16 %v627
    %v2400 = vunpack.c.h.b16 %v627
    %v2401 = vunpack.c.l.b16 %v628
    %v2402 = vunpack.c.h.b16 %v628
    %v2403 = vunpack.c.l.b16 %v629
    %v2404 = vunpack.c.h.b16 %v629
    %v2405 = vunpack.c.l.b16 %v630
    %v2406 = vunpack.c.h.b16 %v630
    %v2407 = vunpack.c.l.b16 %v631
    %v2408 = vunpack.c.h.b16 %v631
    %v2409 = vunpack.c.l.b16 %v632
    %v2410 = vunpack.c.h.b16 %v632
    %v2411 = vunpack.c.l.b16 %v633
    %v2412 = vunpack.c.h.b16 %v633
    %v2413 = vunpack.c.l.b16 %v634
    %v2414 = vunpack.c.h.b16 %v634
    %v2415 = vunpack.c.l.b16 %v635
    %v2416 = vunpack.c.h.b16 %v635
    %v2417 = vunpack.c.l.b16 %v636
    %v2418 = vunpack.c.h.b16 %v636
    %v2419 = vunpack.c.l.b16 %v637
    %v2420 = vunpack.c.h.b16 %v637
    %v2421 = vunpack.c.l.b16 %v638
    %v2422 = vunpack.c.h.b16 %v638
    %v2423 = vunpack.c.l.b16 %v639
    %v2424 = vunpack.c.h.b16 %v639
    %v2425 = vunpack.c.l.b16 %v640
    %v2426 = vunpack.c.h.b16 %v640
    %v2427 = vunpack.c.l.b16 %v641
    %v2428 = vunpack.c.h.b16 %v641
    %v2429 = vunpack.c.l.b16 %v642
    %v2430 = vunpack.c.h.b16 %v642
    %v2431 = vunpack.c.l.b16 %v643
    %v2432 = vunpack.c.h.b16 %v643
    %v2433 = vunpack.c.l.b16 %v644
    %v2434 = vunpack.c.h.b16 %v644
    %v2435 = vunpack.c.l.b16 %v645
    %v2436 = vunpack.c.h.b16 %v645
    %v2437 = vunpack.c.l.b16 %v646
    %v2438 = vunpack.c.h.b16 %v646
    %v2439 = vunpack.c.l.b16 %v647
    %v2440 = vunpack.c.h.b16 %v647
    %v2441 = vunpack.c.l.b16 %v648
    %v2442 = vunpack.c.h.b16 %v648
    %v2443 = vunpack.c.l.b16 %v649
    %v2444 = vunpack.c.h.b16 %v649
    %v2445 = vunpack.c.l.b16 %v650
    %v2446 = vunpack.c.h.b16 %v650
    %v2447 = vunpack.c.l.b16 %v651
    %v2448 = vunpack.c.h.b16 %v651
    %v2449 = vunpack.c.l.b16 %v652
    %v2450 = vunpack.c.h.b16 %v652
    %v2451 = vunpack.c.l.b16 %v653
    %v2452 = vunpack.c.h.b16 %v653
    %v2453 = vunpack.c.l.b16 %v654
    %v2454 = vunpack.c.h.b16 %v654
    %v2455 = vunpack.c.l.b16 %v655
    %v2456 = vunpack.c.h.b16 %v655
    %v2457 = vunpack.c.l.b16 %v656
    %v2458 = vunpack.c.h.b16 %v656
    %v2459 = vunpack.c.l.b16 %v657
    %v2460 = vunpack.c.h.b16 %v657
    %v2461 = vunpack.c.l.b16 %v658
    %v2462 = vunpack.c.h.b16 %v658
    %v2463 = vunpack.c.l.b16 %v659
    %v2464 = vunpack.c.h.b16 %v659
    %v2465 = vunpack.c.l.b16 %v660
    %v2466 = vunpack.c.h.b16 %v660
    %v2467 = vunpack.c.l.b16 %v661
    %v2468 = vunpack.c.h.b16 %v661
    %v2469 = vunpack.c.l.b16 %v662
    %v2470 = vunpack.c.h.b16 %v662
    %v2471 = vunpack.c.l.b16 %v663
    %v2472 = vunpack.c.h.b16 %v663
    %v2473 = vunpack.c.l.b16 %v664
    %v2474 = vunpack.c.h.b16 %v664
    %v2475 = vunpack.c.l.b16 %v665
    %v2476 = vunpack.c.h.b16 %v665
    %v2477 = vunpack.c.l.b16 %v666
    %v2478 = vunpack.c.h.b16 %v666
    %v2479 = vunpack.c.l.b16 %v667
    %v2480 = vunpack.c.h.b16 %v667
    %v2481 = vpack.c.b16 %v1333, %v1329
    %v2482 = vpack.c.b16 %v1334, %v1330
    %v2483 = vpack.c.b16 %v1335, %v1331
    %v2484 = vpack.c.b16 %v1336, %v1332
    %v2485 = vpack.c.b16 %v1341, %v1337
    %v2486 = vpack.c.b16 %v1342, %v1338
    %v2487 = vpack.c.b16 %v1343, %v1339
    %v2488 = vpack.c.b16 %v1344, %v1340
    %v2489 = vpack.c.b16 %v1349, %v1345
    %v2490 = vpack.c.b16 %v1350, %v1346
    %v2491 = vpack.c.b16 %v1351, %v1347
    %v2492 = vpack.c.b16 %v1352, %v1348
    %v2493 = vpack.c.b16 %v1357, %v1353
    %v2494 = vpack.c.b16 %v1358, %v1354
    %v2495 = vpack.c.b16 %v1359, %v1355
    %v2496 = vpack.c.b16 %v1360, %v1356
    %v2497 = vpack.c.b16 %v1365, %v1361
    %v2498 = vpack.c.b16 %v1366, %v1362
    %v2499 = vpack.c.b16 %v1367, %v1363
    %v2500 = vpack.c.b16 %v1368, %v1364
    %v2501 = vpack.c.b16 %v1373, %v1369
    %v2502 = vpack.c.b16 %v1374, %v1370
    %v2503 = vpack.c.b16 %v1375, %v1371
    %v2504 = vpack.c.b16 %v1376, %v1372
    %v2505 = vpack.c.b16 %v1381, %v1377
    %v2506 = vpack.c.b16 %v1382, %v1378
    %v2507 = vpack.c.b16 %v1383, %v1379
    %v2508 = vpack.c.b16 %v1384, %v1380
    %v2509 = vpack.c.b16 %v1389, %v1385
    %v2510 = vpack.c.b16 %v1390, %v1386
    %v2511 = vpack.c.b16 %v1391, %v1387
    %v2512 = vpack.c.b16 %v1392, %v1388
    %v2513 = vpack.c.b16 %v1397, %v1393
    %v2514 = vpack.c.b16 %v1398, %v1394
    %v2515 = vpack.c.b16 %v1399, %v1395
    %v2516 = vpack.c.b16 %v1400, %v1396
    %v2517 = vpack.c.b16 %v1405, %v1401
    %v2518 = vpack.c.b16 %v1406, %v1402
    %v2519 = vpack.c.b16 %v1407, %v1403
    %v2520 = vpack.c.b16 %v1408, %v1404
    %v2521 = vpack.c.b16 %v1413, %v1409
    %v2522 = vpack.c.b16 %v1414, %v1410
    %v2523 = vpack.c.b16 %v1415, %v1411
    %v2524 = vpack.c.b16 %v1416, %v1412
    %v2525 = vpack.c.b16 %v1421, %v1417
    %v2526 = vpack.c.b16 %v1422, %v1418
    %v2527 = vpack.c.b16 %v1423, %v1419
    %v2528 = vpack.c.b16 %v1424, %v1420
    %v2529 = vpack.c.b16 %v1429, %v1425
    %v2530 = vpack.c.b16 %v1430, %v1426
    %v2531 = vpack.c.b16 %v1431, %v1427
    %v2532 = vpack.c.b16 %v1432, %v1428
    %v2533 = vpack.c.b16 %v1437, %v1433
    %v2534 = vpack.c.b16 %v1438, %v1434
    %v2535 = vpack.c.b16 %v1439, %v1435
    %v2536 = vpack.c.b16 %v1440, %v1436
    %v2537 = vpack.c.b16 %v1445, %v1441
    %v2538 = vpack.c.b16 %v1446, %v1442
    %v2539 = vpack.c.b16 %v1447, %v1443
    %v2540 = vpack.c.b16 %v1448, %v1444
    %v2541 = vpack.c.b16 %v1453, %v1449
    %v2542 = vpack.c.b16 %v1454, %v1450
    %v2543 = vpack.c.b16 %v1455, %v1451
    %v2544 = vpack.c.b16 %v1456, %v1452
    %v2545 = vpack.c.b16 %v1461, %v1457
    %v2546 = vpack.c.b16 %v1462, %v1458
    %v2547 = vpack.c.b16 %v1463, %v1459
    %v2548 = vpack.c.b16 %v1464, %v1460
    %v2549 = vpack.c.b16 %v1469, %v1465
    %v2550 = vpack.c.b16 %v1470, %v1466
    %v2551 = vpack.c.b16 %v1471, %v1467
    %v2552 = vpack.c.b16 %v1472, %v1468
    %v2553 = vpack.c.b16 %v1477, %v1473
    %v2554 = vpack.c.b16 %v1478, %v1474
    %v2555 = vpack.c.b16 %v1479, %v1475
    %v2556 = vpack.c.b16 %v1480, %v1476
    %v2557 = vpack.c.b16 %v1485, %v1481
    %v2558 = vpack.c.b16 %v1486, %v1482
    %v2559 = vpack.c.b16 %v1487, %v1483
    %v2560 = vpack.c.b16 %v1488, %v1484
    %v2561 = vpack.c.b16 %v1493, %v1489
    %v2562 = vpack.c.b16 %v1494, %v1490
    %v2563 = vpack.c.b16 %v1495, %v1491
    %v2564 = vpack.c.b16 %v1496, %v1492
    %v2565 = vpack.c.b16 %v1501, %v1497
    %v2566 = vpack.c.b16 %v1502, %v1498
    %v2567 = vpack.c.b16 %v1503, %v1499
    %v2568 = vpack.c.b16 %v1504, %v1500
    %v2569 = vpack.c.b16 %v1509, %v1505
    %v2570 = vpack.c.b16 %v1510, %v1506
    %v2571 = vpack.c.b16 %v1511, %v1507
    %v2572 = vpack.c.b16 %v1512, %v1508
    %v2573 = vpack.c.b16 %v1517, %v1513
    %v2574 = vpack.c.b16 %v1518, %v1514
    %v2575 = vpack.c.b16 %v1519, %v1515
    %v2576 = vpack.c.b16 %v1520, %v1516
    %v2577 = vpack.c.b16 %v1525, %v1521
    %v2578 = vpack.c.b16 %v1526, %v1522
    %v2579 = vpack.c.b16 %v1527, %v1523
    %v2580 = vpack.c.b16 %v1528, %v1524
    %v2581 = vpack.c.b16 %v1533, %v1529
    %v2582 = vpack.c.b16 %v1534, %v1530
    %v2583 = vpack.c.b16 %v1535, %v1531
    %v2584 = vpack.c.b16 %v1536, %v1532
    %v2585 = vpack.c.b16 %v1541, %v1537
    %v2586 = vpack.c.b16 %v1542, %v1538
    %v2587 = vpack.c.b16 %v1543, %v1539
    %v2588 = vpack.c.b16 %v1544, %v1540
    %v2589 = vpack.c.b16 %v1549, %v1545
    %v2590 = vpack.c.b16 %v1550, %v1546
    %v2591 = vpack.c.b16 %v1551, %v1547
    %v2592 = vpack.c.b16 %v1552, %v1548
    %v2593 = vpack.c.b16 %v1557, %v1553
    %v2594 = vpack.c.b16 %v1558, %v1554
    %v2595 = vpack.c.b16 %v1559, %v1555
    %v2596 = vpack.c.b16 %v1560, %v1556
    %v2597 = vpack.c.b16 %v1565, %v1561
    %v2598 = vpack.c.b16 %v1566, %v1562
    %v2599 = vpack.c.b16 %v1567, %v1563
    %v2600 = vpack.c.b16 %v1568, %v1564
    %v2601 = vpack.c.b16 %v1573, %v1569
    %v2602 = vpack.c.b16 %v1574, %v1570
    %v2603 = vpack.c.b16 %v1575, %v1571
    %v2604 = vpack.c.b16 %v1576, %v1572
    %v2605 = vpack.c.b16 %v1581, %v1577
    %v2606 = vpack.c.b16 %v1582, %v1578
    %v2607 = vpack.c.b16 %v1583, %v1579
    %v2608 = vpack.c.b16 %v1584, %v1580
    %v2609 = vpack.c.b16 %v1589, %v1585
    %v2610 = vpack.c.b16 %v1590, %v1586
    %v2611 = vpack.c.b16 %v1591, %v1587
    %v2612 = vpack.c.b16 %v1592, %v1588
    %v2613 = vpack.c.b16 %v1597, %v1593
    %v2614 = vpack.c.b16 %v1598, %v1594
    %v2615 = vpack.c.b16 %v1599, %v1595
    %v2616 = vpack.c.b16 %v1600, %v1596
    %v2617 = vpack.c.b16 %v1605, %v1601
    %v2618 = vpack.c.b16 %v1606, %v1602
    %v2619 = vpack.c.b16 %v1607, %v1603
    %v2620 = vpack.c.b16 %v1608, %v1604
    %v2621 = vpack.c.b16 %v1613, %v1609
    %v2622 = vpack.c.b16 %v1614, %v1610
    %v2623 = vpack.c.b16 %v1615, %v1611
    %v2624 = vpack.c.b16 %v1616, %v1612
    %v2625 = vpack.c.b16 %v1621, %v1617
    %v2626 = vpack.c.b16 %v1622, %v1618
    %v2627 = vpack.c.b16 %v1623, %v1619
    %v2628 = vpack.c.b16 %v1624, %v1620
    %v2629 = vpack.c.b16 %v1629, %v1625
    %v2630 = vpack.c.b16 %v1630, %v1626
    %v2631 = vpack.c.b16 %v1631, %v1627
    %v2632 = vpack.c.b16 %v1632, %v1628
    %v2633 = vpack.c.b16 %v1637, %v1633
    %v2634 = vpack.c.b16 %v1638, %v1634
    %v2635 = vpack.c.b16 %v1639, %v1635
    %v2636 = vpack.c.b16 %v1640, %v1636
    %v2637 = vpack.c.b16 %v1645, %v1641
    %v2638 = vpack.c.b16 %v1646, %v1642
    %v2639 = vpack.c.b16 %v1647, %v1643
    %v2640 = vpack.c.b16 %v1648, %v1644
    %v2641 = vpack.c.b16 %v1653, %v1649
    %v2642 = vpack.c.b16 %v1654, %v1650
    %v2643 = vpack.c.b16 %v1655, %v1651
    %v2644 = vpack.c.b16 %v1656, %v1652
    %v2645 = vpack.c.b16 %v1661, %v1657
    %v2646 = vpack.c.b16 %v1662, %v1658
    %v2647 = vpack.c.b16 %v1663, %v1659
    %v2648 = vpack.c.b16 %v1664, %v1660
    %v2649 = vpack.c.b16 %v1669, %v1665
    %v2650 = vpack.c.b16 %v1670, %v1666
    %v2651 = vpack.c.b16 %v1671, %v1667
    %v2652 = vpack.c.b16 %v1672, %v1668
    %v2653 = vpack.c.b16 %v1677, %v1673
    %v2654 = vpack.c.b16 %v1678, %v1674
    %v2655 = vpack.c.b16 %v1679, %v1675
    %v2656 = vpack.c.b16 %v1680, %v1676
    %v2657 = vpack.c.b16 %v1685, %v1681
    %v2658 = vpack.c.b16 %v1686, %v1682
    %v2659 = vpack.c.b16 %v1687, %v1683
    %v2660 = vpack.c.b16 %v1688, %v1684
    %v2661 = vpack.c.b16 %v1693, %v1689
    %v2662 = vpack.c.b16 %v1694, %v1690
    %v2663 = vpack.c.b16 %v1695, %v1691
    %v2664 = vpack.c.b16 %v1696, %v1692
    %v2665 = vpack.c.b16 %v1701, %v1697
    %v2666 = vpack.c.b16 %v1702, %v1698
    %v2667 = vpack.c.b16 %v1703, %v1699
    %v2668 = vpack.c.b16 %v1704, %v1700
    %v2669 = vpack.c.b16 %v1709, %v1705
    %v2670 = vpack.c.b16 %v1710, %v1706
    %v2671 = vpack.c.b16 %v1711, %v1707
    %v2672 = vpack.c.b16 %v1712, %v1708
    %v2673 = vpack.c.b16 %v1717, %v1713
    %v2674 = vpack.c.b16 %v1718, %v1714
    %v2675 = vpack.c.b16 %v1719, %v1715
    %v2676 = vpack.c.b16 %v1720, %v1716
    %v2677 = vpack.c.b16 %v1725, %v1721
    %v2678 = vpack.c.b16 %v1726, %v1722
    %v2679 = vpack.c.b16 %v1727, %v1723
    %v2680 = vpack.c.b16 %v1728, %v1724
    %v2681 = vpack.c.b16 %v1733, %v1729
    %v2682 = vpack.c.b16 %v1734, %v1730
    %v2683 = vpack.c.b16 %v1735, %v1731
    %v2684 = vpack.c.b16 %v1736, %v1732
    %v2685 = vpack.c.b16 %v1741, %v1737
    %v2686 = vpack.c.b16 %v1742, %v1738
    %v2687 = vpack.c.b16 %v1743, %v1739
    %v2688 = vpack.c.b16 %v1744, %v1740
    %v2689 = vpack.c.b16 %v1749, %v1745
    %v2690 = vpack.c.b16 %v1750, %v1746
    %v2691 = vpack.c.b16 %v1751, %v1747
    %v2692 = vpack.c.b16 %v1752, %v1748
    %v2693 = vpack.c.b16 %v1757, %v1753
    %v2694 = vpack.c.b16 %v1758, %v1754
    %v2695 = vpack.c.b16 %v1759, %v1755
    %v2696 = vpack.c.b16 %v1760, %v1756
    %v2697 = vpack.c.b16 %v1765, %v1761
    %v2698 = vpack.c.b16 %v1766, %v1762
    %v2699 = vpack.c.b16 %v1767, %v1763
    %v2700 = vpack.c.b16 %v1768, %v1764
    %v2701 = vpack.c.b16 %v1773, %v1769
    %v2702 = vpack.c.b16 %v1774, %v1770
    %v2703 = vpack.c.b16 %v1775, %v1771
    %v2704 = vpack.c.b16 %v1776, %v1772
    %v2705 = vpack.c.b16 %v1781, %v1777
    %v2706 = vpack.c.b16 %v1782, %v1778
    %v2707 = vpack.c.b16 %v1783, %v1779
    %v2708 = vpack.c.b16 %v1784, %v1780
    %v2709 = vpack.c.b16 %v1789, %v1785
    %v2710 = vpack.c.b16 %v1790, %v1786
    %v2711 = vpack.c.b16 %v1791, %v1787
    %v2712 = vpack.c.b16 %v1792, %v1788
    %v2713 = vpack.c.b16 %v1797, %v1793
    %v2714 = vpack.c.b16 %v1798, %v1794
    %v2715 = vpack.c.b16 %v1799, %v1795
    %v2716 = vpack.c.b16 %v1800, %v1796
    %v2717 = vpack.c.b16 %v1805, %v1801
    %v2718 = vpack.c.b16 %v1806, %v1802
    %v2719 = vpack.c.b16 %v1807, %v1803
    %v2720 = vpack.c.b16 %v1808, %v1804
    %v2721 = vpack.c.b16 %v1813, %v1809
    %v2722 = vpack.c.b16 %v1814, %v1810
    %v2723 = vpack.c.b16 %v1815, %v1811
    %v2724 = vpack.c.b16 %v1816, %v1812
    %v2725 = vpack.c.b16 %v1821, %v1817
    %v2726 = vpack.c.b16 %v1822, %v1818
    %v2727 = vpack.c.b16 %v1823, %v1819
    %v2728 = vpack.c.b16 %v1824, %v1820
    %v2729 = vpack.c.b16 %v1829, %v1825
    %v2730 = vpack.c.b16 %v1830, %v1826
    %v2731 = vpack.c.b16 %v1831, %v1827
    %v2732 = vpack.c.b16 %v1832, %v1828
    %v2733 = vpack.c.b16 %v1837, %v1833
    %v2734 = vpack.c.b16 %v1838, %v1834
    %v2735 = vpack.c.b16 %v1839, %v1835
    %v2736 = vpack.c.b16 %v1840, %v1836
    %v2737 = vpack.c.b16 %v1845, %v1841
    %v2738 = vpack.c.b16 %v1846, %v1842
    %v2739 = vpack.c.b16 %v1847, %v1843
    %v2740 = vpack.c.b16 %v1848, %v1844
    %v2741 = vpack.c.b16 %v1853, %v1849
    %v2742 = vpack.c.b16 %v1854, %v1850
    %v2743 = vpack.c.b16 %v1855, %v1851
    %v2744 = vpack.c.b16 %v1856, %v1852
    %v2745 = vpack.c.b16 %v1861, %v1857
    %v2746 = vpack.c.b16 %v1862, %v1858
    %v2747 = vpack.c.b16 %v1863, %v1859
    %v2748 = vpack.c.b16 %v1864, %v1860
    %v2749 = vpack.c.b16 %v1869, %v1865
    %v2750 = vpack.c.b16 %v1870, %v1866
    %v2751 = vpack.c.b16 %v1871, %v1867
    %v2752 = vpack.c.b16 %v1872, %v1868
    %v2753 = vpack.c.b16 %v1877, %v1873
    %v2754 = vpack.c.b16 %v1878, %v1874
    %v2755 = vpack.c.b16 %v1879, %v1875
    %v2756 = vpack.c.b16 %v1880, %v1876
    %v2757 = vpack.c.b16 %v1885, %v1881
    %v2758 = vpack.c.b16 %v1886, %v1882
    %v2759 = vpack.c.b16 %v1887, %v1883
    %v2760 = vpack.c.b16 %v1888, %v1884
    %v2761 = vpack.c.b16 %v1893, %v1889
    %v2762 = vpack.c.b16 %v1894, %v1890
    %v2763 = vpack.c.b16 %v1895, %v1891
    %v2764 = vpack.c.b16 %v1896, %v1892
    %v2765 = vpack.c.b16 %v1901, %v1897
    %v2766 = vpack.c.b16 %v1902, %v1898
    %v2767 = vpack.c.b16 %v1903, %v1899
    %v2768 = vpack.c.b16 %v1904, %v1900
    %v2769 = vpack.c.b16 %v1909, %v1905
    %v2770 = vpack.c.b16 %v1910, %v1906
    %v2771 = vpack.c.b16 %v1911, %v1907
    %v2772 = vpack.c.b16 %v1912, %v1908
    %v2773 = vpack.c.b16 %v1917, %v1913
    %v2774 = vpack.c.b16 %v1918, %v1914
    %v2775 = vpack.c.b16 %v1919, %v1915
    %v2776 = vpack.c.b16 %v1920, %v1916
    %v2777 = vpack.c.b16 %v1925, %v1921
    %v2778 = vpack.c.b16 %v1926, %v1922
    %v2779 = vpack.c.b16 %v1927, %v1923
    %v2780 = vpack.c.b16 %v1928, %v1924
    %v2781 = vpack.c.b16 %v1933, %v1929
    %v2782 = vpack.c.b16 %v1934, %v1930
    %v2783 = vpack.c.b16 %v1935, %v1931
    %v2784 = vpack.c.b16 %v1936, %v1932
    %v2785 = vpack.c.b16 %v1941, %v1937
    %v2786 = vpack.c.b16 %v1942, %v1938
    %v2787 = vpack.c.b16 %v1943, %v1939
    %v2788 = vpack.c.b16 %v1944, %v1940
    %v2789 = vpack.c.b16 %v1949, %v1945
    %v2790 = vpack.c.b16 %v1950, %v1946
    %v2791 = vpack.c.b16 %v1951, %v1947
    %v2792 = vpack.c.b16 %v1952, %v1948
    %v2793 = vpack.c.b16 %v1957, %v1953
    %v2794 = vpack.c.b16 %v1958, %v1954
    %v2795 = vpack.c.b16 %v1959, %v1955
    %v2796 = vpack.c.b16 %v1960, %v1956
    %v2797 = vpack.c.b16 %v1965, %v1961
    %v2798 = vpack.c.b16 %v1966, %v1962
    %v2799 = vpack.c.b16 %v1967, %v1963
    %v2800 = vpack.c.b16 %v1968, %v1964
    %v2801 = vpack.c.b16 %v1973, %v1969
    %v2802 = vpack.c.b16 %v1974, %v1970
    %v2803 = vpack.c.b16 %v1975, %v1971
    %v2804 = vpack.c.b16 %v1976, %v1972
    %v2805 = vpack.c.b16 %v1981, %v1977
    %v2806 = vpack.c.b16 %v1982, %v1978
    %v2807 = vpack.c.b16 %v1983, %v1979
    %v2808 = vpack.c.b16 %v1984, %v1980
    %v2809 = vpack.c.b16 %v1989, %v1985
    %v2810 = vpack.c.b16 %v1990, %v1986
    %v2811 = vpack.c.b16 %v1991, %v1987
    %v2812 = vpack.c.b16 %v1992, %v1988
    %v2813 = vpack.c.b16 %v1997, %v1993
    %v2814 = vpack.c.b16 %v1998, %v1994
    %v2815 = vpack.c.b16 %v1999, %v1995
    %v2816 = vpack.c.b16 %v2000, %v1996
    %v2817 = vpack.c.b16 %v2005, %v2001
    %v2818 = vpack.c.b16 %v2006, %v2002
    %v2819 = vpack.c.b16 %v2007, %v2003
    %v2820 = vpack.c.b16 %v2008, %v2004
    %v2821 = vpack.c.b16 %v2013, %v2009
    %v2822 = vpack.c.b16 %v2014, %v2010
    %v2823 = vpack.c.b16 %v2015, %v2011
    %v2824 = vpack.c.b16 %v2016, %v2012
    %v2825 = vpack.c.b16 %v2021, %v2017
    %v2826 = vpack.c.b16 %v2022, %v2018
    %v2827 = vpack.c.b16 %v2023, %v2019
    %v2828 = vpack.c.b16 %v2024, %v2020
    %v2829 = vpack.c.b16 %v2029, %v2025
    %v2830 = vpack.c.b16 %v2030, %v2026
    %v2831 = vpack.c.b16 %v2031, %v2027
    %v2832 = vpack.c.b16 %v2032, %v2028
    %v2833 = vpack.c.b16 %v2037, %v2033
    %v2834 = vpack.c.b16 %v2038, %v2034
    %v2835 = vpack.c.b16 %v2039, %v2035
    %v2836 = vpack.c.b16 %v2040, %v2036
    %v2837 = vpack.c.b16 %v2045, %v2041
    %v2838 = vpack.c.b16 %v2046, %v2042
    %v2839 = vpack.c.b16 %v2047, %v2043
    %v2840 = vpack.c.b16 %v2048, %v2044
    %v2841 = vpack.c.b16 %v2053, %v2049
    %v2842 = vpack.c.b16 %v2054, %v2050
    %v2843 = vpack.c.b16 %v2055, %v2051
    %v2844 = vpack.c.b16 %v2056, %v2052
    %v2845 = vpack.c.b16 %v2061, %v2057
    %v2846 = vpack.c.b16 %v2062, %v2058
    %v2847 = vpack.c.b16 %v2063, %v2059
    %v2848 = vpack.c.b16 %v2064, %v2060
    %v2849 = vpack.c.b16 %v2069, %v2065
    %v2850 = vpack.c.b16 %v2070, %v2066
    %v2851 = vpack.c.b16 %v2071, %v2067
    %v2852 = vpack.c.b16 %v2072, %v2068
    %v2853 = vpack.c.b16 %v2077, %v2073
    %v2854 = vpack.c.b16 %v2078, %v2074
    %v2855 = vpack.c.b16 %v2079, %v2075
    %v2856 = vpack.c.b16 %v2080, %v2076
    %v2857 = vpack.c.b16 %v2085, %v2081
    %v2858 = vpack.c.b16 %v2086, %v2082
    %v2859 = vpack.c.b16 %v2087, %v2083
    %v2860 = vpack.c.b16 %v2088, %v2084
    %v2861 = vpack.c.b16 %v2093, %v2089
    %v2862 = vpack.c.b16 %v2094, %v2090
    %v2863 = vpack.c.b16 %v2095, %v2091
    %v2864 = vpack.c.b16 %v2096, %v2092
    %v2865 = vpack.c.b16 %v2101, %v2097
    %v2866 = vpack.c.b16 %v2102, %v2098
    %v2867 = vpack.c.b16 %v2103, %v2099
    %v2868 = vpack.c.b16 %v2104, %v2100
    %v2869 = vpack.c.b16 %v2109, %v2105
    %v2870 = vpack.c.b16 %v2110, %v2106
    %v2871 = vpack.c.b16 %v2111, %v2107
    %v2872 = vpack.c.b16 %v2112, %v2108
    %v2873 = vpack.c.b16 %v2117, %v2113
    %v2874 = vpack.c.b16 %v2118, %v2114
    %v2875 = vpack.c.b16 %v2119, %v2115
    %v2876 = vpack.c.b16 %v2120, %v2116
    %v2877 = vpack.c.b16 %v2125, %v2121
    %v2878 = vpack.c.b16 %v2126, %v2122
    %v2879 = vpack.c.b16 %v2127, %v2123
    %v2880 = vpack.c.b16 %v2128, %v2124
    %v2881 = vpack.c.b16 %v2133, %v2129
    %v2882 = vpack.c.b16 %v2134, %v2130
    %v2883 = vpack.c.b16 %v2135, %v2131
    %v2884 = vpack.c.b16 %v2136, %v2132
    %v2885 = vpack.c.b16 %v2141, %v2137
    %v2886 = vpack.c.b16 %v2142, %v2138
    %v2887 = vpack.c.b16 %v2143, %v2139
    %v2888 = vpack.c.b16 %v2144, %v2140
    %v2889 = vpack.c.b16 %v2149, %v2145
    %v2890 = vpack.c.b16 %v2150, %v2146
    %v2891 = vpack.c.b16 %v2151, %v2147
    %v2892 = vpack.c.b16 %v2152, %v2148
    %v2893 = vpack.c.b16 %v2157, %v2153
    %v2894 = vpack.c.b16 %v2158, %v2154
    %v2895 = vpack.c.b16 %v2159, %v2155
    %v2896 = vpack.c.b16 %v2160, %v2156
    %v2897 = vpack.c.b16 %v2165, %v2161
    %v2898 = vpack.c.b16 %v2166, %v2162
    %v2899 = vpack.c.b16 %v2167, %v2163
    %v2900 = vpack.c.b16 %v2168, %v2164
    %v2901 = vpack.c.b16 %v2173, %v2169
    %v2902 = vpack.c.b16 %v2174, %v2170
    %v2903 = vpack.c.b16 %v2175, %v2171
    %v2904 = vpack.c.b16 %v2176, %v2172
    %v2905 = vpack.c.b16 %v2181, %v2177
    %v2906 = vpack.c.b16 %v2182, %v2178
    %v2907 = vpack.c.b16 %v2183, %v2179
    %v2908 = vpack.c.b16 %v2184, %v2180
    %v2909 = vpack.c.b16 %v2189, %v2185
    %v2910 = vpack.c.b16 %v2190, %v2186
    %v2911 = vpack.c.b16 %v2191, %v2187
    %v2912 = vpack.c.b16 %v2192, %v2188
    %v2913 = vpack.c.b16 %v2197, %v2193
    %v2914 = vpack.c.b16 %v2198, %v2194
    %v2915 = vpack.c.b16 %v2199, %v2195
    %v2916 = vpack.c.b16 %v2200, %v2196
    %v2917 = vpack.c.b16 %v2205, %v2201
    %v2918 = vpack.c.b16 %v2206, %v2202
    %v2919 = vpack.c.b16 %v2207, %v2203
    %v2920 = vpack.c.b16 %v2208, %v2204
    %v2921 = vpack.c.b16 %v2213, %v2209
    %v2922 = vpack.c.b16 %v2214, %v2210
    %v2923 = vpack.c.b16 %v2215, %v2211
    %v2924 = vpack.c.b16 %v2216, %v2212
    %v2925 = vpack.c.b16 %v2221, %v2217
    %v2926 = vpack.c.b16 %v2222, %v2218
    %v2927 = vpack.c.b16 %v2223, %v2219
    %v2928 = vpack.c.b16 %v2224, %v2220
    %v2929 = vpack.c.b16 %v2229, %v2225
    %v2930 = vpack.c.b16 %v2230, %v2226
    %v2931 = vpack.c.b16 %v2231, %v2227
    %v2932 = vpack.c.b16 %v2232, %v2228
    %v2933 = vpack.c.b16 %v2237, %v2233
    %v2934 = vpack.c.b16 %v2238, %v2234
    %v2935 = vpack.c.b16 %v2239, %v2235
    %v2936 = vpack.c.b16 %v2240, %v2236
    %v2937 = vpack.c.b16 %v2245, %v2241
    %v2938 = vpack.c.b16 %v2246, %v2242
    %v2939 = vpack.c.b16 %v2247, %v2243
    %v2940 = vpack.c.b16 %v2248, %v2244
    %v2941 = vpack.c.b16 %v2253, %v2249
    %v2942 = vpack.c.b16 %v2254, %v2250
    %v2943 = vpack.c.b16 %v2255, %v2251
    %v2944 = vpack.c.b16 %v2256, %v2252
    %v2945 = vpack.c.b16 %v2261, %v2257
    %v2946 = vpack.c.b16 %v2262, %v2258
    %v2947 = vpack.c.b16 %v2263, %v2259
    %v2948 = vpack.c.b16 %v2264, %v2260
    %v2949 = vpack.c.b16 %v2269, %v2265
    %v2950 = vpack.c.b16 %v2270, %v2266
    %v2951 = vpack.c.b16 %v2271, %v2267
    %v2952 = vpack.c.b16 %v2272, %v2268
    %v2953 = vpack.c.b16 %v2277, %v2273
    %v2954 = vpack.c.b16 %v2278, %v2274
    %v2955 = vpack.c.b16 %v2279, %v2275
    %v2956 = vpack.c.b16 %v2280, %v2276
    %v2957 = vpack.c.b16 %v2285, %v2281
    %v2958 = vpack.c.b16 %v2286, %v2282
    %v2959 = vpack.c.b16 %v2287, %v2283
    %v2960 = vpack.c.b16 %v2288, %v2284
    %v2961 = vpack.c.b16 %v2293, %v2289
    %v2962 = vpack.c.b16 %v2294, %v2290
    %v2963 = vpack.c.b16 %v2295, %v2291
    %v2964 = vpack.c.b16 %v2296, %v2292
    %v2965 = vpack.c.b16 %v2301, %v2297
    %v2966 = vpack.c.b16 %v2302, %v2298
    %v2967 = vpack.c.b16 %v2303, %v2299
    %v2968 = vpack.c.b16 %v2304, %v2300
    %v2969 = vpack.c.b16 %v2309, %v2305
    %v2970 = vpack.c.b16 %v2310, %v2306
    %v2971 = vpack.c.b16 %v2311, %v2307
    %v2972 = vpack.c.b16 %v2312, %v2308
    %v2973 = vpack.c.b16 %v2317, %v2313
    %v2974 = vpack.c.b16 %v2318, %v2314
    %v2975 = vpack.c.b16 %v2319, %v2315
    %v2976 = vpack.c.b16 %v2320, %v2316
    %v2977 = vpack.c.b16 %v2325, %v2321
    %v2978 = vpack.c.b16 %v2326, %v2322
    %v2979 = vpack.c.b16 %v2327, %v2323
    %v2980 = vpack.c.b16 %v2328, %v2324
    %v2981 = vpack.c.b16 %v2333, %v2329
    %v2982 = vpack.c.b16 %v2334, %v2330
    %v2983 = vpack.c.b16 %v2335, %v2331
    %v2984 = vpack.c.b16 %v2336, %v2332
    %v2985 = vpack.c.b16 %v2341, %v2337
    %v2986 = vpack.c.b16 %v2342, %v2338
    %v2987 = vpack.c.b16 %v2343, %v2339
    %v2988 = vpack.c.b16 %v2344, %v2340
    %v2989 = vpack.c.b16 %v2349, %v2345
    %v2990 = vpack.c.b16 %v2350, %v2346
    %v2991 = vpack.c.b16 %v2351, %v2347
    %v2992 = vpack.c.b16 %v2352, %v2348
    %v2993 = vpack.c.b16 %v2357, %v2353
    %v2994 = vpack.c.b16 %v2358, %v2354
    %v2995 = vpack.c.b16 %v2359, %v2355
    %v2996 = vpack.c.b16 %v2360, %v2356
    %v2997 = vpack.c.b16 %v2365, %v2361
    %v2998 = vpack.c.b16 %v2366, %v2362
    %v2999 = vpack.c.b16 %v2367, %v2363
    %v3000 = vpack.c.b16 %v2368, %v2364
    %v3001 = vpack.c.b16 %v2373, %v2369
    %v3002 = vpack.c.b16 %v2374, %v2370
    %v3003 = vpack.c.b16 %v2375, %v2371
    %v3004 = vpack.c.b16 %v2376, %v2372
    %v3005 = vpack.c.b16 %v2381, %v2377
    %v3006 = vpack.c.b16 %v2382, %v2378
    %v3007 = vpack.c.b16 %v2383, %v2379
    %v3008 = vpack.c.b16 %v2384, %v2380
    %v3009 = vpack.c.b16 %v2389, %v2385
    %v3010 = vpack.c.b16 %v2390, %v2386
    %v3011 = vpack.c.b16 %v2391, %v2387
    %v3012 = vpack.c.b16 %v2392, %v2388
    %v3013 = vpack.c.b16 %v2397, %v2393
    %v3014 = vpack.c.b16 %v2398, %v2394
    %v3015 = vpack.c.b16 %v2399, %v2395
    %v3016 = vpack.c.b16 %v2400, %v2396
    %v3017 = vpack.c.b16 %v2405, %v2401
    %v3018 = vpack.c.b16 %v2406, %v2402
    %v3019 = vpack.c.b16 %v2407, %v2403
    %v3020 = vpack.c.b16 %v2408, %v2404
    %v3021 = vpack.c.b16 %v2413, %v2409
    %v3022 = vpack.c.b16 %v2414, %v2410
    %v3023 = vpack.c.b16 %v2415, %v2411
    %v3024 = vpack.c.b16 %v2416, %v2412
    %v3025 = vpack.c.b16 %v2421, %v2417
    %v3026 = vpack.c.b16 %v2422, %v2418
    %v3027 = vpack.c.b16 %v2423, %v2419
    %v3028 = vpack.c.b16 %v2424, %v2420
    %v3029 = vpack.c.b16 %v2429, %v2425
    %v3030 = vpack.c.b16 %v2430, %v2426
    %v3031 = vpack.c.b16 %v2431, %v2427
    %v3032 = vpack.c.b16 %v2432, %v2428
    %v3033 = vpack.c.b16 %v2437, %v2433
    %v3034 = vpack.c.b16 %v2438, %v2434
    %v3035 = vpack.c.b16 %v2439, %v2435
    %v3036 = vpack.c.b16 %v2440, %v2436
    %v3037 = vpack.c.b16 %v2445, %v2441
    %v3038 = vpack.c.b16 %v2446, %v2442
    %v3039 = vpack.c.b16 %v2447, %v2443
    %v3040 = vpack.c.b16 %v2448, %v2444
    %v3041 = vpack.c.b16 %v2453, %v2449
    %v3042 = vpack.c.b16 %v2454, %v2450
    %v3043 = vpack.c.b16 %v2455, %v2451
    %v3044 = vpack.c.b16 %v2456, %v2452
    %v3045 = vpack.c.b16 %v2461, %v2457
    %v3046 = vpack.c.b16 %v2462, %v2458
    %v3047 = vpack.c.b16 %v2463, %v2459
    %v3048 = vpack.c.b16 %v2464, %v2460
    %v3049 = vpack.c.b16 %v2469, %v2465
    %v3050 = vpack.c.b16 %v2470, %v2466
    %v3051 = vpack.c.b16 %v2471, %v2467
    %v3052 = vpack.c.b16 %v2472, %v2468
    %v3053 = vpack.c.b16 %v2477, %v2473
    %v3054 = vpack.c.b16 %v2478, %v2474
    %v3055 = vpack.c.b16 %v2479, %v2475
    %v3056 = vpack.c.b16 %v2480, %v2476
    %3633 = vmatprep.subr.bf16.mxu0 %v2510
    %3634 = vmatpush1.bf16.msra.mxu0 %v2509
    %3635 = vmatprep.subr.bf16.mxu0 %v2506
    %3636 = vmatpush1.bf16.msra.mxu0 %v2505
    %3637 = vmatprep.subr.bf16.mxu0 %v2502
    %3638 = vmatpush1.bf16.msra.mxu0 %v2501
    %3639 = vmatprep.subr.bf16.mxu0 %v2498
    %3640 = vmatpush1.bf16.msra.mxu0 %v2497
    %3641 = vmatprep.subr.bf16.mxu0 %v2494
    %3642 = vmatpush1.bf16.msra.mxu0 %v2493
    %3643 = vmatprep.subr.bf16.mxu0 %v2490
    %3644 = vmatpush1.bf16.msra.mxu0 %v2489
    %3645 = vmatprep.subr.bf16.mxu0 %v2486
    %3646 = vmatpush1.bf16.msra.mxu0 %v2485
    %3647 = vmatprep.subr.bf16.mxu0 %v2482
    %3648 = vmatpush1.bf16.msra.mxu0 %v2481
    %3649 = vmatprep.subr.bf16.mxu0 %v2542
    %3650 = vmatpush2.bf16.msra.mxu0 %v2541
    %3651 = vmatprep.subr.bf16.mxu0 %v2538
    %3652 = vmatpush2.bf16.msra.mxu0 %v2537
    %3653 = vmatprep.subr.bf16.mxu0 %v2534
    %3654 = vmatpush2.bf16.msra.mxu0 %v2533
    %3655 = vmatprep.subr.bf16.mxu0 %v2530
    %3656 = vmatpush2.bf16.msra.mxu0 %v2529
    %3657 = vmatprep.subr.bf16.mxu0 %v2526
    %3658 = vmatpush2.bf16.msra.mxu0 %v2525
    %3659 = vmatprep.subr.bf16.mxu0 %v2522
    %3660 = vmatpush2.bf16.msra.mxu0 %v2521
    %3661 = vmatprep.subr.bf16.mxu0 %v2518
    %3662 = vmatpush2.bf16.msra.mxu0 %v2517
    %3663 = vmatprep.subr.bf16.mxu0 %v2514
    %3664 = vmatpush2.bf16.msra.mxu0 %v2513
    %3665 = vmatprep.mubr.bf16.mxu0 %v718
    %3666 = vmatmul.mubr.bf16.gmra.mxu0 %v717
    %v3667 = vpop.f32.mrf.mxu0
    %v3668 = vadd.f32 %v673, %v3667
    %v3669 = vpop.f32.mrf.mxu0
    %v3670 = vadd.f32 %v677, %v3669
    %v3671 = vpop.f32.mrf.mxu0
    %v3672 = vpop.f32.mrf.mxu0
    %3673 = vdwg.mxu0
    %3674 = vmatprep.subr.bf16.mxu0 %v2574
    %3675 = vmatpush1.bf16.msra.mxu0 %v2573
    %3676 = vmatprep.subr.bf16.mxu0 %v2570
    %3677 = vmatpush1.bf16.msra.mxu0 %v2569
    %3678 = vmatprep.subr.bf16.mxu0 %v2566
    %3679 = vmatpush1.bf16.msra.mxu0 %v2565
    %3680 = vmatprep.subr.bf16.mxu0 %v2562
    %3681 = vmatpush1.bf16.msra.mxu0 %v2561
    %3682 = vmatprep.subr.bf16.mxu0 %v2558
    %3683 = vmatpush1.bf16.msra.mxu0 %v2557
    %3684 = vmatprep.subr.bf16.mxu0 %v2554
    %3685 = vmatpush1.bf16.msra.mxu0 %v2553
    %3686 = vmatprep.subr.bf16.mxu0 %v2550
    %3687 = vmatpush1.bf16.msra.mxu0 %v2549
    %3688 = vmatprep.subr.bf16.mxu0 %v2546
    %3689 = vmatpush1.bf16.msra.mxu0 %v2545
    %3690 = vmatprep.subr.bf16.mxu0 %v2606
    %3691 = vmatpush2.bf16.msra.mxu0 %v2605
    %3692 = vmatprep.subr.bf16.mxu0 %v2602
    %3693 = vmatpush2.bf16.msra.mxu0 %v2601
    %3694 = vmatprep.subr.bf16.mxu0 %v2598
    %3695 = vmatpush2.bf16.msra.mxu0 %v2597
    %3696 = vmatprep.subr.bf16.mxu0 %v2594
    %3697 = vmatpush2.bf16.msra.mxu0 %v2593
    %3698 = vmatprep.subr.bf16.mxu0 %v2590
    %3699 = vmatpush2.bf16.msra.mxu0 %v2589
    %3700 = vmatprep.subr.bf16.mxu0 %v2586
    %3701 = vmatpush2.bf16.msra.mxu0 %v2585
    %3702 = vmatprep.subr.bf16.mxu0 %v2582
    %3703 = vmatpush2.bf16.msra.mxu0 %v2581
    %3704 = vmatprep.subr.bf16.mxu0 %v2578
    %3705 = vmatpush2.bf16.msra.mxu0 %v2577
    %3706 = vmatprep.mubr.bf16.mxu0 %v720
    %3707 = vmatmul.mubr.bf16.gmra.mxu0 %v719
    %v3708 = vpop.f32.mrf.mxu0
    %v3709 = vadd.f32 %v3668, %v3708
    %v3710 = vpop.f32.mrf.mxu0
    %v3711 = vadd.f32 %v3670, %v3710
    %v3712 = vpop.f32.mrf.mxu0
    %v3713 = vpop.f32.mrf.mxu0
    %3714 = vdwg.mxu0
    %3715 = vmatprep.subr.bf16.mxu0 %v2638
    %3716 = vmatpush1.bf16.msra.mxu0 %v2637
    %3717 = vmatprep.subr.bf16.mxu0 %v2634
    %3718 = vmatpush1.bf16.msra.mxu0 %v2633
    %3719 = vmatprep.subr.bf16.mxu0 %v2630
    %3720 = vmatpush1.bf16.msra.mxu0 %v2629
    %3721 = vmatprep.subr.bf16.mxu0 %v2626
    %3722 = vmatpush1.bf16.msra.mxu0 %v2625
    %3723 = vmatprep.subr.bf16.mxu0 %v2622
    %3724 = vmatpush1.bf16.msra.mxu0 %v2621
    %3725 = vmatprep.subr.bf16.mxu0 %v2618
    %3726 = vmatpush1.bf16.msra.mxu0 %v2617
    %3727 = vmatprep.subr.bf16.mxu0 %v2614
    %3728 = vmatpush1.bf16.msra.mxu0 %v2613
    %3729 = vmatprep.subr.bf16.mxu0 %v2610
    %3730 = vmatpush1.bf16.msra.mxu0 %v2609
    %3731 = vmatprep.subr.bf16.mxu0 %v2670
    %3732 = vmatpush2.bf16.msra.mxu0 %v2669
    %3733 = vmatprep.subr.bf16.mxu0 %v2666
    %3734 = vmatpush2.bf16.msra.mxu0 %v2665
    %3735 = vmatprep.subr.bf16.mxu0 %v2662
    %3736 = vmatpush2.bf16.msra.mxu0 %v2661
    %3737 = vmatprep.subr.bf16.mxu0 %v2658
    %3738 = vmatpush2.bf16.msra.mxu0 %v2657
    %3739 = vmatprep.subr.bf16.mxu0 %v2654
    %3740 = vmatpush2.bf16.msra.mxu0 %v2653
    %3741 = vmatprep.subr.bf16.mxu0 %v2650
    %3742 = vmatpush2.bf16.msra.mxu0 %v2649
    %3743 = vmatprep.subr.bf16.mxu0 %v2646
    %3744 = vmatpush2.bf16.msra.mxu0 %v2645
    %3745 = vmatprep.subr.bf16.mxu0 %v2642
    %3746 = vmatpush2.bf16.msra.mxu0 %v2641
    %3747 = vmatprep.mubr.bf16.mxu0 %v722
    %3748 = vmatmul.mubr.bf16.gmra.mxu0 %v721
    %v3749 = vpop.f32.mrf.mxu0
    %v3750 = vadd.f32 %v3709, %v3749
    %v3751 = vpop.f32.mrf.mxu0
    %v3752 = vadd.f32 %v3711, %v3751
    %v3753 = vpop.f32.mrf.mxu0
    %v3754 = vpop.f32.mrf.mxu0
    %3755 = vdwg.mxu0
    %3756 = vmatprep.subr.bf16.mxu0 %v2702
    %3757 = vmatpush1.bf16.msra.mxu0 %v2701
    %3758 = vmatprep.subr.bf16.mxu0 %v2698
    %3759 = vmatpush1.bf16.msra.mxu0 %v2697
    %3760 = vmatprep.subr.bf16.mxu0 %v2694
    %3761 = vmatpush1.bf16.msra.mxu0 %v2693
    %3762 = vmatprep.subr.bf16.mxu0 %v2690
    %3763 = vmatpush1.bf16.msra.mxu0 %v2689
    %3764 = vmatprep.subr.bf16.mxu0 %v2686
    %3765 = vmatpush1.bf16.msra.mxu0 %v2685
    %3766 = vmatprep.subr.bf16.mxu0 %v2682
    %3767 = vmatpush1.bf16.msra.mxu0 %v2681
    %3768 = vmatprep.subr.bf16.mxu0 %v2678
    %3769 = vmatpush1.bf16.msra.mxu0 %v2677
    %3770 = vmatprep.subr.bf16.mxu0 %v2674
    %3771 = vmatpush1.bf16.msra.mxu0 %v2673
    %3772 = vmatprep.subr.bf16.mxu0 %v2734
    %3773 = vmatpush2.bf16.msra.mxu0 %v2733
    %3774 = vmatprep.subr.bf16.mxu0 %v2730
    %3775 = vmatpush2.bf16.msra.mxu0 %v2729
    %3776 = vmatprep.subr.bf16.mxu0 %v2726
    %3777 = vmatpush2.bf16.msra.mxu0 %v2725
    %3778 = vmatprep.subr.bf16.mxu0 %v2722
    %3779 = vmatpush2.bf16.msra.mxu0 %v2721
    %3780 = vmatprep.subr.bf16.mxu0 %v2718
    %3781 = vmatpush2.bf16.msra.mxu0 %v2717
    %3782 = vmatprep.subr.bf16.mxu0 %v2714
    %3783 = vmatpush2.bf16.msra.mxu0 %v2713
    %3784 = vmatprep.subr.bf16.mxu0 %v2710
    %3785 = vmatpush2.bf16.msra.mxu0 %v2709
    %3786 = vmatprep.subr.bf16.mxu0 %v2706
    %3787 = vmatpush2.bf16.msra.mxu0 %v2705
    %3788 = vmatprep.mubr.bf16.mxu0 %v724
    %3789 = vmatmul.mubr.bf16.gmra.mxu0 %v723
    %v3790 = vpop.f32.mrf.mxu0
    %v3791 = vadd.f32 %v3750, %v3790
    %v3792 = vpop.f32.mrf.mxu0
    %v3793 = vadd.f32 %v3752, %v3792
    %v3794 = vpop.f32.mrf.mxu0
    %v3795 = vpop.f32.mrf.mxu0
    %3796 = vdwg.mxu0
    %3797 = vmatprep.subr.bf16.mxu0 %v2766
    %3798 = vmatpush1.bf16.msra.mxu0 %v2765
    %3799 = vmatprep.subr.bf16.mxu0 %v2762
    %3800 = vmatpush1.bf16.msra.mxu0 %v2761
    %3801 = vmatprep.subr.bf16.mxu0 %v2758
    %3802 = vmatpush1.bf16.msra.mxu0 %v2757
    %3803 = vmatprep.subr.bf16.mxu0 %v2754
    %3804 = vmatpush1.bf16.msra.mxu0 %v2753
    %3805 = vmatprep.subr.bf16.mxu0 %v2750
    %3806 = vmatpush1.bf16.msra.mxu0 %v2749
    %3807 = vmatprep.subr.bf16.mxu0 %v2746
    %3808 = vmatpush1.bf16.msra.mxu0 %v2745
    %3809 = vmatprep.subr.bf16.mxu0 %v2742
    %3810 = vmatpush1.bf16.msra.mxu0 %v2741
    %3811 = vmatprep.subr.bf16.mxu0 %v2738
    %3812 = vmatpush1.bf16.msra.mxu0 %v2737
    %3813 = vmatprep.subr.bf16.mxu0 %v2798
    %3814 = vmatpush2.bf16.msra.mxu0 %v2797
    %3815 = vmatprep.subr.bf16.mxu0 %v2794
    %3816 = vmatpush2.bf16.msra.mxu0 %v2793
    %3817 = vmatprep.subr.bf16.mxu0 %v2790
    %3818 = vmatpush2.bf16.msra.mxu0 %v2789
    %3819 = vmatprep.subr.bf16.mxu0 %v2786
    %3820 = vmatpush2.bf16.msra.mxu0 %v2785
    %3821 = vmatprep.subr.bf16.mxu0 %v2782
    %3822 = vmatpush2.bf16.msra.mxu0 %v2781
    %3823 = vmatprep.subr.bf16.mxu0 %v2778
    %3824 = vmatpush2.bf16.msra.mxu0 %v2777
    %3825 = vmatprep.subr.bf16.mxu0 %v2774
    %3826 = vmatpush2.bf16.msra.mxu0 %v2773
    %3827 = vmatprep.subr.bf16.mxu0 %v2770
    %3828 = vmatpush2.bf16.msra.mxu0 %v2769
    %3829 = vmatprep.mubr.bf16.mxu0 %v726
    %3830 = vmatmul.mubr.bf16.gmra.mxu0 %v725
    %v3831 = vpop.f32.mrf.mxu0
    %v3832 = vadd.f32 %v3791, %v3831
    %v3833 = vpop.f32.mrf.mxu0
    %v3834 = vadd.f32 %v3793, %v3833
    %v3835 = vpop.f32.mrf.mxu0
    %v3836 = vpop.f32.mrf.mxu0
    %3837 = vdwg.mxu0
    %3838 = vmatprep.subr.bf16.mxu0 %v2830
    %3839 = vmatpush1.bf16.msra.mxu0 %v2829
    %3840 = vmatprep.subr.bf16.mxu0 %v2826
    %3841 = vmatpush1.bf16.msra.mxu0 %v2825
    %3842 = vmatprep.subr.bf16.mxu0 %v2822
    %3843 = vmatpush1.bf16.msra.mxu0 %v2821
    %3844 = vmatprep.subr.bf16.mxu0 %v2818
    %3845 = vmatpush1.bf16.msra.mxu0 %v2817
    %3846 = vmatprep.subr.bf16.mxu0 %v2814
    %3847 = vmatpush1.bf16.msra.mxu0 %v2813
    %3848 = vmatprep.subr.bf16.mxu0 %v2810
    %3849 = vmatpush1.bf16.msra.mxu0 %v2809
    %3850 = vmatprep.subr.bf16.mxu0 %v2806
    %3851 = vmatpush1.bf16.msra.mxu0 %v2805
    %3852 = vmatprep.subr.bf16.mxu0 %v2802
    %3853 = vmatpush1.bf16.msra.mxu0 %v2801
    %3854 = vmatprep.subr.bf16.mxu0 %v2862
    %3855 = vmatpush2.bf16.msra.mxu0 %v2861
    %3856 = vmatprep.subr.bf16.mxu0 %v2858
    %3857 = vmatpush2.bf16.msra.mxu0 %v2857
    %3858 = vmatprep.subr.bf16.mxu0 %v2854
    %3859 = vmatpush2.bf16.msra.mxu0 %v2853
    %3860 = vmatprep.subr.bf16.mxu0 %v2850
    %3861 = vmatpush2.bf16.msra.mxu0 %v2849
    %3862 = vmatprep.subr.bf16.mxu0 %v2846
    %3863 = vmatpush2.bf16.msra.mxu0 %v2845
    %3864 = vmatprep.subr.bf16.mxu0 %v2842
    %3865 = vmatpush2.bf16.msra.mxu0 %v2841
    %3866 = vmatprep.subr.bf16.mxu0 %v2838
    %3867 = vmatpush2.bf16.msra.mxu0 %v2837
    %3868 = vmatprep.subr.bf16.mxu0 %v2834
    %3869 = vmatpush2.bf16.msra.mxu0 %v2833
    %3870 = vmatprep.mubr.bf16.mxu0 %v728
    %3871 = vmatmul.mubr.bf16.gmra.mxu0 %v727
    %v3872 = vpop.f32.mrf.mxu0
    %v3873 = vadd.f32 %v3832, %v3872
    %v3874 = vpop.f32.mrf.mxu0
    %v3875 = vadd.f32 %v3834, %v3874
    %v3876 = vpop.f32.mrf.mxu0
    %v3877 = vpop.f32.mrf.mxu0
    %3878 = vdwg.mxu0
    %3879 = vmatprep.subr.bf16.mxu0 %v2894
    %3880 = vmatpush1.bf16.msra.mxu0 %v2893
    %3881 = vmatprep.subr.bf16.mxu0 %v2890
    %3882 = vmatpush1.bf16.msra.mxu0 %v2889
    %3883 = vmatprep.subr.bf16.mxu0 %v2886
    %3884 = vmatpush1.bf16.msra.mxu0 %v2885
    %3885 = vmatprep.subr.bf16.mxu0 %v2882
    %3886 = vmatpush1.bf16.msra.mxu0 %v2881
    %3887 = vmatprep.subr.bf16.mxu0 %v2878
    %3888 = vmatpush1.bf16.msra.mxu0 %v2877
    %3889 = vmatprep.subr.bf16.mxu0 %v2874
    %3890 = vmatpush1.bf16.msra.mxu0 %v2873
    %3891 = vmatprep.subr.bf16.mxu0 %v2870
    %3892 = vmatpush1.bf16.msra.mxu0 %v2869
    %3893 = vmatprep.subr.bf16.mxu0 %v2866
    %3894 = vmatpush1.bf16.msra.mxu0 %v2865
    %3895 = vmatprep.subr.bf16.mxu0 %v2926
    %3896 = vmatpush2.bf16.msra.mxu0 %v2925
    %3897 = vmatprep.subr.bf16.mxu0 %v2922
    %3898 = vmatpush2.bf16.msra.mxu0 %v2921
    %3899 = vmatprep.subr.bf16.mxu0 %v2918
    %3900 = vmatpush2.bf16.msra.mxu0 %v2917
    %3901 = vmatprep.subr.bf16.mxu0 %v2914
    %3902 = vmatpush2.bf16.msra.mxu0 %v2913
    %3903 = vmatprep.subr.bf16.mxu0 %v2910
    %3904 = vmatpush2.bf16.msra.mxu0 %v2909
    %3905 = vmatprep.subr.bf16.mxu0 %v2906
    %3906 = vmatpush2.bf16.msra.mxu0 %v2905
    %3907 = vmatprep.subr.bf16.mxu0 %v2902
    %3908 = vmatpush2.bf16.msra.mxu0 %v2901
    %3909 = vmatprep.subr.bf16.mxu0 %v2898
    %3910 = vmatpush2.bf16.msra.mxu0 %v2897
    %3911 = vmatprep.mubr.bf16.mxu0 %v730
    %3912 = vmatmul.mubr.bf16.gmra.mxu0 %v729
    %v3913 = vpop.f32.mrf.mxu0
    %v3914 = vadd.f32 %v3873, %v3913
    %v3915 = vpop.f32.mrf.mxu0
    %v3916 = vadd.f32 %v3875, %v3915
    %v3917 = vpop.f32.mrf.mxu0
    %v3918 = vpop.f32.mrf.mxu0
    %3919 = vdwg.mxu0
    %3920 = vmatprep.subr.bf16.mxu0 %v2958
    %3921 = vmatpush1.bf16.msra.mxu0 %v2957
    %3922 = vmatprep.subr.bf16.mxu0 %v2954
    %3923 = vmatpush1.bf16.msra.mxu0 %v2953
    %3924 = vmatprep.subr.bf16.mxu0 %v2950
    %3925 = vmatpush1.bf16.msra.mxu0 %v2949
    %3926 = vmatprep.subr.bf16.mxu0 %v2946
    %3927 = vmatpush1.bf16.msra.mxu0 %v2945
    %3928 = vmatprep.subr.bf16.mxu0 %v2942
    %3929 = vmatpush1.bf16.msra.mxu0 %v2941
    %3930 = vmatprep.subr.bf16.mxu0 %v2938
    %3931 = vmatpush1.bf16.msra.mxu0 %v2937
    %3932 = vmatprep.subr.bf16.mxu0 %v2934
    %3933 = vmatpush1.bf16.msra.mxu0 %v2933
    %3934 = vmatprep.subr.bf16.mxu0 %v2930
    %3935 = vmatpush1.bf16.msra.mxu0 %v2929
    %3936 = vmatprep.subr.bf16.mxu0 %v2990
    %3937 = vmatpush2.bf16.msra.mxu0 %v2989
    %3938 = vmatprep.subr.bf16.mxu0 %v2986
    %3939 = vmatpush2.bf16.msra.mxu0 %v2985
    %3940 = vmatprep.subr.bf16.mxu0 %v2982
    %3941 = vmatpush2.bf16.msra.mxu0 %v2981
    %3942 = vmatprep.subr.bf16.mxu0 %v2978
    %3943 = vmatpush2.bf16.msra.mxu0 %v2977
    %3944 = vmatprep.subr.bf16.mxu0 %v2974
    %3945 = vmatpush2.bf16.msra.mxu0 %v2973
    %3946 = vmatprep.subr.bf16.mxu0 %v2970
    %3947 = vmatpush2.bf16.msra.mxu0 %v2969
    %3948 = vmatprep.subr.bf16.mxu0 %v2966
    %3949 = vmatpush2.bf16.msra.mxu0 %v2965
    %3950 = vmatprep.subr.bf16.mxu0 %v2962
    %3951 = vmatpush2.bf16.msra.mxu0 %v2961
    %3952 = vmatprep.mubr.bf16.mxu0 %v732
    %3953 = vmatmul.mubr.bf16.gmra.mxu0 %v731
    %v3954 = vpop.f32.mrf.mxu0
    %v3955 = vadd.f32 %v3914, %v3954
    %v3956 = vpop.f32.mrf.mxu0
    %v3957 = vadd.f32 %v3916, %v3956
    %v3958 = vpop.f32.mrf.mxu0
    %v3959 = vpop.f32.mrf.mxu0
    %3960 = vdwg.mxu0
    %3961 = vmatprep.subr.bf16.mxu0 %v3022
    %3962 = vmatpush1.bf16.msra.mxu0 %v3021
    %3963 = vmatprep.subr.bf16.mxu0 %v3018
    %3964 = vmatpush1.bf16.msra.mxu0 %v3017
    %3965 = vmatprep.subr.bf16.mxu0 %v3014
    %3966 = vmatpush1.bf16.msra.mxu0 %v3013
    %3967 = vmatprep.subr.bf16.mxu0 %v3010
    %3968 = vmatpush1.bf16.msra.mxu0 %v3009
    %3969 = vmatprep.subr.bf16.mxu0 %v3006
    %3970 = vmatpush1.bf16.msra.mxu0 %v3005
    %3971 = vmatprep.subr.bf16.mxu0 %v3002
    %3972 = vmatpush1.bf16.msra.mxu0 %v3001
    %3973 = vmatprep.subr.bf16.mxu0 %v2998
    %3974 = vmatpush1.bf16.msra.mxu0 %v2997
    %3975 = vmatprep.subr.bf16.mxu0 %v2994
    %3976 = vmatpush1.bf16.msra.mxu0 %v2993
    %3977 = vmatprep.subr.bf16.mxu0 %v3054
    %3978 = vmatpush2.bf16.msra.mxu0 %v3053
    %3979 = vmatprep.subr.bf16.mxu0 %v3050
    %3980 = vmatpush2.bf16.msra.mxu0 %v3049
    %3981 = vmatprep.subr.bf16.mxu0 %v3046
    %3982 = vmatpush2.bf16.msra.mxu0 %v3045
    %3983 = vmatprep.subr.bf16.mxu0 %v3042
    %3984 = vmatpush2.bf16.msra.mxu0 %v3041
    %3985 = vmatprep.subr.bf16.mxu0 %v3038
    %3986 = vmatpush2.bf16.msra.mxu0 %v3037
    %3987 = vmatprep.subr.bf16.mxu0 %v3034
    %3988 = vmatpush2.bf16.msra.mxu0 %v3033
    %3989 = vmatprep.subr.bf16.mxu0 %v3030
    %3990 = vmatpush2.bf16.msra.mxu0 %v3029
    %3991 = vmatprep.subr.bf16.mxu0 %v3026
    %3992 = vmatpush2.bf16.msra.mxu0 %v3025
    %3993 = vmatprep.mubr.bf16.mxu0 %v734
    %3994 = vmatmul.mubr.bf16.gmra.mxu0 %v733
    %v3995 = vpop.f32.mrf.mxu0
    %v3996 = vadd.f32 %v3955, %v3995
    %v3997 = vpop.f32.mrf.mxu0
    %v3998 = vadd.f32 %v3957, %v3997
    %v3999 = vpop.f32.mrf.mxu0
    %v4000 = vpop.f32.mrf.mxu0
    %4001 = vdwg.mxu0
    %4002 = vmatprep.subr.bf16.mxu0 %v2512
    %4003 = vmatpush1.bf16.msra.mxu0 %v2511
    %4004 = vmatprep.subr.bf16.mxu0 %v2508
    %4005 = vmatpush1.bf16.msra.mxu0 %v2507
    %4006 = vmatprep.subr.bf16.mxu0 %v2504
    %4007 = vmatpush1.bf16.msra.mxu0 %v2503
    %4008 = vmatprep.subr.bf16.mxu0 %v2500
    %4009 = vmatpush1.bf16.msra.mxu0 %v2499
    %4010 = vmatprep.subr.bf16.mxu0 %v2496
    %4011 = vmatpush1.bf16.msra.mxu0 %v2495
    %4012 = vmatprep.subr.bf16.mxu0 %v2492
    %4013 = vmatpush1.bf16.msra.mxu0 %v2491
    %4014 = vmatprep.subr.bf16.mxu0 %v2488
    %4015 = vmatpush1.bf16.msra.mxu0 %v2487
    %4016 = vmatprep.subr.bf16.mxu0 %v2484
    %4017 = vmatpush1.bf16.msra.mxu0 %v2483
    %4018 = vmatprep.subr.bf16.mxu0 %v2544
    %4019 = vmatpush2.bf16.msra.mxu0 %v2543
    %4020 = vmatprep.subr.bf16.mxu0 %v2540
    %4021 = vmatpush2.bf16.msra.mxu0 %v2539
    %4022 = vmatprep.subr.bf16.mxu0 %v2536
    %4023 = vmatpush2.bf16.msra.mxu0 %v2535
    %4024 = vmatprep.subr.bf16.mxu0 %v2532
    %4025 = vmatpush2.bf16.msra.mxu0 %v2531
    %4026 = vmatprep.subr.bf16.mxu0 %v2528
    %4027 = vmatpush2.bf16.msra.mxu0 %v2527
    %4028 = vmatprep.subr.bf16.mxu0 %v2524
    %4029 = vmatpush2.bf16.msra.mxu0 %v2523
    %4030 = vmatprep.subr.bf16.mxu0 %v2520
    %4031 = vmatpush2.bf16.msra.mxu0 %v2519
    %4032 = vmatprep.subr.bf16.mxu0 %v2516
    %4033 = vmatpush2.bf16.msra.mxu0 %v2515
    %4034 = vmatprep.mubr.bf16.mxu0 %v718
    %4035 = vmatmul.mubr.bf16.gmra.mxu0 %v717
    %v4036 = vpop.f32.mrf.mxu0
    %v4037 = vadd.f32 %v681, %v4036
    %v4038 = vpop.f32.mrf.mxu0
    %v4039 = vadd.f32 %v685, %v4038
    %v4040 = vpop.f32.mrf.mxu0
    %v4041 = vpop.f32.mrf.mxu0
    %4042 = vdwg.mxu0
    %4043 = vmatprep.subr.bf16.mxu0 %v2576
    %4044 = vmatpush1.bf16.msra.mxu0 %v2575
    %4045 = vmatprep.subr.bf16.mxu0 %v2572
    %4046 = vmatpush1.bf16.msra.mxu0 %v2571
    %4047 = vmatprep.subr.bf16.mxu0 %v2568
    %4048 = vmatpush1.bf16.msra.mxu0 %v2567
    %4049 = vmatprep.subr.bf16.mxu0 %v2564
    %4050 = vmatpush1.bf16.msra.mxu0 %v2563
    %4051 = vmatprep.subr.bf16.mxu0 %v2560
    %4052 = vmatpush1.bf16.msra.mxu0 %v2559
    %4053 = vmatprep.subr.bf16.mxu0 %v2556
    %4054 = vmatpush1.bf16.msra.mxu0 %v2555
    %4055 = vmatprep.subr.bf16.mxu0 %v2552
    %4056 = vmatpush1.bf16.msra.mxu0 %v2551
    %4057 = vmatprep.subr.bf16.mxu0 %v2548
    %4058 = vmatpush1.bf16.msra.mxu0 %v2547
    %4059 = vmatprep.subr.bf16.mxu0 %v2608
    %4060 = vmatpush2.bf16.msra.mxu0 %v2607
    %4061 = vmatprep.subr.bf16.mxu0 %v2604
    %4062 = vmatpush2.bf16.msra.mxu0 %v2603
    %4063 = vmatprep.subr.bf16.mxu0 %v2600
    %4064 = vmatpush2.bf16.msra.mxu0 %v2599
    %4065 = vmatprep.subr.bf16.mxu0 %v2596
    %4066 = vmatpush2.bf16.msra.mxu0 %v2595
    %4067 = vmatprep.subr.bf16.mxu0 %v2592
    %4068 = vmatpush2.bf16.msra.mxu0 %v2591
    %4069 = vmatprep.subr.bf16.mxu0 %v2588
    %4070 = vmatpush2.bf16.msra.mxu0 %v2587
    %4071 = vmatprep.subr.bf16.mxu0 %v2584
    %4072 = vmatpush2.bf16.msra.mxu0 %v2583
    %4073 = vmatprep.subr.bf16.mxu0 %v2580
    %4074 = vmatpush2.bf16.msra.mxu0 %v2579
    %4075 = vmatprep.mubr.bf16.mxu0 %v720
    %4076 = vmatmul.mubr.bf16.gmra.mxu0 %v719
    %v4077 = vpop.f32.mrf.mxu0
    %v4078 = vadd.f32 %v4037, %v4077
    %v4079 = vpop.f32.mrf.mxu0
    %v4080 = vadd.f32 %v4039, %v4079
    %v4081 = vpop.f32.mrf.mxu0
    %v4082 = vpop.f32.mrf.mxu0
    %4083 = vdwg.mxu0
    %4084 = vmatprep.subr.bf16.mxu0 %v2640
    %4085 = vmatpush1.bf16.msra.mxu0 %v2639
    %4086 = vmatprep.subr.bf16.mxu0 %v2636
    %4087 = vmatpush1.bf16.msra.mxu0 %v2635
    %4088 = vmatprep.subr.bf16.mxu0 %v2632
    %4089 = vmatpush1.bf16.msra.mxu0 %v2631
    %4090 = vmatprep.subr.bf16.mxu0 %v2628
    %4091 = vmatpush1.bf16.msra.mxu0 %v2627
    %4092 = vmatprep.subr.bf16.mxu0 %v2624
    %4093 = vmatpush1.bf16.msra.mxu0 %v2623
    %4094 = vmatprep.subr.bf16.mxu0 %v2620
    %4095 = vmatpush1.bf16.msra.mxu0 %v2619
    %4096 = vmatprep.subr.bf16.mxu0 %v2616
    %4097 = vmatpush1.bf16.msra.mxu0 %v2615
    %4098 = vmatprep.subr.bf16.mxu0 %v2612
    %4099 = vmatpush1.bf16.msra.mxu0 %v2611
    %4100 = vmatprep.subr.bf16.mxu0 %v2672
    %4101 = vmatpush2.bf16.msra.mxu0 %v2671
    %4102 = vmatprep.subr.bf16.mxu0 %v2668
    %4103 = vmatpush2.bf16.msra.mxu0 %v2667
    %4104 = vmatprep.subr.bf16.mxu0 %v2664
    %4105 = vmatpush2.bf16.msra.mxu0 %v2663
    %4106 = vmatprep.subr.bf16.mxu0 %v2660
    %4107 = vmatpush2.bf16.msra.mxu0 %v2659
    %4108 = vmatprep.subr.bf16.mxu0 %v2656
    %4109 = vmatpush2.bf16.msra.mxu0 %v2655
    %4110 = vmatprep.subr.bf16.mxu0 %v2652
    %4111 = vmatpush2.bf16.msra.mxu0 %v2651
    %4112 = vmatprep.subr.bf16.mxu0 %v2648
    %4113 = vmatpush2.bf16.msra.mxu0 %v2647
    %4114 = vmatprep.subr.bf16.mxu0 %v2644
    %4115 = vmatpush2.bf16.msra.mxu0 %v2643
    %4116 = vmatprep.mubr.bf16.mxu0 %v722
    %4117 = vmatmul.mubr.bf16.gmra.mxu0 %v721
    %v4118 = vpop.f32.mrf.mxu0
    %v4119 = vadd.f32 %v4078, %v4118
    %v4120 = vpop.f32.mrf.mxu0
    %v4121 = vadd.f32 %v4080, %v4120
    %v4122 = vpop.f32.mrf.mxu0
    %v4123 = vpop.f32.mrf.mxu0
    %4124 = vdwg.mxu0
    %4125 = vmatprep.subr.bf16.mxu0 %v2704
    %4126 = vmatpush1.bf16.msra.mxu0 %v2703
    %4127 = vmatprep.subr.bf16.mxu0 %v2700
    %4128 = vmatpush1.bf16.msra.mxu0 %v2699
    %4129 = vmatprep.subr.bf16.mxu0 %v2696
    %4130 = vmatpush1.bf16.msra.mxu0 %v2695
    %4131 = vmatprep.subr.bf16.mxu0 %v2692
    %4132 = vmatpush1.bf16.msra.mxu0 %v2691
    %4133 = vmatprep.subr.bf16.mxu0 %v2688
    %4134 = vmatpush1.bf16.msra.mxu0 %v2687
    %4135 = vmatprep.subr.bf16.mxu0 %v2684
    %4136 = vmatpush1.bf16.msra.mxu0 %v2683
    %4137 = vmatprep.subr.bf16.mxu0 %v2680
    %4138 = vmatpush1.bf16.msra.mxu0 %v2679
    %4139 = vmatprep.subr.bf16.mxu0 %v2676
    %4140 = vmatpush1.bf16.msra.mxu0 %v2675
    %4141 = vmatprep.subr.bf16.mxu0 %v2736
    %4142 = vmatpush2.bf16.msra.mxu0 %v2735
    %4143 = vmatprep.subr.bf16.mxu0 %v2732
    %4144 = vmatpush2.bf16.msra.mxu0 %v2731
    %4145 = vmatprep.subr.bf16.mxu0 %v2728
    %4146 = vmatpush2.bf16.msra.mxu0 %v2727
    %4147 = vmatprep.subr.bf16.mxu0 %v2724
    %4148 = vmatpush2.bf16.msra.mxu0 %v2723
    %4149 = vmatprep.subr.bf16.mxu0 %v2720
    %4150 = vmatpush2.bf16.msra.mxu0 %v2719
    %4151 = vmatprep.subr.bf16.mxu0 %v2716
    %4152 = vmatpush2.bf16.msra.mxu0 %v2715
    %4153 = vmatprep.subr.bf16.mxu0 %v2712
    %4154 = vmatpush2.bf16.msra.mxu0 %v2711
    %4155 = vmatprep.subr.bf16.mxu0 %v2708
    %4156 = vmatpush2.bf16.msra.mxu0 %v2707
    %4157 = vmatprep.mubr.bf16.mxu0 %v724
    %4158 = vmatmul.mubr.bf16.gmra.mxu0 %v723
    %v4159 = vpop.f32.mrf.mxu0
    %v4160 = vadd.f32 %v4119, %v4159
    %v4161 = vpop.f32.mrf.mxu0
    %v4162 = vadd.f32 %v4121, %v4161
    %v4163 = vpop.f32.mrf.mxu0
    %v4164 = vpop.f32.mrf.mxu0
    %4165 = vdwg.mxu0
    %4166 = vmatprep.subr.bf16.mxu0 %v2768
    %4167 = vmatpush1.bf16.msra.mxu0 %v2767
    %4168 = vmatprep.subr.bf16.mxu0 %v2764
    %4169 = vmatpush1.bf16.msra.mxu0 %v2763
    %4170 = vmatprep.subr.bf16.mxu0 %v2760
    %4171 = vmatpush1.bf16.msra.mxu0 %v2759
    %4172 = vmatprep.subr.bf16.mxu0 %v2756
    %4173 = vmatpush1.bf16.msra.mxu0 %v2755
    %4174 = vmatprep.subr.bf16.mxu0 %v2752
    %4175 = vmatpush1.bf16.msra.mxu0 %v2751
    %4176 = vmatprep.subr.bf16.mxu0 %v2748
    %4177 = vmatpush1.bf16.msra.mxu0 %v2747
    %4178 = vmatprep.subr.bf16.mxu0 %v2744
    %4179 = vmatpush1.bf16.msra.mxu0 %v2743
    %4180 = vmatprep.subr.bf16.mxu0 %v2740
    %4181 = vmatpush1.bf16.msra.mxu0 %v2739
    %4182 = vmatprep.subr.bf16.mxu0 %v2800
    %4183 = vmatpush2.bf16.msra.mxu0 %v2799
    %4184 = vmatprep.subr.bf16.mxu0 %v2796
    %4185 = vmatpush2.bf16.msra.mxu0 %v2795
    %4186 = vmatprep.subr.bf16.mxu0 %v2792
    %4187 = vmatpush2.bf16.msra.mxu0 %v2791
    %4188 = vmatprep.subr.bf16.mxu0 %v2788
    %4189 = vmatpush2.bf16.msra.mxu0 %v2787
    %4190 = vmatprep.subr.bf16.mxu0 %v2784
    %4191 = vmatpush2.bf16.msra.mxu0 %v2783
    %4192 = vmatprep.subr.bf16.mxu0 %v2780
    %4193 = vmatpush2.bf16.msra.mxu0 %v2779
    %4194 = vmatprep.subr.bf16.mxu0 %v2776
    %4195 = vmatpush2.bf16.msra.mxu0 %v2775
    %4196 = vmatprep.subr.bf16.mxu0 %v2772
    %4197 = vmatpush2.bf16.msra.mxu0 %v2771
    %4198 = vmatprep.mubr.bf16.mxu0 %v726
    %4199 = vmatmul.mubr.bf16.gmra.mxu0 %v725
    %v4200 = vpop.f32.mrf.mxu0
    %v4201 = vadd.f32 %v4160, %v4200
    %v4202 = vpop.f32.mrf.mxu0
    %v4203 = vadd.f32 %v4162, %v4202
    %v4204 = vpop.f32.mrf.mxu0
    %v4205 = vpop.f32.mrf.mxu0
    %4206 = vdwg.mxu0
    %4207 = vmatprep.subr.bf16.mxu0 %v2832
    %4208 = vmatpush1.bf16.msra.mxu0 %v2831
    %4209 = vmatprep.subr.bf16.mxu0 %v2828
    %4210 = vmatpush1.bf16.msra.mxu0 %v2827
    %4211 = vmatprep.subr.bf16.mxu0 %v2824
    %4212 = vmatpush1.bf16.msra.mxu0 %v2823
    %4213 = vmatprep.subr.bf16.mxu0 %v2820
    %4214 = vmatpush1.bf16.msra.mxu0 %v2819
    %4215 = vmatprep.subr.bf16.mxu0 %v2816
    %4216 = vmatpush1.bf16.msra.mxu0 %v2815
    %4217 = vmatprep.subr.bf16.mxu0 %v2812
    %4218 = vmatpush1.bf16.msra.mxu0 %v2811
    %4219 = vmatprep.subr.bf16.mxu0 %v2808
    %4220 = vmatpush1.bf16.msra.mxu0 %v2807
    %4221 = vmatprep.subr.bf16.mxu0 %v2804
    %4222 = vmatpush1.bf16.msra.mxu0 %v2803
    %4223 = vmatprep.subr.bf16.mxu0 %v2864
    %4224 = vmatpush2.bf16.msra.mxu0 %v2863
    %4225 = vmatprep.subr.bf16.mxu0 %v2860
    %4226 = vmatpush2.bf16.msra.mxu0 %v2859
    %4227 = vmatprep.subr.bf16.mxu0 %v2856
    %4228 = vmatpush2.bf16.msra.mxu0 %v2855
    %4229 = vmatprep.subr.bf16.mxu0 %v2852
    %4230 = vmatpush2.bf16.msra.mxu0 %v2851
    %4231 = vmatprep.subr.bf16.mxu0 %v2848
    %4232 = vmatpush2.bf16.msra.mxu0 %v2847
    %4233 = vmatprep.subr.bf16.mxu0 %v2844
    %4234 = vmatpush2.bf16.msra.mxu0 %v2843
    %4235 = vmatprep.subr.bf16.mxu0 %v2840
    %4236 = vmatpush2.bf16.msra.mxu0 %v2839
    %4237 = vmatprep.subr.bf16.mxu0 %v2836
    %4238 = vmatpush2.bf16.msra.mxu0 %v2835
    %4239 = vmatprep.mubr.bf16.mxu0 %v728
    %4240 = vmatmul.mubr.bf16.gmra.mxu0 %v727
    %v4241 = vpop.f32.mrf.mxu0
    %v4242 = vadd.f32 %v4201, %v4241
    %v4243 = vpop.f32.mrf.mxu0
    %v4244 = vadd.f32 %v4203, %v4243
    %v4245 = vpop.f32.mrf.mxu0
    %v4246 = vpop.f32.mrf.mxu0
    %4247 = vdwg.mxu0
    %4248 = vmatprep.subr.bf16.mxu0 %v2896
    %4249 = vmatpush1.bf16.msra.mxu0 %v2895
    %4250 = vmatprep.subr.bf16.mxu0 %v2892
    %4251 = vmatpush1.bf16.msra.mxu0 %v2891
    %4252 = vmatprep.subr.bf16.mxu0 %v2888
    %4253 = vmatpush1.bf16.msra.mxu0 %v2887
    %4254 = vmatprep.subr.bf16.mxu0 %v2884
    %4255 = vmatpush1.bf16.msra.mxu0 %v2883
    %4256 = vmatprep.subr.bf16.mxu0 %v2880
    %4257 = vmatpush1.bf16.msra.mxu0 %v2879
    %4258 = vmatprep.subr.bf16.mxu0 %v2876
    %4259 = vmatpush1.bf16.msra.mxu0 %v2875
    %4260 = vmatprep.subr.bf16.mxu0 %v2872
    %4261 = vmatpush1.bf16.msra.mxu0 %v2871
    %4262 = vmatprep.subr.bf16.mxu0 %v2868
    %4263 = vmatpush1.bf16.msra.mxu0 %v2867
    %4264 = vmatprep.subr.bf16.mxu0 %v2928
    %4265 = vmatpush2.bf16.msra.mxu0 %v2927
    %4266 = vmatprep.subr.bf16.mxu0 %v2924
    %4267 = vmatpush2.bf16.msra.mxu0 %v2923
    %4268 = vmatprep.subr.bf16.mxu0 %v2920
    %4269 = vmatpush2.bf16.msra.mxu0 %v2919
    %4270 = vmatprep.subr.bf16.mxu0 %v2916
    %4271 = vmatpush2.bf16.msra.mxu0 %v2915
    %4272 = vmatprep.subr.bf16.mxu0 %v2912
    %4273 = vmatpush2.bf16.msra.mxu0 %v2911
    %4274 = vmatprep.subr.bf16.mxu0 %v2908
    %4275 = vmatpush2.bf16.msra.mxu0 %v2907
    %4276 = vmatprep.subr.bf16.mxu0 %v2904
    %4277 = vmatpush2.bf16.msra.mxu0 %v2903
    %4278 = vmatprep.subr.bf16.mxu0 %v2900
    %4279 = vmatpush2.bf16.msra.mxu0 %v2899
    %4280 = vmatprep.mubr.bf16.mxu0 %v730
    %4281 = vmatmul.mubr.bf16.gmra.mxu0 %v729
    %v4282 = vpop.f32.mrf.mxu0
    %v4283 = vadd.f32 %v4242, %v4282
    %v4284 = vpop.f32.mrf.mxu0
    %v4285 = vadd.f32 %v4244, %v4284
    %v4286 = vpop.f32.mrf.mxu0
    %v4287 = vpop.f32.mrf.mxu0
    %4288 = vdwg.mxu0
    %4289 = vmatprep.subr.bf16.mxu0 %v2960
    %4290 = vmatpush1.bf16.msra.mxu0 %v2959
    %4291 = vmatprep.subr.bf16.mxu0 %v2956
    %4292 = vmatpush1.bf16.msra.mxu0 %v2955
    %4293 = vmatprep.subr.bf16.mxu0 %v2952
    %4294 = vmatpush1.bf16.msra.mxu0 %v2951
    %4295 = vmatprep.subr.bf16.mxu0 %v2948
    %4296 = vmatpush1.bf16.msra.mxu0 %v2947
    %4297 = vmatprep.subr.bf16.mxu0 %v2944
    %4298 = vmatpush1.bf16.msra.mxu0 %v2943
    %4299 = vmatprep.subr.bf16.mxu0 %v2940
    %4300 = vmatpush1.bf16.msra.mxu0 %v2939
    %4301 = vmatprep.subr.bf16.mxu0 %v2936
    %4302 = vmatpush1.bf16.msra.mxu0 %v2935
    %4303 = vmatprep.subr.bf16.mxu0 %v2932
    %4304 = vmatpush1.bf16.msra.mxu0 %v2931
    %4305 = vmatprep.subr.bf16.mxu0 %v2992
    %4306 = vmatpush2.bf16.msra.mxu0 %v2991
    %4307 = vmatprep.subr.bf16.mxu0 %v2988
    %4308 = vmatpush2.bf16.msra.mxu0 %v2987
    %4309 = vmatprep.subr.bf16.mxu0 %v2984
    %4310 = vmatpush2.bf16.msra.mxu0 %v2983
    %4311 = vmatprep.subr.bf16.mxu0 %v2980
    %4312 = vmatpush2.bf16.msra.mxu0 %v2979
    %4313 = vmatprep.subr.bf16.mxu0 %v2976
    %4314 = vmatpush2.bf16.msra.mxu0 %v2975
    %4315 = vmatprep.subr.bf16.mxu0 %v2972
    %4316 = vmatpush2.bf16.msra.mxu0 %v2971
    %4317 = vmatprep.subr.bf16.mxu0 %v2968
    %4318 = vmatpush2.bf16.msra.mxu0 %v2967
    %4319 = vmatprep.subr.bf16.mxu0 %v2964
    %4320 = vmatpush2.bf16.msra.mxu0 %v2963
    %4321 = vmatprep.mubr.bf16.mxu0 %v732
    %4322 = vmatmul.mubr.bf16.gmra.mxu0 %v731
    %v4323 = vpop.f32.mrf.mxu0
    %v4324 = vadd.f32 %v4283, %v4323
    %v4325 = vpop.f32.mrf.mxu0
    %v4326 = vadd.f32 %v4285, %v4325
    %v4327 = vpop.f32.mrf.mxu0
    %v4328 = vpop.f32.mrf.mxu0
    %4329 = vdwg.mxu0
    %4330 = vmatprep.subr.bf16.mxu0 %v3024
    %4331 = vmatpush1.bf16.msra.mxu0 %v3023
    %4332 = vmatprep.subr.bf16.mxu0 %v3020
    %4333 = vmatpush1.bf16.msra.mxu0 %v3019
    %4334 = vmatprep.subr.bf16.mxu0 %v3016
    %4335 = vmatpush1.bf16.msra.mxu0 %v3015
    %4336 = vmatprep.subr.bf16.mxu0 %v3012
    %4337 = vmatpush1.bf16.msra.mxu0 %v3011
    %4338 = vmatprep.subr.bf16.mxu0 %v3008
    %4339 = vmatpush1.bf16.msra.mxu0 %v3007
    %4340 = vmatprep.subr.bf16.mxu0 %v3004
    %4341 = vmatpush1.bf16.msra.mxu0 %v3003
    %4342 = vmatprep.subr.bf16.mxu0 %v3000
    %4343 = vmatpush1.bf16.msra.mxu0 %v2999
    %4344 = vmatprep.subr.bf16.mxu0 %v2996
    %4345 = vmatpush1.bf16.msra.mxu0 %v2995
    %4346 = vmatprep.subr.bf16.mxu0 %v3056
    %4347 = vmatpush2.bf16.msra.mxu0 %v3055
    %4348 = vmatprep.subr.bf16.mxu0 %v3052
    %4349 = vmatpush2.bf16.msra.mxu0 %v3051
    %4350 = vmatprep.subr.bf16.mxu0 %v3048
    %4351 = vmatpush2.bf16.msra.mxu0 %v3047
    %4352 = vmatprep.subr.bf16.mxu0 %v3044
    %4353 = vmatpush2.bf16.msra.mxu0 %v3043
    %4354 = vmatprep.subr.bf16.mxu0 %v3040
    %4355 = vmatpush2.bf16.msra.mxu0 %v3039
    %4356 = vmatprep.subr.bf16.mxu0 %v3036
    %4357 = vmatpush2.bf16.msra.mxu0 %v3035
    %4358 = vmatprep.subr.bf16.mxu0 %v3032
    %4359 = vmatpush2.bf16.msra.mxu0 %v3031
    %4360 = vmatprep.subr.bf16.mxu0 %v3028
    %4361 = vmatpush2.bf16.msra.mxu0 %v3027
    %4362 = vmatprep.mubr.bf16.mxu0 %v734
    %4363 = vmatmul.mubr.bf16.gmra.mxu0 %v733
    %v4364 = vpop.f32.mrf.mxu0
    %v4365 = vadd.f32 %v4324, %v4364
    %v4366 = vpop.f32.mrf.mxu0
    %v4367 = vadd.f32 %v4326, %v4366
    %v4368 = vpop.f32.mrf.mxu0
    %v4369 = vpop.f32.mrf.mxu0
    %4370 = vdwg.mxu0
    %v4371 = vpack.c.bf16 %v3996, %v3996
    %v4372 = vpack.c.bf16 %v3998, %v3998
    %v4373 = vpack.c.bf16 %v4365, %v4365
    %v4374 = vpack.c.bf16 %v4367, %v4367
    %v4375 = vld [vmem:[#allocation8] sm:$0xff]
    %v4376 = vld [vmem:[#allocation8 + $0x8] sm:$0xff]
    %v4377 = vld [vmem:[#allocation8 + $0x10] sm:$0xff]
    %v4378 = vld [vmem:[#allocation8 + $0x18] sm:$0xff]
    %v4379 = vld [vmem:[#allocation8 + $0x20] sm:$0xff]
    %v4380 = vld [vmem:[#allocation8 + $0x28] sm:$0xff]
    %v4381 = vld [vmem:[#allocation8 + $0x30] sm:$0xff]
    %v4382 = vld [vmem:[#allocation8 + $0x38] sm:$0xff]
    %v4383 = vld [vmem:[#allocation8 + $0x40] sm:$0xff]
    %v4384 = vld [vmem:[#allocation8 + $0x48] sm:$0xff]
    %v4385 = vld [vmem:[#allocation8 + $0x50] sm:$0xff]
    %v4386 = vld [vmem:[#allocation8 + $0x58] sm:$0xff]
    %v4387 = vld [vmem:[#allocation8 + $0x60] sm:$0xff]
    %v4388 = vld [vmem:[#allocation8 + $0x68] sm:$0xff]
    %v4389 = vld [vmem:[#allocation8 + $0x70] sm:$0xff]
    %v4390 = vld [vmem:[#allocation8 + $0x78] sm:$0xff]
    %v4391 = vld [vmem:[#allocation8 + $0x80] sm:$0xff]
    %v4392 = vld [vmem:[#allocation8 + $0x88] sm:$0xff]
    %v4393 = vld [vmem:[#allocation8 + $0x90] sm:$0xff]
    %v4394 = vld [vmem:[#allocation8 + $0x98] sm:$0xff]
    %v4395 = vld [vmem:[#allocation8 + $0xa0] sm:$0xff]
    %v4396 = vld [vmem:[#allocation8 + $0xa8] sm:$0xff]
    %v4397 = vld [vmem:[#allocation8 + $0xb0] sm:$0xff]
    %v4398 = vld [vmem:[#allocation8 + $0xb8] sm:$0xff]
    %v4399 = vld [vmem:[#allocation8 + $0xc0] sm:$0xff]
    %v4400 = vld [vmem:[#allocation8 + $0xc8] sm:$0xff]
    %v4401 = vld [vmem:[#allocation8 + $0xd0] sm:$0xff]
    %v4402 = vld [vmem:[#allocation8 + $0xd8] sm:$0xff]
    %v4403 = vld [vmem:[#allocation8 + $0xe0] sm:$0xff]
    %v4404 = vld [vmem:[#allocation8 + $0xe8] sm:$0xff]
    %v4405 = vld [vmem:[#allocation8 + $0xf0] sm:$0xff]
    %v4406 = vld [vmem:[#allocation8 + $0xf8] sm:$0xff]
    %v4407 = vld [vmem:[#allocation8 + $0x100] sm:$0xff]
    %v4408 = vld [vmem:[#allocation8 + $0x108] sm:$0xff]
    %v4409 = vld [vmem:[#allocation8 + $0x110] sm:$0xff]
    %v4410 = vld [vmem:[#allocation8 + $0x118] sm:$0xff]
    %v4411 = vld [vmem:[#allocation8 + $0x120] sm:$0xff]
    %v4412 = vld [vmem:[#allocation8 + $0x128] sm:$0xff]
    %v4413 = vld [vmem:[#allocation8 + $0x130] sm:$0xff]
    %v4414 = vld [vmem:[#allocation8 + $0x138] sm:$0xff]
    %v4415 = vld [vmem:[#allocation8 + $0x140] sm:$0xff]
    %v4416 = vld [vmem:[#allocation8 + $0x148] sm:$0xff]
    %v4417 = vld [vmem:[#allocation8 + $0x150] sm:$0xff]
    %v4418 = vld [vmem:[#allocation8 + $0x158] sm:$0xff]
    %v4419 = vld [vmem:[#allocation8 + $0x160] sm:$0xff]
    %v4420 = vld [vmem:[#allocation8 + $0x168] sm:$0xff]
    %v4421 = vld [vmem:[#allocation8 + $0x170] sm:$0xff]
    %v4422 = vld [vmem:[#allocation8 + $0x178] sm:$0xff]
    %v4423 = vld [vmem:[#allocation8 + $0x180] sm:$0xff]
    %v4424 = vld [vmem:[#allocation8 + $0x188] sm:$0xff]
    %v4425 = vld [vmem:[#allocation8 + $0x190] sm:$0xff]
    %v4426 = vld [vmem:[#allocation8 + $0x198] sm:$0xff]
    %v4427 = vld [vmem:[#allocation8 + $0x1a0] sm:$0xff]
    %v4428 = vld [vmem:[#allocation8 + $0x1a8] sm:$0xff]
    %v4429 = vld [vmem:[#allocation8 + $0x1b0] sm:$0xff]
    %v4430 = vld [vmem:[#allocation8 + $0x1b8] sm:$0xff]
    %v4431 = vld [vmem:[#allocation8 + $0x1c0] sm:$0xff]
    %v4432 = vld [vmem:[#allocation8 + $0x1c8] sm:$0xff]
    %v4433 = vld [vmem:[#allocation8 + $0x1d0] sm:$0xff]
    %v4434 = vld [vmem:[#allocation8 + $0x1d8] sm:$0xff]
    %v4435 = vld [vmem:[#allocation8 + $0x1e0] sm:$0xff]
    %v4436 = vld [vmem:[#allocation8 + $0x1e8] sm:$0xff]
    %v4437 = vld [vmem:[#allocation8 + $0x1f0] sm:$0xff]
    %v4438 = vld [vmem:[#allocation8 + $0x1f8] sm:$0xff]
    %v4439 = vld [vmem:[#allocation8 + $0x200] sm:$0xff]
    %v4440 = vld [vmem:[#allocation8 + $0x208] sm:$0xff]
    %v4441 = vld [vmem:[#allocation8 + $0x210] sm:$0xff]
    %v4442 = vld [vmem:[#allocation8 + $0x218] sm:$0xff]
    %v4443 = vld [vmem:[#allocation8 + $0x220] sm:$0xff]
    %v4444 = vld [vmem:[#allocation8 + $0x228] sm:$0xff]
    %v4445 = vld [vmem:[#allocation8 + $0x230] sm:$0xff]
    %v4446 = vld [vmem:[#allocation8 + $0x238] sm:$0xff]
    %v4447 = vld [vmem:[#allocation8 + $0x240] sm:$0xff]
    %v4448 = vld [vmem:[#allocation8 + $0x248] sm:$0xff]
    %v4449 = vld [vmem:[#allocation8 + $0x250] sm:$0xff]
    %v4450 = vld [vmem:[#allocation8 + $0x258] sm:$0xff]
    %v4451 = vld [vmem:[#allocation8 + $0x260] sm:$0xff]
    %v4452 = vld [vmem:[#allocation8 + $0x268] sm:$0xff]
    %v4453 = vld [vmem:[#allocation8 + $0x270] sm:$0xff]
    %v4454 = vld [vmem:[#allocation8 + $0x278] sm:$0xff]
    %v4455 = vld [vmem:[#allocation8 + $0x280] sm:$0xff]
    %v4456 = vld [vmem:[#allocation8 + $0x288] sm:$0xff]
    %v4457 = vld [vmem:[#allocation8 + $0x290] sm:$0xff]
    %v4458 = vld [vmem:[#allocation8 + $0x298] sm:$0xff]
    %v4459 = vld [vmem:[#allocation8 + $0x2a0] sm:$0xff]
    %v4460 = vld [vmem:[#allocation8 + $0x2a8] sm:$0xff]
    %v4461 = vld [vmem:[#allocation8 + $0x2b0] sm:$0xff]
    %v4462 = vld [vmem:[#allocation8 + $0x2b8] sm:$0xff]
    %v4463 = vld [vmem:[#allocation8 + $0x2c0] sm:$0xff]
    %v4464 = vld [vmem:[#allocation8 + $0x2c8] sm:$0xff]
    %v4465 = vld [vmem:[#allocation8 + $0x2d0] sm:$0xff]
    %v4466 = vld [vmem:[#allocation8 + $0x2d8] sm:$0xff]
    %v4467 = vld [vmem:[#allocation8 + $0x2e0] sm:$0xff]
    %v4468 = vld [vmem:[#allocation8 + $0x2e8] sm:$0xff]
    %v4469 = vld [vmem:[#allocation8 + $0x2f0] sm:$0xff]
    %v4470 = vld [vmem:[#allocation8 + $0x2f8] sm:$0xff]
    %v4471 = vld [vmem:[#allocation8 + $0x300] sm:$0xff]
    %v4472 = vld [vmem:[#allocation8 + $0x308] sm:$0xff]
    %v4473 = vld [vmem:[#allocation8 + $0x310] sm:$0xff]
    %v4474 = vld [vmem:[#allocation8 + $0x318] sm:$0xff]
    %v4475 = vld [vmem:[#allocation8 + $0x320] sm:$0xff]
    %v4476 = vld [vmem:[#allocation8 + $0x328] sm:$0xff]
    %v4477 = vld [vmem:[#allocation8 + $0x330] sm:$0xff]
    %v4478 = vld [vmem:[#allocation8 + $0x338] sm:$0xff]
    %v4479 = vld [vmem:[#allocation8 + $0x340] sm:$0xff]
    %v4480 = vld [vmem:[#allocation8 + $0x348] sm:$0xff]
    %v4481 = vld [vmem:[#allocation8 + $0x350] sm:$0xff]
    %v4482 = vld [vmem:[#allocation8 + $0x358] sm:$0xff]
    %v4483 = vld [vmem:[#allocation8 + $0x360] sm:$0xff]
    %v4484 = vld [vmem:[#allocation8 + $0x368] sm:$0xff]
    %v4485 = vld [vmem:[#allocation8 + $0x370] sm:$0xff]
    %v4486 = vld [vmem:[#allocation8 + $0x378] sm:$0xff]
    %v4487 = vld [vmem:[#allocation8 + $0x380] sm:$0xff]
    %v4488 = vld [vmem:[#allocation8 + $0x388] sm:$0xff]
    %v4489 = vld [vmem:[#allocation8 + $0x390] sm:$0xff]
    %v4490 = vld [vmem:[#allocation8 + $0x398] sm:$0xff]
    %v4491 = vld [vmem:[#allocation8 + $0x3a0] sm:$0xff]
    %v4492 = vld [vmem:[#allocation8 + $0x3a8] sm:$0xff]
    %v4493 = vld [vmem:[#allocation8 + $0x3b0] sm:$0xff]
    %v4494 = vld [vmem:[#allocation8 + $0x3b8] sm:$0xff]
    %v4495 = vld [vmem:[#allocation8 + $0x3c0] sm:$0xff]
    %v4496 = vld [vmem:[#allocation8 + $0x3c8] sm:$0xff]
    %v4497 = vld [vmem:[#allocation8 + $0x3d0] sm:$0xff]
    %v4498 = vld [vmem:[#allocation8 + $0x3d8] sm:$0xff]
    %v4499 = vld [vmem:[#allocation8 + $0x3e0] sm:$0xff]
    %v4500 = vld [vmem:[#allocation8 + $0x3e8] sm:$0xff]
    %v4501 = vld [vmem:[#allocation8 + $0x3f0] sm:$0xff]
    %v4502 = vld [vmem:[#allocation8 + $0x3f8] sm:$0xff]
    %v4503 = vld [vmem:[#allocation8 + $0x400] sm:$0xff]
    %v4504 = vld [vmem:[#allocation8 + $0x408] sm:$0xff]
    %v4505 = vld [vmem:[#allocation8 + $0x410] sm:$0xff]
    %v4506 = vld [vmem:[#allocation8 + $0x418] sm:$0xff]
    %v4507 = vld [vmem:[#allocation8 + $0x420] sm:$0xff]
    %v4508 = vld [vmem:[#allocation8 + $0x428] sm:$0xff]
    %v4509 = vld [vmem:[#allocation8 + $0x430] sm:$0xff]
    %v4510 = vld [vmem:[#allocation8 + $0x438] sm:$0xff]
    %v4511 = vld [vmem:[#allocation8 + $0x440] sm:$0xff]
    %v4512 = vld [vmem:[#allocation8 + $0x448] sm:$0xff]
    %v4513 = vld [vmem:[#allocation8 + $0x450] sm:$0xff]
    %v4514 = vld [vmem:[#allocation8 + $0x458] sm:$0xff]
    %v4515 = vld [vmem:[#allocation8 + $0x460] sm:$0xff]
    %v4516 = vld [vmem:[#allocation8 + $0x468] sm:$0xff]
    %v4517 = vld [vmem:[#allocation8 + $0x470] sm:$0xff]
    %v4518 = vld [vmem:[#allocation8 + $0x478] sm:$0xff]
    %v4519 = vld [vmem:[#allocation8 + $0x480] sm:$0xff]
    %v4520 = vld [vmem:[#allocation8 + $0x488] sm:$0xff]
    %v4521 = vld [vmem:[#allocation8 + $0x490] sm:$0xff]
    %v4522 = vld [vmem:[#allocation8 + $0x498] sm:$0xff]
    %v4523 = vld [vmem:[#allocation8 + $0x4a0] sm:$0xff]
    %v4524 = vld [vmem:[#allocation8 + $0x4a8] sm:$0xff]
    %v4525 = vld [vmem:[#allocation8 + $0x4b0] sm:$0xff]
    %v4526 = vld [vmem:[#allocation8 + $0x4b8] sm:$0xff]
    %v4527 = vld [vmem:[#allocation8 + $0x4c0] sm:$0xff]
    %v4528 = vld [vmem:[#allocation8 + $0x4c8] sm:$0xff]
    %v4529 = vld [vmem:[#allocation8 + $0x4d0] sm:$0xff]
    %v4530 = vld [vmem:[#allocation8 + $0x4d8] sm:$0xff]
    %v4531 = vld [vmem:[#allocation8 + $0x4e0] sm:$0xff]
    %v4532 = vld [vmem:[#allocation8 + $0x4e8] sm:$0xff]
    %v4533 = vld [vmem:[#allocation8 + $0x4f0] sm:$0xff]
    %v4534 = vld [vmem:[#allocation8 + $0x4f8] sm:$0xff]
    %v4535 = vld [vmem:[#allocation8 + $0x500] sm:$0xff]
    %v4536 = vld [vmem:[#allocation8 + $0x508] sm:$0xff]
    %v4537 = vld [vmem:[#allocation8 + $0x510] sm:$0xff]
    %v4538 = vld [vmem:[#allocation8 + $0x518] sm:$0xff]
    %v4539 = vld [vmem:[#allocation8 + $0x520] sm:$0xff]
    %v4540 = vld [vmem:[#allocation8 + $0x528] sm:$0xff]
    %v4541 = vld [vmem:[#allocation8 + $0x530] sm:$0xff]
    %v4542 = vld [vmem:[#allocation8 + $0x538] sm:$0xff]
    %v4543 = vld [vmem:[#allocation8 + $0x540] sm:$0xff]
    %v4544 = vld [vmem:[#allocation8 + $0x548] sm:$0xff]
    %v4545 = vld [vmem:[#allocation8 + $0x550] sm:$0xff]
    %v4546 = vld [vmem:[#allocation8 + $0x558] sm:$0xff]
    %v4547 = vld [vmem:[#allocation8 + $0x560] sm:$0xff]
    %v4548 = vld [vmem:[#allocation8 + $0x568] sm:$0xff]
    %v4549 = vld [vmem:[#allocation8 + $0x570] sm:$0xff]
    %v4550 = vld [vmem:[#allocation8 + $0x578] sm:$0xff]
    %v4551 = vld [vmem:[#allocation8 + $0x580] sm:$0xff]
    %v4552 = vld [vmem:[#allocation8 + $0x588] sm:$0xff]
    %v4553 = vld [vmem:[#allocation8 + $0x590] sm:$0xff]
    %v4554 = vld [vmem:[#allocation8 + $0x598] sm:$0xff]
    %v4555 = vld [vmem:[#allocation8 + $0x5a0] sm:$0xff]
    %v4556 = vld [vmem:[#allocation8 + $0x5a8] sm:$0xff]
    %v4557 = vld [vmem:[#allocation8 + $0x5b0] sm:$0xff]
    %v4558 = vld [vmem:[#allocation8 + $0x5b8] sm:$0xff]
    %v4559 = vld [vmem:[#allocation8 + $0x5c0] sm:$0xff]
    %v4560 = vld [vmem:[#allocation8 + $0x5c8] sm:$0xff]
    %v4561 = vld [vmem:[#allocation8 + $0x5d0] sm:$0xff]
    %v4562 = vld [vmem:[#allocation8 + $0x5d8] sm:$0xff]
    %v4563 = vld [vmem:[#allocation8 + $0x5e0] sm:$0xff]
    %v4564 = vld [vmem:[#allocation8 + $0x5e8] sm:$0xff]
    %v4565 = vld [vmem:[#allocation8 + $0x5f0] sm:$0xff]
    %v4566 = vld [vmem:[#allocation8 + $0x5f8] sm:$0xff]
    %v4567 = vld [vmem:[#allocation8 + $0x600] sm:$0xff]
    %v4568 = vld [vmem:[#allocation8 + $0x608] sm:$0xff]
    %v4569 = vld [vmem:[#allocation8 + $0x610] sm:$0xff]
    %v4570 = vld [vmem:[#allocation8 + $0x618] sm:$0xff]
    %v4571 = vld [vmem:[#allocation8 + $0x620] sm:$0xff]
    %v4572 = vld [vmem:[#allocation8 + $0x628] sm:$0xff]
    %v4573 = vld [vmem:[#allocation8 + $0x630] sm:$0xff]
    %v4574 = vld [vmem:[#allocation8 + $0x638] sm:$0xff]
    %v4575 = vld [vmem:[#allocation8 + $0x640] sm:$0xff]
    %v4576 = vld [vmem:[#allocation8 + $0x648] sm:$0xff]
    %v4577 = vld [vmem:[#allocation8 + $0x650] sm:$0xff]
    %v4578 = vld [vmem:[#allocation8 + $0x658] sm:$0xff]
    %v4579 = vld [vmem:[#allocation8 + $0x660] sm:$0xff]
    %v4580 = vld [vmem:[#allocation8 + $0x668] sm:$0xff]
    %v4581 = vld [vmem:[#allocation8 + $0x670] sm:$0xff]
    %v4582 = vld [vmem:[#allocation8 + $0x678] sm:$0xff]
    %v4583 = vld [vmem:[#allocation8 + $0x680] sm:$0xff]
    %v4584 = vld [vmem:[#allocation8 + $0x688] sm:$0xff]
    %v4585 = vld [vmem:[#allocation8 + $0x690] sm:$0xff]
    %v4586 = vld [vmem:[#allocation8 + $0x698] sm:$0xff]
    %v4587 = vld [vmem:[#allocation8 + $0x6a0] sm:$0xff]
    %v4588 = vld [vmem:[#allocation8 + $0x6a8] sm:$0xff]
    %v4589 = vld [vmem:[#allocation8 + $0x6b0] sm:$0xff]
    %v4590 = vld [vmem:[#allocation8 + $0x6b8] sm:$0xff]
    %v4591 = vld [vmem:[#allocation8 + $0x6c0] sm:$0xff]
    %v4592 = vld [vmem:[#allocation8 + $0x6c8] sm:$0xff]
    %v4593 = vld [vmem:[#allocation8 + $0x6d0] sm:$0xff]
    %v4594 = vld [vmem:[#allocation8 + $0x6d8] sm:$0xff]
    %v4595 = vld [vmem:[#allocation8 + $0x6e0] sm:$0xff]
    %v4596 = vld [vmem:[#allocation8 + $0x6e8] sm:$0xff]
    %v4597 = vld [vmem:[#allocation8 + $0x6f0] sm:$0xff]
    %v4598 = vld [vmem:[#allocation8 + $0x6f8] sm:$0xff]
    %v4599 = vld [vmem:[#allocation8 + $0x700] sm:$0xff]
    %v4600 = vld [vmem:[#allocation8 + $0x708] sm:$0xff]
    %v4601 = vld [vmem:[#allocation8 + $0x710] sm:$0xff]
    %v4602 = vld [vmem:[#allocation8 + $0x718] sm:$0xff]
    %v4603 = vld [vmem:[#allocation8 + $0x720] sm:$0xff]
    %v4604 = vld [vmem:[#allocation8 + $0x728] sm:$0xff]
    %v4605 = vld [vmem:[#allocation8 + $0x730] sm:$0xff]
    %v4606 = vld [vmem:[#allocation8 + $0x738] sm:$0xff]
    %v4607 = vld [vmem:[#allocation8 + $0x740] sm:$0xff]
    %v4608 = vld [vmem:[#allocation8 + $0x748] sm:$0xff]
    %v4609 = vld [vmem:[#allocation8 + $0x750] sm:$0xff]
    %v4610 = vld [vmem:[#allocation8 + $0x758] sm:$0xff]
    %v4611 = vld [vmem:[#allocation8 + $0x760] sm:$0xff]
    %v4612 = vld [vmem:[#allocation8 + $0x768] sm:$0xff]
    %v4613 = vld [vmem:[#allocation8 + $0x770] sm:$0xff]
    %v4614 = vld [vmem:[#allocation8 + $0x778] sm:$0xff]
    %v4615 = vld [vmem:[#allocation8 + $0x780] sm:$0xff]
    %v4616 = vld [vmem:[#allocation8 + $0x788] sm:$0xff]
    %v4617 = vld [vmem:[#allocation8 + $0x790] sm:$0xff]
    %v4618 = vld [vmem:[#allocation8 + $0x798] sm:$0xff]
    %v4619 = vld [vmem:[#allocation8 + $0x7a0] sm:$0xff]
    %v4620 = vld [vmem:[#allocation8 + $0x7a8] sm:$0xff]
    %v4621 = vld [vmem:[#allocation8 + $0x7b0] sm:$0xff]
    %v4622 = vld [vmem:[#allocation8 + $0x7b8] sm:$0xff]
    %v4623 = vld [vmem:[#allocation8 + $0x7c0] sm:$0xff]
    %v4624 = vld [vmem:[#allocation8 + $0x7c8] sm:$0xff]
    %v4625 = vld [vmem:[#allocation8 + $0x7d0] sm:$0xff]
    %v4626 = vld [vmem:[#allocation8 + $0x7d8] sm:$0xff]
    %v4627 = vld [vmem:[#allocation8 + $0x7e0] sm:$0xff]
    %v4628 = vld [vmem:[#allocation8 + $0x7e8] sm:$0xff]
    %v4629 = vld [vmem:[#allocation8 + $0x7f0] sm:$0xff]
    %v4630 = vld [vmem:[#allocation8 + $0x7f8] sm:$0xff]
    %v4631 = vld [vmem:[#allocation8 + $0x800] sm:$0xff]
    %v4632 = vld [vmem:[#allocation8 + $0x808] sm:$0xff]
    %v4633 = vld [vmem:[#allocation8 + $0x810] sm:$0xff]
    %v4634 = vld [vmem:[#allocation8 + $0x818] sm:$0xff]
    %v4635 = vld [vmem:[#allocation8 + $0x820] sm:$0xff]
    %v4636 = vld [vmem:[#allocation8 + $0x828] sm:$0xff]
    %v4637 = vld [vmem:[#allocation8 + $0x830] sm:$0xff]
    %v4638 = vld [vmem:[#allocation8 + $0x838] sm:$0xff]
    %v4639 = vld [vmem:[#allocation8 + $0x840] sm:$0xff]
    %v4640 = vld [vmem:[#allocation8 + $0x848] sm:$0xff]
    %v4641 = vld [vmem:[#allocation8 + $0x850] sm:$0xff]
    %v4642 = vld [vmem:[#allocation8 + $0x858] sm:$0xff]
    %v4643 = vld [vmem:[#allocation8 + $0x860] sm:$0xff]
    %v4644 = vld [vmem:[#allocation8 + $0x868] sm:$0xff]
    %v4645 = vld [vmem:[#allocation8 + $0x870] sm:$0xff]
    %v4646 = vld [vmem:[#allocation8 + $0x878] sm:$0xff]
    %v4647 = vld [vmem:[#allocation8 + $0x880] sm:$0xff]
    %v4648 = vld [vmem:[#allocation8 + $0x888] sm:$0xff]
    %v4649 = vld [vmem:[#allocation8 + $0x890] sm:$0xff]
    %v4650 = vld [vmem:[#allocation8 + $0x898] sm:$0xff]
    %v4651 = vld [vmem:[#allocation8 + $0x8a0] sm:$0xff]
    %v4652 = vld [vmem:[#allocation8 + $0x8a8] sm:$0xff]
    %v4653 = vld [vmem:[#allocation8 + $0x8b0] sm:$0xff]
    %v4654 = vld [vmem:[#allocation8 + $0x8b8] sm:$0xff]
    %v4655 = vld [vmem:[#allocation8 + $0x8c0] sm:$0xff]
    %v4656 = vld [vmem:[#allocation8 + $0x8c8] sm:$0xff]
    %v4657 = vld [vmem:[#allocation8 + $0x8d0] sm:$0xff]
    %v4658 = vld [vmem:[#allocation8 + $0x8d8] sm:$0xff]
    %v4659 = vld [vmem:[#allocation8 + $0x8e0] sm:$0xff]
    %v4660 = vld [vmem:[#allocation8 + $0x8e8] sm:$0xff]
    %v4661 = vld [vmem:[#allocation8 + $0x8f0] sm:$0xff]
    %v4662 = vld [vmem:[#allocation8 + $0x8f8] sm:$0xff]
    %v4663 = vld [vmem:[#allocation8 + $0x900] sm:$0xff]
    %v4664 = vld [vmem:[#allocation8 + $0x908] sm:$0xff]
    %v4665 = vld [vmem:[#allocation8 + $0x910] sm:$0xff]
    %v4666 = vld [vmem:[#allocation8 + $0x918] sm:$0xff]
    %v4667 = vld [vmem:[#allocation8 + $0x920] sm:$0xff]
    %v4668 = vld [vmem:[#allocation8 + $0x928] sm:$0xff]
    %v4669 = vld [vmem:[#allocation8 + $0x930] sm:$0xff]
    %v4670 = vld [vmem:[#allocation8 + $0x938] sm:$0xff]
    %v4671 = vld [vmem:[#allocation8 + $0x940] sm:$0xff]
    %v4672 = vld [vmem:[#allocation8 + $0x948] sm:$0xff]
    %v4673 = vld [vmem:[#allocation8 + $0x950] sm:$0xff]
    %v4674 = vld [vmem:[#allocation8 + $0x958] sm:$0xff]
    %v4675 = vld [vmem:[#allocation8 + $0x960] sm:$0xff]
    %v4676 = vld [vmem:[#allocation8 + $0x968] sm:$0xff]
    %v4677 = vld [vmem:[#allocation8 + $0x970] sm:$0xff]
    %v4678 = vld [vmem:[#allocation8 + $0x978] sm:$0xff]
    %v4679 = vld [vmem:[#allocation8 + $0x980] sm:$0xff]
    %v4680 = vld [vmem:[#allocation8 + $0x988] sm:$0xff]
    %v4681 = vld [vmem:[#allocation8 + $0x990] sm:$0xff]
    %v4682 = vld [vmem:[#allocation8 + $0x998] sm:$0xff]
    %v4683 = vld [vmem:[#allocation8 + $0x9a0] sm:$0xff]
    %v4684 = vld [vmem:[#allocation8 + $0x9a8] sm:$0xff]
    %v4685 = vld [vmem:[#allocation8 + $0x9b0] sm:$0xff]
    %v4686 = vld [vmem:[#allocation8 + $0x9b8] sm:$0xff]
    %v4687 = vld [vmem:[#allocation8 + $0x9c0] sm:$0xff]
    %v4688 = vld [vmem:[#allocation8 + $0x9c8] sm:$0xff]
    %v4689 = vld [vmem:[#allocation8 + $0x9d0] sm:$0xff]
    %v4690 = vld [vmem:[#allocation8 + $0x9d8] sm:$0xff]
    %v4691 = vld [vmem:[#allocation8 + $0x9e0] sm:$0xff]
    %v4692 = vld [vmem:[#allocation8 + $0x9e8] sm:$0xff]
    %v4693 = vld [vmem:[#allocation8 + $0x9f0] sm:$0xff]
    %v4694 = vld [vmem:[#allocation8 + $0x9f8] sm:$0xff]
    %v4695 = vld [vmem:[#allocation8 + $0xa00] sm:$0xff]
    %v4696 = vld [vmem:[#allocation8 + $0xa08] sm:$0xff]
    %v4697 = vld [vmem:[#allocation8 + $0xa10] sm:$0xff]
    %v4698 = vld [vmem:[#allocation8 + $0xa18] sm:$0xff]
    %v4699 = vld [vmem:[#allocation8 + $0xa20] sm:$0xff]
    %v4700 = vld [vmem:[#allocation8 + $0xa28] sm:$0xff]
    %v4701 = vld [vmem:[#allocation8 + $0xa30] sm:$0xff]
    %v4702 = vld [vmem:[#allocation8 + $0xa38] sm:$0xff]
    %v4703 = vld [vmem:[#allocation8 + $0xa40] sm:$0xff]
    %v4704 = vld [vmem:[#allocation8 + $0xa48] sm:$0xff]
    %v4705 = vld [vmem:[#allocation8 + $0xa50] sm:$0xff]
    %v4706 = vld [vmem:[#allocation8 + $0xa58] sm:$0xff]
    %v4707 = vld [vmem:[#allocation8 + $0xa60] sm:$0xff]
    %v4708 = vld [vmem:[#allocation8 + $0xa68] sm:$0xff]
    %v4709 = vld [vmem:[#allocation8 + $0xa70] sm:$0xff]
    %v4710 = vld [vmem:[#allocation8 + $0xa78] sm:$0xff]
    %v4711 = vld [vmem:[#allocation8 + $0xa80] sm:$0xff]
    %v4712 = vld [vmem:[#allocation8 + $0xa88] sm:$0xff]
    %v4713 = vld [vmem:[#allocation8 + $0xa90] sm:$0xff]
    %v4714 = vld [vmem:[#allocation8 + $0xa98] sm:$0xff]
    %v4715 = vld [vmem:[#allocation8 + $0xaa0] sm:$0xff]
    %v4716 = vld [vmem:[#allocation8 + $0xaa8] sm:$0xff]
    %v4717 = vld [vmem:[#allocation8 + $0xab0] sm:$0xff]
    %v4718 = vld [vmem:[#allocation8 + $0xab8] sm:$0xff]
    %v4719 = vld [vmem:[#allocation8 + $0xac0] sm:$0xff]
    %v4720 = vld [vmem:[#allocation8 + $0xac8] sm:$0xff]
    %v4721 = vld [vmem:[#allocation8 + $0xad0] sm:$0xff]
    %v4722 = vld [vmem:[#allocation8 + $0xad8] sm:$0xff]
    %v4723 = vld [vmem:[#allocation8 + $0xae0] sm:$0xff]
    %v4724 = vld [vmem:[#allocation8 + $0xae8] sm:$0xff]
    %v4725 = vld [vmem:[#allocation8 + $0xaf0] sm:$0xff]
    %v4726 = vld [vmem:[#allocation8 + $0xaf8] sm:$0xff]
    %v4727 = vld [vmem:[#allocation8 + $0xb00] sm:$0xff]
    %v4728 = vld [vmem:[#allocation8 + $0xb08] sm:$0xff]
    %v4729 = vld [vmem:[#allocation8 + $0xb10] sm:$0xff]
    %v4730 = vld [vmem:[#allocation8 + $0xb18] sm:$0xff]
    %v4731 = vld [vmem:[#allocation8 + $0xb20] sm:$0xff]
    %v4732 = vld [vmem:[#allocation8 + $0xb28] sm:$0xff]
    %v4733 = vld [vmem:[#allocation8 + $0xb30] sm:$0xff]
    %v4734 = vld [vmem:[#allocation8 + $0xb38] sm:$0xff]
    %v4735 = vld [vmem:[#allocation8 + $0xb40] sm:$0xff]
    %v4736 = vld [vmem:[#allocation8 + $0xb48] sm:$0xff]
    %v4737 = vld [vmem:[#allocation8 + $0xb50] sm:$0xff]
    %v4738 = vld [vmem:[#allocation8 + $0xb58] sm:$0xff]
    %v4739 = vld [vmem:[#allocation8 + $0xb60] sm:$0xff]
    %v4740 = vld [vmem:[#allocation8 + $0xb68] sm:$0xff]
    %v4741 = vld [vmem:[#allocation8 + $0xb70] sm:$0xff]
    %v4742 = vld [vmem:[#allocation8 + $0xb78] sm:$0xff]
    %v4743 = vld [vmem:[#allocation8 + $0xb80] sm:$0xff]
    %v4744 = vld [vmem:[#allocation8 + $0xb88] sm:$0xff]
    %v4745 = vld [vmem:[#allocation8 + $0xb90] sm:$0xff]
    %v4746 = vld [vmem:[#allocation8 + $0xb98] sm:$0xff]
    %v4747 = vld [vmem:[#allocation8 + $0xba0] sm:$0xff]
    %v4748 = vld [vmem:[#allocation8 + $0xba8] sm:$0xff]
    %v4749 = vld [vmem:[#allocation8 + $0xbb0] sm:$0xff]
    %v4750 = vld [vmem:[#allocation8 + $0xbb8] sm:$0xff]
    %v4751 = vld [vmem:[#allocation8 + $0xbc0] sm:$0xff]
    %v4752 = vld [vmem:[#allocation8 + $0xbc8] sm:$0xff]
    %v4753 = vld [vmem:[#allocation8 + $0xbd0] sm:$0xff]
    %v4754 = vld [vmem:[#allocation8 + $0xbd8] sm:$0xff]
    %v4755 = vld [vmem:[#allocation8 + $0xbe0] sm:$0xff]
    %v4756 = vld [vmem:[#allocation8 + $0xbe8] sm:$0xff]
    %v4757 = vld [vmem:[#allocation8 + $0xbf0] sm:$0xff]
    %v4758 = vld [vmem:[#allocation8 + $0xbf8] sm:$0xff]
    %v4759 = vld [vmem:[#allocation8 + $0xc00] sm:$0xff]
    %v4760 = vld [vmem:[#allocation8 + $0xc08] sm:$0xff]
    %v4761 = vld [vmem:[#allocation8 + $0xc10] sm:$0xff]
    %v4762 = vld [vmem:[#allocation8 + $0xc18] sm:$0xff]
    %v4763 = vld [vmem:[#allocation8 + $0xc20] sm:$0xff]
    %v4764 = vld [vmem:[#allocation8 + $0xc28] sm:$0xff]
    %v4765 = vld [vmem:[#allocation8 + $0xc30] sm:$0xff]
    %v4766 = vld [vmem:[#allocation8 + $0xc38] sm:$0xff]
    %v4767 = vld [vmem:[#allocation8 + $0xc40] sm:$0xff]
    %v4768 = vld [vmem:[#allocation8 + $0xc48] sm:$0xff]
    %v4769 = vld [vmem:[#allocation8 + $0xc50] sm:$0xff]
    %v4770 = vld [vmem:[#allocation8 + $0xc58] sm:$0xff]
    %v4771 = vld [vmem:[#allocation8 + $0xc60] sm:$0xff]
    %v4772 = vld [vmem:[#allocation8 + $0xc68] sm:$0xff]
    %v4773 = vld [vmem:[#allocation8 + $0xc70] sm:$0xff]
    %v4774 = vld [vmem:[#allocation8 + $0xc78] sm:$0xff]
    %v4775 = vld [vmem:[#allocation8 + $0xc80] sm:$0xff]
    %v4776 = vld [vmem:[#allocation8 + $0xc88] sm:$0xff]
    %v4777 = vld [vmem:[#allocation8 + $0xc90] sm:$0xff]
    %v4778 = vld [vmem:[#allocation8 + $0xc98] sm:$0xff]
    %v4779 = vld [vmem:[#allocation8 + $0xca0] sm:$0xff]
    %v4780 = vld [vmem:[#allocation8 + $0xca8] sm:$0xff]
    %v4781 = vld [vmem:[#allocation8 + $0xcb0] sm:$0xff]
    %v4782 = vld [vmem:[#allocation8 + $0xcb8] sm:$0xff]
    %v4783 = vld [vmem:[#allocation8 + $0xcc0] sm:$0xff]
    %v4784 = vld [vmem:[#allocation8 + $0xcc8] sm:$0xff]
    %v4785 = vld [vmem:[#allocation8 + $0xcd0] sm:$0xff]
    %v4786 = vld [vmem:[#allocation8 + $0xcd8] sm:$0xff]
    %v4787 = vld [vmem:[#allocation8 + $0xce0] sm:$0xff]
    %v4788 = vld [vmem:[#allocation8 + $0xce8] sm:$0xff]
    %v4789 = vld [vmem:[#allocation8 + $0xcf0] sm:$0xff]
    %v4790 = vld [vmem:[#allocation8 + $0xcf8] sm:$0xff]
    %v4791 = vld [vmem:[#allocation8 + $0xd00] sm:$0xff]
    %v4792 = vld [vmem:[#allocation8 + $0xd08] sm:$0xff]
    %v4793 = vld [vmem:[#allocation8 + $0xd10] sm:$0xff]
    %v4794 = vld [vmem:[#allocation8 + $0xd18] sm:$0xff]
    %v4795 = vld [vmem:[#allocation8 + $0xd20] sm:$0xff]
    %v4796 = vld [vmem:[#allocation8 + $0xd28] sm:$0xff]
    %v4797 = vld [vmem:[#allocation8 + $0xd30] sm:$0xff]
    %v4798 = vld [vmem:[#allocation8 + $0xd38] sm:$0xff]
    %v4799 = vld [vmem:[#allocation8 + $0xd40] sm:$0xff]
    %v4800 = vld [vmem:[#allocation8 + $0xd48] sm:$0xff]
    %v4801 = vld [vmem:[#allocation8 + $0xd50] sm:$0xff]
    %v4802 = vld [vmem:[#allocation8 + $0xd58] sm:$0xff]
    %v4803 = vld [vmem:[#allocation8 + $0xd60] sm:$0xff]
    %v4804 = vld [vmem:[#allocation8 + $0xd68] sm:$0xff]
    %v4805 = vld [vmem:[#allocation8 + $0xd70] sm:$0xff]
    %v4806 = vld [vmem:[#allocation8 + $0xd78] sm:$0xff]
    %v4807 = vld [vmem:[#allocation8 + $0xd80] sm:$0xff]
    %v4808 = vld [vmem:[#allocation8 + $0xd88] sm:$0xff]
    %v4809 = vld [vmem:[#allocation8 + $0xd90] sm:$0xff]
    %v4810 = vld [vmem:[#allocation8 + $0xd98] sm:$0xff]
    %v4811 = vld [vmem:[#allocation8 + $0xda0] sm:$0xff]
    %v4812 = vld [vmem:[#allocation8 + $0xda8] sm:$0xff]
    %v4813 = vld [vmem:[#allocation8 + $0xdb0] sm:$0xff]
    %v4814 = vld [vmem:[#allocation8 + $0xdb8] sm:$0xff]
    %v4815 = vld [vmem:[#allocation8 + $0xdc0] sm:$0xff]
    %v4816 = vld [vmem:[#allocation8 + $0xdc8] sm:$0xff]
    %v4817 = vld [vmem:[#allocation8 + $0xdd0] sm:$0xff]
    %v4818 = vld [vmem:[#allocation8 + $0xdd8] sm:$0xff]
    %v4819 = vld [vmem:[#allocation8 + $0xde0] sm:$0xff]
    %v4820 = vld [vmem:[#allocation8 + $0xde8] sm:$0xff]
    %v4821 = vld [vmem:[#allocation8 + $0xdf0] sm:$0xff]
    %v4822 = vld [vmem:[#allocation8 + $0xdf8] sm:$0xff]
    %v4823 = vld [vmem:[#allocation8 + $0xe00] sm:$0xff]
    %v4824 = vld [vmem:[#allocation8 + $0xe08] sm:$0xff]
    %v4825 = vld [vmem:[#allocation8 + $0xe10] sm:$0xff]
    %v4826 = vld [vmem:[#allocation8 + $0xe18] sm:$0xff]
    %v4827 = vld [vmem:[#allocation8 + $0xe20] sm:$0xff]
    %v4828 = vld [vmem:[#allocation8 + $0xe28] sm:$0xff]
    %v4829 = vld [vmem:[#allocation8 + $0xe30] sm:$0xff]
    %v4830 = vld [vmem:[#allocation8 + $0xe38] sm:$0xff]
    %v4831 = vld [vmem:[#allocation8 + $0xe40] sm:$0xff]
    %v4832 = vld [vmem:[#allocation8 + $0xe48] sm:$0xff]
    %v4833 = vld [vmem:[#allocation8 + $0xe50] sm:$0xff]
    %v4834 = vld [vmem:[#allocation8 + $0xe58] sm:$0xff]
    %v4835 = vld [vmem:[#allocation8 + $0xe60] sm:$0xff]
    %v4836 = vld [vmem:[#allocation8 + $0xe68] sm:$0xff]
    %v4837 = vld [vmem:[#allocation8 + $0xe70] sm:$0xff]
    %v4838 = vld [vmem:[#allocation8 + $0xe78] sm:$0xff]
    %v4839 = vld [vmem:[#allocation8 + $0xe80] sm:$0xff]
    %v4840 = vld [vmem:[#allocation8 + $0xe88] sm:$0xff]
    %v4841 = vld [vmem:[#allocation8 + $0xe90] sm:$0xff]
    %v4842 = vld [vmem:[#allocation8 + $0xe98] sm:$0xff]
    %v4843 = vld [vmem:[#allocation8 + $0xea0] sm:$0xff]
    %v4844 = vld [vmem:[#allocation8 + $0xea8] sm:$0xff]
    %v4845 = vld [vmem:[#allocation8 + $0xeb0] sm:$0xff]
    %v4846 = vld [vmem:[#allocation8 + $0xeb8] sm:$0xff]
    %v4847 = vld [vmem:[#allocation8 + $0xec0] sm:$0xff]
    %v4848 = vld [vmem:[#allocation8 + $0xec8] sm:$0xff]
    %v4849 = vld [vmem:[#allocation8 + $0xed0] sm:$0xff]
    %v4850 = vld [vmem:[#allocation8 + $0xed8] sm:$0xff]
    %v4851 = vld [vmem:[#allocation8 + $0xee0] sm:$0xff]
    %v4852 = vld [vmem:[#allocation8 + $0xee8] sm:$0xff]
    %v4853 = vld [vmem:[#allocation8 + $0xef0] sm:$0xff]
    %v4854 = vld [vmem:[#allocation8 + $0xef8] sm:$0xff]
    %v4855 = vld [vmem:[#allocation8 + $0xf00] sm:$0xff]
    %v4856 = vld [vmem:[#allocation8 + $0xf08] sm:$0xff]
    %v4857 = vld [vmem:[#allocation8 + $0xf10] sm:$0xff]
    %v4858 = vld [vmem:[#allocation8 + $0xf18] sm:$0xff]
    %v4859 = vld [vmem:[#allocation8 + $0xf20] sm:$0xff]
    %v4860 = vld [vmem:[#allocation8 + $0xf28] sm:$0xff]
    %v4861 = vld [vmem:[#allocation8 + $0xf30] sm:$0xff]
    %v4862 = vld [vmem:[#allocation8 + $0xf38] sm:$0xff]
    %v4863 = vld [vmem:[#allocation8 + $0xf40] sm:$0xff]
    %v4864 = vld [vmem:[#allocation8 + $0xf48] sm:$0xff]
    %v4865 = vld [vmem:[#allocation8 + $0xf50] sm:$0xff]
    %v4866 = vld [vmem:[#allocation8 + $0xf58] sm:$0xff]
    %v4867 = vld [vmem:[#allocation8 + $0xf60] sm:$0xff]
    %v4868 = vld [vmem:[#allocation8 + $0xf68] sm:$0xff]
    %v4869 = vld [vmem:[#allocation8 + $0xf70] sm:$0xff]
    %v4870 = vld [vmem:[#allocation8 + $0xf78] sm:$0xff]
    %v4871 = vld [vmem:[#allocation8 + $0xf80] sm:$0xff]
    %v4872 = vld [vmem:[#allocation8 + $0xf88] sm:$0xff]
    %v4873 = vld [vmem:[#allocation8 + $0xf90] sm:$0xff]
    %v4874 = vld [vmem:[#allocation8 + $0xf98] sm:$0xff]
    %v4875 = vld [vmem:[#allocation8 + $0xfa0] sm:$0xff]
    %v4876 = vld [vmem:[#allocation8 + $0xfa8] sm:$0xff]
    %v4877 = vld [vmem:[#allocation8 + $0xfb0] sm:$0xff]
    %v4878 = vld [vmem:[#allocation8 + $0xfb8] sm:$0xff]
    %v4879 = vld [vmem:[#allocation8 + $0xfc0] sm:$0xff]
    %v4880 = vld [vmem:[#allocation8 + $0xfc8] sm:$0xff]
    %v4881 = vld [vmem:[#allocation8 + $0xfd0] sm:$0xff]
    %v4882 = vld [vmem:[#allocation8 + $0xfd8] sm:$0xff]
    %v4883 = vld [vmem:[#allocation8 + $0xfe0] sm:$0xff]
    %v4884 = vld [vmem:[#allocation8 + $0xfe8] sm:$0xff]
    %v4885 = vld [vmem:[#allocation8 + $0xff0] sm:$0xff]
    %v4886 = vld [vmem:[#allocation8 + $0xff8] sm:$0xff]
    %v4887 = vld [vmem:[#allocation8 + $0x1000] sm:$0xff]
    %v4888 = vld [vmem:[#allocation8 + $0x1008] sm:$0xff]
    %v4889 = vld [vmem:[#allocation8 + $0x1010] sm:$0xff]
    %v4890 = vld [vmem:[#allocation8 + $0x1018] sm:$0xff]
    %v4891 = vld [vmem:[#allocation8 + $0x1020] sm:$0xff]
    %v4892 = vld [vmem:[#allocation8 + $0x1028] sm:$0xff]
    %v4893 = vld [vmem:[#allocation8 + $0x1030] sm:$0xff]
    %v4894 = vld [vmem:[#allocation8 + $0x1038] sm:$0xff]
    %v4895 = vld [vmem:[#allocation8 + $0x1040] sm:$0xff]
    %v4896 = vld [vmem:[#allocation8 + $0x1048] sm:$0xff]
    %v4897 = vld [vmem:[#allocation8 + $0x1050] sm:$0xff]
    %v4898 = vld [vmem:[#allocation8 + $0x1058] sm:$0xff]
    %v4899 = vld [vmem:[#allocation8 + $0x1060] sm:$0xff]
    %v4900 = vld [vmem:[#allocation8 + $0x1068] sm:$0xff]
    %v4901 = vld [vmem:[#allocation8 + $0x1070] sm:$0xff]
    %v4902 = vld [vmem:[#allocation8 + $0x1078] sm:$0xff]
    %v4903 = vld [vmem:[#allocation8 + $0x1080] sm:$0xff]
    %v4904 = vld [vmem:[#allocation8 + $0x1088] sm:$0xff]
    %v4905 = vld [vmem:[#allocation8 + $0x1090] sm:$0xff]
    %v4906 = vld [vmem:[#allocation8 + $0x1098] sm:$0xff]
    %v4907 = vld [vmem:[#allocation8 + $0x10a0] sm:$0xff]
    %v4908 = vld [vmem:[#allocation8 + $0x10a8] sm:$0xff]
    %v4909 = vld [vmem:[#allocation8 + $0x10b0] sm:$0xff]
    %v4910 = vld [vmem:[#allocation8 + $0x10b8] sm:$0xff]
    %v4911 = vld [vmem:[#allocation8 + $0x10c0] sm:$0xff]
    %v4912 = vld [vmem:[#allocation8 + $0x10c8] sm:$0xff]
    %v4913 = vld [vmem:[#allocation8 + $0x10d0] sm:$0xff]
    %v4914 = vld [vmem:[#allocation8 + $0x10d8] sm:$0xff]
    %v4915 = vld [vmem:[#allocation8 + $0x10e0] sm:$0xff]
    %v4916 = vld [vmem:[#allocation8 + $0x10e8] sm:$0xff]
    %v4917 = vld [vmem:[#allocation8 + $0x10f0] sm:$0xff]
    %v4918 = vld [vmem:[#allocation8 + $0x10f8] sm:$0xff]
    %v4919 = vld [vmem:[#allocation8 + $0x1100] sm:$0xff]
    %v4920 = vld [vmem:[#allocation8 + $0x1108] sm:$0xff]
    %v4921 = vld [vmem:[#allocation8 + $0x1110] sm:$0xff]
    %v4922 = vld [vmem:[#allocation8 + $0x1118] sm:$0xff]
    %v4923 = vld [vmem:[#allocation8 + $0x1120] sm:$0xff]
    %v4924 = vld [vmem:[#allocation8 + $0x1128] sm:$0xff]
    %v4925 = vld [vmem:[#allocation8 + $0x1130] sm:$0xff]
    %v4926 = vld [vmem:[#allocation8 + $0x1138] sm:$0xff]
    %v4927 = vld [vmem:[#allocation8 + $0x1140] sm:$0xff]
    %v4928 = vld [vmem:[#allocation8 + $0x1148] sm:$0xff]
    %v4929 = vld [vmem:[#allocation8 + $0x1150] sm:$0xff]
    %v4930 = vld [vmem:[#allocation8 + $0x1158] sm:$0xff]
    %v4931 = vld [vmem:[#allocation8 + $0x1160] sm:$0xff]
    %v4932 = vld [vmem:[#allocation8 + $0x1168] sm:$0xff]
    %v4933 = vld [vmem:[#allocation8 + $0x1170] sm:$0xff]
    %v4934 = vld [vmem:[#allocation8 + $0x1178] sm:$0xff]
    %v4935 = vld [vmem:[#allocation8 + $0x1180] sm:$0xff]
    %v4936 = vld [vmem:[#allocation8 + $0x1188] sm:$0xff]
    %v4937 = vld [vmem:[#allocation8 + $0x1190] sm:$0xff]
    %v4938 = vld [vmem:[#allocation8 + $0x1198] sm:$0xff]
    %v4939 = vld [vmem:[#allocation8 + $0x11a0] sm:$0xff]
    %v4940 = vld [vmem:[#allocation8 + $0x11a8] sm:$0xff]
    %v4941 = vld [vmem:[#allocation8 + $0x11b0] sm:$0xff]
    %v4942 = vld [vmem:[#allocation8 + $0x11b8] sm:$0xff]
    %v4943 = vld [vmem:[#allocation8 + $0x11c0] sm:$0xff]
    %v4944 = vld [vmem:[#allocation8 + $0x11c8] sm:$0xff]
    %v4945 = vld [vmem:[#allocation8 + $0x11d0] sm:$0xff]
    %v4946 = vld [vmem:[#allocation8 + $0x11d8] sm:$0xff]
    %v4947 = vld [vmem:[#allocation8 + $0x11e0] sm:$0xff]
    %v4948 = vld [vmem:[#allocation8 + $0x11e8] sm:$0xff]
    %v4949 = vld [vmem:[#allocation8 + $0x11f0] sm:$0xff]
    %v4950 = vld [vmem:[#allocation8 + $0x11f8] sm:$0xff]
    %v4951 = vld [vmem:[#allocation10] sm:$0xff]
    %v4952 = vld [vmem:[#allocation10 + $0x8] sm:$0xff]
    %v4953 = vld [vmem:[#allocation10 + $0x10] sm:$0x3]
    %v4957 = vlaneseq
    %v4958 = vshrl.u32 %v4957, 7
    %v4959 = vsub.s32 0, %v4958
    %v4960 = vrot.slane %v4951, %v4959
    %v4961 = vlaneseq
    %v4962 = vshrl.u32 %v4961, 7
    %v4963 = vsub.s32 1, %v4962
    %v4964 = vrot.slane %v4951, %v4963
    %v4965 = vlaneseq
    %v4966 = vshrl.u32 %v4965, 7
    %v4967 = vsub.s32 2, %v4966
    %v4968 = vrot.slane %v4951, %v4967
    %v4969 = vlaneseq
    %v4970 = vshrl.u32 %v4969, 7
    %v4971 = vsub.s32 3, %v4970
    %v4972 = vrot.slane %v4951, %v4971
    %v4973 = vlaneseq
    %v4974 = vshrl.u32 %v4973, 7
    %v4975 = vsub.s32 4, %v4974
    %v4976 = vrot.slane %v4951, %v4975
    %v4977 = vlaneseq
    %v4978 = vshrl.u32 %v4977, 7
    %v4979 = vsub.s32 5, %v4978
    %v4980 = vrot.slane %v4951, %v4979
    %v4981 = vlaneseq
    %v4982 = vshrl.u32 %v4981, 7
    %v4983 = vsub.s32 6, %v4982
    %v4984 = vrot.slane %v4951, %v4983
    %v4985 = vlaneseq
    %v4986 = vshrl.u32 %v4985, 7
    %v4987 = vsub.s32 7, %v4986
    %v4988 = vrot.slane %v4951, %v4987
    %v4989 = vlaneseq
    %v4990 = vshrl.u32 %v4989, 7
    %v4991 = vsub.s32 0, %v4990
    %v4992 = vrot.slane %v4952, %v4991
    %v4993 = vlaneseq
    %v4994 = vshrl.u32 %v4993, 7
    %v4995 = vsub.s32 1, %v4994
    %v4996 = vrot.slane %v4952, %v4995
    %v4997 = vlaneseq
    %v4998 = vshrl.u32 %v4997, 7
    %v4999 = vsub.s32 2, %v4998
    %v5000 = vrot.slane %v4952, %v4999
    %v5001 = vlaneseq
    %v5002 = vshrl.u32 %v5001, 7
    %v5003 = vsub.s32 3, %v5002
    %v5004 = vrot.slane %v4952, %v5003
    %v5005 = vlaneseq
    %v5006 = vshrl.u32 %v5005, 7
    %v5007 = vsub.s32 4, %v5006
    %v5008 = vrot.slane %v4952, %v5007
    %v5009 = vlaneseq
    %v5010 = vshrl.u32 %v5009, 7
    %v5011 = vsub.s32 5, %v5010
    %v5012 = vrot.slane %v4952, %v5011
    %v5013 = vlaneseq
    %v5014 = vshrl.u32 %v5013, 7
    %v5015 = vsub.s32 6, %v5014
    %v5016 = vrot.slane %v4952, %v5015
    %v5017 = vlaneseq
    %v5018 = vshrl.u32 %v5017, 7
    %v5019 = vsub.s32 7, %v5018
    %v5020 = vrot.slane %v4952, %v5019
    %v5021 = vlaneseq
    %v5022 = vshrl.u32 %v5021, 7
    %v5023 = vsub.s32 0, %v5022
    %v5024 = vrot.slane %v4953, %v5023
    %v5025 = vlaneseq
    %v5026 = vshrl.u32 %v5025, 7
    %v5027 = vsub.s32 1, %v5026
    %v5028 = vrot.slane %v4953, %v5027
    %v5623 = vunpack.c.l.b16 %v4375
    %v5624 = vunpack.c.h.b16 %v4375
    %v5625 = vunpack.c.l.b16 %v4376
    %v5626 = vunpack.c.h.b16 %v4376
    %v5627 = vunpack.c.l.b16 %v4377
    %v5628 = vunpack.c.h.b16 %v4377
    %v5629 = vunpack.c.l.b16 %v4378
    %v5630 = vunpack.c.h.b16 %v4378
    %v5631 = vunpack.c.l.b16 %v4379
    %v5632 = vunpack.c.h.b16 %v4379
    %v5633 = vunpack.c.l.b16 %v4380
    %v5634 = vunpack.c.h.b16 %v4380
    %v5635 = vunpack.c.l.b16 %v4381
    %v5636 = vunpack.c.h.b16 %v4381
    %v5637 = vunpack.c.l.b16 %v4382
    %v5638 = vunpack.c.h.b16 %v4382
    %v5639 = vunpack.c.l.b16 %v4383
    %v5640 = vunpack.c.h.b16 %v4383
    %v5641 = vunpack.c.l.b16 %v4384
    %v5642 = vunpack.c.h.b16 %v4384
    %v5643 = vunpack.c.l.b16 %v4385
    %v5644 = vunpack.c.h.b16 %v4385
    %v5645 = vunpack.c.l.b16 %v4386
    %v5646 = vunpack.c.h.b16 %v4386
    %v5647 = vunpack.c.l.b16 %v4387
    %v5648 = vunpack.c.h.b16 %v4387
    %v5649 = vunpack.c.l.b16 %v4388
    %v5650 = vunpack.c.h.b16 %v4388
    %v5651 = vunpack.c.l.b16 %v4389
    %v5652 = vunpack.c.h.b16 %v4389
    %v5653 = vunpack.c.l.b16 %v4390
    %v5654 = vunpack.c.h.b16 %v4390
    %v5655 = vunpack.c.l.b16 %v4391
    %v5656 = vunpack.c.h.b16 %v4391
    %v5657 = vunpack.c.l.b16 %v4392
    %v5658 = vunpack.c.h.b16 %v4392
    %v5659 = vunpack.c.l.b16 %v4393
    %v5660 = vunpack.c.h.b16 %v4393
    %v5661 = vunpack.c.l.b16 %v4394
    %v5662 = vunpack.c.h.b16 %v4394
    %v5663 = vunpack.c.l.b16 %v4395
    %v5664 = vunpack.c.h.b16 %v4395
    %v5665 = vunpack.c.l.b16 %v4396
    %v5666 = vunpack.c.h.b16 %v4396
    %v5667 = vunpack.c.l.b16 %v4397
    %v5668 = vunpack.c.h.b16 %v4397
    %v5669 = vunpack.c.l.b16 %v4398
    %v5670 = vunpack.c.h.b16 %v4398
    %v5671 = vunpack.c.l.b16 %v4399
    %v5672 = vunpack.c.h.b16 %v4399
    %v5673 = vunpack.c.l.b16 %v4400
    %v5674 = vunpack.c.h.b16 %v4400
    %v5675 = vunpack.c.l.b16 %v4401
    %v5676 = vunpack.c.h.b16 %v4401
    %v5677 = vunpack.c.l.b16 %v4402
    %v5678 = vunpack.c.h.b16 %v4402
    %v5679 = vunpack.c.l.b16 %v4403
    %v5680 = vunpack.c.h.b16 %v4403
    %v5681 = vunpack.c.l.b16 %v4404
    %v5682 = vunpack.c.h.b16 %v4404
    %v5683 = vunpack.c.l.b16 %v4405
    %v5684 = vunpack.c.h.b16 %v4405
    %v5685 = vunpack.c.l.b16 %v4406
    %v5686 = vunpack.c.h.b16 %v4406
    %v5687 = vunpack.c.l.b16 %v4407
    %v5688 = vunpack.c.h.b16 %v4407
    %v5689 = vunpack.c.l.b16 %v4408
    %v5690 = vunpack.c.h.b16 %v4408
    %v5691 = vunpack.c.l.b16 %v4409
    %v5692 = vunpack.c.h.b16 %v4409
    %v5693 = vunpack.c.l.b16 %v4410
    %v5694 = vunpack.c.h.b16 %v4410
    %v5695 = vunpack.c.l.b16 %v4411
    %v5696 = vunpack.c.h.b16 %v4411
    %v5697 = vunpack.c.l.b16 %v4412
    %v5698 = vunpack.c.h.b16 %v4412
    %v5699 = vunpack.c.l.b16 %v4413
    %v5700 = vunpack.c.h.b16 %v4413
    %v5701 = vunpack.c.l.b16 %v4414
    %v5702 = vunpack.c.h.b16 %v4414
    %v5703 = vunpack.c.l.b16 %v4415
    %v5704 = vunpack.c.h.b16 %v4415
    %v5705 = vunpack.c.l.b16 %v4416
    %v5706 = vunpack.c.h.b16 %v4416
    %v5707 = vunpack.c.l.b16 %v4417
    %v5708 = vunpack.c.h.b16 %v4417
    %v5709 = vunpack.c.l.b16 %v4418
    %v5710 = vunpack.c.h.b16 %v4418
    %v5711 = vunpack.c.l.b16 %v4419
    %v5712 = vunpack.c.h.b16 %v4419
    %v5713 = vunpack.c.l.b16 %v4420
    %v5714 = vunpack.c.h.b16 %v4420
    %v5715 = vunpack.c.l.b16 %v4421
    %v5716 = vunpack.c.h.b16 %v4421
    %v5717 = vunpack.c.l.b16 %v4422
    %v5718 = vunpack.c.h.b16 %v4422
    %v5719 = vunpack.c.l.b16 %v4423
    %v5720 = vunpack.c.h.b16 %v4423
    %v5721 = vunpack.c.l.b16 %v4424
    %v5722 = vunpack.c.h.b16 %v4424
    %v5723 = vunpack.c.l.b16 %v4425
    %v5724 = vunpack.c.h.b16 %v4425
    %v5725 = vunpack.c.l.b16 %v4426
    %v5726 = vunpack.c.h.b16 %v4426
    %v5727 = vunpack.c.l.b16 %v4427
    %v5728 = vunpack.c.h.b16 %v4427
    %v5729 = vunpack.c.l.b16 %v4428
    %v5730 = vunpack.c.h.b16 %v4428
    %v5731 = vunpack.c.l.b16 %v4429
    %v5732 = vunpack.c.h.b16 %v4429
    %v5733 = vunpack.c.l.b16 %v4430
    %v5734 = vunpack.c.h.b16 %v4430
    %v5735 = vunpack.c.l.b16 %v4431
    %v5736 = vunpack.c.h.b16 %v4431
    %v5737 = vunpack.c.l.b16 %v4432
    %v5738 = vunpack.c.h.b16 %v4432
    %v5739 = vunpack.c.l.b16 %v4433
    %v5740 = vunpack.c.h.b16 %v4433
    %v5741 = vunpack.c.l.b16 %v4434
    %v5742 = vunpack.c.h.b16 %v4434
    %v5743 = vunpack.c.l.b16 %v4435
    %v5744 = vunpack.c.h.b16 %v4435
    %v5745 = vunpack.c.l.b16 %v4436
    %v5746 = vunpack.c.h.b16 %v4436
    %v5747 = vunpack.c.l.b16 %v4437
    %v5748 = vunpack.c.h.b16 %v4437
    %v5749 = vunpack.c.l.b16 %v4438
    %v5750 = vunpack.c.h.b16 %v4438
    %v5751 = vunpack.c.l.b16 %v4439
    %v5752 = vunpack.c.h.b16 %v4439
    %v5753 = vunpack.c.l.b16 %v4440
    %v5754 = vunpack.c.h.b16 %v4440
    %v5755 = vunpack.c.l.b16 %v4441
    %v5756 = vunpack.c.h.b16 %v4441
    %v5757 = vunpack.c.l.b16 %v4442
    %v5758 = vunpack.c.h.b16 %v4442
    %v5759 = vunpack.c.l.b16 %v4443
    %v5760 = vunpack.c.h.b16 %v4443
    %v5761 = vunpack.c.l.b16 %v4444
    %v5762 = vunpack.c.h.b16 %v4444
    %v5763 = vunpack.c.l.b16 %v4445
    %v5764 = vunpack.c.h.b16 %v4445
    %v5765 = vunpack.c.l.b16 %v4446
    %v5766 = vunpack.c.h.b16 %v4446
    %v5767 = vunpack.c.l.b16 %v4447
    %v5768 = vunpack.c.h.b16 %v4447
    %v5769 = vunpack.c.l.b16 %v4448
    %v5770 = vunpack.c.h.b16 %v4448
    %v5771 = vunpack.c.l.b16 %v4449
    %v5772 = vunpack.c.h.b16 %v4449
    %v5773 = vunpack.c.l.b16 %v4450
    %v5774 = vunpack.c.h.b16 %v4450
    %v5775 = vunpack.c.l.b16 %v4451
    %v5776 = vunpack.c.h.b16 %v4451
    %v5777 = vunpack.c.l.b16 %v4452
    %v5778 = vunpack.c.h.b16 %v4452
    %v5779 = vunpack.c.l.b16 %v4453
    %v5780 = vunpack.c.h.b16 %v4453
    %v5781 = vunpack.c.l.b16 %v4454
    %v5782 = vunpack.c.h.b16 %v4454
    %v5783 = vunpack.c.l.b16 %v4455
    %v5784 = vunpack.c.h.b16 %v4455
    %v5785 = vunpack.c.l.b16 %v4456
    %v5786 = vunpack.c.h.b16 %v4456
    %v5787 = vunpack.c.l.b16 %v4457
    %v5788 = vunpack.c.h.b16 %v4457
    %v5789 = vunpack.c.l.b16 %v4458
    %v5790 = vunpack.c.h.b16 %v4458
    %v5791 = vunpack.c.l.b16 %v4459
    %v5792 = vunpack.c.h.b16 %v4459
    %v5793 = vunpack.c.l.b16 %v4460
    %v5794 = vunpack.c.h.b16 %v4460
    %v5795 = vunpack.c.l.b16 %v4461
    %v5796 = vunpack.c.h.b16 %v4461
    %v5797 = vunpack.c.l.b16 %v4462
    %v5798 = vunpack.c.h.b16 %v4462
    %v5799 = vunpack.c.l.b16 %v4463
    %v5800 = vunpack.c.h.b16 %v4463
    %v5801 = vunpack.c.l.b16 %v4464
    %v5802 = vunpack.c.h.b16 %v4464
    %v5803 = vunpack.c.l.b16 %v4465
    %v5804 = vunpack.c.h.b16 %v4465
    %v5805 = vunpack.c.l.b16 %v4466
    %v5806 = vunpack.c.h.b16 %v4466
    %v5807 = vunpack.c.l.b16 %v4467
    %v5808 = vunpack.c.h.b16 %v4467
    %v5809 = vunpack.c.l.b16 %v4468
    %v5810 = vunpack.c.h.b16 %v4468
    %v5811 = vunpack.c.l.b16 %v4469
    %v5812 = vunpack.c.h.b16 %v4469
    %v5813 = vunpack.c.l.b16 %v4470
    %v5814 = vunpack.c.h.b16 %v4470
    %v5815 = vunpack.c.l.b16 %v4471
    %v5816 = vunpack.c.h.b16 %v4471
    %v5817 = vunpack.c.l.b16 %v4472
    %v5818 = vunpack.c.h.b16 %v4472
    %v5819 = vunpack.c.l.b16 %v4473
    %v5820 = vunpack.c.h.b16 %v4473
    %v5821 = vunpack.c.l.b16 %v4474
    %v5822 = vunpack.c.h.b16 %v4474
    %v5823 = vunpack.c.l.b16 %v4475
    %v5824 = vunpack.c.h.b16 %v4475
    %v5825 = vunpack.c.l.b16 %v4476
    %v5826 = vunpack.c.h.b16 %v4476
    %v5827 = vunpack.c.l.b16 %v4477
    %v5828 = vunpack.c.h.b16 %v4477
    %v5829 = vunpack.c.l.b16 %v4478
    %v5830 = vunpack.c.h.b16 %v4478
    %v5831 = vunpack.c.l.b16 %v4479
    %v5832 = vunpack.c.h.b16 %v4479
    %v5833 = vunpack.c.l.b16 %v4480
    %v5834 = vunpack.c.h.b16 %v4480
    %v5835 = vunpack.c.l.b16 %v4481
    %v5836 = vunpack.c.h.b16 %v4481
    %v5837 = vunpack.c.l.b16 %v4482
    %v5838 = vunpack.c.h.b16 %v4482
    %v5839 = vunpack.c.l.b16 %v4483
    %v5840 = vunpack.c.h.b16 %v4483
    %v5841 = vunpack.c.l.b16 %v4484
    %v5842 = vunpack.c.h.b16 %v4484
    %v5843 = vunpack.c.l.b16 %v4485
    %v5844 = vunpack.c.h.b16 %v4485
    %v5845 = vunpack.c.l.b16 %v4486
    %v5846 = vunpack.c.h.b16 %v4486
    %v5847 = vunpack.c.l.b16 %v4487
    %v5848 = vunpack.c.h.b16 %v4487
    %v5849 = vunpack.c.l.b16 %v4488
    %v5850 = vunpack.c.h.b16 %v4488
    %v5851 = vunpack.c.l.b16 %v4489
    %v5852 = vunpack.c.h.b16 %v4489
    %v5853 = vunpack.c.l.b16 %v4490
    %v5854 = vunpack.c.h.b16 %v4490
    %v5855 = vunpack.c.l.b16 %v4491
    %v5856 = vunpack.c.h.b16 %v4491
    %v5857 = vunpack.c.l.b16 %v4492
    %v5858 = vunpack.c.h.b16 %v4492
    %v5859 = vunpack.c.l.b16 %v4493
    %v5860 = vunpack.c.h.b16 %v4493
    %v5861 = vunpack.c.l.b16 %v4494
    %v5862 = vunpack.c.h.b16 %v4494
    %v5863 = vunpack.c.l.b16 %v4495
    %v5864 = vunpack.c.h.b16 %v4495
    %v5865 = vunpack.c.l.b16 %v4496
    %v5866 = vunpack.c.h.b16 %v4496
    %v5867 = vunpack.c.l.b16 %v4497
    %v5868 = vunpack.c.h.b16 %v4497
    %v5869 = vunpack.c.l.b16 %v4498
    %v5870 = vunpack.c.h.b16 %v4498
    %v5871 = vunpack.c.l.b16 %v4499
    %v5872 = vunpack.c.h.b16 %v4499
    %v5873 = vunpack.c.l.b16 %v4500
    %v5874 = vunpack.c.h.b16 %v4500
    %v5875 = vunpack.c.l.b16 %v4501
    %v5876 = vunpack.c.h.b16 %v4501
    %v5877 = vunpack.c.l.b16 %v4502
    %v5878 = vunpack.c.h.b16 %v4502
    %v5879 = vunpack.c.l.b16 %v4503
    %v5880 = vunpack.c.h.b16 %v4503
    %v5881 = vunpack.c.l.b16 %v4504
    %v5882 = vunpack.c.h.b16 %v4504
    %v5883 = vunpack.c.l.b16 %v4505
    %v5884 = vunpack.c.h.b16 %v4505
    %v5885 = vunpack.c.l.b16 %v4506
    %v5886 = vunpack.c.h.b16 %v4506
    %v5887 = vunpack.c.l.b16 %v4507
    %v5888 = vunpack.c.h.b16 %v4507
    %v5889 = vunpack.c.l.b16 %v4508
    %v5890 = vunpack.c.h.b16 %v4508
    %v5891 = vunpack.c.l.b16 %v4509
    %v5892 = vunpack.c.h.b16 %v4509
    %v5893 = vunpack.c.l.b16 %v4510
    %v5894 = vunpack.c.h.b16 %v4510
    %v5895 = vunpack.c.l.b16 %v4511
    %v5896 = vunpack.c.h.b16 %v4511
    %v5897 = vunpack.c.l.b16 %v4512
    %v5898 = vunpack.c.h.b16 %v4512
    %v5899 = vunpack.c.l.b16 %v4513
    %v5900 = vunpack.c.h.b16 %v4513
    %v5901 = vunpack.c.l.b16 %v4514
    %v5902 = vunpack.c.h.b16 %v4514
    %v5903 = vunpack.c.l.b16 %v4515
    %v5904 = vunpack.c.h.b16 %v4515
    %v5905 = vunpack.c.l.b16 %v4516
    %v5906 = vunpack.c.h.b16 %v4516
    %v5907 = vunpack.c.l.b16 %v4517
    %v5908 = vunpack.c.h.b16 %v4517
    %v5909 = vunpack.c.l.b16 %v4518
    %v5910 = vunpack.c.h.b16 %v4518
    %v5911 = vunpack.c.l.b16 %v4519
    %v5912 = vunpack.c.h.b16 %v4519
    %v5913 = vunpack.c.l.b16 %v4520
    %v5914 = vunpack.c.h.b16 %v4520
    %v5915 = vunpack.c.l.b16 %v4521
    %v5916 = vunpack.c.h.b16 %v4521
    %v5917 = vunpack.c.l.b16 %v4522
    %v5918 = vunpack.c.h.b16 %v4522
    %v5919 = vunpack.c.l.b16 %v4523
    %v5920 = vunpack.c.h.b16 %v4523
    %v5921 = vunpack.c.l.b16 %v4524
    %v5922 = vunpack.c.h.b16 %v4524
    %v5923 = vunpack.c.l.b16 %v4525
    %v5924 = vunpack.c.h.b16 %v4525
    %v5925 = vunpack.c.l.b16 %v4526
    %v5926 = vunpack.c.h.b16 %v4526
    %v5927 = vunpack.c.l.b16 %v4527
    %v5928 = vunpack.c.h.b16 %v4527
    %v5929 = vunpack.c.l.b16 %v4528
    %v5930 = vunpack.c.h.b16 %v4528
    %v5931 = vunpack.c.l.b16 %v4529
    %v5932 = vunpack.c.h.b16 %v4529
    %v5933 = vunpack.c.l.b16 %v4530
    %v5934 = vunpack.c.h.b16 %v4530
    %v5935 = vunpack.c.l.b16 %v4531
    %v5936 = vunpack.c.h.b16 %v4531
    %v5937 = vunpack.c.l.b16 %v4532
    %v5938 = vunpack.c.h.b16 %v4532
    %v5939 = vunpack.c.l.b16 %v4533
    %v5940 = vunpack.c.h.b16 %v4533
    %v5941 = vunpack.c.l.b16 %v4534
    %v5942 = vunpack.c.h.b16 %v4534
    %v5943 = vunpack.c.l.b16 %v4535
    %v5944 = vunpack.c.h.b16 %v4535
    %v5945 = vunpack.c.l.b16 %v4536
    %v5946 = vunpack.c.h.b16 %v4536
    %v5947 = vunpack.c.l.b16 %v4537
    %v5948 = vunpack.c.h.b16 %v4537
    %v5949 = vunpack.c.l.b16 %v4538
    %v5950 = vunpack.c.h.b16 %v4538
    %v5951 = vunpack.c.l.b16 %v4539
    %v5952 = vunpack.c.h.b16 %v4539
    %v5953 = vunpack.c.l.b16 %v4540
    %v5954 = vunpack.c.h.b16 %v4540
    %v5955 = vunpack.c.l.b16 %v4541
    %v5956 = vunpack.c.h.b16 %v4541
    %v5957 = vunpack.c.l.b16 %v4542
    %v5958 = vunpack.c.h.b16 %v4542
    %v5959 = vunpack.c.l.b16 %v4543
    %v5960 = vunpack.c.h.b16 %v4543
    %v5961 = vunpack.c.l.b16 %v4544
    %v5962 = vunpack.c.h.b16 %v4544
    %v5963 = vunpack.c.l.b16 %v4545
    %v5964 = vunpack.c.h.b16 %v4545
    %v5965 = vunpack.c.l.b16 %v4546
    %v5966 = vunpack.c.h.b16 %v4546
    %v5967 = vunpack.c.l.b16 %v4547
    %v5968 = vunpack.c.h.b16 %v4547
    %v5969 = vunpack.c.l.b16 %v4548
    %v5970 = vunpack.c.h.b16 %v4548
    %v5971 = vunpack.c.l.b16 %v4549
    %v5972 = vunpack.c.h.b16 %v4549
    %v5973 = vunpack.c.l.b16 %v4550
    %v5974 = vunpack.c.h.b16 %v4550
    %v5975 = vunpack.c.l.b16 %v4551
    %v5976 = vunpack.c.h.b16 %v4551
    %v5977 = vunpack.c.l.b16 %v4552
    %v5978 = vunpack.c.h.b16 %v4552
    %v5979 = vunpack.c.l.b16 %v4553
    %v5980 = vunpack.c.h.b16 %v4553
    %v5981 = vunpack.c.l.b16 %v4554
    %v5982 = vunpack.c.h.b16 %v4554
    %v5983 = vunpack.c.l.b16 %v4555
    %v5984 = vunpack.c.h.b16 %v4555
    %v5985 = vunpack.c.l.b16 %v4556
    %v5986 = vunpack.c.h.b16 %v4556
    %v5987 = vunpack.c.l.b16 %v4557
    %v5988 = vunpack.c.h.b16 %v4557
    %v5989 = vunpack.c.l.b16 %v4558
    %v5990 = vunpack.c.h.b16 %v4558
    %v5991 = vunpack.c.l.b16 %v4559
    %v5992 = vunpack.c.h.b16 %v4559
    %v5993 = vunpack.c.l.b16 %v4560
    %v5994 = vunpack.c.h.b16 %v4560
    %v5995 = vunpack.c.l.b16 %v4561
    %v5996 = vunpack.c.h.b16 %v4561
    %v5997 = vunpack.c.l.b16 %v4562
    %v5998 = vunpack.c.h.b16 %v4562
    %v5999 = vunpack.c.l.b16 %v4563
    %v6000 = vunpack.c.h.b16 %v4563
    %v6001 = vunpack.c.l.b16 %v4564
    %v6002 = vunpack.c.h.b16 %v4564
    %v6003 = vunpack.c.l.b16 %v4565
    %v6004 = vunpack.c.h.b16 %v4565
    %v6005 = vunpack.c.l.b16 %v4566
    %v6006 = vunpack.c.h.b16 %v4566
    %v6007 = vunpack.c.l.b16 %v4567
    %v6008 = vunpack.c.h.b16 %v4567
    %v6009 = vunpack.c.l.b16 %v4568
    %v6010 = vunpack.c.h.b16 %v4568
    %v6011 = vunpack.c.l.b16 %v4569
    %v6012 = vunpack.c.h.b16 %v4569
    %v6013 = vunpack.c.l.b16 %v4570
    %v6014 = vunpack.c.h.b16 %v4570
    %v6015 = vunpack.c.l.b16 %v4571
    %v6016 = vunpack.c.h.b16 %v4571
    %v6017 = vunpack.c.l.b16 %v4572
    %v6018 = vunpack.c.h.b16 %v4572
    %v6019 = vunpack.c.l.b16 %v4573
    %v6020 = vunpack.c.h.b16 %v4573
    %v6021 = vunpack.c.l.b16 %v4574
    %v6022 = vunpack.c.h.b16 %v4574
    %v6023 = vunpack.c.l.b16 %v4575
    %v6024 = vunpack.c.h.b16 %v4575
    %v6025 = vunpack.c.l.b16 %v4576
    %v6026 = vunpack.c.h.b16 %v4576
    %v6027 = vunpack.c.l.b16 %v4577
    %v6028 = vunpack.c.h.b16 %v4577
    %v6029 = vunpack.c.l.b16 %v4578
    %v6030 = vunpack.c.h.b16 %v4578
    %v6031 = vunpack.c.l.b16 %v4579
    %v6032 = vunpack.c.h.b16 %v4579
    %v6033 = vunpack.c.l.b16 %v4580
    %v6034 = vunpack.c.h.b16 %v4580
    %v6035 = vunpack.c.l.b16 %v4581
    %v6036 = vunpack.c.h.b16 %v4581
    %v6037 = vunpack.c.l.b16 %v4582
    %v6038 = vunpack.c.h.b16 %v4582
    %v6039 = vunpack.c.l.b16 %v4583
    %v6040 = vunpack.c.h.b16 %v4583
    %v6041 = vunpack.c.l.b16 %v4584
    %v6042 = vunpack.c.h.b16 %v4584
    %v6043 = vunpack.c.l.b16 %v4585
    %v6044 = vunpack.c.h.b16 %v4585
    %v6045 = vunpack.c.l.b16 %v4586
    %v6046 = vunpack.c.h.b16 %v4586
    %v6047 = vunpack.c.l.b16 %v4587
    %v6048 = vunpack.c.h.b16 %v4587
    %v6049 = vunpack.c.l.b16 %v4588
    %v6050 = vunpack.c.h.b16 %v4588
    %v6051 = vunpack.c.l.b16 %v4589
    %v6052 = vunpack.c.h.b16 %v4589
    %v6053 = vunpack.c.l.b16 %v4590
    %v6054 = vunpack.c.h.b16 %v4590
    %v6055 = vunpack.c.l.b16 %v4591
    %v6056 = vunpack.c.h.b16 %v4591
    %v6057 = vunpack.c.l.b16 %v4592
    %v6058 = vunpack.c.h.b16 %v4592
    %v6059 = vunpack.c.l.b16 %v4593
    %v6060 = vunpack.c.h.b16 %v4593
    %v6061 = vunpack.c.l.b16 %v4594
    %v6062 = vunpack.c.h.b16 %v4594
    %v6063 = vunpack.c.l.b16 %v4595
    %v6064 = vunpack.c.h.b16 %v4595
    %v6065 = vunpack.c.l.b16 %v4596
    %v6066 = vunpack.c.h.b16 %v4596
    %v6067 = vunpack.c.l.b16 %v4597
    %v6068 = vunpack.c.h.b16 %v4597
    %v6069 = vunpack.c.l.b16 %v4598
    %v6070 = vunpack.c.h.b16 %v4598
    %v6071 = vunpack.c.l.b16 %v4599
    %v6072 = vunpack.c.h.b16 %v4599
    %v6073 = vunpack.c.l.b16 %v4600
    %v6074 = vunpack.c.h.b16 %v4600
    %v6075 = vunpack.c.l.b16 %v4601
    %v6076 = vunpack.c.h.b16 %v4601
    %v6077 = vunpack.c.l.b16 %v4602
    %v6078 = vunpack.c.h.b16 %v4602
    %v6079 = vunpack.c.l.b16 %v4603
    %v6080 = vunpack.c.h.b16 %v4603
    %v6081 = vunpack.c.l.b16 %v4604
    %v6082 = vunpack.c.h.b16 %v4604
    %v6083 = vunpack.c.l.b16 %v4605
    %v6084 = vunpack.c.h.b16 %v4605
    %v6085 = vunpack.c.l.b16 %v4606
    %v6086 = vunpack.c.h.b16 %v4606
    %v6087 = vunpack.c.l.b16 %v4607
    %v6088 = vunpack.c.h.b16 %v4607
    %v6089 = vunpack.c.l.b16 %v4608
    %v6090 = vunpack.c.h.b16 %v4608
    %v6091 = vunpack.c.l.b16 %v4609
    %v6092 = vunpack.c.h.b16 %v4609
    %v6093 = vunpack.c.l.b16 %v4610
    %v6094 = vunpack.c.h.b16 %v4610
    %v6095 = vunpack.c.l.b16 %v4611
    %v6096 = vunpack.c.h.b16 %v4611
    %v6097 = vunpack.c.l.b16 %v4612
    %v6098 = vunpack.c.h.b16 %v4612
    %v6099 = vunpack.c.l.b16 %v4613
    %v6100 = vunpack.c.h.b16 %v4613
    %v6101 = vunpack.c.l.b16 %v4614
    %v6102 = vunpack.c.h.b16 %v4614
    %v6103 = vunpack.c.l.b16 %v4615
    %v6104 = vunpack.c.h.b16 %v4615
    %v6105 = vunpack.c.l.b16 %v4616
    %v6106 = vunpack.c.h.b16 %v4616
    %v6107 = vunpack.c.l.b16 %v4617
    %v6108 = vunpack.c.h.b16 %v4617
    %v6109 = vunpack.c.l.b16 %v4618
    %v6110 = vunpack.c.h.b16 %v4618
    %v6111 = vunpack.c.l.b16 %v4619
    %v6112 = vunpack.c.h.b16 %v4619
    %v6113 = vunpack.c.l.b16 %v4620
    %v6114 = vunpack.c.h.b16 %v4620
    %v6115 = vunpack.c.l.b16 %v4621
    %v6116 = vunpack.c.h.b16 %v4621
    %v6117 = vunpack.c.l.b16 %v4622
    %v6118 = vunpack.c.h.b16 %v4622
    %v6119 = vunpack.c.l.b16 %v4623
    %v6120 = vunpack.c.h.b16 %v4623
    %v6121 = vunpack.c.l.b16 %v4624
    %v6122 = vunpack.c.h.b16 %v4624
    %v6123 = vunpack.c.l.b16 %v4625
    %v6124 = vunpack.c.h.b16 %v4625
    %v6125 = vunpack.c.l.b16 %v4626
    %v6126 = vunpack.c.h.b16 %v4626
    %v6127 = vunpack.c.l.b16 %v4627
    %v6128 = vunpack.c.h.b16 %v4627
    %v6129 = vunpack.c.l.b16 %v4628
    %v6130 = vunpack.c.h.b16 %v4628
    %v6131 = vunpack.c.l.b16 %v4629
    %v6132 = vunpack.c.h.b16 %v4629
    %v6133 = vunpack.c.l.b16 %v4630
    %v6134 = vunpack.c.h.b16 %v4630
    %v6135 = vunpack.c.l.b16 %v4631
    %v6136 = vunpack.c.h.b16 %v4631
    %v6137 = vunpack.c.l.b16 %v4632
    %v6138 = vunpack.c.h.b16 %v4632
    %v6139 = vunpack.c.l.b16 %v4633
    %v6140 = vunpack.c.h.b16 %v4633
    %v6141 = vunpack.c.l.b16 %v4634
    %v6142 = vunpack.c.h.b16 %v4634
    %v6143 = vunpack.c.l.b16 %v4635
    %v6144 = vunpack.c.h.b16 %v4635
    %v6145 = vunpack.c.l.b16 %v4636
    %v6146 = vunpack.c.h.b16 %v4636
    %v6147 = vunpack.c.l.b16 %v4637
    %v6148 = vunpack.c.h.b16 %v4637
    %v6149 = vunpack.c.l.b16 %v4638
    %v6150 = vunpack.c.h.b16 %v4638
    %v6151 = vunpack.c.l.b16 %v4639
    %v6152 = vunpack.c.h.b16 %v4639
    %v6153 = vunpack.c.l.b16 %v4640
    %v6154 = vunpack.c.h.b16 %v4640
    %v6155 = vunpack.c.l.b16 %v4641
    %v6156 = vunpack.c.h.b16 %v4641
    %v6157 = vunpack.c.l.b16 %v4642
    %v6158 = vunpack.c.h.b16 %v4642
    %v6159 = vunpack.c.l.b16 %v4643
    %v6160 = vunpack.c.h.b16 %v4643
    %v6161 = vunpack.c.l.b16 %v4644
    %v6162 = vunpack.c.h.b16 %v4644
    %v6163 = vunpack.c.l.b16 %v4645
    %v6164 = vunpack.c.h.b16 %v4645
    %v6165 = vunpack.c.l.b16 %v4646
    %v6166 = vunpack.c.h.b16 %v4646
    %v6167 = vunpack.c.l.b16 %v4647
    %v6168 = vunpack.c.h.b16 %v4647
    %v6169 = vunpack.c.l.b16 %v4648
    %v6170 = vunpack.c.h.b16 %v4648
    %v6171 = vunpack.c.l.b16 %v4649
    %v6172 = vunpack.c.h.b16 %v4649
    %v6173 = vunpack.c.l.b16 %v4650
    %v6174 = vunpack.c.h.b16 %v4650
    %v6175 = vunpack.c.l.b16 %v4651
    %v6176 = vunpack.c.h.b16 %v4651
    %v6177 = vunpack.c.l.b16 %v4652
    %v6178 = vunpack.c.h.b16 %v4652
    %v6179 = vunpack.c.l.b16 %v4653
    %v6180 = vunpack.c.h.b16 %v4653
    %v6181 = vunpack.c.l.b16 %v4654
    %v6182 = vunpack.c.h.b16 %v4654
    %v6183 = vunpack.c.l.b16 %v4655
    %v6184 = vunpack.c.h.b16 %v4655
    %v6185 = vunpack.c.l.b16 %v4656
    %v6186 = vunpack.c.h.b16 %v4656
    %v6187 = vunpack.c.l.b16 %v4657
    %v6188 = vunpack.c.h.b16 %v4657
    %v6189 = vunpack.c.l.b16 %v4658
    %v6190 = vunpack.c.h.b16 %v4658
    %v6191 = vunpack.c.l.b16 %v4659
    %v6192 = vunpack.c.h.b16 %v4659
    %v6193 = vunpack.c.l.b16 %v4660
    %v6194 = vunpack.c.h.b16 %v4660
    %v6195 = vunpack.c.l.b16 %v4661
    %v6196 = vunpack.c.h.b16 %v4661
    %v6197 = vunpack.c.l.b16 %v4662
    %v6198 = vunpack.c.h.b16 %v4662
    %v6199 = vunpack.c.l.b16 %v4663
    %v6200 = vunpack.c.h.b16 %v4663
    %v6201 = vunpack.c.l.b16 %v4664
    %v6202 = vunpack.c.h.b16 %v4664
    %v6203 = vunpack.c.l.b16 %v4665
    %v6204 = vunpack.c.h.b16 %v4665
    %v6205 = vunpack.c.l.b16 %v4666
    %v6206 = vunpack.c.h.b16 %v4666
    %v6207 = vunpack.c.l.b16 %v4667
    %v6208 = vunpack.c.h.b16 %v4667
    %v6209 = vunpack.c.l.b16 %v4668
    %v6210 = vunpack.c.h.b16 %v4668
    %v6211 = vunpack.c.l.b16 %v4669
    %v6212 = vunpack.c.h.b16 %v4669
    %v6213 = vunpack.c.l.b16 %v4670
    %v6214 = vunpack.c.h.b16 %v4670
    %v6215 = vunpack.c.l.b16 %v4671
    %v6216 = vunpack.c.h.b16 %v4671
    %v6217 = vunpack.c.l.b16 %v4672
    %v6218 = vunpack.c.h.b16 %v4672
    %v6219 = vunpack.c.l.b16 %v4673
    %v6220 = vunpack.c.h.b16 %v4673
    %v6221 = vunpack.c.l.b16 %v4674
    %v6222 = vunpack.c.h.b16 %v4674
    %v6223 = vunpack.c.l.b16 %v4675
    %v6224 = vunpack.c.h.b16 %v4675
    %v6225 = vunpack.c.l.b16 %v4676
    %v6226 = vunpack.c.h.b16 %v4676
    %v6227 = vunpack.c.l.b16 %v4677
    %v6228 = vunpack.c.h.b16 %v4677
    %v6229 = vunpack.c.l.b16 %v4678
    %v6230 = vunpack.c.h.b16 %v4678
    %v6231 = vunpack.c.l.b16 %v4679
    %v6232 = vunpack.c.h.b16 %v4679
    %v6233 = vunpack.c.l.b16 %v4680
    %v6234 = vunpack.c.h.b16 %v4680
    %v6235 = vunpack.c.l.b16 %v4681
    %v6236 = vunpack.c.h.b16 %v4681
    %v6237 = vunpack.c.l.b16 %v4682
    %v6238 = vunpack.c.h.b16 %v4682
    %v6239 = vunpack.c.l.b16 %v4683
    %v6240 = vunpack.c.h.b16 %v4683
    %v6241 = vunpack.c.l.b16 %v4684
    %v6242 = vunpack.c.h.b16 %v4684
    %v6243 = vunpack.c.l.b16 %v4685
    %v6244 = vunpack.c.h.b16 %v4685
    %v6245 = vunpack.c.l.b16 %v4686
    %v6246 = vunpack.c.h.b16 %v4686
    %v6247 = vunpack.c.l.b16 %v4687
    %v6248 = vunpack.c.h.b16 %v4687
    %v6249 = vunpack.c.l.b16 %v4688
    %v6250 = vunpack.c.h.b16 %v4688
    %v6251 = vunpack.c.l.b16 %v4689
    %v6252 = vunpack.c.h.b16 %v4689
    %v6253 = vunpack.c.l.b16 %v4690
    %v6254 = vunpack.c.h.b16 %v4690
    %v6255 = vunpack.c.l.b16 %v4691
    %v6256 = vunpack.c.h.b16 %v4691
    %v6257 = vunpack.c.l.b16 %v4692
    %v6258 = vunpack.c.h.b16 %v4692
    %v6259 = vunpack.c.l.b16 %v4693
    %v6260 = vunpack.c.h.b16 %v4693
    %v6261 = vunpack.c.l.b16 %v4694
    %v6262 = vunpack.c.h.b16 %v4694
    %v6263 = vunpack.c.l.b16 %v4695
    %v6264 = vunpack.c.h.b16 %v4695
    %v6265 = vunpack.c.l.b16 %v4696
    %v6266 = vunpack.c.h.b16 %v4696
    %v6267 = vunpack.c.l.b16 %v4697
    %v6268 = vunpack.c.h.b16 %v4697
    %v6269 = vunpack.c.l.b16 %v4698
    %v6270 = vunpack.c.h.b16 %v4698
    %v6271 = vunpack.c.l.b16 %v4699
    %v6272 = vunpack.c.h.b16 %v4699
    %v6273 = vunpack.c.l.b16 %v4700
    %v6274 = vunpack.c.h.b16 %v4700
    %v6275 = vunpack.c.l.b16 %v4701
    %v6276 = vunpack.c.h.b16 %v4701
    %v6277 = vunpack.c.l.b16 %v4702
    %v6278 = vunpack.c.h.b16 %v4702
    %v6279 = vunpack.c.l.b16 %v4703
    %v6280 = vunpack.c.h.b16 %v4703
    %v6281 = vunpack.c.l.b16 %v4704
    %v6282 = vunpack.c.h.b16 %v4704
    %v6283 = vunpack.c.l.b16 %v4705
    %v6284 = vunpack.c.h.b16 %v4705
    %v6285 = vunpack.c.l.b16 %v4706
    %v6286 = vunpack.c.h.b16 %v4706
    %v6287 = vunpack.c.l.b16 %v4707
    %v6288 = vunpack.c.h.b16 %v4707
    %v6289 = vunpack.c.l.b16 %v4708
    %v6290 = vunpack.c.h.b16 %v4708
    %v6291 = vunpack.c.l.b16 %v4709
    %v6292 = vunpack.c.h.b16 %v4709
    %v6293 = vunpack.c.l.b16 %v4710
    %v6294 = vunpack.c.h.b16 %v4710
    %v6295 = vunpack.c.l.b16 %v4711
    %v6296 = vunpack.c.h.b16 %v4711
    %v6297 = vunpack.c.l.b16 %v4712
    %v6298 = vunpack.c.h.b16 %v4712
    %v6299 = vunpack.c.l.b16 %v4713
    %v6300 = vunpack.c.h.b16 %v4713
    %v6301 = vunpack.c.l.b16 %v4714
    %v6302 = vunpack.c.h.b16 %v4714
    %v6303 = vunpack.c.l.b16 %v4715
    %v6304 = vunpack.c.h.b16 %v4715
    %v6305 = vunpack.c.l.b16 %v4716
    %v6306 = vunpack.c.h.b16 %v4716
    %v6307 = vunpack.c.l.b16 %v4717
    %v6308 = vunpack.c.h.b16 %v4717
    %v6309 = vunpack.c.l.b16 %v4718
    %v6310 = vunpack.c.h.b16 %v4718
    %v6311 = vunpack.c.l.b16 %v4719
    %v6312 = vunpack.c.h.b16 %v4719
    %v6313 = vunpack.c.l.b16 %v4720
    %v6314 = vunpack.c.h.b16 %v4720
    %v6315 = vunpack.c.l.b16 %v4721
    %v6316 = vunpack.c.h.b16 %v4721
    %v6317 = vunpack.c.l.b16 %v4722
    %v6318 = vunpack.c.h.b16 %v4722
    %v6319 = vunpack.c.l.b16 %v4723
    %v6320 = vunpack.c.h.b16 %v4723
    %v6321 = vunpack.c.l.b16 %v4724
    %v6322 = vunpack.c.h.b16 %v4724
    %v6323 = vunpack.c.l.b16 %v4725
    %v6324 = vunpack.c.h.b16 %v4725
    %v6325 = vunpack.c.l.b16 %v4726
    %v6326 = vunpack.c.h.b16 %v4726
    %v6327 = vunpack.c.l.b16 %v4727
    %v6328 = vunpack.c.h.b16 %v4727
    %v6329 = vunpack.c.l.b16 %v4728
    %v6330 = vunpack.c.h.b16 %v4728
    %v6331 = vunpack.c.l.b16 %v4729
    %v6332 = vunpack.c.h.b16 %v4729
    %v6333 = vunpack.c.l.b16 %v4730
    %v6334 = vunpack.c.h.b16 %v4730
    %v6335 = vunpack.c.l.b16 %v4731
    %v6336 = vunpack.c.h.b16 %v4731
    %v6337 = vunpack.c.l.b16 %v4732
    %v6338 = vunpack.c.h.b16 %v4732
    %v6339 = vunpack.c.l.b16 %v4733
    %v6340 = vunpack.c.h.b16 %v4733
    %v6341 = vunpack.c.l.b16 %v4734
    %v6342 = vunpack.c.h.b16 %v4734
    %v6343 = vunpack.c.l.b16 %v4735
    %v6344 = vunpack.c.h.b16 %v4735
    %v6345 = vunpack.c.l.b16 %v4736
    %v6346 = vunpack.c.h.b16 %v4736
    %v6347 = vunpack.c.l.b16 %v4737
    %v6348 = vunpack.c.h.b16 %v4737
    %v6349 = vunpack.c.l.b16 %v4738
    %v6350 = vunpack.c.h.b16 %v4738
    %v6351 = vunpack.c.l.b16 %v4739
    %v6352 = vunpack.c.h.b16 %v4739
    %v6353 = vunpack.c.l.b16 %v4740
    %v6354 = vunpack.c.h.b16 %v4740
    %v6355 = vunpack.c.l.b16 %v4741
    %v6356 = vunpack.c.h.b16 %v4741
    %v6357 = vunpack.c.l.b16 %v4742
    %v6358 = vunpack.c.h.b16 %v4742
    %v6359 = vunpack.c.l.b16 %v4743
    %v6360 = vunpack.c.h.b16 %v4743
    %v6361 = vunpack.c.l.b16 %v4744
    %v6362 = vunpack.c.h.b16 %v4744
    %v6363 = vunpack.c.l.b16 %v4745
    %v6364 = vunpack.c.h.b16 %v4745
    %v6365 = vunpack.c.l.b16 %v4746
    %v6366 = vunpack.c.h.b16 %v4746
    %v6367 = vunpack.c.l.b16 %v4747
    %v6368 = vunpack.c.h.b16 %v4747
    %v6369 = vunpack.c.l.b16 %v4748
    %v6370 = vunpack.c.h.b16 %v4748
    %v6371 = vunpack.c.l.b16 %v4749
    %v6372 = vunpack.c.h.b16 %v4749
    %v6373 = vunpack.c.l.b16 %v4750
    %v6374 = vunpack.c.h.b16 %v4750
    %v6375 = vunpack.c.l.b16 %v4751
    %v6376 = vunpack.c.h.b16 %v4751
    %v6377 = vunpack.c.l.b16 %v4752
    %v6378 = vunpack.c.h.b16 %v4752
    %v6379 = vunpack.c.l.b16 %v4753
    %v6380 = vunpack.c.h.b16 %v4753
    %v6381 = vunpack.c.l.b16 %v4754
    %v6382 = vunpack.c.h.b16 %v4754
    %v6383 = vunpack.c.l.b16 %v4755
    %v6384 = vunpack.c.h.b16 %v4755
    %v6385 = vunpack.c.l.b16 %v4756
    %v6386 = vunpack.c.h.b16 %v4756
    %v6387 = vunpack.c.l.b16 %v4757
    %v6388 = vunpack.c.h.b16 %v4757
    %v6389 = vunpack.c.l.b16 %v4758
    %v6390 = vunpack.c.h.b16 %v4758
    %v6391 = vunpack.c.l.b16 %v4759
    %v6392 = vunpack.c.h.b16 %v4759
    %v6393 = vunpack.c.l.b16 %v4760
    %v6394 = vunpack.c.h.b16 %v4760
    %v6395 = vunpack.c.l.b16 %v4761
    %v6396 = vunpack.c.h.b16 %v4761
    %v6397 = vunpack.c.l.b16 %v4762
    %v6398 = vunpack.c.h.b16 %v4762
    %v6399 = vunpack.c.l.b16 %v4763
    %v6400 = vunpack.c.h.b16 %v4763
    %v6401 = vunpack.c.l.b16 %v4764
    %v6402 = vunpack.c.h.b16 %v4764
    %v6403 = vunpack.c.l.b16 %v4765
    %v6404 = vunpack.c.h.b16 %v4765
    %v6405 = vunpack.c.l.b16 %v4766
    %v6406 = vunpack.c.h.b16 %v4766
    %v6407 = vunpack.c.l.b16 %v4767
    %v6408 = vunpack.c.h.b16 %v4767
    %v6409 = vunpack.c.l.b16 %v4768
    %v6410 = vunpack.c.h.b16 %v4768
    %v6411 = vunpack.c.l.b16 %v4769
    %v6412 = vunpack.c.h.b16 %v4769
    %v6413 = vunpack.c.l.b16 %v4770
    %v6414 = vunpack.c.h.b16 %v4770
    %v6415 = vunpack.c.l.b16 %v4771
    %v6416 = vunpack.c.h.b16 %v4771
    %v6417 = vunpack.c.l.b16 %v4772
    %v6418 = vunpack.c.h.b16 %v4772
    %v6419 = vunpack.c.l.b16 %v4773
    %v6420 = vunpack.c.h.b16 %v4773
    %v6421 = vunpack.c.l.b16 %v4774
    %v6422 = vunpack.c.h.b16 %v4774
    %v6423 = vunpack.c.l.b16 %v4775
    %v6424 = vunpack.c.h.b16 %v4775
    %v6425 = vunpack.c.l.b16 %v4776
    %v6426 = vunpack.c.h.b16 %v4776
    %v6427 = vunpack.c.l.b16 %v4777
    %v6428 = vunpack.c.h.b16 %v4777
    %v6429 = vunpack.c.l.b16 %v4778
    %v6430 = vunpack.c.h.b16 %v4778
    %v6431 = vunpack.c.l.b16 %v4779
    %v6432 = vunpack.c.h.b16 %v4779
    %v6433 = vunpack.c.l.b16 %v4780
    %v6434 = vunpack.c.h.b16 %v4780
    %v6435 = vunpack.c.l.b16 %v4781
    %v6436 = vunpack.c.h.b16 %v4781
    %v6437 = vunpack.c.l.b16 %v4782
    %v6438 = vunpack.c.h.b16 %v4782
    %v6439 = vunpack.c.l.b16 %v4783
    %v6440 = vunpack.c.h.b16 %v4783
    %v6441 = vunpack.c.l.b16 %v4784
    %v6442 = vunpack.c.h.b16 %v4784
    %v6443 = vunpack.c.l.b16 %v4785
    %v6444 = vunpack.c.h.b16 %v4785
    %v6445 = vunpack.c.l.b16 %v4786
    %v6446 = vunpack.c.h.b16 %v4786
    %v6447 = vunpack.c.l.b16 %v4787
    %v6448 = vunpack.c.h.b16 %v4787
    %v6449 = vunpack.c.l.b16 %v4788
    %v6450 = vunpack.c.h.b16 %v4788
    %v6451 = vunpack.c.l.b16 %v4789
    %v6452 = vunpack.c.h.b16 %v4789
    %v6453 = vunpack.c.l.b16 %v4790
    %v6454 = vunpack.c.h.b16 %v4790
    %v6455 = vunpack.c.l.b16 %v4791
    %v6456 = vunpack.c.h.b16 %v4791
    %v6457 = vunpack.c.l.b16 %v4792
    %v6458 = vunpack.c.h.b16 %v4792
    %v6459 = vunpack.c.l.b16 %v4793
    %v6460 = vunpack.c.h.b16 %v4793
    %v6461 = vunpack.c.l.b16 %v4794
    %v6462 = vunpack.c.h.b16 %v4794
    %v6463 = vunpack.c.l.b16 %v4795
    %v6464 = vunpack.c.h.b16 %v4795
    %v6465 = vunpack.c.l.b16 %v4796
    %v6466 = vunpack.c.h.b16 %v4796
    %v6467 = vunpack.c.l.b16 %v4797
    %v6468 = vunpack.c.h.b16 %v4797
    %v6469 = vunpack.c.l.b16 %v4798
    %v6470 = vunpack.c.h.b16 %v4798
    %v6471 = vunpack.c.l.b16 %v4799
    %v6472 = vunpack.c.h.b16 %v4799
    %v6473 = vunpack.c.l.b16 %v4800
    %v6474 = vunpack.c.h.b16 %v4800
    %v6475 = vunpack.c.l.b16 %v4801
    %v6476 = vunpack.c.h.b16 %v4801
    %v6477 = vunpack.c.l.b16 %v4802
    %v6478 = vunpack.c.h.b16 %v4802
    %v6479 = vunpack.c.l.b16 %v4803
    %v6480 = vunpack.c.h.b16 %v4803
    %v6481 = vunpack.c.l.b16 %v4804
    %v6482 = vunpack.c.h.b16 %v4804
    %v6483 = vunpack.c.l.b16 %v4805
    %v6484 = vunpack.c.h.b16 %v4805
    %v6485 = vunpack.c.l.b16 %v4806
    %v6486 = vunpack.c.h.b16 %v4806
    %v6487 = vunpack.c.l.b16 %v4807
    %v6488 = vunpack.c.h.b16 %v4807
    %v6489 = vunpack.c.l.b16 %v4808
    %v6490 = vunpack.c.h.b16 %v4808
    %v6491 = vunpack.c.l.b16 %v4809
    %v6492 = vunpack.c.h.b16 %v4809
    %v6493 = vunpack.c.l.b16 %v4810
    %v6494 = vunpack.c.h.b16 %v4810
    %v6495 = vunpack.c.l.b16 %v4811
    %v6496 = vunpack.c.h.b16 %v4811
    %v6497 = vunpack.c.l.b16 %v4812
    %v6498 = vunpack.c.h.b16 %v4812
    %v6499 = vunpack.c.l.b16 %v4813
    %v6500 = vunpack.c.h.b16 %v4813
    %v6501 = vunpack.c.l.b16 %v4814
    %v6502 = vunpack.c.h.b16 %v4814
    %v6503 = vunpack.c.l.b16 %v4815
    %v6504 = vunpack.c.h.b16 %v4815
    %v6505 = vunpack.c.l.b16 %v4816
    %v6506 = vunpack.c.h.b16 %v4816
    %v6507 = vunpack.c.l.b16 %v4817
    %v6508 = vunpack.c.h.b16 %v4817
    %v6509 = vunpack.c.l.b16 %v4818
    %v6510 = vunpack.c.h.b16 %v4818
    %v6511 = vunpack.c.l.b16 %v4819
    %v6512 = vunpack.c.h.b16 %v4819
    %v6513 = vunpack.c.l.b16 %v4820
    %v6514 = vunpack.c.h.b16 %v4820
    %v6515 = vunpack.c.l.b16 %v4821
    %v6516 = vunpack.c.h.b16 %v4821
    %v6517 = vunpack.c.l.b16 %v4822
    %v6518 = vunpack.c.h.b16 %v4822
    %v6519 = vunpack.c.l.b16 %v4823
    %v6520 = vunpack.c.h.b16 %v4823
    %v6521 = vunpack.c.l.b16 %v4824
    %v6522 = vunpack.c.h.b16 %v4824
    %v6523 = vunpack.c.l.b16 %v4825
    %v6524 = vunpack.c.h.b16 %v4825
    %v6525 = vunpack.c.l.b16 %v4826
    %v6526 = vunpack.c.h.b16 %v4826
    %v6527 = vunpack.c.l.b16 %v4827
    %v6528 = vunpack.c.h.b16 %v4827
    %v6529 = vunpack.c.l.b16 %v4828
    %v6530 = vunpack.c.h.b16 %v4828
    %v6531 = vunpack.c.l.b16 %v4829
    %v6532 = vunpack.c.h.b16 %v4829
    %v6533 = vunpack.c.l.b16 %v4830
    %v6534 = vunpack.c.h.b16 %v4830
    %v6535 = vunpack.c.l.b16 %v4831
    %v6536 = vunpack.c.h.b16 %v4831
    %v6537 = vunpack.c.l.b16 %v4832
    %v6538 = vunpack.c.h.b16 %v4832
    %v6539 = vunpack.c.l.b16 %v4833
    %v6540 = vunpack.c.h.b16 %v4833
    %v6541 = vunpack.c.l.b16 %v4834
    %v6542 = vunpack.c.h.b16 %v4834
    %v6543 = vunpack.c.l.b16 %v4835
    %v6544 = vunpack.c.h.b16 %v4835
    %v6545 = vunpack.c.l.b16 %v4836
    %v6546 = vunpack.c.h.b16 %v4836
    %v6547 = vunpack.c.l.b16 %v4837
    %v6548 = vunpack.c.h.b16 %v4837
    %v6549 = vunpack.c.l.b16 %v4838
    %v6550 = vunpack.c.h.b16 %v4838
    %v6551 = vunpack.c.l.b16 %v4839
    %v6552 = vunpack.c.h.b16 %v4839
    %v6553 = vunpack.c.l.b16 %v4840
    %v6554 = vunpack.c.h.b16 %v4840
    %v6555 = vunpack.c.l.b16 %v4841
    %v6556 = vunpack.c.h.b16 %v4841
    %v6557 = vunpack.c.l.b16 %v4842
    %v6558 = vunpack.c.h.b16 %v4842
    %v6559 = vunpack.c.l.b16 %v4843
    %v6560 = vunpack.c.h.b16 %v4843
    %v6561 = vunpack.c.l.b16 %v4844
    %v6562 = vunpack.c.h.b16 %v4844
    %v6563 = vunpack.c.l.b16 %v4845
    %v6564 = vunpack.c.h.b16 %v4845
    %v6565 = vunpack.c.l.b16 %v4846
    %v6566 = vunpack.c.h.b16 %v4846
    %v6567 = vunpack.c.l.b16 %v4847
    %v6568 = vunpack.c.h.b16 %v4847
    %v6569 = vunpack.c.l.b16 %v4848
    %v6570 = vunpack.c.h.b16 %v4848
    %v6571 = vunpack.c.l.b16 %v4849
    %v6572 = vunpack.c.h.b16 %v4849
    %v6573 = vunpack.c.l.b16 %v4850
    %v6574 = vunpack.c.h.b16 %v4850
    %v6575 = vunpack.c.l.b16 %v4851
    %v6576 = vunpack.c.h.b16 %v4851
    %v6577 = vunpack.c.l.b16 %v4852
    %v6578 = vunpack.c.h.b16 %v4852
    %v6579 = vunpack.c.l.b16 %v4853
    %v6580 = vunpack.c.h.b16 %v4853
    %v6581 = vunpack.c.l.b16 %v4854
    %v6582 = vunpack.c.h.b16 %v4854
    %v6583 = vunpack.c.l.b16 %v4855
    %v6584 = vunpack.c.h.b16 %v4855
    %v6585 = vunpack.c.l.b16 %v4856
    %v6586 = vunpack.c.h.b16 %v4856
    %v6587 = vunpack.c.l.b16 %v4857
    %v6588 = vunpack.c.h.b16 %v4857
    %v6589 = vunpack.c.l.b16 %v4858
    %v6590 = vunpack.c.h.b16 %v4858
    %v6591 = vunpack.c.l.b16 %v4859
    %v6592 = vunpack.c.h.b16 %v4859
    %v6593 = vunpack.c.l.b16 %v4860
    %v6594 = vunpack.c.h.b16 %v4860
    %v6595 = vunpack.c.l.b16 %v4861
    %v6596 = vunpack.c.h.b16 %v4861
    %v6597 = vunpack.c.l.b16 %v4862
    %v6598 = vunpack.c.h.b16 %v4862
    %v6599 = vunpack.c.l.b16 %v4863
    %v6600 = vunpack.c.h.b16 %v4863
    %v6601 = vunpack.c.l.b16 %v4864
    %v6602 = vunpack.c.h.b16 %v4864
    %v6603 = vunpack.c.l.b16 %v4865
    %v6604 = vunpack.c.h.b16 %v4865
    %v6605 = vunpack.c.l.b16 %v4866
    %v6606 = vunpack.c.h.b16 %v4866
    %v6607 = vunpack.c.l.b16 %v4867
    %v6608 = vunpack.c.h.b16 %v4867
    %v6609 = vunpack.c.l.b16 %v4868
    %v6610 = vunpack.c.h.b16 %v4868
    %v6611 = vunpack.c.l.b16 %v4869
    %v6612 = vunpack.c.h.b16 %v4869
    %v6613 = vunpack.c.l.b16 %v4870
    %v6614 = vunpack.c.h.b16 %v4870
    %v6615 = vunpack.c.l.b16 %v4871
    %v6616 = vunpack.c.h.b16 %v4871
    %v6617 = vunpack.c.l.b16 %v4872
    %v6618 = vunpack.c.h.b16 %v4872
    %v6619 = vunpack.c.l.b16 %v4873
    %v6620 = vunpack.c.h.b16 %v4873
    %v6621 = vunpack.c.l.b16 %v4874
    %v6622 = vunpack.c.h.b16 %v4874
    %v6623 = vunpack.c.l.b16 %v4875
    %v6624 = vunpack.c.h.b16 %v4875
    %v6625 = vunpack.c.l.b16 %v4876
    %v6626 = vunpack.c.h.b16 %v4876
    %v6627 = vunpack.c.l.b16 %v4877
    %v6628 = vunpack.c.h.b16 %v4877
    %v6629 = vunpack.c.l.b16 %v4878
    %v6630 = vunpack.c.h.b16 %v4878
    %v6631 = vunpack.c.l.b16 %v4879
    %v6632 = vunpack.c.h.b16 %v4879
    %v6633 = vunpack.c.l.b16 %v4880
    %v6634 = vunpack.c.h.b16 %v4880
    %v6635 = vunpack.c.l.b16 %v4881
    %v6636 = vunpack.c.h.b16 %v4881
    %v6637 = vunpack.c.l.b16 %v4882
    %v6638 = vunpack.c.h.b16 %v4882
    %v6639 = vunpack.c.l.b16 %v4883
    %v6640 = vunpack.c.h.b16 %v4883
    %v6641 = vunpack.c.l.b16 %v4884
    %v6642 = vunpack.c.h.b16 %v4884
    %v6643 = vunpack.c.l.b16 %v4885
    %v6644 = vunpack.c.h.b16 %v4885
    %v6645 = vunpack.c.l.b16 %v4886
    %v6646 = vunpack.c.h.b16 %v4886
    %v6647 = vunpack.c.l.b16 %v4887
    %v6648 = vunpack.c.h.b16 %v4887
    %v6649 = vunpack.c.l.b16 %v4888
    %v6650 = vunpack.c.h.b16 %v4888
    %v6651 = vunpack.c.l.b16 %v4889
    %v6652 = vunpack.c.h.b16 %v4889
    %v6653 = vunpack.c.l.b16 %v4890
    %v6654 = vunpack.c.h.b16 %v4890
    %v6655 = vunpack.c.l.b16 %v4891
    %v6656 = vunpack.c.h.b16 %v4891
    %v6657 = vunpack.c.l.b16 %v4892
    %v6658 = vunpack.c.h.b16 %v4892
    %v6659 = vunpack.c.l.b16 %v4893
    %v6660 = vunpack.c.h.b16 %v4893
    %v6661 = vunpack.c.l.b16 %v4894
    %v6662 = vunpack.c.h.b16 %v4894
    %v6663 = vunpack.c.l.b16 %v4895
    %v6664 = vunpack.c.h.b16 %v4895
    %v6665 = vunpack.c.l.b16 %v4896
    %v6666 = vunpack.c.h.b16 %v4896
    %v6667 = vunpack.c.l.b16 %v4897
    %v6668 = vunpack.c.h.b16 %v4897
    %v6669 = vunpack.c.l.b16 %v4898
    %v6670 = vunpack.c.h.b16 %v4898
    %v6671 = vunpack.c.l.b16 %v4899
    %v6672 = vunpack.c.h.b16 %v4899
    %v6673 = vunpack.c.l.b16 %v4900
    %v6674 = vunpack.c.h.b16 %v4900
    %v6675 = vunpack.c.l.b16 %v4901
    %v6676 = vunpack.c.h.b16 %v4901
    %v6677 = vunpack.c.l.b16 %v4902
    %v6678 = vunpack.c.h.b16 %v4902
    %v6679 = vunpack.c.l.b16 %v4903
    %v6680 = vunpack.c.h.b16 %v4903
    %v6681 = vunpack.c.l.b16 %v4904
    %v6682 = vunpack.c.h.b16 %v4904
    %v6683 = vunpack.c.l.b16 %v4905
    %v6684 = vunpack.c.h.b16 %v4905
    %v6685 = vunpack.c.l.b16 %v4906
    %v6686 = vunpack.c.h.b16 %v4906
    %v6687 = vunpack.c.l.b16 %v4907
    %v6688 = vunpack.c.h.b16 %v4907
    %v6689 = vunpack.c.l.b16 %v4908
    %v6690 = vunpack.c.h.b16 %v4908
    %v6691 = vunpack.c.l.b16 %v4909
    %v6692 = vunpack.c.h.b16 %v4909
    %v6693 = vunpack.c.l.b16 %v4910
    %v6694 = vunpack.c.h.b16 %v4910
    %v6695 = vunpack.c.l.b16 %v4911
    %v6696 = vunpack.c.h.b16 %v4911
    %v6697 = vunpack.c.l.b16 %v4912
    %v6698 = vunpack.c.h.b16 %v4912
    %v6699 = vunpack.c.l.b16 %v4913
    %v6700 = vunpack.c.h.b16 %v4913
    %v6701 = vunpack.c.l.b16 %v4914
    %v6702 = vunpack.c.h.b16 %v4914
    %v6703 = vunpack.c.l.b16 %v4915
    %v6704 = vunpack.c.h.b16 %v4915
    %v6705 = vunpack.c.l.b16 %v4916
    %v6706 = vunpack.c.h.b16 %v4916
    %v6707 = vunpack.c.l.b16 %v4917
    %v6708 = vunpack.c.h.b16 %v4917
    %v6709 = vunpack.c.l.b16 %v4918
    %v6710 = vunpack.c.h.b16 %v4918
    %v6711 = vunpack.c.l.b16 %v4919
    %v6712 = vunpack.c.h.b16 %v4919
    %v6713 = vunpack.c.l.b16 %v4920
    %v6714 = vunpack.c.h.b16 %v4920
    %v6715 = vunpack.c.l.b16 %v4921
    %v6716 = vunpack.c.h.b16 %v4921
    %v6717 = vunpack.c.l.b16 %v4922
    %v6718 = vunpack.c.h.b16 %v4922
    %v6719 = vunpack.c.l.b16 %v4923
    %v6720 = vunpack.c.h.b16 %v4923
    %v6721 = vunpack.c.l.b16 %v4924
    %v6722 = vunpack.c.h.b16 %v4924
    %v6723 = vunpack.c.l.b16 %v4925
    %v6724 = vunpack.c.h.b16 %v4925
    %v6725 = vunpack.c.l.b16 %v4926
    %v6726 = vunpack.c.h.b16 %v4926
    %v6727 = vunpack.c.l.b16 %v4927
    %v6728 = vunpack.c.h.b16 %v4927
    %v6729 = vunpack.c.l.b16 %v4928
    %v6730 = vunpack.c.h.b16 %v4928
    %v6731 = vunpack.c.l.b16 %v4929
    %v6732 = vunpack.c.h.b16 %v4929
    %v6733 = vunpack.c.l.b16 %v4930
    %v6734 = vunpack.c.h.b16 %v4930
    %v6735 = vunpack.c.l.b16 %v4931
    %v6736 = vunpack.c.h.b16 %v4931
    %v6737 = vunpack.c.l.b16 %v4932
    %v6738 = vunpack.c.h.b16 %v4932
    %v6739 = vunpack.c.l.b16 %v4933
    %v6740 = vunpack.c.h.b16 %v4933
    %v6741 = vunpack.c.l.b16 %v4934
    %v6742 = vunpack.c.h.b16 %v4934
    %v6743 = vunpack.c.l.b16 %v4935
    %v6744 = vunpack.c.h.b16 %v4935
    %v6745 = vunpack.c.l.b16 %v4936
    %v6746 = vunpack.c.h.b16 %v4936
    %v6747 = vunpack.c.l.b16 %v4937
    %v6748 = vunpack.c.h.b16 %v4937
    %v6749 = vunpack.c.l.b16 %v4938
    %v6750 = vunpack.c.h.b16 %v4938
    %v6751 = vunpack.c.l.b16 %v4939
    %v6752 = vunpack.c.h.b16 %v4939
    %v6753 = vunpack.c.l.b16 %v4940
    %v6754 = vunpack.c.h.b16 %v4940
    %v6755 = vunpack.c.l.b16 %v4941
    %v6756 = vunpack.c.h.b16 %v4941
    %v6757 = vunpack.c.l.b16 %v4942
    %v6758 = vunpack.c.h.b16 %v4942
    %v6759 = vunpack.c.l.b16 %v4943
    %v6760 = vunpack.c.h.b16 %v4943
    %v6761 = vunpack.c.l.b16 %v4944
    %v6762 = vunpack.c.h.b16 %v4944
    %v6763 = vunpack.c.l.b16 %v4945
    %v6764 = vunpack.c.h.b16 %v4945
    %v6765 = vunpack.c.l.b16 %v4946
    %v6766 = vunpack.c.h.b16 %v4946
    %v6767 = vunpack.c.l.b16 %v4947
    %v6768 = vunpack.c.h.b16 %v4947
    %v6769 = vunpack.c.l.b16 %v4948
    %v6770 = vunpack.c.h.b16 %v4948
    %v6771 = vunpack.c.l.b16 %v4949
    %v6772 = vunpack.c.h.b16 %v4949
    %v6773 = vunpack.c.l.b16 %v4950
    %v6774 = vunpack.c.h.b16 %v4950
    %v6775 = vpack.c.b16 %v5641, %v5623
    %v6776 = vpack.c.b16 %v5642, %v5624
    %v6777 = vpack.c.b16 %v5643, %v5625
    %v6778 = vpack.c.b16 %v5644, %v5626
    %v6779 = vpack.c.b16 %v5645, %v5627
    %v6780 = vpack.c.b16 %v5646, %v5628
    %v6781 = vpack.c.b16 %v5647, %v5629
    %v6782 = vpack.c.b16 %v5648, %v5630
    %v6783 = vpack.c.b16 %v5649, %v5631
    %v6784 = vpack.c.b16 %v5650, %v5632
    %v6785 = vpack.c.b16 %v5651, %v5633
    %v6786 = vpack.c.b16 %v5652, %v5634
    %v6787 = vpack.c.b16 %v5653, %v5635
    %v6788 = vpack.c.b16 %v5654, %v5636
    %v6789 = vpack.c.b16 %v5655, %v5637
    %v6790 = vpack.c.b16 %v5656, %v5638
    %v6791 = vpack.c.b16 %v5657, %v5639
    %v6792 = vpack.c.b16 %v5658, %v5640
    %v6793 = vpack.c.b16 %v5677, %v5659
    %v6794 = vpack.c.b16 %v5678, %v5660
    %v6795 = vpack.c.b16 %v5679, %v5661
    %v6796 = vpack.c.b16 %v5680, %v5662
    %v6797 = vpack.c.b16 %v5681, %v5663
    %v6798 = vpack.c.b16 %v5682, %v5664
    %v6799 = vpack.c.b16 %v5683, %v5665
    %v6800 = vpack.c.b16 %v5684, %v5666
    %v6801 = vpack.c.b16 %v5685, %v5667
    %v6802 = vpack.c.b16 %v5686, %v5668
    %v6803 = vpack.c.b16 %v5687, %v5669
    %v6804 = vpack.c.b16 %v5688, %v5670
    %v6805 = vpack.c.b16 %v5689, %v5671
    %v6806 = vpack.c.b16 %v5690, %v5672
    %v6807 = vpack.c.b16 %v5691, %v5673
    %v6808 = vpack.c.b16 %v5692, %v5674
    %v6809 = vpack.c.b16 %v5693, %v5675
    %v6810 = vpack.c.b16 %v5694, %v5676
    %v6811 = vpack.c.b16 %v5713, %v5695
    %v6812 = vpack.c.b16 %v5714, %v5696
    %v6813 = vpack.c.b16 %v5715, %v5697
    %v6814 = vpack.c.b16 %v5716, %v5698
    %v6815 = vpack.c.b16 %v5717, %v5699
    %v6816 = vpack.c.b16 %v5718, %v5700
    %v6817 = vpack.c.b16 %v5719, %v5701
    %v6818 = vpack.c.b16 %v5720, %v5702
    %v6819 = vpack.c.b16 %v5721, %v5703
    %v6820 = vpack.c.b16 %v5722, %v5704
    %v6821 = vpack.c.b16 %v5723, %v5705
    %v6822 = vpack.c.b16 %v5724, %v5706
    %v6823 = vpack.c.b16 %v5725, %v5707
    %v6824 = vpack.c.b16 %v5726, %v5708
    %v6825 = vpack.c.b16 %v5727, %v5709
    %v6826 = vpack.c.b16 %v5728, %v5710
    %v6827 = vpack.c.b16 %v5729, %v5711
    %v6828 = vpack.c.b16 %v5730, %v5712
    %v6829 = vpack.c.b16 %v5749, %v5731
    %v6830 = vpack.c.b16 %v5750, %v5732
    %v6831 = vpack.c.b16 %v5751, %v5733
    %v6832 = vpack.c.b16 %v5752, %v5734
    %v6833 = vpack.c.b16 %v5753, %v5735
    %v6834 = vpack.c.b16 %v5754, %v5736
    %v6835 = vpack.c.b16 %v5755, %v5737
    %v6836 = vpack.c.b16 %v5756, %v5738
    %v6837 = vpack.c.b16 %v5757, %v5739
    %v6838 = vpack.c.b16 %v5758, %v5740
    %v6839 = vpack.c.b16 %v5759, %v5741
    %v6840 = vpack.c.b16 %v5760, %v5742
    %v6841 = vpack.c.b16 %v5761, %v5743
    %v6842 = vpack.c.b16 %v5762, %v5744
    %v6843 = vpack.c.b16 %v5763, %v5745
    %v6844 = vpack.c.b16 %v5764, %v5746
    %v6845 = vpack.c.b16 %v5765, %v5747
    %v6846 = vpack.c.b16 %v5766, %v5748
    %v6847 = vpack.c.b16 %v5785, %v5767
    %v6848 = vpack.c.b16 %v5786, %v5768
    %v6849 = vpack.c.b16 %v5787, %v5769
    %v6850 = vpack.c.b16 %v5788, %v5770
    %v6851 = vpack.c.b16 %v5789, %v5771
    %v6852 = vpack.c.b16 %v5790, %v5772
    %v6853 = vpack.c.b16 %v5791, %v5773
    %v6854 = vpack.c.b16 %v5792, %v5774
    %v6855 = vpack.c.b16 %v5793, %v5775
    %v6856 = vpack.c.b16 %v5794, %v5776
    %v6857 = vpack.c.b16 %v5795, %v5777
    %v6858 = vpack.c.b16 %v5796, %v5778
    %v6859 = vpack.c.b16 %v5797, %v5779
    %v6860 = vpack.c.b16 %v5798, %v5780
    %v6861 = vpack.c.b16 %v5799, %v5781
    %v6862 = vpack.c.b16 %v5800, %v5782
    %v6863 = vpack.c.b16 %v5801, %v5783
    %v6864 = vpack.c.b16 %v5802, %v5784
    %v6865 = vpack.c.b16 %v5821, %v5803
    %v6866 = vpack.c.b16 %v5822, %v5804
    %v6867 = vpack.c.b16 %v5823, %v5805
    %v6868 = vpack.c.b16 %v5824, %v5806
    %v6869 = vpack.c.b16 %v5825, %v5807
    %v6870 = vpack.c.b16 %v5826, %v5808
    %v6871 = vpack.c.b16 %v5827, %v5809
    %v6872 = vpack.c.b16 %v5828, %v5810
    %v6873 = vpack.c.b16 %v5829, %v5811
    %v6874 = vpack.c.b16 %v5830, %v5812
    %v6875 = vpack.c.b16 %v5831, %v5813
    %v6876 = vpack.c.b16 %v5832, %v5814
    %v6877 = vpack.c.b16 %v5833, %v5815
    %v6878 = vpack.c.b16 %v5834, %v5816
    %v6879 = vpack.c.b16 %v5835, %v5817
    %v6880 = vpack.c.b16 %v5836, %v5818
    %v6881 = vpack.c.b16 %v5837, %v5819
    %v6882 = vpack.c.b16 %v5838, %v5820
    %v6883 = vpack.c.b16 %v5857, %v5839
    %v6884 = vpack.c.b16 %v5858, %v5840
    %v6885 = vpack.c.b16 %v5859, %v5841
    %v6886 = vpack.c.b16 %v5860, %v5842
    %v6887 = vpack.c.b16 %v5861, %v5843
    %v6888 = vpack.c.b16 %v5862, %v5844
    %v6889 = vpack.c.b16 %v5863, %v5845
    %v6890 = vpack.c.b16 %v5864, %v5846
    %v6891 = vpack.c.b16 %v5865, %v5847
    %v6892 = vpack.c.b16 %v5866, %v5848
    %v6893 = vpack.c.b16 %v5867, %v5849
    %v6894 = vpack.c.b16 %v5868, %v5850
    %v6895 = vpack.c.b16 %v5869, %v5851
    %v6896 = vpack.c.b16 %v5870, %v5852
    %v6897 = vpack.c.b16 %v5871, %v5853
    %v6898 = vpack.c.b16 %v5872, %v5854
    %v6899 = vpack.c.b16 %v5873, %v5855
    %v6900 = vpack.c.b16 %v5874, %v5856
    %v6901 = vpack.c.b16 %v5893, %v5875
    %v6902 = vpack.c.b16 %v5894, %v5876
    %v6903 = vpack.c.b16 %v5895, %v5877
    %v6904 = vpack.c.b16 %v5896, %v5878
    %v6905 = vpack.c.b16 %v5897, %v5879
    %v6906 = vpack.c.b16 %v5898, %v5880
    %v6907 = vpack.c.b16 %v5899, %v5881
    %v6908 = vpack.c.b16 %v5900, %v5882
    %v6909 = vpack.c.b16 %v5901, %v5883
    %v6910 = vpack.c.b16 %v5902, %v5884
    %v6911 = vpack.c.b16 %v5903, %v5885
    %v6912 = vpack.c.b16 %v5904, %v5886
    %v6913 = vpack.c.b16 %v5905, %v5887
    %v6914 = vpack.c.b16 %v5906, %v5888
    %v6915 = vpack.c.b16 %v5907, %v5889
    %v6916 = vpack.c.b16 %v5908, %v5890
    %v6917 = vpack.c.b16 %v5909, %v5891
    %v6918 = vpack.c.b16 %v5910, %v5892
    %v6919 = vpack.c.b16 %v5929, %v5911
    %v6920 = vpack.c.b16 %v5930, %v5912
    %v6921 = vpack.c.b16 %v5931, %v5913
    %v6922 = vpack.c.b16 %v5932, %v5914
    %v6923 = vpack.c.b16 %v5933, %v5915
    %v6924 = vpack.c.b16 %v5934, %v5916
    %v6925 = vpack.c.b16 %v5935, %v5917
    %v6926 = vpack.c.b16 %v5936, %v5918
    %v6927 = vpack.c.b16 %v5937, %v5919
    %v6928 = vpack.c.b16 %v5938, %v5920
    %v6929 = vpack.c.b16 %v5939, %v5921
    %v6930 = vpack.c.b16 %v5940, %v5922
    %v6931 = vpack.c.b16 %v5941, %v5923
    %v6932 = vpack.c.b16 %v5942, %v5924
    %v6933 = vpack.c.b16 %v5943, %v5925
    %v6934 = vpack.c.b16 %v5944, %v5926
    %v6935 = vpack.c.b16 %v5945, %v5927
    %v6936 = vpack.c.b16 %v5946, %v5928
    %v6937 = vpack.c.b16 %v5965, %v5947
    %v6938 = vpack.c.b16 %v5966, %v5948
    %v6939 = vpack.c.b16 %v5967, %v5949
    %v6940 = vpack.c.b16 %v5968, %v5950
    %v6941 = vpack.c.b16 %v5969, %v5951
    %v6942 = vpack.c.b16 %v5970, %v5952
    %v6943 = vpack.c.b16 %v5971, %v5953
    %v6944 = vpack.c.b16 %v5972, %v5954
    %v6945 = vpack.c.b16 %v5973, %v5955
    %v6946 = vpack.c.b16 %v5974, %v5956
    %v6947 = vpack.c.b16 %v5975, %v5957
    %v6948 = vpack.c.b16 %v5976, %v5958
    %v6949 = vpack.c.b16 %v5977, %v5959
    %v6950 = vpack.c.b16 %v5978, %v5960
    %v6951 = vpack.c.b16 %v5979, %v5961
    %v6952 = vpack.c.b16 %v5980, %v5962
    %v6953 = vpack.c.b16 %v5981, %v5963
    %v6954 = vpack.c.b16 %v5982, %v5964
    %v6955 = vpack.c.b16 %v6001, %v5983
    %v6956 = vpack.c.b16 %v6002, %v5984
    %v6957 = vpack.c.b16 %v6003, %v5985
    %v6958 = vpack.c.b16 %v6004, %v5986
    %v6959 = vpack.c.b16 %v6005, %v5987
    %v6960 = vpack.c.b16 %v6006, %v5988
    %v6961 = vpack.c.b16 %v6007, %v5989
    %v6962 = vpack.c.b16 %v6008, %v5990
    %v6963 = vpack.c.b16 %v6009, %v5991
    %v6964 = vpack.c.b16 %v6010, %v5992
    %v6965 = vpack.c.b16 %v6011, %v5993
    %v6966 = vpack.c.b16 %v6012, %v5994
    %v6967 = vpack.c.b16 %v6013, %v5995
    %v6968 = vpack.c.b16 %v6014, %v5996
    %v6969 = vpack.c.b16 %v6015, %v5997
    %v6970 = vpack.c.b16 %v6016, %v5998
    %v6971 = vpack.c.b16 %v6017, %v5999
    %v6972 = vpack.c.b16 %v6018, %v6000
    %v6973 = vpack.c.b16 %v6037, %v6019
    %v6974 = vpack.c.b16 %v6038, %v6020
    %v6975 = vpack.c.b16 %v6039, %v6021
    %v6976 = vpack.c.b16 %v6040, %v6022
    %v6977 = vpack.c.b16 %v6041, %v6023
    %v6978 = vpack.c.b16 %v6042, %v6024
    %v6979 = vpack.c.b16 %v6043, %v6025
    %v6980 = vpack.c.b16 %v6044, %v6026
    %v6981 = vpack.c.b16 %v6045, %v6027
    %v6982 = vpack.c.b16 %v6046, %v6028
    %v6983 = vpack.c.b16 %v6047, %v6029
    %v6984 = vpack.c.b16 %v6048, %v6030
    %v6985 = vpack.c.b16 %v6049, %v6031
    %v6986 = vpack.c.b16 %v6050, %v6032
    %v6987 = vpack.c.b16 %v6051, %v6033
    %v6988 = vpack.c.b16 %v6052, %v6034
    %v6989 = vpack.c.b16 %v6053, %v6035
    %v6990 = vpack.c.b16 %v6054, %v6036
    %v6991 = vpack.c.b16 %v6073, %v6055
    %v6992 = vpack.c.b16 %v6074, %v6056
    %v6993 = vpack.c.b16 %v6075, %v6057
    %v6994 = vpack.c.b16 %v6076, %v6058
    %v6995 = vpack.c.b16 %v6077, %v6059
    %v6996 = vpack.c.b16 %v6078, %v6060
    %v6997 = vpack.c.b16 %v6079, %v6061
    %v6998 = vpack.c.b16 %v6080, %v6062
    %v6999 = vpack.c.b16 %v6081, %v6063
    %v7000 = vpack.c.b16 %v6082, %v6064
    %v7001 = vpack.c.b16 %v6083, %v6065
    %v7002 = vpack.c.b16 %v6084, %v6066
    %v7003 = vpack.c.b16 %v6085, %v6067
    %v7004 = vpack.c.b16 %v6086, %v6068
    %v7005 = vpack.c.b16 %v6087, %v6069
    %v7006 = vpack.c.b16 %v6088, %v6070
    %v7007 = vpack.c.b16 %v6089, %v6071
    %v7008 = vpack.c.b16 %v6090, %v6072
    %v7009 = vpack.c.b16 %v6109, %v6091
    %v7010 = vpack.c.b16 %v6110, %v6092
    %v7011 = vpack.c.b16 %v6111, %v6093
    %v7012 = vpack.c.b16 %v6112, %v6094
    %v7013 = vpack.c.b16 %v6113, %v6095
    %v7014 = vpack.c.b16 %v6114, %v6096
    %v7015 = vpack.c.b16 %v6115, %v6097
    %v7016 = vpack.c.b16 %v6116, %v6098
    %v7017 = vpack.c.b16 %v6117, %v6099
    %v7018 = vpack.c.b16 %v6118, %v6100
    %v7019 = vpack.c.b16 %v6119, %v6101
    %v7020 = vpack.c.b16 %v6120, %v6102
    %v7021 = vpack.c.b16 %v6121, %v6103
    %v7022 = vpack.c.b16 %v6122, %v6104
    %v7023 = vpack.c.b16 %v6123, %v6105
    %v7024 = vpack.c.b16 %v6124, %v6106
    %v7025 = vpack.c.b16 %v6125, %v6107
    %v7026 = vpack.c.b16 %v6126, %v6108
    %v7027 = vpack.c.b16 %v6145, %v6127
    %v7028 = vpack.c.b16 %v6146, %v6128
    %v7029 = vpack.c.b16 %v6147, %v6129
    %v7030 = vpack.c.b16 %v6148, %v6130
    %v7031 = vpack.c.b16 %v6149, %v6131
    %v7032 = vpack.c.b16 %v6150, %v6132
    %v7033 = vpack.c.b16 %v6151, %v6133
    %v7034 = vpack.c.b16 %v6152, %v6134
    %v7035 = vpack.c.b16 %v6153, %v6135
    %v7036 = vpack.c.b16 %v6154, %v6136
    %v7037 = vpack.c.b16 %v6155, %v6137
    %v7038 = vpack.c.b16 %v6156, %v6138
    %v7039 = vpack.c.b16 %v6157, %v6139
    %v7040 = vpack.c.b16 %v6158, %v6140
    %v7041 = vpack.c.b16 %v6159, %v6141
    %v7042 = vpack.c.b16 %v6160, %v6142
    %v7043 = vpack.c.b16 %v6161, %v6143
    %v7044 = vpack.c.b16 %v6162, %v6144
    %v7045 = vpack.c.b16 %v6181, %v6163
    %v7046 = vpack.c.b16 %v6182, %v6164
    %v7047 = vpack.c.b16 %v6183, %v6165
    %v7048 = vpack.c.b16 %v6184, %v6166
    %v7049 = vpack.c.b16 %v6185, %v6167
    %v7050 = vpack.c.b16 %v6186, %v6168
    %v7051 = vpack.c.b16 %v6187, %v6169
    %v7052 = vpack.c.b16 %v6188, %v6170
    %v7053 = vpack.c.b16 %v6189, %v6171
    %v7054 = vpack.c.b16 %v6190, %v6172
    %v7055 = vpack.c.b16 %v6191, %v6173
    %v7056 = vpack.c.b16 %v6192, %v6174
    %v7057 = vpack.c.b16 %v6193, %v6175
    %v7058 = vpack.c.b16 %v6194, %v6176
    %v7059 = vpack.c.b16 %v6195, %v6177
    %v7060 = vpack.c.b16 %v6196, %v6178
    %v7061 = vpack.c.b16 %v6197, %v6179
    %v7062 = vpack.c.b16 %v6198, %v6180
    %v7063 = vpack.c.b16 %v6217, %v6199
    %v7064 = vpack.c.b16 %v6218, %v6200
    %v7065 = vpack.c.b16 %v6219, %v6201
    %v7066 = vpack.c.b16 %v6220, %v6202
    %v7067 = vpack.c.b16 %v6221, %v6203
    %v7068 = vpack.c.b16 %v6222, %v6204
    %v7069 = vpack.c.b16 %v6223, %v6205
    %v7070 = vpack.c.b16 %v6224, %v6206
    %v7071 = vpack.c.b16 %v6225, %v6207
    %v7072 = vpack.c.b16 %v6226, %v6208
    %v7073 = vpack.c.b16 %v6227, %v6209
    %v7074 = vpack.c.b16 %v6228, %v6210
    %v7075 = vpack.c.b16 %v6229, %v6211
    %v7076 = vpack.c.b16 %v6230, %v6212
    %v7077 = vpack.c.b16 %v6231, %v6213
    %v7078 = vpack.c.b16 %v6232, %v6214
    %v7079 = vpack.c.b16 %v6233, %v6215
    %v7080 = vpack.c.b16 %v6234, %v6216
    %v7081 = vpack.c.b16 %v6253, %v6235
    %v7082 = vpack.c.b16 %v6254, %v6236
    %v7083 = vpack.c.b16 %v6255, %v6237
    %v7084 = vpack.c.b16 %v6256, %v6238
    %v7085 = vpack.c.b16 %v6257, %v6239
    %v7086 = vpack.c.b16 %v6258, %v6240
    %v7087 = vpack.c.b16 %v6259, %v6241
    %v7088 = vpack.c.b16 %v6260, %v6242
    %v7089 = vpack.c.b16 %v6261, %v6243
    %v7090 = vpack.c.b16 %v6262, %v6244
    %v7091 = vpack.c.b16 %v6263, %v6245
    %v7092 = vpack.c.b16 %v6264, %v6246
    %v7093 = vpack.c.b16 %v6265, %v6247
    %v7094 = vpack.c.b16 %v6266, %v6248
    %v7095 = vpack.c.b16 %v6267, %v6249
    %v7096 = vpack.c.b16 %v6268, %v6250
    %v7097 = vpack.c.b16 %v6269, %v6251
    %v7098 = vpack.c.b16 %v6270, %v6252
    %v7099 = vpack.c.b16 %v6289, %v6271
    %v7100 = vpack.c.b16 %v6290, %v6272
    %v7101 = vpack.c.b16 %v6291, %v6273
    %v7102 = vpack.c.b16 %v6292, %v6274
    %v7103 = vpack.c.b16 %v6293, %v6275
    %v7104 = vpack.c.b16 %v6294, %v6276
    %v7105 = vpack.c.b16 %v6295, %v6277
    %v7106 = vpack.c.b16 %v6296, %v6278
    %v7107 = vpack.c.b16 %v6297, %v6279
    %v7108 = vpack.c.b16 %v6298, %v6280
    %v7109 = vpack.c.b16 %v6299, %v6281
    %v7110 = vpack.c.b16 %v6300, %v6282
    %v7111 = vpack.c.b16 %v6301, %v6283
    %v7112 = vpack.c.b16 %v6302, %v6284
    %v7113 = vpack.c.b16 %v6303, %v6285
    %v7114 = vpack.c.b16 %v6304, %v6286
    %v7115 = vpack.c.b16 %v6305, %v6287
    %v7116 = vpack.c.b16 %v6306, %v6288
    %v7117 = vpack.c.b16 %v6325, %v6307
    %v7118 = vpack.c.b16 %v6326, %v6308
    %v7119 = vpack.c.b16 %v6327, %v6309
    %v7120 = vpack.c.b16 %v6328, %v6310
    %v7121 = vpack.c.b16 %v6329, %v6311
    %v7122 = vpack.c.b16 %v6330, %v6312
    %v7123 = vpack.c.b16 %v6331, %v6313
    %v7124 = vpack.c.b16 %v6332, %v6314
    %v7125 = vpack.c.b16 %v6333, %v6315
    %v7126 = vpack.c.b16 %v6334, %v6316
    %v7127 = vpack.c.b16 %v6335, %v6317
    %v7128 = vpack.c.b16 %v6336, %v6318
    %v7129 = vpack.c.b16 %v6337, %v6319
    %v7130 = vpack.c.b16 %v6338, %v6320
    %v7131 = vpack.c.b16 %v6339, %v6321
    %v7132 = vpack.c.b16 %v6340, %v6322
    %v7133 = vpack.c.b16 %v6341, %v6323
    %v7134 = vpack.c.b16 %v6342, %v6324
    %v7135 = vpack.c.b16 %v6361, %v6343
    %v7136 = vpack.c.b16 %v6362, %v6344
    %v7137 = vpack.c.b16 %v6363, %v6345
    %v7138 = vpack.c.b16 %v6364, %v6346
    %v7139 = vpack.c.b16 %v6365, %v6347
    %v7140 = vpack.c.b16 %v6366, %v6348
    %v7141 = vpack.c.b16 %v6367, %v6349
    %v7142 = vpack.c.b16 %v6368, %v6350
    %v7143 = vpack.c.b16 %v6369, %v6351
    %v7144 = vpack.c.b16 %v6370, %v6352
    %v7145 = vpack.c.b16 %v6371, %v6353
    %v7146 = vpack.c.b16 %v6372, %v6354
    %v7147 = vpack.c.b16 %v6373, %v6355
    %v7148 = vpack.c.b16 %v6374, %v6356
    %v7149 = vpack.c.b16 %v6375, %v6357
    %v7150 = vpack.c.b16 %v6376, %v6358
    %v7151 = vpack.c.b16 %v6377, %v6359
    %v7152 = vpack.c.b16 %v6378, %v6360
    %v7153 = vpack.c.b16 %v6397, %v6379
    %v7154 = vpack.c.b16 %v6398, %v6380
    %v7155 = vpack.c.b16 %v6399, %v6381
    %v7156 = vpack.c.b16 %v6400, %v6382
    %v7157 = vpack.c.b16 %v6401, %v6383
    %v7158 = vpack.c.b16 %v6402, %v6384
    %v7159 = vpack.c.b16 %v6403, %v6385
    %v7160 = vpack.c.b16 %v6404, %v6386
    %v7161 = vpack.c.b16 %v6405, %v6387
    %v7162 = vpack.c.b16 %v6406, %v6388
    %v7163 = vpack.c.b16 %v6407, %v6389
    %v7164 = vpack.c.b16 %v6408, %v6390
    %v7165 = vpack.c.b16 %v6409, %v6391
    %v7166 = vpack.c.b16 %v6410, %v6392
    %v7167 = vpack.c.b16 %v6411, %v6393
    %v7168 = vpack.c.b16 %v6412, %v6394
    %v7169 = vpack.c.b16 %v6413, %v6395
    %v7170 = vpack.c.b16 %v6414, %v6396
    %v7171 = vpack.c.b16 %v6433, %v6415
    %v7172 = vpack.c.b16 %v6434, %v6416
    %v7173 = vpack.c.b16 %v6435, %v6417
    %v7174 = vpack.c.b16 %v6436, %v6418
    %v7175 = vpack.c.b16 %v6437, %v6419
    %v7176 = vpack.c.b16 %v6438, %v6420
    %v7177 = vpack.c.b16 %v6439, %v6421
    %v7178 = vpack.c.b16 %v6440, %v6422
    %v7179 = vpack.c.b16 %v6441, %v6423
    %v7180 = vpack.c.b16 %v6442, %v6424
    %v7181 = vpack.c.b16 %v6443, %v6425
    %v7182 = vpack.c.b16 %v6444, %v6426
    %v7183 = vpack.c.b16 %v6445, %v6427
    %v7184 = vpack.c.b16 %v6446, %v6428
    %v7185 = vpack.c.b16 %v6447, %v6429
    %v7186 = vpack.c.b16 %v6448, %v6430
    %v7187 = vpack.c.b16 %v6449, %v6431
    %v7188 = vpack.c.b16 %v6450, %v6432
    %v7189 = vpack.c.b16 %v6469, %v6451
    %v7190 = vpack.c.b16 %v6470, %v6452
    %v7191 = vpack.c.b16 %v6471, %v6453
    %v7192 = vpack.c.b16 %v6472, %v6454
    %v7193 = vpack.c.b16 %v6473, %v6455
    %v7194 = vpack.c.b16 %v6474, %v6456
    %v7195 = vpack.c.b16 %v6475, %v6457
    %v7196 = vpack.c.b16 %v6476, %v6458
    %v7197 = vpack.c.b16 %v6477, %v6459
    %v7198 = vpack.c.b16 %v6478, %v6460
    %v7199 = vpack.c.b16 %v6479, %v6461
    %v7200 = vpack.c.b16 %v6480, %v6462
    %v7201 = vpack.c.b16 %v6481, %v6463
    %v7202 = vpack.c.b16 %v6482, %v6464
    %v7203 = vpack.c.b16 %v6483, %v6465
    %v7204 = vpack.c.b16 %v6484, %v6466
    %v7205 = vpack.c.b16 %v6485, %v6467
    %v7206 = vpack.c.b16 %v6486, %v6468
    %v7207 = vpack.c.b16 %v6505, %v6487
    %v7208 = vpack.c.b16 %v6506, %v6488
    %v7209 = vpack.c.b16 %v6507, %v6489
    %v7210 = vpack.c.b16 %v6508, %v6490
    %v7211 = vpack.c.b16 %v6509, %v6491
    %v7212 = vpack.c.b16 %v6510, %v6492
    %v7213 = vpack.c.b16 %v6511, %v6493
    %v7214 = vpack.c.b16 %v6512, %v6494
    %v7215 = vpack.c.b16 %v6513, %v6495
    %v7216 = vpack.c.b16 %v6514, %v6496
    %v7217 = vpack.c.b16 %v6515, %v6497
    %v7218 = vpack.c.b16 %v6516, %v6498
    %v7219 = vpack.c.b16 %v6517, %v6499
    %v7220 = vpack.c.b16 %v6518, %v6500
    %v7221 = vpack.c.b16 %v6519, %v6501
    %v7222 = vpack.c.b16 %v6520, %v6502
    %v7223 = vpack.c.b16 %v6521, %v6503
    %v7224 = vpack.c.b16 %v6522, %v6504
    %v7225 = vpack.c.b16 %v6541, %v6523
    %v7226 = vpack.c.b16 %v6542, %v6524
    %v7227 = vpack.c.b16 %v6543, %v6525
    %v7228 = vpack.c.b16 %v6544, %v6526
    %v7229 = vpack.c.b16 %v6545, %v6527
    %v7230 = vpack.c.b16 %v6546, %v6528
    %v7231 = vpack.c.b16 %v6547, %v6529
    %v7232 = vpack.c.b16 %v6548, %v6530
    %v7233 = vpack.c.b16 %v6549, %v6531
    %v7234 = vpack.c.b16 %v6550, %v6532
    %v7235 = vpack.c.b16 %v6551, %v6533
    %v7236 = vpack.c.b16 %v6552, %v6534
    %v7237 = vpack.c.b16 %v6553, %v6535
    %v7238 = vpack.c.b16 %v6554, %v6536
    %v7239 = vpack.c.b16 %v6555, %v6537
    %v7240 = vpack.c.b16 %v6556, %v6538
    %v7241 = vpack.c.b16 %v6557, %v6539
    %v7242 = vpack.c.b16 %v6558, %v6540
    %v7243 = vpack.c.b16 %v6577, %v6559
    %v7244 = vpack.c.b16 %v6578, %v6560
    %v7245 = vpack.c.b16 %v6579, %v6561
    %v7246 = vpack.c.b16 %v6580, %v6562
    %v7247 = vpack.c.b16 %v6581, %v6563
    %v7248 = vpack.c.b16 %v6582, %v6564
    %v7249 = vpack.c.b16 %v6583, %v6565
    %v7250 = vpack.c.b16 %v6584, %v6566
    %v7251 = vpack.c.b16 %v6585, %v6567
    %v7252 = vpack.c.b16 %v6586, %v6568
    %v7253 = vpack.c.b16 %v6587, %v6569
    %v7254 = vpack.c.b16 %v6588, %v6570
    %v7255 = vpack.c.b16 %v6589, %v6571
    %v7256 = vpack.c.b16 %v6590, %v6572
    %v7257 = vpack.c.b16 %v6591, %v6573
    %v7258 = vpack.c.b16 %v6592, %v6574
    %v7259 = vpack.c.b16 %v6593, %v6575
    %v7260 = vpack.c.b16 %v6594, %v6576
    %v7261 = vpack.c.b16 %v6613, %v6595
    %v7262 = vpack.c.b16 %v6614, %v6596
    %v7263 = vpack.c.b16 %v6615, %v6597
    %v7264 = vpack.c.b16 %v6616, %v6598
    %v7265 = vpack.c.b16 %v6617, %v6599
    %v7266 = vpack.c.b16 %v6618, %v6600
    %v7267 = vpack.c.b16 %v6619, %v6601
    %v7268 = vpack.c.b16 %v6620, %v6602
    %v7269 = vpack.c.b16 %v6621, %v6603
    %v7270 = vpack.c.b16 %v6622, %v6604
    %v7271 = vpack.c.b16 %v6623, %v6605
    %v7272 = vpack.c.b16 %v6624, %v6606
    %v7273 = vpack.c.b16 %v6625, %v6607
    %v7274 = vpack.c.b16 %v6626, %v6608
    %v7275 = vpack.c.b16 %v6627, %v6609
    %v7276 = vpack.c.b16 %v6628, %v6610
    %v7277 = vpack.c.b16 %v6629, %v6611
    %v7278 = vpack.c.b16 %v6630, %v6612
    %v7279 = vpack.c.b16 %v6649, %v6631
    %v7280 = vpack.c.b16 %v6650, %v6632
    %v7281 = vpack.c.b16 %v6651, %v6633
    %v7282 = vpack.c.b16 %v6652, %v6634
    %v7283 = vpack.c.b16 %v6653, %v6635
    %v7284 = vpack.c.b16 %v6654, %v6636
    %v7285 = vpack.c.b16 %v6655, %v6637
    %v7286 = vpack.c.b16 %v6656, %v6638
    %v7287 = vpack.c.b16 %v6657, %v6639
    %v7288 = vpack.c.b16 %v6658, %v6640
    %v7289 = vpack.c.b16 %v6659, %v6641
    %v7290 = vpack.c.b16 %v6660, %v6642
    %v7291 = vpack.c.b16 %v6661, %v6643
    %v7292 = vpack.c.b16 %v6662, %v6644
    %v7293 = vpack.c.b16 %v6663, %v6645
    %v7294 = vpack.c.b16 %v6664, %v6646
    %v7295 = vpack.c.b16 %v6665, %v6647
    %v7296 = vpack.c.b16 %v6666, %v6648
    %v7297 = vpack.c.b16 %v6685, %v6667
    %v7298 = vpack.c.b16 %v6686, %v6668
    %v7299 = vpack.c.b16 %v6687, %v6669
    %v7300 = vpack.c.b16 %v6688, %v6670
    %v7301 = vpack.c.b16 %v6689, %v6671
    %v7302 = vpack.c.b16 %v6690, %v6672
    %v7303 = vpack.c.b16 %v6691, %v6673
    %v7304 = vpack.c.b16 %v6692, %v6674
    %v7305 = vpack.c.b16 %v6693, %v6675
    %v7306 = vpack.c.b16 %v6694, %v6676
    %v7307 = vpack.c.b16 %v6695, %v6677
    %v7308 = vpack.c.b16 %v6696, %v6678
    %v7309 = vpack.c.b16 %v6697, %v6679
    %v7310 = vpack.c.b16 %v6698, %v6680
    %v7311 = vpack.c.b16 %v6699, %v6681
    %v7312 = vpack.c.b16 %v6700, %v6682
    %v7313 = vpack.c.b16 %v6701, %v6683
    %v7314 = vpack.c.b16 %v6702, %v6684
    %v7315 = vpack.c.b16 %v6721, %v6703
    %v7316 = vpack.c.b16 %v6722, %v6704
    %v7317 = vpack.c.b16 %v6723, %v6705
    %v7318 = vpack.c.b16 %v6724, %v6706
    %v7319 = vpack.c.b16 %v6725, %v6707
    %v7320 = vpack.c.b16 %v6726, %v6708
    %v7321 = vpack.c.b16 %v6727, %v6709
    %v7322 = vpack.c.b16 %v6728, %v6710
    %v7323 = vpack.c.b16 %v6729, %v6711
    %v7324 = vpack.c.b16 %v6730, %v6712
    %v7325 = vpack.c.b16 %v6731, %v6713
    %v7326 = vpack.c.b16 %v6732, %v6714
    %v7327 = vpack.c.b16 %v6733, %v6715
    %v7328 = vpack.c.b16 %v6734, %v6716
    %v7329 = vpack.c.b16 %v6735, %v6717
    %v7330 = vpack.c.b16 %v6736, %v6718
    %v7331 = vpack.c.b16 %v6737, %v6719
    %v7332 = vpack.c.b16 %v6738, %v6720
    %v7333 = vpack.c.b16 %v6757, %v6739
    %v7334 = vpack.c.b16 %v6758, %v6740
    %v7335 = vpack.c.b16 %v6759, %v6741
    %v7336 = vpack.c.b16 %v6760, %v6742
    %v7337 = vpack.c.b16 %v6761, %v6743
    %v7338 = vpack.c.b16 %v6762, %v6744
    %v7339 = vpack.c.b16 %v6763, %v6745
    %v7340 = vpack.c.b16 %v6764, %v6746
    %v7341 = vpack.c.b16 %v6765, %v6747
    %v7342 = vpack.c.b16 %v6766, %v6748
    %v7343 = vpack.c.b16 %v6767, %v6749
    %v7344 = vpack.c.b16 %v6768, %v6750
    %v7345 = vpack.c.b16 %v6769, %v6751
    %v7346 = vpack.c.b16 %v6770, %v6752
    %v7347 = vpack.c.b16 %v6771, %v6753
    %v7348 = vpack.c.b16 %v6772, %v6754
    %v7349 = vpack.c.b16 %v6773, %v6755
    %v7350 = vpack.c.b16 %v6774, %v6756
    %7927 = vmatprep.subr.bf16.mxu0 %v6902
    %7928 = vmatpush1.bf16.msra.mxu0 %v6901
    %7929 = vmatprep.subr.bf16.mxu0 %v6884
    %7930 = vmatpush1.bf16.msra.mxu0 %v6883
    %7931 = vmatprep.subr.bf16.mxu0 %v6866
    %7932 = vmatpush1.bf16.msra.mxu0 %v6865
    %7933 = vmatprep.subr.bf16.mxu0 %v6848
    %7934 = vmatpush1.bf16.msra.mxu0 %v6847
    %7935 = vmatprep.subr.bf16.mxu0 %v6830
    %7936 = vmatpush1.bf16.msra.mxu0 %v6829
    %7937 = vmatprep.subr.bf16.mxu0 %v6812
    %7938 = vmatpush1.bf16.msra.mxu0 %v6811
    %7939 = vmatprep.subr.bf16.mxu0 %v6794
    %7940 = vmatpush1.bf16.msra.mxu0 %v6793
    %7941 = vmatprep.subr.bf16.mxu0 %v6776
    %7942 = vmatpush1.bf16.msra.mxu0 %v6775
    %7943 = vmatprep.subr.bf16.mxu0 %v7046
    %7944 = vmatpush2.bf16.msra.mxu0 %v7045
    %7945 = vmatprep.subr.bf16.mxu0 %v7028
    %7946 = vmatpush2.bf16.msra.mxu0 %v7027
    %7947 = vmatprep.subr.bf16.mxu0 %v7010
    %7948 = vmatpush2.bf16.msra.mxu0 %v7009
    %7949 = vmatprep.subr.bf16.mxu0 %v6992
    %7950 = vmatpush2.bf16.msra.mxu0 %v6991
    %7951 = vmatprep.subr.bf16.mxu0 %v6974
    %7952 = vmatpush2.bf16.msra.mxu0 %v6973
    %7953 = vmatprep.subr.bf16.mxu0 %v6956
    %7954 = vmatpush2.bf16.msra.mxu0 %v6955
    %7955 = vmatprep.subr.bf16.mxu0 %v6938
    %7956 = vmatpush2.bf16.msra.mxu0 %v6937
    %7957 = vmatprep.subr.bf16.mxu0 %v6920
    %7958 = vmatpush2.bf16.msra.mxu0 %v6919
    %7959 = vmatprep.mubr.bf16.mxu0 %v4372
    %7960 = vmatmul.mubr.bf16.gmra.mxu0 %v4371
    %v7961 = vpop.f32.mrf.mxu0
    %v7962 = vadd.f32 %v4960, %v7961
    %v7963 = vpop.f32.mrf.mxu0
    %v7964 = vadd.f32 %v4964, %v7963
    %v7965 = vpop.f32.mrf.mxu0
    %v7966 = vpop.f32.mrf.mxu0
    %7967 = vdwg.mxu0
    %7968 = vmatprep.subr.bf16.mxu0 %v7190
    %7969 = vmatpush1.bf16.msra.mxu0 %v7189
    %7970 = vmatprep.subr.bf16.mxu0 %v7172
    %7971 = vmatpush1.bf16.msra.mxu0 %v7171
    %7972 = vmatprep.subr.bf16.mxu0 %v7154
    %7973 = vmatpush1.bf16.msra.mxu0 %v7153
    %7974 = vmatprep.subr.bf16.mxu0 %v7136
    %7975 = vmatpush1.bf16.msra.mxu0 %v7135
    %7976 = vmatprep.subr.bf16.mxu0 %v7118
    %7977 = vmatpush1.bf16.msra.mxu0 %v7117
    %7978 = vmatprep.subr.bf16.mxu0 %v7100
    %7979 = vmatpush1.bf16.msra.mxu0 %v7099
    %7980 = vmatprep.subr.bf16.mxu0 %v7082
    %7981 = vmatpush1.bf16.msra.mxu0 %v7081
    %7982 = vmatprep.subr.bf16.mxu0 %v7064
    %7983 = vmatpush1.bf16.msra.mxu0 %v7063
    %7984 = vmatprep.subr.bf16.mxu0 %v7334
    %7985 = vmatpush2.bf16.msra.mxu0 %v7333
    %7986 = vmatprep.subr.bf16.mxu0 %v7316
    %7987 = vmatpush2.bf16.msra.mxu0 %v7315
    %7988 = vmatprep.subr.bf16.mxu0 %v7298
    %7989 = vmatpush2.bf16.msra.mxu0 %v7297
    %7990 = vmatprep.subr.bf16.mxu0 %v7280
    %7991 = vmatpush2.bf16.msra.mxu0 %v7279
    %7992 = vmatprep.subr.bf16.mxu0 %v7262
    %7993 = vmatpush2.bf16.msra.mxu0 %v7261
    %7994 = vmatprep.subr.bf16.mxu0 %v7244
    %7995 = vmatpush2.bf16.msra.mxu0 %v7243
    %7996 = vmatprep.subr.bf16.mxu0 %v7226
    %7997 = vmatpush2.bf16.msra.mxu0 %v7225
    %7998 = vmatprep.subr.bf16.mxu0 %v7208
    %7999 = vmatpush2.bf16.msra.mxu0 %v7207
    %8000 = vmatprep.mubr.bf16.mxu0 %v4374
    %8001 = vmatmul.mubr.bf16.gmra.mxu0 %v4373
    %v8002 = vpop.f32.mrf.mxu0
    %v8003 = vadd.f32 %v7962, %v8002
    %v8004 = vpop.f32.mrf.mxu0
    %v8005 = vadd.f32 %v7964, %v8004
    %v8006 = vpop.f32.mrf.mxu0
    %v8007 = vpop.f32.mrf.mxu0
    %8008 = vdwg.mxu0
    %8009 = vmatprep.subr.bf16.mxu0 %v6904
    %8010 = vmatpush1.bf16.msra.mxu0 %v6903
    %8011 = vmatprep.subr.bf16.mxu0 %v6886
    %8012 = vmatpush1.bf16.msra.mxu0 %v6885
    %8013 = vmatprep.subr.bf16.mxu0 %v6868
    %8014 = vmatpush1.bf16.msra.mxu0 %v6867
    %8015 = vmatprep.subr.bf16.mxu0 %v6850
    %8016 = vmatpush1.bf16.msra.mxu0 %v6849
    %8017 = vmatprep.subr.bf16.mxu0 %v6832
    %8018 = vmatpush1.bf16.msra.mxu0 %v6831
    %8019 = vmatprep.subr.bf16.mxu0 %v6814
    %8020 = vmatpush1.bf16.msra.mxu0 %v6813
    %8021 = vmatprep.subr.bf16.mxu0 %v6796
    %8022 = vmatpush1.bf16.msra.mxu0 %v6795
    %8023 = vmatprep.subr.bf16.mxu0 %v6778
    %8024 = vmatpush1.bf16.msra.mxu0 %v6777
    %8025 = vmatprep.subr.bf16.mxu0 %v7048
    %8026 = vmatpush2.bf16.msra.mxu0 %v7047
    %8027 = vmatprep.subr.bf16.mxu0 %v7030
    %8028 = vmatpush2.bf16.msra.mxu0 %v7029
    %8029 = vmatprep.subr.bf16.mxu0 %v7012
    %8030 = vmatpush2.bf16.msra.mxu0 %v7011
    %8031 = vmatprep.subr.bf16.mxu0 %v6994
    %8032 = vmatpush2.bf16.msra.mxu0 %v6993
    %8033 = vmatprep.subr.bf16.mxu0 %v6976
    %8034 = vmatpush2.bf16.msra.mxu0 %v6975
    %8035 = vmatprep.subr.bf16.mxu0 %v6958
    %8036 = vmatpush2.bf16.msra.mxu0 %v6957
    %8037 = vmatprep.subr.bf16.mxu0 %v6940
    %8038 = vmatpush2.bf16.msra.mxu0 %v6939
    %8039 = vmatprep.subr.bf16.mxu0 %v6922
    %8040 = vmatpush2.bf16.msra.mxu0 %v6921
    %8041 = vmatprep.mubr.bf16.mxu0 %v4372
    %8042 = vmatmul.mubr.bf16.gmra.mxu0 %v4371
    %v8043 = vpop.f32.mrf.mxu0
    %v8044 = vadd.f32 %v4968, %v8043
    %v8045 = vpop.f32.mrf.mxu0
    %v8046 = vadd.f32 %v4972, %v8045
    %v8047 = vpop.f32.mrf.mxu0
    %v8048 = vpop.f32.mrf.mxu0
    %8049 = vdwg.mxu0
    %8050 = vmatprep.subr.bf16.mxu0 %v7192
    %8051 = vmatpush1.bf16.msra.mxu0 %v7191
    %8052 = vmatprep.subr.bf16.mxu0 %v7174
    %8053 = vmatpush1.bf16.msra.mxu0 %v7173
    %8054 = vmatprep.subr.bf16.mxu0 %v7156
    %8055 = vmatpush1.bf16.msra.mxu0 %v7155
    %8056 = vmatprep.subr.bf16.mxu0 %v7138
    %8057 = vmatpush1.bf16.msra.mxu0 %v7137
    %8058 = vmatprep.subr.bf16.mxu0 %v7120
    %8059 = vmatpush1.bf16.msra.mxu0 %v7119
    %8060 = vmatprep.subr.bf16.mxu0 %v7102
    %8061 = vmatpush1.bf16.msra.mxu0 %v7101
    %8062 = vmatprep.subr.bf16.mxu0 %v7084
    %8063 = vmatpush1.bf16.msra.mxu0 %v7083
    %8064 = vmatprep.subr.bf16.mxu0 %v7066
    %8065 = vmatpush1.bf16.msra.mxu0 %v7065
    %8066 = vmatprep.subr.bf16.mxu0 %v7336
    %8067 = vmatpush2.bf16.msra.mxu0 %v7335
    %8068 = vmatprep.subr.bf16.mxu0 %v7318
    %8069 = vmatpush2.bf16.msra.mxu0 %v7317
    %8070 = vmatprep.subr.bf16.mxu0 %v7300
    %8071 = vmatpush2.bf16.msra.mxu0 %v7299
    %8072 = vmatprep.subr.bf16.mxu0 %v7282
    %8073 = vmatpush2.bf16.msra.mxu0 %v7281
    %8074 = vmatprep.subr.bf16.mxu0 %v7264
    %8075 = vmatpush2.bf16.msra.mxu0 %v7263
    %8076 = vmatprep.subr.bf16.mxu0 %v7246
    %8077 = vmatpush2.bf16.msra.mxu0 %v7245
    %8078 = vmatprep.subr.bf16.mxu0 %v7228
    %8079 = vmatpush2.bf16.msra.mxu0 %v7227
    %8080 = vmatprep.subr.bf16.mxu0 %v7210
    %8081 = vmatpush2.bf16.msra.mxu0 %v7209
    %8082 = vmatprep.mubr.bf16.mxu0 %v4374
    %8083 = vmatmul.mubr.bf16.gmra.mxu0 %v4373
    %v8084 = vpop.f32.mrf.mxu0
    %v8085 = vadd.f32 %v8044, %v8084
    %v8086 = vpop.f32.mrf.mxu0
    %v8087 = vadd.f32 %v8046, %v8086
    %v8088 = vpop.f32.mrf.mxu0
    %v8089 = vpop.f32.mrf.mxu0
    %8090 = vdwg.mxu0
    %8091 = vmatprep.subr.bf16.mxu0 %v6906
    %8092 = vmatpush1.bf16.msra.mxu0 %v6905
    %8093 = vmatprep.subr.bf16.mxu0 %v6888
    %8094 = vmatpush1.bf16.msra.mxu0 %v6887
    %8095 = vmatprep.subr.bf16.mxu0 %v6870
    %8096 = vmatpush1.bf16.msra.mxu0 %v6869
    %8097 = vmatprep.subr.bf16.mxu0 %v6852
    %8098 = vmatpush1.bf16.msra.mxu0 %v6851
    %8099 = vmatprep.subr.bf16.mxu0 %v6834
    %8100 = vmatpush1.bf16.msra.mxu0 %v6833
    %8101 = vmatprep.subr.bf16.mxu0 %v6816
    %8102 = vmatpush1.bf16.msra.mxu0 %v6815
    %8103 = vmatprep.subr.bf16.mxu0 %v6798
    %8104 = vmatpush1.bf16.msra.mxu0 %v6797
    %8105 = vmatprep.subr.bf16.mxu0 %v6780
    %8106 = vmatpush1.bf16.msra.mxu0 %v6779
    %8107 = vmatprep.subr.bf16.mxu0 %v7050
    %8108 = vmatpush2.bf16.msra.mxu0 %v7049
    %8109 = vmatprep.subr.bf16.mxu0 %v7032
    %8110 = vmatpush2.bf16.msra.mxu0 %v7031
    %8111 = vmatprep.subr.bf16.mxu0 %v7014
    %8112 = vmatpush2.bf16.msra.mxu0 %v7013
    %8113 = vmatprep.subr.bf16.mxu0 %v6996
    %8114 = vmatpush2.bf16.msra.mxu0 %v6995
    %8115 = vmatprep.subr.bf16.mxu0 %v6978
    %8116 = vmatpush2.bf16.msra.mxu0 %v6977
    %8117 = vmatprep.subr.bf16.mxu0 %v6960
    %8118 = vmatpush2.bf16.msra.mxu0 %v6959
    %8119 = vmatprep.subr.bf16.mxu0 %v6942
    %8120 = vmatpush2.bf16.msra.mxu0 %v6941
    %8121 = vmatprep.subr.bf16.mxu0 %v6924
    %8122 = vmatpush2.bf16.msra.mxu0 %v6923
    %8123 = vmatprep.mubr.bf16.mxu0 %v4372
    %8124 = vmatmul.mubr.bf16.gmra.mxu0 %v4371
    %v8125 = vpop.f32.mrf.mxu0
    %v8126 = vadd.f32 %v4976, %v8125
    %v8127 = vpop.f32.mrf.mxu0
    %v8128 = vadd.f32 %v4980, %v8127
    %v8129 = vpop.f32.mrf.mxu0
    %v8130 = vpop.f32.mrf.mxu0
    %8131 = vdwg.mxu0
    %8132 = vmatprep.subr.bf16.mxu0 %v7194
    %8133 = vmatpush1.bf16.msra.mxu0 %v7193
    %8134 = vmatprep.subr.bf16.mxu0 %v7176
    %8135 = vmatpush1.bf16.msra.mxu0 %v7175
    %8136 = vmatprep.subr.bf16.mxu0 %v7158
    %8137 = vmatpush1.bf16.msra.mxu0 %v7157
    %8138 = vmatprep.subr.bf16.mxu0 %v7140
    %8139 = vmatpush1.bf16.msra.mxu0 %v7139
    %8140 = vmatprep.subr.bf16.mxu0 %v7122
    %8141 = vmatpush1.bf16.msra.mxu0 %v7121
    %8142 = vmatprep.subr.bf16.mxu0 %v7104
    %8143 = vmatpush1.bf16.msra.mxu0 %v7103
    %8144 = vmatprep.subr.bf16.mxu0 %v7086
    %8145 = vmatpush1.bf16.msra.mxu0 %v7085
    %8146 = vmatprep.subr.bf16.mxu0 %v7068
    %8147 = vmatpush1.bf16.msra.mxu0 %v7067
    %8148 = vmatprep.subr.bf16.mxu0 %v7338
    %8149 = vmatpush2.bf16.msra.mxu0 %v7337
    %8150 = vmatprep.subr.bf16.mxu0 %v7320
    %8151 = vmatpush2.bf16.msra.mxu0 %v7319
    %8152 = vmatprep.subr.bf16.mxu0 %v7302
    %8153 = vmatpush2.bf16.msra.mxu0 %v7301
    %8154 = vmatprep.subr.bf16.mxu0 %v7284
    %8155 = vmatpush2.bf16.msra.mxu0 %v7283
    %8156 = vmatprep.subr.bf16.mxu0 %v7266
    %8157 = vmatpush2.bf16.msra.mxu0 %v7265
    %8158 = vmatprep.subr.bf16.mxu0 %v7248
    %8159 = vmatpush2.bf16.msra.mxu0 %v7247
    %8160 = vmatprep.subr.bf16.mxu0 %v7230
    %8161 = vmatpush2.bf16.msra.mxu0 %v7229
    %8162 = vmatprep.subr.bf16.mxu0 %v7212
    %8163 = vmatpush2.bf16.msra.mxu0 %v7211
    %8164 = vmatprep.mubr.bf16.mxu0 %v4374
    %8165 = vmatmul.mubr.bf16.gmra.mxu0 %v4373
    %v8166 = vpop.f32.mrf.mxu0
    %v8167 = vadd.f32 %v8126, %v8166
    %v8168 = vpop.f32.mrf.mxu0
    %v8169 = vadd.f32 %v8128, %v8168
    %v8170 = vpop.f32.mrf.mxu0
    %v8171 = vpop.f32.mrf.mxu0
    %8172 = vdwg.mxu0
    %8173 = vmatprep.subr.bf16.mxu0 %v6908
    %8174 = vmatpush1.bf16.msra.mxu0 %v6907
    %8175 = vmatprep.subr.bf16.mxu0 %v6890
    %8176 = vmatpush1.bf16.msra.mxu0 %v6889
    %8177 = vmatprep.subr.bf16.mxu0 %v6872
    %8178 = vmatpush1.bf16.msra.mxu0 %v6871
    %8179 = vmatprep.subr.bf16.mxu0 %v6854
    %8180 = vmatpush1.bf16.msra.mxu0 %v6853
    %8181 = vmatprep.subr.bf16.mxu0 %v6836
    %8182 = vmatpush1.bf16.msra.mxu0 %v6835
    %8183 = vmatprep.subr.bf16.mxu0 %v6818
    %8184 = vmatpush1.bf16.msra.mxu0 %v6817
    %8185 = vmatprep.subr.bf16.mxu0 %v6800
    %8186 = vmatpush1.bf16.msra.mxu0 %v6799
    %8187 = vmatprep.subr.bf16.mxu0 %v6782
    %8188 = vmatpush1.bf16.msra.mxu0 %v6781
    %8189 = vmatprep.subr.bf16.mxu0 %v7052
    %8190 = vmatpush2.bf16.msra.mxu0 %v7051
    %8191 = vmatprep.subr.bf16.mxu0 %v7034
    %8192 = vmatpush2.bf16.msra.mxu0 %v7033
    %8193 = vmatprep.subr.bf16.mxu0 %v7016
    %8194 = vmatpush2.bf16.msra.mxu0 %v7015
    %8195 = vmatprep.subr.bf16.mxu0 %v6998
    %8196 = vmatpush2.bf16.msra.mxu0 %v6997
    %8197 = vmatprep.subr.bf16.mxu0 %v6980
    %8198 = vmatpush2.bf16.msra.mxu0 %v6979
    %8199 = vmatprep.subr.bf16.mxu0 %v6962
    %8200 = vmatpush2.bf16.msra.mxu0 %v6961
    %8201 = vmatprep.subr.bf16.mxu0 %v6944
    %8202 = vmatpush2.bf16.msra.mxu0 %v6943
    %8203 = vmatprep.subr.bf16.mxu0 %v6926
    %8204 = vmatpush2.bf16.msra.mxu0 %v6925
    %8205 = vmatprep.mubr.bf16.mxu0 %v4372
    %8206 = vmatmul.mubr.bf16.gmra.mxu0 %v4371
    %v8207 = vpop.f32.mrf.mxu0
    %v8208 = vadd.f32 %v4984, %v8207
    %v8209 = vpop.f32.mrf.mxu0
    %v8210 = vadd.f32 %v4988, %v8209
    %v8211 = vpop.f32.mrf.mxu0
    %v8212 = vpop.f32.mrf.mxu0
    %8213 = vdwg.mxu0
    %8214 = vmatprep.subr.bf16.mxu0 %v7196
    %8215 = vmatpush1.bf16.msra.mxu0 %v7195
    %8216 = vmatprep.subr.bf16.mxu0 %v7178
    %8217 = vmatpush1.bf16.msra.mxu0 %v7177
    %8218 = vmatprep.subr.bf16.mxu0 %v7160
    %8219 = vmatpush1.bf16.msra.mxu0 %v7159
    %8220 = vmatprep.subr.bf16.mxu0 %v7142
    %8221 = vmatpush1.bf16.msra.mxu0 %v7141
    %8222 = vmatprep.subr.bf16.mxu0 %v7124
    %8223 = vmatpush1.bf16.msra.mxu0 %v7123
    %8224 = vmatprep.subr.bf16.mxu0 %v7106
    %8225 = vmatpush1.bf16.msra.mxu0 %v7105
    %8226 = vmatprep.subr.bf16.mxu0 %v7088
    %8227 = vmatpush1.bf16.msra.mxu0 %v7087
    %8228 = vmatprep.subr.bf16.mxu0 %v7070
    %8229 = vmatpush1.bf16.msra.mxu0 %v7069
    %8230 = vmatprep.subr.bf16.mxu0 %v7340
    %8231 = vmatpush2.bf16.msra.mxu0 %v7339
    %8232 = vmatprep.subr.bf16.mxu0 %v7322
    %8233 = vmatpush2.bf16.msra.mxu0 %v7321
    %8234 = vmatprep.subr.bf16.mxu0 %v7304
    %8235 = vmatpush2.bf16.msra.mxu0 %v7303
    %8236 = vmatprep.subr.bf16.mxu0 %v7286
    %8237 = vmatpush2.bf16.msra.mxu0 %v7285
    %8238 = vmatprep.subr.bf16.mxu0 %v7268
    %8239 = vmatpush2.bf16.msra.mxu0 %v7267
    %8240 = vmatprep.subr.bf16.mxu0 %v7250
    %8241 = vmatpush2.bf16.msra.mxu0 %v7249
    %8242 = vmatprep.subr.bf16.mxu0 %v7232
    %8243 = vmatpush2.bf16.msra.mxu0 %v7231
    %8244 = vmatprep.subr.bf16.mxu0 %v7214
    %8245 = vmatpush2.bf16.msra.mxu0 %v7213
    %8246 = vmatprep.mubr.bf16.mxu0 %v4374
    %8247 = vmatmul.mubr.bf16.gmra.mxu0 %v4373
    %v8248 = vpop.f32.mrf.mxu0
    %v8249 = vadd.f32 %v8208, %v8248
    %v8250 = vpop.f32.mrf.mxu0
    %v8251 = vadd.f32 %v8210, %v8250
    %v8252 = vpop.f32.mrf.mxu0
    %v8253 = vpop.f32.mrf.mxu0
    %8254 = vdwg.mxu0
    %8255 = vmatprep.subr.bf16.mxu0 %v6910
    %8256 = vmatpush1.bf16.msra.mxu0 %v6909
    %8257 = vmatprep.subr.bf16.mxu0 %v6892
    %8258 = vmatpush1.bf16.msra.mxu0 %v6891
    %8259 = vmatprep.subr.bf16.mxu0 %v6874
    %8260 = vmatpush1.bf16.msra.mxu0 %v6873
    %8261 = vmatprep.subr.bf16.mxu0 %v6856
    %8262 = vmatpush1.bf16.msra.mxu0 %v6855
    %8263 = vmatprep.subr.bf16.mxu0 %v6838
    %8264 = vmatpush1.bf16.msra.mxu0 %v6837
    %8265 = vmatprep.subr.bf16.mxu0 %v6820
    %8266 = vmatpush1.bf16.msra.mxu0 %v6819
    %8267 = vmatprep.subr.bf16.mxu0 %v6802
    %8268 = vmatpush1.bf16.msra.mxu0 %v6801
    %8269 = vmatprep.subr.bf16.mxu0 %v6784
    %8270 = vmatpush1.bf16.msra.mxu0 %v6783
    %8271 = vmatprep.subr.bf16.mxu0 %v7054
    %8272 = vmatpush2.bf16.msra.mxu0 %v7053
    %8273 = vmatprep.subr.bf16.mxu0 %v7036
    %8274 = vmatpush2.bf16.msra.mxu0 %v7035
    %8275 = vmatprep.subr.bf16.mxu0 %v7018
    %8276 = vmatpush2.bf16.msra.mxu0 %v7017
    %8277 = vmatprep.subr.bf16.mxu0 %v7000
    %8278 = vmatpush2.bf16.msra.mxu0 %v6999
    %8279 = vmatprep.subr.bf16.mxu0 %v6982
    %8280 = vmatpush2.bf16.msra.mxu0 %v6981
    %8281 = vmatprep.subr.bf16.mxu0 %v6964
    %8282 = vmatpush2.bf16.msra.mxu0 %v6963
    %8283 = vmatprep.subr.bf16.mxu0 %v6946
    %8284 = vmatpush2.bf16.msra.mxu0 %v6945
    %8285 = vmatprep.subr.bf16.mxu0 %v6928
    %8286 = vmatpush2.bf16.msra.mxu0 %v6927
    %8287 = vmatprep.mubr.bf16.mxu0 %v4372
    %8288 = vmatmul.mubr.bf16.gmra.mxu0 %v4371
    %v8289 = vpop.f32.mrf.mxu0
    %v8290 = vadd.f32 %v4992, %v8289
    %v8291 = vpop.f32.mrf.mxu0
    %v8292 = vadd.f32 %v4996, %v8291
    %v8293 = vpop.f32.mrf.mxu0
    %v8294 = vpop.f32.mrf.mxu0
    %8295 = vdwg.mxu0
    %8296 = vmatprep.subr.bf16.mxu0 %v7198
    %8297 = vmatpush1.bf16.msra.mxu0 %v7197
    %8298 = vmatprep.subr.bf16.mxu0 %v7180
    %8299 = vmatpush1.bf16.msra.mxu0 %v7179
    %8300 = vmatprep.subr.bf16.mxu0 %v7162
    %8301 = vmatpush1.bf16.msra.mxu0 %v7161
    %8302 = vmatprep.subr.bf16.mxu0 %v7144
    %8303 = vmatpush1.bf16.msra.mxu0 %v7143
    %8304 = vmatprep.subr.bf16.mxu0 %v7126
    %8305 = vmatpush1.bf16.msra.mxu0 %v7125
    %8306 = vmatprep.subr.bf16.mxu0 %v7108
    %8307 = vmatpush1.bf16.msra.mxu0 %v7107
    %8308 = vmatprep.subr.bf16.mxu0 %v7090
    %8309 = vmatpush1.bf16.msra.mxu0 %v7089
    %8310 = vmatprep.subr.bf16.mxu0 %v7072
    %8311 = vmatpush1.bf16.msra.mxu0 %v7071
    %8312 = vmatprep.subr.bf16.mxu0 %v7342
    %8313 = vmatpush2.bf16.msra.mxu0 %v7341
    %8314 = vmatprep.subr.bf16.mxu0 %v7324
    %8315 = vmatpush2.bf16.msra.mxu0 %v7323
    %8316 = vmatprep.subr.bf16.mxu0 %v7306
    %8317 = vmatpush2.bf16.msra.mxu0 %v7305
    %8318 = vmatprep.subr.bf16.mxu0 %v7288
    %8319 = vmatpush2.bf16.msra.mxu0 %v7287
    %8320 = vmatprep.subr.bf16.mxu0 %v7270
    %8321 = vmatpush2.bf16.msra.mxu0 %v7269
    %8322 = vmatprep.subr.bf16.mxu0 %v7252
    %8323 = vmatpush2.bf16.msra.mxu0 %v7251
    %8324 = vmatprep.subr.bf16.mxu0 %v7234
    %8325 = vmatpush2.bf16.msra.mxu0 %v7233
    %8326 = vmatprep.subr.bf16.mxu0 %v7216
    %8327 = vmatpush2.bf16.msra.mxu0 %v7215
    %8328 = vmatprep.mubr.bf16.mxu0 %v4374
    %8329 = vmatmul.mubr.bf16.gmra.mxu0 %v4373
    %v8330 = vpop.f32.mrf.mxu0
    %v8331 = vadd.f32 %v8290, %v8330
    %v8332 = vpop.f32.mrf.mxu0
    %v8333 = vadd.f32 %v8292, %v8332
    %v8334 = vpop.f32.mrf.mxu0
    %v8335 = vpop.f32.mrf.mxu0
    %8336 = vdwg.mxu0
    %8337 = vmatprep.subr.bf16.mxu0 %v6912
    %8338 = vmatpush1.bf16.msra.mxu0 %v6911
    %8339 = vmatprep.subr.bf16.mxu0 %v6894
    %8340 = vmatpush1.bf16.msra.mxu0 %v6893
    %8341 = vmatprep.subr.bf16.mxu0 %v6876
    %8342 = vmatpush1.bf16.msra.mxu0 %v6875
    %8343 = vmatprep.subr.bf16.mxu0 %v6858
    %8344 = vmatpush1.bf16.msra.mxu0 %v6857
    %8345 = vmatprep.subr.bf16.mxu0 %v6840
    %8346 = vmatpush1.bf16.msra.mxu0 %v6839
    %8347 = vmatprep.subr.bf16.mxu0 %v6822
    %8348 = vmatpush1.bf16.msra.mxu0 %v6821
    %8349 = vmatprep.subr.bf16.mxu0 %v6804
    %8350 = vmatpush1.bf16.msra.mxu0 %v6803
    %8351 = vmatprep.subr.bf16.mxu0 %v6786
    %8352 = vmatpush1.bf16.msra.mxu0 %v6785
    %8353 = vmatprep.subr.bf16.mxu0 %v7056
    %8354 = vmatpush2.bf16.msra.mxu0 %v7055
    %8355 = vmatprep.subr.bf16.mxu0 %v7038
    %8356 = vmatpush2.bf16.msra.mxu0 %v7037
    %8357 = vmatprep.subr.bf16.mxu0 %v7020
    %8358 = vmatpush2.bf16.msra.mxu0 %v7019
    %8359 = vmatprep.subr.bf16.mxu0 %v7002
    %8360 = vmatpush2.bf16.msra.mxu0 %v7001
    %8361 = vmatprep.subr.bf16.mxu0 %v6984
    %8362 = vmatpush2.bf16.msra.mxu0 %v6983
    %8363 = vmatprep.subr.bf16.mxu0 %v6966
    %8364 = vmatpush2.bf16.msra.mxu0 %v6965
    %8365 = vmatprep.subr.bf16.mxu0 %v6948
    %8366 = vmatpush2.bf16.msra.mxu0 %v6947
    %8367 = vmatprep.subr.bf16.mxu0 %v6930
    %8368 = vmatpush2.bf16.msra.mxu0 %v6929
    %8369 = vmatprep.mubr.bf16.mxu0 %v4372
    %8370 = vmatmul.mubr.bf16.gmra.mxu0 %v4371
    %v8371 = vpop.f32.mrf.mxu0
    %v8372 = vadd.f32 %v5000, %v8371
    %v8373 = vpop.f32.mrf.mxu0
    %v8374 = vadd.f32 %v5004, %v8373
    %v8375 = vpop.f32.mrf.mxu0
    %v8376 = vpop.f32.mrf.mxu0
    %8377 = vdwg.mxu0
    %8378 = vmatprep.subr.bf16.mxu0 %v7200
    %8379 = vmatpush1.bf16.msra.mxu0 %v7199
    %8380 = vmatprep.subr.bf16.mxu0 %v7182
    %8381 = vmatpush1.bf16.msra.mxu0 %v7181
    %8382 = vmatprep.subr.bf16.mxu0 %v7164
    %8383 = vmatpush1.bf16.msra.mxu0 %v7163
    %8384 = vmatprep.subr.bf16.mxu0 %v7146
    %8385 = vmatpush1.bf16.msra.mxu0 %v7145
    %8386 = vmatprep.subr.bf16.mxu0 %v7128
    %8387 = vmatpush1.bf16.msra.mxu0 %v7127
    %8388 = vmatprep.subr.bf16.mxu0 %v7110
    %8389 = vmatpush1.bf16.msra.mxu0 %v7109
    %8390 = vmatprep.subr.bf16.mxu0 %v7092
    %8391 = vmatpush1.bf16.msra.mxu0 %v7091
    %8392 = vmatprep.subr.bf16.mxu0 %v7074
    %8393 = vmatpush1.bf16.msra.mxu0 %v7073
    %8394 = vmatprep.subr.bf16.mxu0 %v7344
    %8395 = vmatpush2.bf16.msra.mxu0 %v7343
    %8396 = vmatprep.subr.bf16.mxu0 %v7326
    %8397 = vmatpush2.bf16.msra.mxu0 %v7325
    %8398 = vmatprep.subr.bf16.mxu0 %v7308
    %8399 = vmatpush2.bf16.msra.mxu0 %v7307
    %8400 = vmatprep.subr.bf16.mxu0 %v7290
    %8401 = vmatpush2.bf16.msra.mxu0 %v7289
    %8402 = vmatprep.subr.bf16.mxu0 %v7272
    %8403 = vmatpush2.bf16.msra.mxu0 %v7271
    %8404 = vmatprep.subr.bf16.mxu0 %v7254
    %8405 = vmatpush2.bf16.msra.mxu0 %v7253
    %8406 = vmatprep.subr.bf16.mxu0 %v7236
    %8407 = vmatpush2.bf16.msra.mxu0 %v7235
    %8408 = vmatprep.subr.bf16.mxu0 %v7218
    %8409 = vmatpush2.bf16.msra.mxu0 %v7217
    %8410 = vmatprep.mubr.bf16.mxu0 %v4374
    %8411 = vmatmul.mubr.bf16.gmra.mxu0 %v4373
    %v8412 = vpop.f32.mrf.mxu0
    %v8413 = vadd.f32 %v8372, %v8412
    %v8414 = vpop.f32.mrf.mxu0
    %v8415 = vadd.f32 %v8374, %v8414
    %v8416 = vpop.f32.mrf.mxu0
    %v8417 = vpop.f32.mrf.mxu0
    %8418 = vdwg.mxu0
    %8419 = vmatprep.subr.bf16.mxu0 %v6914
    %8420 = vmatpush1.bf16.msra.mxu0 %v6913
    %8421 = vmatprep.subr.bf16.mxu0 %v6896
    %8422 = vmatpush1.bf16.msra.mxu0 %v6895
    %8423 = vmatprep.subr.bf16.mxu0 %v6878
    %8424 = vmatpush1.bf16.msra.mxu0 %v6877
    %8425 = vmatprep.subr.bf16.mxu0 %v6860
    %8426 = vmatpush1.bf16.msra.mxu0 %v6859
    %8427 = vmatprep.subr.bf16.mxu0 %v6842
    %8428 = vmatpush1.bf16.msra.mxu0 %v6841
    %8429 = vmatprep.subr.bf16.mxu0 %v6824
    %8430 = vmatpush1.bf16.msra.mxu0 %v6823
    %8431 = vmatprep.subr.bf16.mxu0 %v6806
    %8432 = vmatpush1.bf16.msra.mxu0 %v6805
    %8433 = vmatprep.subr.bf16.mxu0 %v6788
    %8434 = vmatpush1.bf16.msra.mxu0 %v6787
    %8435 = vmatprep.subr.bf16.mxu0 %v7058
    %8436 = vmatpush2.bf16.msra.mxu0 %v7057
    %8437 = vmatprep.subr.bf16.mxu0 %v7040
    %8438 = vmatpush2.bf16.msra.mxu0 %v7039
    %8439 = vmatprep.subr.bf16.mxu0 %v7022
    %8440 = vmatpush2.bf16.msra.mxu0 %v7021
    %8441 = vmatprep.subr.bf16.mxu0 %v7004
    %8442 = vmatpush2.bf16.msra.mxu0 %v7003
    %8443 = vmatprep.subr.bf16.mxu0 %v6986
    %8444 = vmatpush2.bf16.msra.mxu0 %v6985
    %8445 = vmatprep.subr.bf16.mxu0 %v6968
    %8446 = vmatpush2.bf16.msra.mxu0 %v6967
    %8447 = vmatprep.subr.bf16.mxu0 %v6950
    %8448 = vmatpush2.bf16.msra.mxu0 %v6949
    %8449 = vmatprep.subr.bf16.mxu0 %v6932
    %8450 = vmatpush2.bf16.msra.mxu0 %v6931
    %8451 = vmatprep.mubr.bf16.mxu0 %v4372
    %8452 = vmatmul.mubr.bf16.gmra.mxu0 %v4371
    %v8453 = vpop.f32.mrf.mxu0
    %v8454 = vadd.f32 %v5008, %v8453
    %v8455 = vpop.f32.mrf.mxu0
    %v8456 = vadd.f32 %v5012, %v8455
    %v8457 = vpop.f32.mrf.mxu0
    %v8458 = vpop.f32.mrf.mxu0
    %8459 = vdwg.mxu0
    %8460 = vmatprep.subr.bf16.mxu0 %v7202
    %8461 = vmatpush1.bf16.msra.mxu0 %v7201
    %8462 = vmatprep.subr.bf16.mxu0 %v7184
    %8463 = vmatpush1.bf16.msra.mxu0 %v7183
    %8464 = vmatprep.subr.bf16.mxu0 %v7166
    %8465 = vmatpush1.bf16.msra.mxu0 %v7165
    %8466 = vmatprep.subr.bf16.mxu0 %v7148
    %8467 = vmatpush1.bf16.msra.mxu0 %v7147
    %8468 = vmatprep.subr.bf16.mxu0 %v7130
    %8469 = vmatpush1.bf16.msra.mxu0 %v7129
    %8470 = vmatprep.subr.bf16.mxu0 %v7112
    %8471 = vmatpush1.bf16.msra.mxu0 %v7111
    %8472 = vmatprep.subr.bf16.mxu0 %v7094
    %8473 = vmatpush1.bf16.msra.mxu0 %v7093
    %8474 = vmatprep.subr.bf16.mxu0 %v7076
    %8475 = vmatpush1.bf16.msra.mxu0 %v7075
    %8476 = vmatprep.subr.bf16.mxu0 %v7346
    %8477 = vmatpush2.bf16.msra.mxu0 %v7345
    %8478 = vmatprep.subr.bf16.mxu0 %v7328
    %8479 = vmatpush2.bf16.msra.mxu0 %v7327
    %8480 = vmatprep.subr.bf16.mxu0 %v7310
    %8481 = vmatpush2.bf16.msra.mxu0 %v7309
    %8482 = vmatprep.subr.bf16.mxu0 %v7292
    %8483 = vmatpush2.bf16.msra.mxu0 %v7291
    %8484 = vmatprep.subr.bf16.mxu0 %v7274
    %8485 = vmatpush2.bf16.msra.mxu0 %v7273
    %8486 = vmatprep.subr.bf16.mxu0 %v7256
    %8487 = vmatpush2.bf16.msra.mxu0 %v7255
    %8488 = vmatprep.subr.bf16.mxu0 %v7238
    %8489 = vmatpush2.bf16.msra.mxu0 %v7237
    %8490 = vmatprep.subr.bf16.mxu0 %v7220
    %8491 = vmatpush2.bf16.msra.mxu0 %v7219
    %8492 = vmatprep.mubr.bf16.mxu0 %v4374
    %8493 = vmatmul.mubr.bf16.gmra.mxu0 %v4373
    %v8494 = vpop.f32.mrf.mxu0
    %v8495 = vadd.f32 %v8454, %v8494
    %v8496 = vpop.f32.mrf.mxu0
    %v8497 = vadd.f32 %v8456, %v8496
    %v8498 = vpop.f32.mrf.mxu0
    %v8499 = vpop.f32.mrf.mxu0
    %8500 = vdwg.mxu0
    %8501 = vmatprep.subr.bf16.mxu0 %v6916
    %8502 = vmatpush1.bf16.msra.mxu0 %v6915
    %8503 = vmatprep.subr.bf16.mxu0 %v6898
    %8504 = vmatpush1.bf16.msra.mxu0 %v6897
    %8505 = vmatprep.subr.bf16.mxu0 %v6880
    %8506 = vmatpush1.bf16.msra.mxu0 %v6879
    %8507 = vmatprep.subr.bf16.mxu0 %v6862
    %8508 = vmatpush1.bf16.msra.mxu0 %v6861
    %8509 = vmatprep.subr.bf16.mxu0 %v6844
    %8510 = vmatpush1.bf16.msra.mxu0 %v6843
    %8511 = vmatprep.subr.bf16.mxu0 %v6826
    %8512 = vmatpush1.bf16.msra.mxu0 %v6825
    %8513 = vmatprep.subr.bf16.mxu0 %v6808
    %8514 = vmatpush1.bf16.msra.mxu0 %v6807
    %8515 = vmatprep.subr.bf16.mxu0 %v6790
    %8516 = vmatpush1.bf16.msra.mxu0 %v6789
    %8517 = vmatprep.subr.bf16.mxu0 %v7060
    %8518 = vmatpush2.bf16.msra.mxu0 %v7059
    %8519 = vmatprep.subr.bf16.mxu0 %v7042
    %8520 = vmatpush2.bf16.msra.mxu0 %v7041
    %8521 = vmatprep.subr.bf16.mxu0 %v7024
    %8522 = vmatpush2.bf16.msra.mxu0 %v7023
    %8523 = vmatprep.subr.bf16.mxu0 %v7006
    %8524 = vmatpush2.bf16.msra.mxu0 %v7005
    %8525 = vmatprep.subr.bf16.mxu0 %v6988
    %8526 = vmatpush2.bf16.msra.mxu0 %v6987
    %8527 = vmatprep.subr.bf16.mxu0 %v6970
    %8528 = vmatpush2.bf16.msra.mxu0 %v6969
    %8529 = vmatprep.subr.bf16.mxu0 %v6952
    %8530 = vmatpush2.bf16.msra.mxu0 %v6951
    %8531 = vmatprep.subr.bf16.mxu0 %v6934
    %8532 = vmatpush2.bf16.msra.mxu0 %v6933
    %8533 = vmatprep.mubr.bf16.mxu0 %v4372
    %8534 = vmatmul.mubr.bf16.gmra.mxu0 %v4371
    %v8535 = vpop.f32.mrf.mxu0
    %v8536 = vadd.f32 %v5016, %v8535
    %v8537 = vpop.f32.mrf.mxu0
    %v8538 = vadd.f32 %v5020, %v8537
    %v8539 = vpop.f32.mrf.mxu0
    %v8540 = vpop.f32.mrf.mxu0
    %8541 = vdwg.mxu0
    %8542 = vmatprep.subr.bf16.mxu0 %v7204
    %8543 = vmatpush1.bf16.msra.mxu0 %v7203
    %8544 = vmatprep.subr.bf16.mxu0 %v7186
    %8545 = vmatpush1.bf16.msra.mxu0 %v7185
    %8546 = vmatprep.subr.bf16.mxu0 %v7168
    %8547 = vmatpush1.bf16.msra.mxu0 %v7167
    %8548 = vmatprep.subr.bf16.mxu0 %v7150
    %8549 = vmatpush1.bf16.msra.mxu0 %v7149
    %8550 = vmatprep.subr.bf16.mxu0 %v7132
    %8551 = vmatpush1.bf16.msra.mxu0 %v7131
    %8552 = vmatprep.subr.bf16.mxu0 %v7114
    %8553 = vmatpush1.bf16.msra.mxu0 %v7113
    %8554 = vmatprep.subr.bf16.mxu0 %v7096
    %8555 = vmatpush1.bf16.msra.mxu0 %v7095
    %8556 = vmatprep.subr.bf16.mxu0 %v7078
    %8557 = vmatpush1.bf16.msra.mxu0 %v7077
    %8558 = vmatprep.subr.bf16.mxu0 %v7348
    %8559 = vmatpush2.bf16.msra.mxu0 %v7347
    %8560 = vmatprep.subr.bf16.mxu0 %v7330
    %8561 = vmatpush2.bf16.msra.mxu0 %v7329
    %8562 = vmatprep.subr.bf16.mxu0 %v7312
    %8563 = vmatpush2.bf16.msra.mxu0 %v7311
    %8564 = vmatprep.subr.bf16.mxu0 %v7294
    %8565 = vmatpush2.bf16.msra.mxu0 %v7293
    %8566 = vmatprep.subr.bf16.mxu0 %v7276
    %8567 = vmatpush2.bf16.msra.mxu0 %v7275
    %8568 = vmatprep.subr.bf16.mxu0 %v7258
    %8569 = vmatpush2.bf16.msra.mxu0 %v7257
    %8570 = vmatprep.subr.bf16.mxu0 %v7240
    %8571 = vmatpush2.bf16.msra.mxu0 %v7239
    %8572 = vmatprep.subr.bf16.mxu0 %v7222
    %8573 = vmatpush2.bf16.msra.mxu0 %v7221
    %8574 = vmatprep.mubr.bf16.mxu0 %v4374
    %8575 = vmatmul.mubr.bf16.gmra.mxu0 %v4373
    %v8576 = vpop.f32.mrf.mxu0
    %v8577 = vadd.f32 %v8536, %v8576
    %v8578 = vpop.f32.mrf.mxu0
    %v8579 = vadd.f32 %v8538, %v8578
    %v8580 = vpop.f32.mrf.mxu0
    %v8581 = vpop.f32.mrf.mxu0
    %8582 = vdwg.mxu0
    %8583 = vmatprep.subr.bf16.mxu0 %v6918
    %8584 = vmatpush1.bf16.msra.mxu0 %v6917
    %8585 = vmatprep.subr.bf16.mxu0 %v6900
    %8586 = vmatpush1.bf16.msra.mxu0 %v6899
    %8587 = vmatprep.subr.bf16.mxu0 %v6882
    %8588 = vmatpush1.bf16.msra.mxu0 %v6881
    %8589 = vmatprep.subr.bf16.mxu0 %v6864
    %8590 = vmatpush1.bf16.msra.mxu0 %v6863
    %8591 = vmatprep.subr.bf16.mxu0 %v6846
    %8592 = vmatpush1.bf16.msra.mxu0 %v6845
    %8593 = vmatprep.subr.bf16.mxu0 %v6828
    %8594 = vmatpush1.bf16.msra.mxu0 %v6827
    %8595 = vmatprep.subr.bf16.mxu0 %v6810
    %8596 = vmatpush1.bf16.msra.mxu0 %v6809
    %8597 = vmatprep.subr.bf16.mxu0 %v6792
    %8598 = vmatpush1.bf16.msra.mxu0 %v6791
    %8599 = vmatprep.subr.bf16.mxu0 %v7062
    %8600 = vmatpush2.bf16.msra.mxu0 %v7061
    %8601 = vmatprep.subr.bf16.mxu0 %v7044
    %8602 = vmatpush2.bf16.msra.mxu0 %v7043
    %8603 = vmatprep.subr.bf16.mxu0 %v7026
    %8604 = vmatpush2.bf16.msra.mxu0 %v7025
    %8605 = vmatprep.subr.bf16.mxu0 %v7008
    %8606 = vmatpush2.bf16.msra.mxu0 %v7007
    %8607 = vmatprep.subr.bf16.mxu0 %v6990
    %8608 = vmatpush2.bf16.msra.mxu0 %v6989
    %8609 = vmatprep.subr.bf16.mxu0 %v6972
    %8610 = vmatpush2.bf16.msra.mxu0 %v6971
    %8611 = vmatprep.subr.bf16.mxu0 %v6954
    %8612 = vmatpush2.bf16.msra.mxu0 %v6953
    %8613 = vmatprep.subr.bf16.mxu0 %v6936
    %8614 = vmatpush2.bf16.msra.mxu0 %v6935
    %8615 = vmatprep.mubr.bf16.mxu0 %v4372
    %8616 = vmatmul.mubr.bf16.gmra.mxu0 %v4371
    %v8617 = vpop.f32.mrf.mxu0
    %v8618 = vadd.f32 %v5024, %v8617
    %v8619 = vpop.f32.mrf.mxu0
    %v8620 = vadd.f32 %v5028, %v8619
    %v8621 = vpop.f32.mrf.mxu0
    %v8622 = vpop.f32.mrf.mxu0
    %8623 = vdwg.mxu0
    %8624 = vmatprep.subr.bf16.mxu0 %v7206
    %8625 = vmatpush1.bf16.msra.mxu0 %v7205
    %8626 = vmatprep.subr.bf16.mxu0 %v7188
    %8627 = vmatpush1.bf16.msra.mxu0 %v7187
    %8628 = vmatprep.subr.bf16.mxu0 %v7170
    %8629 = vmatpush1.bf16.msra.mxu0 %v7169
    %8630 = vmatprep.subr.bf16.mxu0 %v7152
    %8631 = vmatpush1.bf16.msra.mxu0 %v7151
    %8632 = vmatprep.subr.bf16.mxu0 %v7134
    %8633 = vmatpush1.bf16.msra.mxu0 %v7133
    %8634 = vmatprep.subr.bf16.mxu0 %v7116
    %8635 = vmatpush1.bf16.msra.mxu0 %v7115
    %8636 = vmatprep.subr.bf16.mxu0 %v7098
    %8637 = vmatpush1.bf16.msra.mxu0 %v7097
    %8638 = vmatprep.subr.bf16.mxu0 %v7080
    %8639 = vmatpush1.bf16.msra.mxu0 %v7079
    %8640 = vmatprep.subr.bf16.mxu0 %v7350
    %8641 = vmatpush2.bf16.msra.mxu0 %v7349
    %8642 = vmatprep.subr.bf16.mxu0 %v7332
    %8643 = vmatpush2.bf16.msra.mxu0 %v7331
    %8644 = vmatprep.subr.bf16.mxu0 %v7314
    %8645 = vmatpush2.bf16.msra.mxu0 %v7313
    %8646 = vmatprep.subr.bf16.mxu0 %v7296
    %8647 = vmatpush2.bf16.msra.mxu0 %v7295
    %8648 = vmatprep.subr.bf16.mxu0 %v7278
    %8649 = vmatpush2.bf16.msra.mxu0 %v7277
    %8650 = vmatprep.subr.bf16.mxu0 %v7260
    %8651 = vmatpush2.bf16.msra.mxu0 %v7259
    %8652 = vmatprep.subr.bf16.mxu0 %v7242
    %8653 = vmatpush2.bf16.msra.mxu0 %v7241
    %8654 = vmatprep.subr.bf16.mxu0 %v7224
    %8655 = vmatpush2.bf16.msra.mxu0 %v7223
    %8656 = vmatprep.mubr.bf16.mxu0 %v4374
    %8657 = vmatmul.mubr.bf16.gmra.mxu0 %v4373
    %v8658 = vpop.f32.mrf.mxu0
    %v8659 = vadd.f32 %v8618, %v8658
    %v8660 = vpop.f32.mrf.mxu0
    %v8661 = vadd.f32 %v8620, %v8660
    %v8662 = vpop.f32.mrf.mxu0
    %v8663 = vpop.f32.mrf.mxu0
    %8664 = vdwg.mxu0
    %v8665 = vtanh.pop %v8003
    %v8666 = vtanh.pop %v8005
    %v8667 = vtanh.pop %v8085
    %v8668 = vtanh.pop %v8087
    %v8669 = vtanh.pop %v8167
    %v8670 = vtanh.pop %v8169
    %v8671 = vtanh.pop %v8249
    %v8672 = vtanh.pop %v8251
    %v8673 = vtanh.pop %v8331
    %v8674 = vtanh.pop %v8333
    %v8675 = vtanh.pop %v8413
    %v8676 = vtanh.pop %v8415
    %v8677 = vtanh.pop %v8495
    %v8678 = vtanh.pop %v8497
    %v8679 = vtanh.pop %v8577
    %v8680 = vtanh.pop %v8579
    %v8681 = vtanh.pop %v8659
    %v8682 = vtanh.pop %v8661
    %8683 = vst [vmem:[#allocation11] sm:$0xff] %v8665
    %8684 = vst [vmem:[#allocation11 + $0x8] sm:$0xff] %v8666
    %8685 = vst [vmem:[#allocation11 + $0x10] sm:$0xff] %v8667
    %8686 = vst [vmem:[#allocation11 + $0x18] sm:$0xff] %v8668
    %8687 = vst [vmem:[#allocation11 + $0x20] sm:$0xff] %v8669
    %8688 = vst [vmem:[#allocation11 + $0x28] sm:$0xff] %v8670
    %8689 = vst [vmem:[#allocation11 + $0x30] sm:$0xff] %v8671
    %8690 = vst [vmem:[#allocation11 + $0x38] sm:$0xff] %v8672
    %8691 = vst [vmem:[#allocation11 + $0x40] sm:$0xff] %v8673
    %8692 = vst [vmem:[#allocation11 + $0x48] sm:$0xff] %v8674
    %8693 = vst [vmem:[#allocation11 + $0x50] sm:$0xff] %v8675
    %8694 = vst [vmem:[#allocation11 + $0x58] sm:$0xff] %v8676
    %8695 = vst [vmem:[#allocation11 + $0x60] sm:$0xff] %v8677
    %8696 = vst [vmem:[#allocation11 + $0x68] sm:$0xff] %v8678
    %8697 = vst [vmem:[#allocation11 + $0x70] sm:$0xff] %v8679
    %8698 = vst [vmem:[#allocation11 + $0x78] sm:$0xff] %v8680
    %8699 = vst [vmem:[#allocation11 + $0x80] sm:$0xff] %v8681
    %8700 = vst [vmem:[#allocation11 + $0x88] sm:$0xff] %v8682
    // Predicated region
    $region42: #{tpu_custom_call.1} parent=1 // pred_check
      _
    $region43: #{tpu_custom_call.1} parent=1 // pred_check_branch
      %8702 = sbr.rel (0) target = $region45
    $region44: #{tpu_custom_call.1} parent=1 // pred_region
      %s8704 = ssub.s32 2304, 2304
      %8705 = vsyncadd [#allocation4], %s8704
      %s8707 = sshll.u32 [#allocation11], 4
      %s8708 = int_to_ptr.vmem [resolvable:$true] %s8707
      %8710 = dma.vmem_to_hbm [thread:$0]  %s8708, 2304, %s5, [#allocation4]
    $region45: #{tpu_custom_call.1} parent=1 // pred_fallthru
      _
    // Predicated region
    $region46: #{tpu_custom_call.1} parent=1 // pred_check
      _
    $region47: #{tpu_custom_call.1} parent=1 // pred_check_branch
      %8712 = sbr.rel (0) target = $region49
    $region48: #{tpu_custom_call.1} parent=1 // pred_region
      %8713 = dma.done [#allocation4], 2304
    $region49: #{tpu_custom_call.1} parent=1 // pred_fallthru
      _
    %8714 = vsyncpa [#allocation3], 1
    %8715 = vsyncpa [#allocation6], 1
    %8716 = vsyncpa [#allocation9], 1
    %8717 = vsyncpa [#allocation4], 1

</llo_original>
